<compile_context>
chip_gen: v7x
topology: tpu7x:2x2x1
jax: 0.10.0
libtpu: 0.0.40
codegen_flags: <defaults>
</compile_context>

<pallas_src>
import math
import jax
import jax.numpy as jnp
from jax.experimental import pallas as pl
from jax.experimental.pallas import tpu as pltpu

HIDDEN = 768
FFN = 3072
LN_EPS = 1e-5
INV_SQRT2 = 1.0 / math.sqrt(2.0)


def fused_kernel(x229_ref, x196_ref, gamma_ref, beta_ref, w_ref, b_ref, o_ref):
    # dropout (eval mode) -> identity; residual add
    x = x229_ref[...] + x196_ref[...]

    # LayerNorm over the hidden dim, elementwise affine (computed once per row tile)
    mean = jnp.mean(x, axis=-1, keepdims=True)
    cent = x - mean
    var = jnp.mean(cent * cent, axis=-1, keepdims=True)
    xn = cent * jax.lax.rsqrt(var + LN_EPS)
    xn = xn * gamma_ref[...] + beta_ref[...]

    # Linear 768 -> 3072: bf16 operands on the MXU, f32 accumulate, f32 bias add
    y = jnp.dot(xn.astype(jnp.bfloat16), w_ref[...],
                preferred_element_type=jnp.float32) + b_ref[...]

    # exact (erf-based) GELU, matching torch._C._nn.gelu default
    o_ref[...] = 0.5 * y * (1.0 + jax.lax.erf(y * INV_SQRT2))


def fused_forward(x229, x196, gamma, beta, w, b, *, tm=None):
    """x229, x196: (B, S, H) f32. w: (H, FFN). Returns (B, S, FFN) f32."""
    B, S, H = x229.shape
    assert H == HIDDEN and w.shape == (HIDDEN, FFN)
    M = B * S

    if tm is None:
        # Prefer >=4 grid steps (v7x megacore split) with MXU-friendly row tiles.
        tm = 128 if M >= 512 else (64 if M >= 64 else 8)

    M_pad = pl.cdiv(M, tm) * tm

    x229_2d = x229.reshape(M, H)
    x196_2d = x196.reshape(M, H)
    if M_pad != M:
        pad = ((0, M_pad - M), (0, 0))
        x229_2d = jnp.pad(x229_2d, pad)
        x196_2d = jnp.pad(x196_2d, pad)

    gamma_2d = gamma.reshape(1, H).astype(jnp.float32)
    beta_2d = beta.reshape(1, H).astype(jnp.float32)
    w_bf16 = w.astype(jnp.bfloat16)            # 4.5 MB, VMEM-resident across the grid
    b_2d = b.reshape(1, FFN).astype(jnp.float32)

    out = pl.pallas_call(
        fused_kernel,
        out_shape=jax.ShapeDtypeStruct((M_pad, FFN), jnp.float32),
        grid_spec=pltpu.PrefetchScalarGridSpec(
            num_scalar_prefetch=0,
            grid=(M_pad // tm,),
            in_specs=[
                pl.BlockSpec((tm, H), lambda i: (i, 0)),    # x229 row tile
                pl.BlockSpec((tm, H), lambda i: (i, 0)),    # x196 row tile
                pl.BlockSpec((1, H), lambda i: (0, 0)),     # gamma (constant)
                pl.BlockSpec((1, H), lambda i: (0, 0)),     # beta  (constant)
                pl.BlockSpec((H, FFN), lambda i: (0, 0)),   # W bf16, resident (constant)
                pl.BlockSpec((1, FFN), lambda i: (0, 0)),   # bias  (constant)
            ],
            out_specs=pl.BlockSpec((tm, FFN), lambda i: (i, 0)),
        ),
        compiler_params=pltpu.CompilerParams(
            dimension_semantics=("parallel",),
            vmem_limit_bytes=48 * 1024 * 1024,
        ),
    )(x229_2d, x196_2d, gamma_2d, beta_2d, w_bf16, b_2d)

    return out[:M].reshape(B, S, FFN)


def reference_forward(x229, x196, gamma, beta, w, b):
    x = x229 + x196
    mean = jnp.mean(x, axis=-1, keepdims=True)
    var = jnp.mean((x - mean) ** 2, axis=-1, keepdims=True)
    xn = (x - mean) * jax.lax.rsqrt(var + LN_EPS)
    xn = xn * gamma + beta
    y = jnp.einsum("bsh,hf->bsf", xn, w) + b
    return 0.5 * y * (1.0 + jax.lax.erf(y * INV_SQRT2))


if __name__ == "__main__":
    key = jax.random.PRNGKey(0)
    k1, k2, k3, k4, k5, k6 = jax.random.split(key, 6)

    # small shapes consistent with the module's (1, 384, 768) usage
    B, S = 1, 256
    x229 = jax.random.normal(k1, (B, S, HIDDEN), dtype=jnp.float32)
    x196 = jax.random.normal(k2, (B, S, HIDDEN), dtype=jnp.float32)

    # deterministic synthetic parameters (shapes from module __init__)
    gamma = 1.0 + 0.02 * jax.random.normal(k3, (HIDDEN,), dtype=jnp.float32)
    beta = 0.02 * jax.random.normal(k4, (HIDDEN,), dtype=jnp.float32)
    # torch Linear weight is (out, in) = (3072, 768); kernel uses transposed (768, 3072)
    w = (jax.random.normal(k5, (HIDDEN, FFN), dtype=jnp.float32)
         * (1.0 / math.sqrt(HIDDEN)))
    b = 0.02 * jax.random.normal(k6, (FFN,), dtype=jnp.float32)

    out = fused_forward(x229, x196, gamma, beta, w, b)
    out = jax.block_until_ready(out)

    ref = reference_forward(x229, x196, gamma, beta, w, b)
    assert out.shape == (B, S, FFN)
    # tolerance loosened vs pure-f32 because matmul operands are bf16
    assert jnp.allclose(out, ref, atol=3e-2, rtol=3e-2), "mismatch vs reference"

    print("KERNEL_OK")
</pallas_src>

<mosaic_0001>
module attributes {stable_mosaic.version = 11 : i64} {
  func.func @fused_kernel(%arg0: i32, %arg1: memref<64x768xf32, #tpu.memory_space<vmem>>, %arg2: memref<64x768xf32, #tpu.memory_space<vmem>>, %arg3: memref<1x768xf32, #tpu.memory_space<vmem>>, %arg4: memref<1x768xf32, #tpu.memory_space<vmem>>, %arg5: memref<768x3072xbf16, #tpu.memory_space<vmem>>, %arg6: memref<1x3072xf32, #tpu.memory_space<vmem>>, %arg7: memref<64x3072xf32, #tpu.memory_space<vmem>>) attributes {dimension_semantics = [#tpu.dimension_semantics<parallel>], iteration_bounds = array<i64: 4>, scalar_prefetch = 0 : i64, scratch_operands = 0 : i64, tpu.core_type = #tpu.core_type<tc>, window_params = [{transform_indices = @transform_0, window_bounds = array<i64: 64, 768>}, {transform_indices = @transform_1, window_bounds = array<i64: 64, 768>}, {pipeline_mode = #tpu.pipeline_mode<synchronous>, transform_indices = @transform_2, window_bounds = array<i64: 1, 768>}, {pipeline_mode = #tpu.pipeline_mode<synchronous>, transform_indices = @transform_3, window_bounds = array<i64: 1, 768>}, {pipeline_mode = #tpu.pipeline_mode<synchronous>, transform_indices = @transform_4, window_bounds = array<i64: 768, 3072>}, {pipeline_mode = #tpu.pipeline_mode<synchronous>, transform_indices = @transform_5, window_bounds = array<i64: 1, 3072>}, {transform_indices = @transform_6, window_bounds = array<i64: 64, 3072>}]} {
    %c0 = arith.constant 0 : index
    %c0_0 = arith.constant 0 : index
    %0 = vector.load %arg1[%c0, %c0_0] : memref<64x768xf32, #tpu.memory_space<vmem>>, vector<64x768xf32>
    %c0_1 = arith.constant 0 : index
    %c0_2 = arith.constant 0 : index
    %1 = vector.load %arg2[%c0_1, %c0_2] : memref<64x768xf32, #tpu.memory_space<vmem>>, vector<64x768xf32>
    %2 = arith.addf %0, %1 : vector<64x768xf32>
    %cst = arith.constant dense<0.000000e+00> : vector<64xf32>
    %3 = vector.multi_reduction <add>, %2, %cst [1] : vector<64x768xf32> to vector<64xf32>
    %4 = vector.shape_cast %3 : vector<64xf32> to vector<64x1xf32>
    %cst_3 = arith.constant 7.680000e+02 : f32
    %5 = vector.broadcast %cst_3 : f32 to vector<64x1xf32>
    %6 = arith.divf %4, %5 : vector<64x1xf32>
    %7 = vector.broadcast %6 : vector<64x1xf32> to vector<64x768xf32>
    %8 = arith.subf %2, %7 : vector<64x768xf32>
    %9 = arith.mulf %8, %8 : vector<64x768xf32>
    %cst_4 = arith.constant dense<0.000000e+00> : vector<64xf32>
    %10 = vector.multi_reduction <add>, %9, %cst_4 [1] : vector<64x768xf32> to vector<64xf32>
    %11 = vector.shape_cast %10 : vector<64xf32> to vector<64x1xf32>
    %cst_5 = arith.constant 7.680000e+02 : f32
    %12 = vector.broadcast %cst_5 : f32 to vector<64x1xf32>
    %13 = arith.divf %11, %12 : vector<64x1xf32>
    %cst_6 = arith.constant 9.99999974E-6 : f32
    %14 = vector.broadcast %cst_6 : f32 to vector<64x1xf32>
    %15 = arith.addf %13, %14 : vector<64x1xf32>
    %16 = math.rsqrt %15 : vector<64x1xf32>
    %17 = vector.broadcast %16 : vector<64x1xf32> to vector<64x768xf32>
    %18 = arith.mulf %8, %17 : vector<64x768xf32>
    %c0_7 = arith.constant 0 : index
    %c0_8 = arith.constant 0 : index
    %19 = vector.load %arg3[%c0_7, %c0_8] : memref<1x768xf32, #tpu.memory_space<vmem>>, vector<1x768xf32>
    %20 = vector.broadcast %19 : vector<1x768xf32> to vector<64x768xf32>
    %21 = arith.mulf %18, %20 : vector<64x768xf32>
    %c0_9 = arith.constant 0 : index
    %c0_10 = arith.constant 0 : index
    %22 = vector.load %arg4[%c0_9, %c0_10] : memref<1x768xf32, #tpu.memory_space<vmem>>, vector<1x768xf32>
    %23 = vector.broadcast %22 : vector<1x768xf32> to vector<64x768xf32>
    %24 = arith.addf %21, %23 : vector<64x768xf32>
    %25 = arith.truncf %24 : vector<64x768xf32> to vector<64x768xbf16>
    %c0_11 = arith.constant 0 : index
    %c0_12 = arith.constant 0 : index
    %26 = vector.load %arg5[%c0_11, %c0_12] : memref<768x3072xbf16, #tpu.memory_space<vmem>>, vector<768x3072xbf16>
    %cst_13 = arith.constant dense<0.000000e+00> : vector<64x3072xf32>
    %27 = tpu.matmul %25, %26, %cst_13 {dimension_numbers = #tpu.dot_dimension_numbers<[1], [0], [0], [1], [0, 0, 1, 1], [], []>} : vector<64x768xbf16>, vector<768x3072xbf16>, vector<64x3072xf32> -> vector<64x3072xf32>
    %c0_14 = arith.constant 0 : index
    %c0_15 = arith.constant 0 : index
    %28 = vector.load %arg6[%c0_14, %c0_15] : memref<1x3072xf32, #tpu.memory_space<vmem>>, vector<1x3072xf32>
    %29 = vector.broadcast %28 : vector<1x3072xf32> to vector<64x3072xf32>
    %30 = arith.addf %27, %29 : vector<64x3072xf32>
    %cst_16 = arith.constant 5.000000e-01 : f32
    %31 = vector.broadcast %cst_16 : f32 to vector<64x3072xf32>
    %32 = arith.mulf %31, %30 : vector<64x3072xf32>
    %cst_17 = arith.constant 0.707106769 : f32
    %33 = vector.broadcast %cst_17 : f32 to vector<64x3072xf32>
    %34 = arith.mulf %30, %33 : vector<64x3072xf32>
    %35 = math.erf %34 : vector<64x3072xf32>
    %cst_18 = arith.constant 1.000000e+00 : f32
    %36 = vector.broadcast %cst_18 : f32 to vector<64x3072xf32>
    %37 = arith.addf %36, %35 : vector<64x3072xf32>
    %38 = arith.mulf %32, %37 : vector<64x3072xf32>
    %c0_19 = arith.constant 0 : index
    %c0_20 = arith.constant 0 : index
    %39 = vector.load %arg7[%c0_19, %c0_20] : memref<64x3072xf32, #tpu.memory_space<vmem>>, vector<64x3072xf32>
    tpu.vector_store %arg7[%c0_19, %c0_20], %38 {strides = array<i32>} : memref<64x3072xf32, #tpu.memory_space<vmem>>, vector<64x3072xf32>,
    return
  }
  func.func @transform_0(%arg0: i32) -> (i32, i32) {
    %c0_i32 = arith.constant 0 : i32
    %c0_i32_0 = arith.constant 0 : i32
    return %arg0, %c0_i32 : i32, i32
  }
  func.func @transform_1(%arg0: i32) -> (i32, i32) {
    %c0_i32 = arith.constant 0 : i32
    %c0_i32_0 = arith.constant 0 : i32
    return %arg0, %c0_i32 : i32, i32
  }
  func.func @transform_2(%arg0: i32) -> (i32, i32) {
    %c0_i32 = arith.constant 0 : i32
    %c0_i32_0 = arith.constant 0 : i32
    %c0_i32_1 = arith.constant 0 : i32
    return %c0_i32, %c0_i32_0 : i32, i32
  }
  func.func @transform_3(%arg0: i32) -> (i32, i32) {
    %c0_i32 = arith.constant 0 : i32
    %c0_i32_0 = arith.constant 0 : i32
    %c0_i32_1 = arith.constant 0 : i32
    return %c0_i32, %c0_i32_0 : i32, i32
  }
  func.func @transform_4(%arg0: i32) -> (i32, i32) {
    %c0_i32 = arith.constant 0 : i32
    %c0_i32_0 = arith.constant 0 : i32
    %c0_i32_1 = arith.constant 0 : i32
    return %c0_i32, %c0_i32_0 : i32, i32
  }
  func.func @transform_5(%arg0: i32) -> (i32, i32) {
    %c0_i32 = arith.constant 0 : i32
    %c0_i32_0 = arith.constant 0 : i32
    %c0_i32_1 = arith.constant 0 : i32
    return %c0_i32, %c0_i32_0 : i32, i32
  }
  func.func @transform_6(%arg0: i32) -> (i32, i32) {
    %c0_i32 = arith.constant 0 : i32
    %c0_i32_0 = arith.constant 0 : i32
    return %arg0, %c0_i32 : i32, i32
  }
}

</mosaic_0001>

<llo_original>
// kernel: tpu_custom_call.1
$region0: #{tpu_custom_call.1}
  #allocation0 [shape = 'u32[]', space=smem, size = 0x4, offset = 0x4, fixed_abs, tag = 'smem constant byte address 0x4 - core index']
  #allocation1 [shape = 'u32[144,128]{1,0:T(1,128)}', space=vmem, size = 0x12000, scoped, tag = 'internal scratch']
  %s0 = inlined_call_operand.hbm [shape: f32[256,768], index: 0, kind: input, shape index: {}]
  %s1 = inlined_call_operand.hbm [shape: f32[256,768], index: 1, kind: input, shape index: {}]
  %s2 = inlined_call_operand.hbm [shape: f32[1,768], index: 2, kind: input, shape index: {}]
  %s3 = inlined_call_operand.hbm [shape: f32[1,768], index: 3, kind: input, shape index: {}]
  %s4 = inlined_call_operand.hbm [shape: bf16[768,3072], index: 4, kind: input, shape index: {}]
  %s5 = inlined_call_operand.hbm [shape: f32[1,3072], index: 5, kind: input, shape index: {}]
  %s6 = inlined_call_operand.hbm [shape: f32[256,3072], index: 6, kind: output, shape index: {}]
  %s7 = sld [smem:[#allocation0]]
  $region81: #{tpu_custom_call.1} parent=0
    _
  %s9 = ssub.s32 1, %s7
  %s10 = scalar_select 0, %s9, %s7
  $region1: #{tpu_custom_call.1} parent=0
    #allocation2 [shape = 'u8[393216]{0}', space=vmem, size = 0x60000, scoped, tag = 'input window, operand 0']
    #allocation3 [shape = 's32[2]{0}', space=sflag, size = 0x8, scoped, tag = 'scoped memory for tpu_custom_call.1']
    #allocation4 [shape = 's32[2]{0}', space=sflag, size = 0x8, scoped, tag = 'scoped memory for tpu_custom_call.1']
    #allocation5 [shape = 'u8[393216]{0}', space=vmem, size = 0x60000, scoped, tag = 'input window, operand 1']
    #allocation6 [shape = 's32[2]{0}', space=sflag, size = 0x8, scoped, tag = 'scoped memory for tpu_custom_call.1']
    #allocation7 [shape = 'u8[3072]{0}', space=vmem, size = 0xc00, scoped, tag = 'input window, operand 2, single buffered']
    #allocation8 [shape = 'u8[3072]{0}', space=vmem, size = 0xc00, scoped, tag = 'input window, operand 3, single buffered']
    #allocation9 [shape = 's32[1]{0}', space=sflag, size = 0x4, scoped, tag = 'scoped memory for tpu_custom_call.1']
    #allocation10 [shape = 'u8[4718592]{0}', space=vmem, size = 0x480000, scoped, tag = 'input window, operand 4, single buffered']
    #allocation11 [shape = 'u8[12288]{0}', space=vmem, size = 0x3000, scoped, tag = 'input window, operand 5, single buffered']
    #allocation12 [shape = 's32[1]{0}', space=sflag, size = 0x4, scoped, tag = 'scoped memory for tpu_custom_call.1']
    #allocation13 [shape = 'u8[1572864]{0}', space=vmem, size = 0x180000, scoped, tag = 'output window, operand 0']
    %11 = vsyncpa [#allocation3], 0
    %s12 = scalar_lea.sflag [#allocation3], 1
    %13 = vsyncpa %s12, 0
    %14 = vsyncpa [#allocation6], 0
    %s15 = scalar_lea.sflag [#allocation6], 1
    %16 = vsyncpa %s15, 0
    %17 = vsyncpa [#allocation9], 0
    %18 = vsyncpa [#allocation12], 0
    %19 = vsyncpa [#allocation4], 0
    %s20 = scalar_lea.sflag [#allocation4], 1
    %21 = vsyncpa %s20, 0
    loop: start=0, step=1, limit=6
    $region2: #{tpu_custom_call.1} parent=1 // loop_pre_header
      _
    $region3: #{tpu_custom_call.1} parent=1 // loop_header
      %s23 = sphi 0, %s27
      %p24 = scmp.ge.s32.totalorder %s23, 6
      %s33 = sphi 0, %s35
      %s36 = sphi 0, %s33
      %s37 = sphi 0, %s36
      %s53 = sphi 0, %s37
      %s59 = sphi 0, %s61
      %s62 = sphi 0, %s59
      %s63 = sphi 0, %s62
      %s79 = sphi 0, %s63
      %s83 = sphi 0, %s83
      %s85 = sphi 0, %s83
      %s86 = sphi 0, %s85
      %s100 = sphi 0, %s86
      %s104 = sphi 0, %s104
      %s106 = sphi 0, %s104
      %s107 = sphi 0, %s106
      %s121 = sphi 0, %s107
      %s125 = sphi 0, %s125
      %s127 = sphi 0, %s125
      %s128 = sphi 0, %s127
      %s142 = sphi 0, %s128
      %s146 = sphi 0, %s146
      %s148 = sphi 0, %s146
      %s149 = sphi 0, %s148
      %s163 = sphi 0, %s149
      %s169 = sphi 0, %s171
      %s172 = sphi 0, %s169
      %s173 = sphi 0, %s172
      %s189 = sphi 0, %s173
    $region4: #{tpu_custom_call.1} parent=1 // loop_header_branch
      %26 = sbr.rel (%p24) target = $region8
    $region5: #{tpu_custom_call.1} parent=1 // loop_body
      %s28 = ssub.s32 %s23, 1
      %s29 = ssub.s32 %s23, 2
      %s30 = sadd.s32 %s23, 1
      %s31 = ssub.s32 %s23, %s30
      %p32 = scmp.eq.s32.totalorder %s31, 0
      %s34 = sadd.s32 %s33, 1
      %s35 = scalar_select %p32, %s33, %s34
      %p38 = pneg %p32
      %p39 = scmp.eq.s32.totalorder %s23, 3
      %p40 = por %p38, %p39
      %p41 = scmp.ne.s32.totalorder %s33, %s36
      %p42 = scmp.eq.s32.totalorder %s23, 0
      %p43 = por %p41, %p42
      %p44 = scmp.ne.s32.totalorder %s33, %s36
      %p45 = scmp.eq.s32.totalorder %s28, 3
      %p46 = por %p44, %p45
      %p47 = scmp.ne.s32.totalorder %s36, %s37
      %p48 = scmp.eq.s32.totalorder %s28, 0
      %p49 = por %p47, %p48
      %p50 = scmp.ne.s32.totalorder %s36, %s37
      %p51 = scmp.eq.s32.totalorder %s29, 3
      %p52 = por %p50, %p51
      %p54 = scmp.ne.s32.totalorder %s37, %s53
      %p55 = scmp.eq.s32.totalorder %s29, 0
      %p56 = por %p54, %p55
      %s57 = ssub.s32 %s23, %s30
      %p58 = scmp.eq.s32.totalorder %s57, 0
      %s60 = sadd.s32 %s59, 1
      %s61 = scalar_select %p58, %s59, %s60
      %p64 = pneg %p58
      %p65 = scmp.eq.s32.totalorder %s23, 3
      %p66 = por %p64, %p65
      %p67 = scmp.ne.s32.totalorder %s59, %s62
      %p68 = scmp.eq.s32.totalorder %s23, 0
      %p69 = por %p67, %p68
      %p70 = scmp.ne.s32.totalorder %s59, %s62
      %p71 = scmp.eq.s32.totalorder %s28, 3
      %p72 = por %p70, %p71
      %p73 = scmp.ne.s32.totalorder %s62, %s63
      %p74 = scmp.eq.s32.totalorder %s28, 0
      %p75 = por %p73, %p74
      %p76 = scmp.ne.s32.totalorder %s62, %s63
      %p77 = scmp.eq.s32.totalorder %s29, 3
      %p78 = por %p76, %p77
      %p80 = scmp.ne.s32.totalorder %s63, %s79
      %p81 = scmp.eq.s32.totalorder %s29, 0
      %p82 = por %p80, %p81
      %s84 = sadd.s32 %s83, 1
      %p87 = scmp.eq.s32.totalorder %s23, 3
      %p88 = scmp.ne.s32.totalorder %s83, %s85
      %p89 = scmp.eq.s32.totalorder %s23, 0
      %p90 = por %p88, %p89
      %p91 = scmp.ne.s32.totalorder %s83, %s85
      %p92 = scmp.eq.s32.totalorder %s28, 3
      %p93 = por %p91, %p92
      %p94 = scmp.ne.s32.totalorder %s85, %s86
      %p95 = scmp.eq.s32.totalorder %s28, 0
      %p96 = por %p94, %p95
      %p97 = scmp.ne.s32.totalorder %s85, %s86
      %p98 = scmp.eq.s32.totalorder %s29, 3
      %p99 = por %p97, %p98
      %p101 = scmp.ne.s32.totalorder %s86, %s100
      %p102 = scmp.eq.s32.totalorder %s29, 0
      %p103 = por %p101, %p102
      %s105 = sadd.s32 %s104, 1
      %p108 = scmp.eq.s32.totalorder %s23, 3
      %p109 = scmp.ne.s32.totalorder %s104, %s106
      %p110 = scmp.eq.s32.totalorder %s23, 0
      %p111 = por %p109, %p110
      %p112 = scmp.ne.s32.totalorder %s104, %s106
      %p113 = scmp.eq.s32.totalorder %s28, 3
      %p114 = por %p112, %p113
      %p115 = scmp.ne.s32.totalorder %s106, %s107
      %p116 = scmp.eq.s32.totalorder %s28, 0
      %p117 = por %p115, %p116
      %p118 = scmp.ne.s32.totalorder %s106, %s107
      %p119 = scmp.eq.s32.totalorder %s29, 3
      %p120 = por %p118, %p119
      %p122 = scmp.ne.s32.totalorder %s107, %s121
      %p123 = scmp.eq.s32.totalorder %s29, 0
      %p124 = por %p122, %p123
      %s126 = sadd.s32 %s125, 1
      %p129 = scmp.eq.s32.totalorder %s23, 3
      %p130 = scmp.ne.s32.totalorder %s125, %s127
      %p131 = scmp.eq.s32.totalorder %s23, 0
      %p132 = por %p130, %p131
      %p133 = scmp.ne.s32.totalorder %s125, %s127
      %p134 = scmp.eq.s32.totalorder %s28, 3
      %p135 = por %p133, %p134
      %p136 = scmp.ne.s32.totalorder %s127, %s128
      %p137 = scmp.eq.s32.totalorder %s28, 0
      %p138 = por %p136, %p137
      %p139 = scmp.ne.s32.totalorder %s127, %s128
      %p140 = scmp.eq.s32.totalorder %s29, 3
      %p141 = por %p139, %p140
      %p143 = scmp.ne.s32.totalorder %s128, %s142
      %p144 = scmp.eq.s32.totalorder %s29, 0
      %p145 = por %p143, %p144
      %s147 = sadd.s32 %s146, 1
      %p150 = scmp.eq.s32.totalorder %s23, 3
      %p151 = scmp.ne.s32.totalorder %s146, %s148
      %p152 = scmp.eq.s32.totalorder %s23, 0
      %p153 = por %p151, %p152
      %p154 = scmp.ne.s32.totalorder %s146, %s148
      %p155 = scmp.eq.s32.totalorder %s28, 3
      %p156 = por %p154, %p155
      %p157 = scmp.ne.s32.totalorder %s148, %s149
      %p158 = scmp.eq.s32.totalorder %s28, 0
      %p159 = por %p157, %p158
      %p160 = scmp.ne.s32.totalorder %s148, %s149
      %p161 = scmp.eq.s32.totalorder %s29, 3
      %p162 = por %p160, %p161
      %p164 = scmp.ne.s32.totalorder %s149, %s163
      %p165 = scmp.eq.s32.totalorder %s29, 0
      %p166 = por %p164, %p165
      %s167 = ssub.s32 %s23, %s30
      %p168 = scmp.eq.s32.totalorder %s167, 0
      %s170 = sadd.s32 %s169, 1
      %s171 = scalar_select %p168, %s169, %s170
      %p174 = pneg %p168
      %p175 = scmp.eq.s32.totalorder %s23, 3
      %p176 = por %p174, %p175
      %p177 = scmp.ne.s32.totalorder %s169, %s172
      %p178 = scmp.eq.s32.totalorder %s23, 0
      %p179 = por %p177, %p178
      %p180 = scmp.ne.s32.totalorder %s169, %s172
      %p181 = scmp.eq.s32.totalorder %s28, 3
      %p182 = por %p180, %p181
      %p183 = scmp.ne.s32.totalorder %s172, %s173
      %p184 = scmp.eq.s32.totalorder %s28, 0
      %p185 = por %p183, %p184
      %p186 = scmp.ne.s32.totalorder %s172, %s173
      %p187 = scmp.eq.s32.totalorder %s29, 3
      %p188 = por %p186, %p187
      %p190 = scmp.ne.s32.totalorder %s173, %s189
      %p191 = scmp.eq.s32.totalorder %s29, 0
      %p192 = por %p190, %p191
      %p193 = scmp.le.s32.totalorder 1, %s23
      %p194 = scmp.lt.s32.totalorder %s23, 5
      %p195 = pnand %p193, %p194
      %p196 = pneg %p195
      // Predicated region
      $region9: #{tpu_custom_call.1} parent=5 // pred_check
        _
      $region10: #{tpu_custom_call.1} parent=5 // pred_check_branch
        %198 = sbr.rel (%p195) target = $region12
      $region11: #{tpu_custom_call.1} parent=5 // pred_region
        %s199 = ssub.s32 %s23, 1
        // Predicated region
        $region13: #{tpu_custom_call.1} parent=11 // pred_check
          %p200 = pneg %p96
        $region14: #{tpu_custom_call.1} parent=11 // pred_check_branch
          %202 = sbr.rel (%p200) target = $region16
        $region15: #{tpu_custom_call.1} parent=11 // pred_region
          %s204 = ssub.s32 96, 96
          %205 = vsyncadd [#allocation6], %s204
          %s207 = sshll.u32 [#allocation7], 4
          %s208 = int_to_ptr.vmem [resolvable:$true] %s207
          %210 = dma.hbm_to_vmem [thread:$0]  %s2, 96, %s208, [#allocation6]
        $region16: #{tpu_custom_call.1} parent=11 // pred_fallthru
          _
        // Predicated region
        $region17: #{tpu_custom_call.1} parent=11 // pred_check
          %p211 = pneg %p117
        $region18: #{tpu_custom_call.1} parent=11 // pred_check_branch
          %213 = sbr.rel (%p211) target = $region20
        $region19: #{tpu_custom_call.1} parent=11 // pred_region
          %s215 = ssub.s32 96, 96
          %216 = vsyncadd [#allocation9], %s215
          %s218 = sshll.u32 [#allocation8], 4
          %s219 = int_to_ptr.vmem [resolvable:$true] %s218
          %221 = dma.hbm_to_vmem [thread:$0]  %s3, 96, %s219, [#allocation9]
        $region20: #{tpu_custom_call.1} parent=11 // pred_fallthru
          _
        // Predicated region
        $region21: #{tpu_custom_call.1} parent=11 // pred_check
          %p222 = pneg %p138
        $region22: #{tpu_custom_call.1} parent=11 // pred_check_branch
          %224 = sbr.rel (%p222) target = $region24
        $region23: #{tpu_custom_call.1} parent=11 // pred_region
          %s226 = ssub.s32 147456, 147456
          %227 = vsyncadd [#allocation9], %s226
          %s228 = sshll.u32 [#allocation10], 4
          %s229 = int_to_ptr.vmem [resolvable:$true] %s228
          %234 = dma.hbm_to_vmem [thread:$0]  %s4, 147456, %s229, [#allocation9], 1536, 1536, 96
        $region24: #{tpu_custom_call.1} parent=11 // pred_fallthru
          _
        // Predicated region
        $region25: #{tpu_custom_call.1} parent=11 // pred_check
          %p235 = pneg %p159
        $region26: #{tpu_custom_call.1} parent=11 // pred_check_branch
          %237 = sbr.rel (%p235) target = $region28
        $region27: #{tpu_custom_call.1} parent=11 // pred_region
          %s239 = ssub.s32 384, 384
          %240 = vsyncadd [#allocation12], %s239
          %s242 = sshll.u32 [#allocation11], 4
          %s243 = int_to_ptr.vmem [resolvable:$true] %s242
          %245 = dma.hbm_to_vmem [thread:$0]  %s5, 384, %s243, [#allocation12]
        $region28: #{tpu_custom_call.1} parent=11 // pred_fallthru
          _
      $region12: #{tpu_custom_call.1} parent=5 // pred_fallthru
        _
      %p246 = scmp.lt.s32.totalorder %s23, 4
      // Predicated region
      $region29: #{tpu_custom_call.1} parent=5 // pred_check
        %p247 = pneg %p246
      $region30: #{tpu_custom_call.1} parent=5 // pred_check_branch
        %249 = sbr.rel (%p247) target = $region32
      $region31: #{tpu_custom_call.1} parent=5 // pred_region
        // Predicated region
        $region33: #{tpu_custom_call.1} parent=31 // pred_check
          %p250 = pneg %p43
        $region34: #{tpu_custom_call.1} parent=31 // pred_check_branch
          %252 = sbr.rel (%p250) target = $region36
        $region35: #{tpu_custom_call.1} parent=31 // pred_region
          %s253 = sand.u32 %s33, 1
          %s254 = scalar_lea.sflag [#allocation3], %s253
          %s255 = sand.u32 %s33, 1
          %s256 = smul.addr %s255, 384
          %s257 = scalar_lea.vmem [#allocation2], %s256
          %s258 = smul.u32 8, %s23
          %s260 = ssub.s32 6144, 6144
          %261 = vsyncadd %s254, %s260
          %s262 = smul.addr %s258, 6
          %s263 = smul.addr %s262, 128
          %s264 = scalar_lea.hbm %s0, %s263
          %s265 = sshll.u32 %s257, 4
          %s266 = int_to_ptr.vmem [resolvable:$true] %s265
          %271 = dma.hbm_to_vmem [thread:$0]  %s264, 6144, %s266, %s254, 768, 768, 48
        $region36: #{tpu_custom_call.1} parent=31 // pred_fallthru
          _
        // Predicated region
        $region37: #{tpu_custom_call.1} parent=31 // pred_check
          %p272 = pneg %p69
        $region38: #{tpu_custom_call.1} parent=31 // pred_check_branch
          %274 = sbr.rel (%p272) target = $region40
        $region39: #{tpu_custom_call.1} parent=31 // pred_region
          %s275 = sand.u32 %s23, 1
          %s276 = scalar_lea.sflag [#allocation6], %s275
          %s277 = sand.u32 %s59, 1
          %s278 = smul.addr %s277, 384
          %s279 = scalar_lea.vmem [#allocation5], %s278
          %s280 = smul.u32 8, %s23
          %s282 = ssub.s32 6144, 6144
          %283 = vsyncadd %s276, %s282
          %s284 = smul.addr %s280, 6
          %s285 = smul.addr %s284, 128
          %s286 = scalar_lea.hbm %s1, %s285
          %s287 = sshll.u32 %s279, 4
          %s288 = int_to_ptr.vmem [resolvable:$true] %s287
          %293 = dma.hbm_to_vmem [thread:$0]  %s286, 6144, %s288, %s276, 768, 768, 48
        $region40: #{tpu_custom_call.1} parent=31 // pred_fallthru
          _
      $region32: #{tpu_custom_call.1} parent=5 // pred_fallthru
        _
      %p294 = scmp.le.s32.totalorder 1, %s23
      %p295 = scmp.lt.s32.totalorder %s23, 5
      %p296 = pnand %p294, %p295
      %p297 = pneg %p296
      // Predicated region
      $region41: #{tpu_custom_call.1} parent=5 // pred_check
        _
      $region42: #{tpu_custom_call.1} parent=5 // pred_check_branch
        %299 = sbr.rel (%p296) target = $region44
      $region43: #{tpu_custom_call.1} parent=5 // pred_region
        %s300 = ssub.s32 %s23, 1
        %s301 = sand.u32 %s36, 1
        %s302 = scalar_lea.sflag [#allocation3], %s301
        %s303 = sand.u32 %s36, 1
        %s304 = smul.addr %s303, 384
        %s305 = scalar_lea.vmem [#allocation2], %s304
        // Predicated region
        $region45: #{tpu_custom_call.1} parent=43 // pred_check
          %p306 = pneg %p49
        $region46: #{tpu_custom_call.1} parent=43 // pred_check_branch
          %308 = sbr.rel (%p306) target = $region48
        $region47: #{tpu_custom_call.1} parent=43 // pred_region
          %309 = dma.done %s302, 6144
        $region48: #{tpu_custom_call.1} parent=43 // pred_fallthru
          _
        %s310 = sand.u32 %s28, 1
        %s311 = scalar_lea.sflag [#allocation6], %s310
        %s312 = sand.u32 %s62, 1
        %s313 = smul.addr %s312, 384
        %s314 = scalar_lea.vmem [#allocation5], %s313
        // Predicated region
        $region49: #{tpu_custom_call.1} parent=43 // pred_check
          %p315 = pneg %p75
        $region50: #{tpu_custom_call.1} parent=43 // pred_check_branch
          %317 = sbr.rel (%p315) target = $region52
        $region51: #{tpu_custom_call.1} parent=43 // pred_region
          %318 = dma.done %s311, 6144
        $region52: #{tpu_custom_call.1} parent=43 // pred_fallthru
          _
        // Predicated region
        $region53: #{tpu_custom_call.1} parent=43 // pred_check
          %p319 = pneg %p96
        $region54: #{tpu_custom_call.1} parent=43 // pred_check_branch
          %321 = sbr.rel (%p319) target = $region56
        $region55: #{tpu_custom_call.1} parent=43 // pred_region
          %322 = dma.done [#allocation6], 96
        $region56: #{tpu_custom_call.1} parent=43 // pred_fallthru
          _
        // Predicated region
        $region57: #{tpu_custom_call.1} parent=43 // pred_check
          %p323 = pneg %p117
        $region58: #{tpu_custom_call.1} parent=43 // pred_check_branch
          %325 = sbr.rel (%p323) target = $region60
        $region59: #{tpu_custom_call.1} parent=43 // pred_region
          %326 = dma.done [#allocation9], 96
        $region60: #{tpu_custom_call.1} parent=43 // pred_fallthru
          _
        // Predicated region
        $region61: #{tpu_custom_call.1} parent=43 // pred_check
          %p327 = pneg %p138
        $region62: #{tpu_custom_call.1} parent=43 // pred_check_branch
          %329 = sbr.rel (%p327) target = $region64
        $region63: #{tpu_custom_call.1} parent=43 // pred_region
          %330 = dma.done [#allocation9], 147456
        $region64: #{tpu_custom_call.1} parent=43 // pred_fallthru
          _
        // Predicated region
        $region65: #{tpu_custom_call.1} parent=43 // pred_check
          %p331 = pneg %p159
        $region66: #{tpu_custom_call.1} parent=43 // pred_check_branch
          %333 = sbr.rel (%p331) target = $region68
        $region67: #{tpu_custom_call.1} parent=43 // pred_region
          %334 = dma.done [#allocation12], 384
        $region68: #{tpu_custom_call.1} parent=43 // pred_fallthru
          _
        %s335 = sand.u32 %s36, 1
        %s336 = scalar_lea.sflag [#allocation3], %s335
        %s337 = sand.u32 %s36, 1
        %s338 = smul.addr %s337, 384
        %s339 = scalar_lea.vmem [#allocation2], %s338
        %p340 = pneg %p49
        %p341 = pneg %p46
        %s342 = sand.u32 %s28, 1
        %s343 = scalar_lea.sflag [#allocation6], %s342
        %s344 = sand.u32 %s62, 1
        %s345 = smul.addr %s344, 384
        %s346 = scalar_lea.vmem [#allocation5], %s345
        %p347 = pneg %p75
        %p348 = pneg %p72
        %p349 = pneg %p96
        %p350 = pneg %p93
        %p351 = pneg %p117
        %p352 = pneg %p114
        %p353 = pneg %p138
        %p354 = pneg %p135
        %p355 = pneg %p159
        %p356 = pneg %p156
        %p357 = pneg %p185
        %p358 = pneg %p182
        %s359 = sand.u32 %s172, 1
        %s360 = scalar_lea.sflag [#allocation4], %s359
        %s361 = sand.u32 %s172, 1
        %s362 = smul.addr %s361, 1536
        %s363 = scalar_lea.vmem [#allocation13], %s362
        %s364 = smul.u32 8, %s28
        %s365 = smul.u32 8, %s28
        %s366 = smul.u32 8, %s28
        %v367 = vld [vmem:[%s305] sm:$0xff]
        %v368 = vld [vmem:[%s305 + $0x8] sm:$0xff]
        %v369 = vld [vmem:[%s305 + $0x10] sm:$0xff]
        %v370 = vld [vmem:[%s305 + $0x18] sm:$0xff]
        %v371 = vld [vmem:[%s305 + $0x20] sm:$0xff]
        %v372 = vld [vmem:[%s305 + $0x28] sm:$0xff]
        %v373 = vld [vmem:[%s305 + $0x30] sm:$0xff]
        %v374 = vld [vmem:[%s305 + $0x38] sm:$0xff]
        %v375 = vld [vmem:[%s305 + $0x40] sm:$0xff]
        %v376 = vld [vmem:[%s305 + $0x48] sm:$0xff]
        %v377 = vld [vmem:[%s305 + $0x50] sm:$0xff]
        %v378 = vld [vmem:[%s305 + $0x58] sm:$0xff]
        %v379 = vld [vmem:[%s305 + $0x60] sm:$0xff]
        %v380 = vld [vmem:[%s305 + $0x68] sm:$0xff]
        %v381 = vld [vmem:[%s305 + $0x70] sm:$0xff]
        %v382 = vld [vmem:[%s305 + $0x78] sm:$0xff]
        %v383 = vld [vmem:[%s305 + $0x80] sm:$0xff]
        %v384 = vld [vmem:[%s305 + $0x88] sm:$0xff]
        %v385 = vld [vmem:[%s305 + $0x90] sm:$0xff]
        %v386 = vld [vmem:[%s305 + $0x98] sm:$0xff]
        %v387 = vld [vmem:[%s305 + $0xa0] sm:$0xff]
        %v388 = vld [vmem:[%s305 + $0xa8] sm:$0xff]
        %v389 = vld [vmem:[%s305 + $0xb0] sm:$0xff]
        %v390 = vld [vmem:[%s305 + $0xb8] sm:$0xff]
        %v391 = vld [vmem:[%s305 + $0xc0] sm:$0xff]
        %v392 = vld [vmem:[%s305 + $0xc8] sm:$0xff]
        %v393 = vld [vmem:[%s305 + $0xd0] sm:$0xff]
        %v394 = vld [vmem:[%s305 + $0xd8] sm:$0xff]
        %v395 = vld [vmem:[%s305 + $0xe0] sm:$0xff]
        %v396 = vld [vmem:[%s305 + $0xe8] sm:$0xff]
        %v397 = vld [vmem:[%s305 + $0xf0] sm:$0xff]
        %v398 = vld [vmem:[%s305 + $0xf8] sm:$0xff]
        %v399 = vld [vmem:[%s305 + $0x100] sm:$0xff]
        %v400 = vld [vmem:[%s305 + $0x108] sm:$0xff]
        %v401 = vld [vmem:[%s305 + $0x110] sm:$0xff]
        %v402 = vld [vmem:[%s305 + $0x118] sm:$0xff]
        %v403 = vld [vmem:[%s305 + $0x120] sm:$0xff]
        %v404 = vld [vmem:[%s305 + $0x128] sm:$0xff]
        %v405 = vld [vmem:[%s305 + $0x130] sm:$0xff]
        %v406 = vld [vmem:[%s305 + $0x138] sm:$0xff]
        %v407 = vld [vmem:[%s305 + $0x140] sm:$0xff]
        %v408 = vld [vmem:[%s305 + $0x148] sm:$0xff]
        %v409 = vld [vmem:[%s305 + $0x150] sm:$0xff]
        %v410 = vld [vmem:[%s305 + $0x158] sm:$0xff]
        %v411 = vld [vmem:[%s305 + $0x160] sm:$0xff]
        %v412 = vld [vmem:[%s305 + $0x168] sm:$0xff]
        %v413 = vld [vmem:[%s305 + $0x170] sm:$0xff]
        %v414 = vld [vmem:[%s305 + $0x178] sm:$0xff]
        %v415 = vld [vmem:[%s314] sm:$0xff]
        %v416 = vld [vmem:[%s314 + $0x8] sm:$0xff]
        %v417 = vld [vmem:[%s314 + $0x10] sm:$0xff]
        %v418 = vld [vmem:[%s314 + $0x18] sm:$0xff]
        %v419 = vld [vmem:[%s314 + $0x20] sm:$0xff]
        %v420 = vld [vmem:[%s314 + $0x28] sm:$0xff]
        %v421 = vld [vmem:[%s314 + $0x30] sm:$0xff]
        %v422 = vld [vmem:[%s314 + $0x38] sm:$0xff]
        %v423 = vld [vmem:[%s314 + $0x40] sm:$0xff]
        %v424 = vld [vmem:[%s314 + $0x48] sm:$0xff]
        %v425 = vld [vmem:[%s314 + $0x50] sm:$0xff]
        %v426 = vld [vmem:[%s314 + $0x58] sm:$0xff]
        %v427 = vld [vmem:[%s314 + $0x60] sm:$0xff]
        %v428 = vld [vmem:[%s314 + $0x68] sm:$0xff]
        %v429 = vld [vmem:[%s314 + $0x70] sm:$0xff]
        %v430 = vld [vmem:[%s314 + $0x78] sm:$0xff]
        %v431 = vld [vmem:[%s314 + $0x80] sm:$0xff]
        %v432 = vld [vmem:[%s314 + $0x88] sm:$0xff]
        %v433 = vld [vmem:[%s314 + $0x90] sm:$0xff]
        %v434 = vld [vmem:[%s314 + $0x98] sm:$0xff]
        %v435 = vld [vmem:[%s314 + $0xa0] sm:$0xff]
        %v436 = vld [vmem:[%s314 + $0xa8] sm:$0xff]
        %v437 = vld [vmem:[%s314 + $0xb0] sm:$0xff]
        %v438 = vld [vmem:[%s314 + $0xb8] sm:$0xff]
        %v439 = vld [vmem:[%s314 + $0xc0] sm:$0xff]
        %v440 = vld [vmem:[%s314 + $0xc8] sm:$0xff]
        %v441 = vld [vmem:[%s314 + $0xd0] sm:$0xff]
        %v442 = vld [vmem:[%s314 + $0xd8] sm:$0xff]
        %v443 = vld [vmem:[%s314 + $0xe0] sm:$0xff]
        %v444 = vld [vmem:[%s314 + $0xe8] sm:$0xff]
        %v445 = vld [vmem:[%s314 + $0xf0] sm:$0xff]
        %v446 = vld [vmem:[%s314 + $0xf8] sm:$0xff]
        %v447 = vld [vmem:[%s314 + $0x100] sm:$0xff]
        %v448 = vld [vmem:[%s314 + $0x108] sm:$0xff]
        %v449 = vld [vmem:[%s314 + $0x110] sm:$0xff]
        %v450 = vld [vmem:[%s314 + $0x118] sm:$0xff]
        %v451 = vld [vmem:[%s314 + $0x120] sm:$0xff]
        %v452 = vld [vmem:[%s314 + $0x128] sm:$0xff]
        %v453 = vld [vmem:[%s314 + $0x130] sm:$0xff]
        %v454 = vld [vmem:[%s314 + $0x138] sm:$0xff]
        %v455 = vld [vmem:[%s314 + $0x140] sm:$0xff]
        %v456 = vld [vmem:[%s314 + $0x148] sm:$0xff]
        %v457 = vld [vmem:[%s314 + $0x150] sm:$0xff]
        %v458 = vld [vmem:[%s314 + $0x158] sm:$0xff]
        %v459 = vld [vmem:[%s314 + $0x160] sm:$0xff]
        %v460 = vld [vmem:[%s314 + $0x168] sm:$0xff]
        %v461 = vld [vmem:[%s314 + $0x170] sm:$0xff]
        %v462 = vld [vmem:[%s314 + $0x178] sm:$0xff]
        %v463 = vadd.f32 %v367, %v415
        %v464 = vadd.f32 %v368, %v416
        %v465 = vadd.f32 %v369, %v417
        %v466 = vadd.f32 %v370, %v418
        %v467 = vadd.f32 %v371, %v419
        %v468 = vadd.f32 %v372, %v420
        %v469 = vadd.f32 %v373, %v421
        %v470 = vadd.f32 %v374, %v422
        %v471 = vadd.f32 %v375, %v423
        %v472 = vadd.f32 %v376, %v424
        %v473 = vadd.f32 %v377, %v425
        %v474 = vadd.f32 %v378, %v426
        %v475 = vadd.f32 %v379, %v427
        %v476 = vadd.f32 %v380, %v428
        %v477 = vadd.f32 %v381, %v429
        %v478 = vadd.f32 %v382, %v430
        %v479 = vadd.f32 %v383, %v431
        %v480 = vadd.f32 %v384, %v432
        %v481 = vadd.f32 %v385, %v433
        %v482 = vadd.f32 %v386, %v434
        %v483 = vadd.f32 %v387, %v435
        %v484 = vadd.f32 %v388, %v436
        %v485 = vadd.f32 %v389, %v437
        %v486 = vadd.f32 %v390, %v438
        %v487 = vadd.f32 %v391, %v439
        %v488 = vadd.f32 %v392, %v440
        %v489 = vadd.f32 %v393, %v441
        %v490 = vadd.f32 %v394, %v442
        %v491 = vadd.f32 %v395, %v443
        %v492 = vadd.f32 %v396, %v444
        %v493 = vadd.f32 %v397, %v445
        %v494 = vadd.f32 %v398, %v446
        %v495 = vadd.f32 %v399, %v447
        %v496 = vadd.f32 %v400, %v448
        %v497 = vadd.f32 %v401, %v449
        %v498 = vadd.f32 %v402, %v450
        %v499 = vadd.f32 %v403, %v451
        %v500 = vadd.f32 %v404, %v452
        %v501 = vadd.f32 %v405, %v453
        %v502 = vadd.f32 %v406, %v454
        %v503 = vadd.f32 %v407, %v455
        %v504 = vadd.f32 %v408, %v456
        %v505 = vadd.f32 %v409, %v457
        %v506 = vadd.f32 %v410, %v458
        %v507 = vadd.f32 %v411, %v459
        %v508 = vadd.f32 %v412, %v460
        %v509 = vadd.f32 %v413, %v461
        %v510 = vadd.f32 %v414, %v462
        %v511 = vadd.f32 %v463, %v464
        %v512 = vadd.f32 %v511, %v465
        %v513 = vadd.f32 %v512, %v466
        %v514 = vadd.f32 %v513, %v467
        %v515 = vadd.f32 %v514, %v468
        %516 = vadd.xlane.f32.xlu0 %v515
        %v517 = vpop.xlane.xlu0 %516
        %v518 = vadd.f32 %v469, %v470
        %v519 = vadd.f32 %v518, %v471
        %v520 = vadd.f32 %v519, %v472
        %v521 = vadd.f32 %v520, %v473
        %v522 = vadd.f32 %v521, %v474
        %523 = vadd.xlane.f32.xlu0 %v522
        %v524 = vpop.xlane.xlu0 %523
        %v525 = vadd.f32 %v475, %v476
        %v526 = vadd.f32 %v525, %v477
        %v527 = vadd.f32 %v526, %v478
        %v528 = vadd.f32 %v527, %v479
        %v529 = vadd.f32 %v528, %v480
        %530 = vadd.xlane.f32.xlu0 %v529
        %v531 = vpop.xlane.xlu0 %530
        %v532 = vadd.f32 %v481, %v482
        %v533 = vadd.f32 %v532, %v483
        %v534 = vadd.f32 %v533, %v484
        %v535 = vadd.f32 %v534, %v485
        %v536 = vadd.f32 %v535, %v486
        %537 = vadd.xlane.f32.xlu0 %v536
        %v538 = vpop.xlane.xlu0 %537
        %v539 = vadd.f32 %v487, %v488
        %v540 = vadd.f32 %v539, %v489
        %v541 = vadd.f32 %v540, %v490
        %v542 = vadd.f32 %v541, %v491
        %v543 = vadd.f32 %v542, %v492
        %544 = vadd.xlane.f32.xlu0 %v543
        %v545 = vpop.xlane.xlu0 %544
        %v546 = vadd.f32 %v493, %v494
        %v547 = vadd.f32 %v546, %v495
        %v548 = vadd.f32 %v547, %v496
        %v549 = vadd.f32 %v548, %v497
        %v550 = vadd.f32 %v549, %v498
        %551 = vadd.xlane.f32.xlu0 %v550
        %v552 = vpop.xlane.xlu0 %551
        %v553 = vadd.f32 %v499, %v500
        %v554 = vadd.f32 %v553, %v501
        %v555 = vadd.f32 %v554, %v502
        %v556 = vadd.f32 %v555, %v503
        %v557 = vadd.f32 %v556, %v504
        %558 = vadd.xlane.f32.xlu0 %v557
        %v559 = vpop.xlane.xlu0 %558
        %v560 = vadd.f32 %v505, %v506
        %v561 = vadd.f32 %v560, %v507
        %v562 = vadd.f32 %v561, %v508
        %v563 = vadd.f32 %v562, %v509
        %v564 = vadd.f32 %v563, %v510
        %565 = vadd.xlane.f32.xlu0 %v564
        %v566 = vpop.xlane.xlu0 %565
        %v567 = vrcp.pop 768.0
        %v568 = vmul.f32 %v517, %v567
        %v569 = vmul.f32 %v524, %v567
        %v570 = vmul.f32 %v531, %v567
        %v571 = vmul.f32 %v538, %v567
        %v572 = vmul.f32 %v545, %v567
        %v573 = vmul.f32 %v552, %v567
        %v574 = vmul.f32 %v559, %v567
        %v575 = vmul.f32 %v566, %v567
        %v576 = vsub.f32 %v463, %v568
        %v577 = vsub.f32 %v464, %v568
        %v578 = vsub.f32 %v465, %v568
        %v579 = vsub.f32 %v466, %v568
        %v580 = vsub.f32 %v467, %v568
        %v581 = vsub.f32 %v468, %v568
        %v582 = vsub.f32 %v469, %v569
        %v583 = vsub.f32 %v470, %v569
        %v584 = vsub.f32 %v471, %v569
        %v585 = vsub.f32 %v472, %v569
        %v586 = vsub.f32 %v473, %v569
        %v587 = vsub.f32 %v474, %v569
        %v588 = vsub.f32 %v475, %v570
        %v589 = vsub.f32 %v476, %v570
        %v590 = vsub.f32 %v477, %v570
        %v591 = vsub.f32 %v478, %v570
        %v592 = vsub.f32 %v479, %v570
        %v593 = vsub.f32 %v480, %v570
        %v594 = vsub.f32 %v481, %v571
        %v595 = vsub.f32 %v482, %v571
        %v596 = vsub.f32 %v483, %v571
        %v597 = vsub.f32 %v484, %v571
        %v598 = vsub.f32 %v485, %v571
        %v599 = vsub.f32 %v486, %v571
        %v600 = vsub.f32 %v487, %v572
        %v601 = vsub.f32 %v488, %v572
        %v602 = vsub.f32 %v489, %v572
        %v603 = vsub.f32 %v490, %v572
        %v604 = vsub.f32 %v491, %v572
        %v605 = vsub.f32 %v492, %v572
        %v606 = vsub.f32 %v493, %v573
        %v607 = vsub.f32 %v494, %v573
        %v608 = vsub.f32 %v495, %v573
        %v609 = vsub.f32 %v496, %v573
        %v610 = vsub.f32 %v497, %v573
        %v611 = vsub.f32 %v498, %v573
        %v612 = vsub.f32 %v499, %v574
        %v613 = vsub.f32 %v500, %v574
        %v614 = vsub.f32 %v501, %v574
        %v615 = vsub.f32 %v502, %v574
        %v616 = vsub.f32 %v503, %v574
        %v617 = vsub.f32 %v504, %v574
        %v618 = vsub.f32 %v505, %v575
        %v619 = vsub.f32 %v506, %v575
        %v620 = vsub.f32 %v507, %v575
        %v621 = vsub.f32 %v508, %v575
        %v622 = vsub.f32 %v509, %v575
        %v623 = vsub.f32 %v510, %v575
        %v624 = vmul.f32 %v576, %v576
        %v625 = vmul.f32 %v577, %v577
        %v626 = vmul.f32 %v578, %v578
        %v627 = vmul.f32 %v579, %v579
        %v628 = vmul.f32 %v580, %v580
        %v629 = vmul.f32 %v581, %v581
        %v630 = vmul.f32 %v582, %v582
        %v631 = vmul.f32 %v583, %v583
        %v632 = vmul.f32 %v584, %v584
        %v633 = vmul.f32 %v585, %v585
        %v634 = vmul.f32 %v586, %v586
        %v635 = vmul.f32 %v587, %v587
        %v636 = vmul.f32 %v588, %v588
        %v637 = vmul.f32 %v589, %v589
        %v638 = vmul.f32 %v590, %v590
        %v639 = vmul.f32 %v591, %v591
        %v640 = vmul.f32 %v592, %v592
        %v641 = vmul.f32 %v593, %v593
        %v642 = vmul.f32 %v594, %v594
        %v643 = vmul.f32 %v595, %v595
        %v644 = vmul.f32 %v596, %v596
        %v645 = vmul.f32 %v597, %v597
        %v646 = vmul.f32 %v598, %v598
        %v647 = vmul.f32 %v599, %v599
        %v648 = vmul.f32 %v600, %v600
        %v649 = vmul.f32 %v601, %v601
        %v650 = vmul.f32 %v602, %v602
        %v651 = vmul.f32 %v603, %v603
        %v652 = vmul.f32 %v604, %v604
        %v653 = vmul.f32 %v605, %v605
        %v654 = vmul.f32 %v606, %v606
        %v655 = vmul.f32 %v607, %v607
        %v656 = vmul.f32 %v608, %v608
        %v657 = vmul.f32 %v609, %v609
        %v658 = vmul.f32 %v610, %v610
        %v659 = vmul.f32 %v611, %v611
        %v660 = vmul.f32 %v612, %v612
        %v661 = vmul.f32 %v613, %v613
        %v662 = vmul.f32 %v614, %v614
        %v663 = vmul.f32 %v615, %v615
        %v664 = vmul.f32 %v616, %v616
        %v665 = vmul.f32 %v617, %v617
        %v666 = vmul.f32 %v618, %v618
        %v667 = vmul.f32 %v619, %v619
        %v668 = vmul.f32 %v620, %v620
        %v669 = vmul.f32 %v621, %v621
        %v670 = vmul.f32 %v622, %v622
        %v671 = vmul.f32 %v623, %v623
        %v672 = vadd.f32 %v624, %v625
        %v673 = vadd.f32 %v672, %v626
        %v674 = vadd.f32 %v673, %v627
        %v675 = vadd.f32 %v674, %v628
        %v676 = vadd.f32 %v675, %v629
        %677 = vadd.xlane.f32.xlu0 %v676
        %v678 = vpop.xlane.xlu0 %677
        %v679 = vadd.f32 %v630, %v631
        %v680 = vadd.f32 %v679, %v632
        %v681 = vadd.f32 %v680, %v633
        %v682 = vadd.f32 %v681, %v634
        %v683 = vadd.f32 %v682, %v635
        %684 = vadd.xlane.f32.xlu0 %v683
        %v685 = vpop.xlane.xlu0 %684
        %v686 = vadd.f32 %v636, %v637
        %v687 = vadd.f32 %v686, %v638
        %v688 = vadd.f32 %v687, %v639
        %v689 = vadd.f32 %v688, %v640
        %v690 = vadd.f32 %v689, %v641
        %691 = vadd.xlane.f32.xlu0 %v690
        %v692 = vpop.xlane.xlu0 %691
        %v693 = vadd.f32 %v642, %v643
        %v694 = vadd.f32 %v693, %v644
        %v695 = vadd.f32 %v694, %v645
        %v696 = vadd.f32 %v695, %v646
        %v697 = vadd.f32 %v696, %v647
        %698 = vadd.xlane.f32.xlu0 %v697
        %v699 = vpop.xlane.xlu0 %698
        %v700 = vadd.f32 %v648, %v649
        %v701 = vadd.f32 %v700, %v650
        %v702 = vadd.f32 %v701, %v651
        %v703 = vadd.f32 %v702, %v652
        %v704 = vadd.f32 %v703, %v653
        %705 = vadd.xlane.f32.xlu0 %v704
        %v706 = vpop.xlane.xlu0 %705
        %v707 = vadd.f32 %v654, %v655
        %v708 = vadd.f32 %v707, %v656
        %v709 = vadd.f32 %v708, %v657
        %v710 = vadd.f32 %v709, %v658
        %v711 = vadd.f32 %v710, %v659
        %712 = vadd.xlane.f32.xlu0 %v711
        %v713 = vpop.xlane.xlu0 %712
        %v714 = vadd.f32 %v660, %v661
        %v715 = vadd.f32 %v714, %v662
        %v716 = vadd.f32 %v715, %v663
        %v717 = vadd.f32 %v716, %v664
        %v718 = vadd.f32 %v717, %v665
        %719 = vadd.xlane.f32.xlu0 %v718
        %v720 = vpop.xlane.xlu0 %719
        %v721 = vadd.f32 %v666, %v667
        %v722 = vadd.f32 %v721, %v668
        %v723 = vadd.f32 %v722, %v669
        %v724 = vadd.f32 %v723, %v670
        %v725 = vadd.f32 %v724, %v671
        %726 = vadd.xlane.f32.xlu0 %v725
        %v727 = vpop.xlane.xlu0 %726
        %v728 = vmul.f32 %v678, %v567
        %v729 = vmul.f32 %v685, %v567
        %v730 = vmul.f32 %v692, %v567
        %v731 = vmul.f32 %v699, %v567
        %v732 = vmul.f32 %v706, %v567
        %v733 = vmul.f32 %v713, %v567
        %v734 = vmul.f32 %v720, %v567
        %v735 = vmul.f32 %v727, %v567
        %v736 = vadd.f32 %v728, 1e-05
        %v737 = vadd.f32 %v729, 1e-05
        %v738 = vadd.f32 %v730, 1e-05
        %v739 = vadd.f32 %v731, 1e-05
        %v740 = vadd.f32 %v732, 1e-05
        %v741 = vadd.f32 %v733, 1e-05
        %v742 = vadd.f32 %v734, 1e-05
        %v743 = vadd.f32 %v735, 1e-05
        %v744 = vrsqrt.pop %v736
        %v745 = vrsqrt.pop %v737
        %v746 = vrsqrt.pop %v738
        %v747 = vrsqrt.pop %v739
        %v748 = vrsqrt.pop %v740
        %v749 = vrsqrt.pop %v741
        %v750 = vrsqrt.pop %v742
        %v751 = vrsqrt.pop %v743
        %v752 = vmul.f32 %v576, %v744
        %v753 = vmul.f32 %v577, %v744
        %v754 = vmul.f32 %v578, %v744
        %v755 = vmul.f32 %v579, %v744
        %v756 = vmul.f32 %v580, %v744
        %v757 = vmul.f32 %v581, %v744
        %v758 = vmul.f32 %v582, %v745
        %v759 = vmul.f32 %v583, %v745
        %v760 = vmul.f32 %v584, %v745
        %v761 = vmul.f32 %v585, %v745
        %v762 = vmul.f32 %v586, %v745
        %v763 = vmul.f32 %v587, %v745
        %v764 = vmul.f32 %v588, %v746
        %v765 = vmul.f32 %v589, %v746
        %v766 = vmul.f32 %v590, %v746
        %v767 = vmul.f32 %v591, %v746
        %v768 = vmul.f32 %v592, %v746
        %v769 = vmul.f32 %v593, %v746
        %v770 = vmul.f32 %v594, %v747
        %v771 = vmul.f32 %v595, %v747
        %v772 = vmul.f32 %v596, %v747
        %v773 = vmul.f32 %v597, %v747
        %v774 = vmul.f32 %v598, %v747
        %v775 = vmul.f32 %v599, %v747
        %v776 = vmul.f32 %v600, %v748
        %v777 = vmul.f32 %v601, %v748
        %v778 = vmul.f32 %v602, %v748
        %v779 = vmul.f32 %v603, %v748
        %v780 = vmul.f32 %v604, %v748
        %v781 = vmul.f32 %v605, %v748
        %v782 = vmul.f32 %v606, %v749
        %v783 = vmul.f32 %v607, %v749
        %v784 = vmul.f32 %v608, %v749
        %v785 = vmul.f32 %v609, %v749
        %v786 = vmul.f32 %v610, %v749
        %v787 = vmul.f32 %v611, %v749
        %v788 = vmul.f32 %v612, %v750
        %v789 = vmul.f32 %v613, %v750
        %v790 = vmul.f32 %v614, %v750
        %v791 = vmul.f32 %v615, %v750
        %v792 = vmul.f32 %v616, %v750
        %v793 = vmul.f32 %v617, %v750
        %v794 = vmul.f32 %v618, %v751
        %v795 = vmul.f32 %v619, %v751
        %v796 = vmul.f32 %v620, %v751
        %v797 = vmul.f32 %v621, %v751
        %v798 = vmul.f32 %v622, %v751
        %v799 = vmul.f32 %v623, %v751
        %v800 = vld [vmem:[#allocation7] sm:$0x3f]
        %v802 = vlaneseq
        %v803 = vshrl.u32 %v802, 7
        %v804 = vsub.s32 0, %v803
        %v805 = vrot.slane %v800, %v804
        %v806 = vlaneseq
        %v807 = vshrl.u32 %v806, 7
        %v808 = vsub.s32 1, %v807
        %v809 = vrot.slane %v800, %v808
        %v810 = vlaneseq
        %v811 = vshrl.u32 %v810, 7
        %v812 = vsub.s32 2, %v811
        %v813 = vrot.slane %v800, %v812
        %v814 = vlaneseq
        %v815 = vshrl.u32 %v814, 7
        %v816 = vsub.s32 3, %v815
        %v817 = vrot.slane %v800, %v816
        %v818 = vlaneseq
        %v819 = vshrl.u32 %v818, 7
        %v820 = vsub.s32 4, %v819
        %v821 = vrot.slane %v800, %v820
        %v822 = vlaneseq
        %v823 = vshrl.u32 %v822, 7
        %v824 = vsub.s32 5, %v823
        %v825 = vrot.slane %v800, %v824
        %v832 = vmul.f32 %v752, %v805
        %v833 = vmul.f32 %v753, %v809
        %v834 = vmul.f32 %v754, %v813
        %v835 = vmul.f32 %v755, %v817
        %v836 = vmul.f32 %v756, %v821
        %v837 = vmul.f32 %v757, %v825
        %v838 = vmul.f32 %v758, %v805
        %v839 = vmul.f32 %v759, %v809
        %v840 = vmul.f32 %v760, %v813
        %v841 = vmul.f32 %v761, %v817
        %v842 = vmul.f32 %v762, %v821
        %v843 = vmul.f32 %v763, %v825
        %v844 = vmul.f32 %v764, %v805
        %v845 = vmul.f32 %v765, %v809
        %v846 = vmul.f32 %v766, %v813
        %v847 = vmul.f32 %v767, %v817
        %v848 = vmul.f32 %v768, %v821
        %v849 = vmul.f32 %v769, %v825
        %v850 = vmul.f32 %v770, %v805
        %v851 = vmul.f32 %v771, %v809
        %v852 = vmul.f32 %v772, %v813
        %v853 = vmul.f32 %v773, %v817
        %v854 = vmul.f32 %v774, %v821
        %v855 = vmul.f32 %v775, %v825
        %v856 = vmul.f32 %v776, %v805
        %v857 = vmul.f32 %v777, %v809
        %v858 = vmul.f32 %v778, %v813
        %v859 = vmul.f32 %v779, %v817
        %v860 = vmul.f32 %v780, %v821
        %v861 = vmul.f32 %v781, %v825
        %v862 = vmul.f32 %v782, %v805
        %v863 = vmul.f32 %v783, %v809
        %v864 = vmul.f32 %v784, %v813
        %v865 = vmul.f32 %v785, %v817
        %v866 = vmul.f32 %v786, %v821
        %v867 = vmul.f32 %v787, %v825
        %v868 = vmul.f32 %v788, %v805
        %v869 = vmul.f32 %v789, %v809
        %v870 = vmul.f32 %v790, %v813
        %v871 = vmul.f32 %v791, %v817
        %v872 = vmul.f32 %v792, %v821
        %v873 = vmul.f32 %v793, %v825
        %v874 = vmul.f32 %v794, %v805
        %v875 = vmul.f32 %v795, %v809
        %v876 = vmul.f32 %v796, %v813
        %v877 = vmul.f32 %v797, %v817
        %v878 = vmul.f32 %v798, %v821
        %v879 = vmul.f32 %v799, %v825
        %v880 = vld [vmem:[#allocation8] sm:$0x3f]
        %v882 = vlaneseq
        %v883 = vshrl.u32 %v882, 7
        %v884 = vsub.s32 0, %v883
        %v885 = vrot.slane %v880, %v884
        %v886 = vlaneseq
        %v887 = vshrl.u32 %v886, 7
        %v888 = vsub.s32 1, %v887
        %v889 = vrot.slane %v880, %v888
        %v890 = vlaneseq
        %v891 = vshrl.u32 %v890, 7
        %v892 = vsub.s32 2, %v891
        %v893 = vrot.slane %v880, %v892
        %v894 = vlaneseq
        %v895 = vshrl.u32 %v894, 7
        %v896 = vsub.s32 3, %v895
        %v897 = vrot.slane %v880, %v896
        %v898 = vlaneseq
        %v899 = vshrl.u32 %v898, 7
        %v900 = vsub.s32 4, %v899
        %v901 = vrot.slane %v880, %v900
        %v902 = vlaneseq
        %v903 = vshrl.u32 %v902, 7
        %v904 = vsub.s32 5, %v903
        %v905 = vrot.slane %v880, %v904
        %v912 = vadd.f32 %v832, %v885
        %v913 = vadd.f32 %v833, %v889
        %v914 = vadd.f32 %v834, %v893
        %v915 = vadd.f32 %v835, %v897
        %v916 = vadd.f32 %v836, %v901
        %v917 = vadd.f32 %v837, %v905
        %v918 = vadd.f32 %v838, %v885
        %v919 = vadd.f32 %v839, %v889
        %v920 = vadd.f32 %v840, %v893
        %v921 = vadd.f32 %v841, %v897
        %v922 = vadd.f32 %v842, %v901
        %v923 = vadd.f32 %v843, %v905
        %v924 = vadd.f32 %v844, %v885
        %v925 = vadd.f32 %v845, %v889
        %v926 = vadd.f32 %v846, %v893
        %v927 = vadd.f32 %v847, %v897
        %v928 = vadd.f32 %v848, %v901
        %v929 = vadd.f32 %v849, %v905
        %v930 = vadd.f32 %v850, %v885
        %v931 = vadd.f32 %v851, %v889
        %v932 = vadd.f32 %v852, %v893
        %v933 = vadd.f32 %v853, %v897
        %v934 = vadd.f32 %v854, %v901
        %v935 = vadd.f32 %v855, %v905
        %v936 = vadd.f32 %v856, %v885
        %v937 = vadd.f32 %v857, %v889
        %v938 = vadd.f32 %v858, %v893
        %v939 = vadd.f32 %v859, %v897
        %v940 = vadd.f32 %v860, %v901
        %v941 = vadd.f32 %v861, %v905
        %v942 = vadd.f32 %v862, %v885
        %v943 = vadd.f32 %v863, %v889
        %v944 = vadd.f32 %v864, %v893
        %v945 = vadd.f32 %v865, %v897
        %v946 = vadd.f32 %v866, %v901
        %v947 = vadd.f32 %v867, %v905
        %v948 = vadd.f32 %v868, %v885
        %v949 = vadd.f32 %v869, %v889
        %v950 = vadd.f32 %v870, %v893
        %v951 = vadd.f32 %v871, %v897
        %v952 = vadd.f32 %v872, %v901
        %v953 = vadd.f32 %v873, %v905
        %v954 = vadd.f32 %v874, %v885
        %v955 = vadd.f32 %v875, %v889
        %v956 = vadd.f32 %v876, %v893
        %v957 = vadd.f32 %v877, %v897
        %v958 = vadd.f32 %v878, %v901
        %v959 = vadd.f32 %v879, %v905
        %v960 = vpack.c.bf16 %v918, %v912
        %v961 = vpack.c.bf16 %v919, %v913
        %v962 = vpack.c.bf16 %v920, %v914
        %v963 = vpack.c.bf16 %v921, %v915
        %v964 = vpack.c.bf16 %v922, %v916
        %v965 = vpack.c.bf16 %v923, %v917
        %v966 = vpack.c.bf16 %v930, %v924
        %v967 = vpack.c.bf16 %v931, %v925
        %v968 = vpack.c.bf16 %v932, %v926
        %v969 = vpack.c.bf16 %v933, %v927
        %v970 = vpack.c.bf16 %v934, %v928
        %v971 = vpack.c.bf16 %v935, %v929
        %v972 = vpack.c.bf16 %v942, %v936
        %v973 = vpack.c.bf16 %v943, %v937
        %v974 = vpack.c.bf16 %v944, %v938
        %v975 = vpack.c.bf16 %v945, %v939
        %v976 = vpack.c.bf16 %v946, %v940
        %v977 = vpack.c.bf16 %v947, %v941
        %v978 = vpack.c.bf16 %v954, %v948
        %v979 = vpack.c.bf16 %v955, %v949
        %v980 = vpack.c.bf16 %v956, %v950
        %v981 = vpack.c.bf16 %v957, %v951
        %v982 = vpack.c.bf16 %v958, %v952
        %v983 = vpack.c.bf16 %v959, %v953
        %v984 = vld [vmem:[#allocation10] sm:$0xff]
        %v985 = vld [vmem:[#allocation10 + $0x8] sm:$0xff]
        %v986 = vld [vmem:[#allocation10 + $0x10] sm:$0xff]
        %v987 = vld [vmem:[#allocation10 + $0x18] sm:$0xff]
        %v988 = vld [vmem:[#allocation10 + $0x20] sm:$0xff]
        %v989 = vld [vmem:[#allocation10 + $0x28] sm:$0xff]
        %v990 = vld [vmem:[#allocation10 + $0x30] sm:$0xff]
        %v991 = vld [vmem:[#allocation10 + $0x38] sm:$0xff]
        %v992 = vld [vmem:[#allocation10 + $0x40] sm:$0xff]
        %v993 = vld [vmem:[#allocation10 + $0x48] sm:$0xff]
        %v994 = vld [vmem:[#allocation10 + $0x50] sm:$0xff]
        %v995 = vld [vmem:[#allocation10 + $0x58] sm:$0xff]
        %v996 = vld [vmem:[#allocation10 + $0x60] sm:$0xff]
        %v997 = vld [vmem:[#allocation10 + $0x68] sm:$0xff]
        %v998 = vld [vmem:[#allocation10 + $0x70] sm:$0xff]
        %v999 = vld [vmem:[#allocation10 + $0x78] sm:$0xff]
        %v1000 = vld [vmem:[#allocation10 + $0x80] sm:$0xff]
        %v1001 = vld [vmem:[#allocation10 + $0x88] sm:$0xff]
        %v1002 = vld [vmem:[#allocation10 + $0x90] sm:$0xff]
        %v1003 = vld [vmem:[#allocation10 + $0x98] sm:$0xff]
        %v1004 = vld [vmem:[#allocation10 + $0xa0] sm:$0xff]
        %v1005 = vld [vmem:[#allocation10 + $0xa8] sm:$0xff]
        %v1006 = vld [vmem:[#allocation10 + $0xb0] sm:$0xff]
        %v1007 = vld [vmem:[#allocation10 + $0xb8] sm:$0xff]
        %v1008 = vld [vmem:[#allocation10 + $0xc0] sm:$0xff]
        %v1009 = vld [vmem:[#allocation10 + $0xc8] sm:$0xff]
        %v1010 = vld [vmem:[#allocation10 + $0xd0] sm:$0xff]
        %v1011 = vld [vmem:[#allocation10 + $0xd8] sm:$0xff]
        %v1012 = vld [vmem:[#allocation10 + $0xe0] sm:$0xff]
        %v1013 = vld [vmem:[#allocation10 + $0xe8] sm:$0xff]
        %v1014 = vld [vmem:[#allocation10 + $0xf0] sm:$0xff]
        %v1015 = vld [vmem:[#allocation10 + $0xf8] sm:$0xff]
        %v1016 = vld [vmem:[#allocation10 + $0x100] sm:$0xff]
        %v1017 = vld [vmem:[#allocation10 + $0x108] sm:$0xff]
        %v1018 = vld [vmem:[#allocation10 + $0x110] sm:$0xff]
        %v1019 = vld [vmem:[#allocation10 + $0x118] sm:$0xff]
        %v1020 = vld [vmem:[#allocation10 + $0x120] sm:$0xff]
        %v1021 = vld [vmem:[#allocation10 + $0x128] sm:$0xff]
        %v1022 = vld [vmem:[#allocation10 + $0x130] sm:$0xff]
        %v1023 = vld [vmem:[#allocation10 + $0x138] sm:$0xff]
        %v1024 = vld [vmem:[#allocation10 + $0x140] sm:$0xff]
        %v1025 = vld [vmem:[#allocation10 + $0x148] sm:$0xff]
        %v1026 = vld [vmem:[#allocation10 + $0x150] sm:$0xff]
        %v1027 = vld [vmem:[#allocation10 + $0x158] sm:$0xff]
        %v1028 = vld [vmem:[#allocation10 + $0x160] sm:$0xff]
        %v1029 = vld [vmem:[#allocation10 + $0x168] sm:$0xff]
        %v1030 = vld [vmem:[#allocation10 + $0x170] sm:$0xff]
        %v1031 = vld [vmem:[#allocation10 + $0x178] sm:$0xff]
        %v1032 = vld [vmem:[#allocation10 + $0x180] sm:$0xff]
        %v1033 = vld [vmem:[#allocation10 + $0x188] sm:$0xff]
        %v1034 = vld [vmem:[#allocation10 + $0x190] sm:$0xff]
        %v1035 = vld [vmem:[#allocation10 + $0x198] sm:$0xff]
        %v1036 = vld [vmem:[#allocation10 + $0x1a0] sm:$0xff]
        %v1037 = vld [vmem:[#allocation10 + $0x1a8] sm:$0xff]
        %v1038 = vld [vmem:[#allocation10 + $0x1b0] sm:$0xff]
        %v1039 = vld [vmem:[#allocation10 + $0x1b8] sm:$0xff]
        %v1040 = vld [vmem:[#allocation10 + $0x1c0] sm:$0xff]
        %v1041 = vld [vmem:[#allocation10 + $0x1c8] sm:$0xff]
        %v1042 = vld [vmem:[#allocation10 + $0x1d0] sm:$0xff]
        %v1043 = vld [vmem:[#allocation10 + $0x1d8] sm:$0xff]
        %v1044 = vld [vmem:[#allocation10 + $0x1e0] sm:$0xff]
        %v1045 = vld [vmem:[#allocation10 + $0x1e8] sm:$0xff]
        %v1046 = vld [vmem:[#allocation10 + $0x1f0] sm:$0xff]
        %v1047 = vld [vmem:[#allocation10 + $0x1f8] sm:$0xff]
        %v1048 = vld [vmem:[#allocation10 + $0x200] sm:$0xff]
        %v1049 = vld [vmem:[#allocation10 + $0x208] sm:$0xff]
        %v1050 = vld [vmem:[#allocation10 + $0x210] sm:$0xff]
        %v1051 = vld [vmem:[#allocation10 + $0x218] sm:$0xff]
        %v1052 = vld [vmem:[#allocation10 + $0x220] sm:$0xff]
        %v1053 = vld [vmem:[#allocation10 + $0x228] sm:$0xff]
        %v1054 = vld [vmem:[#allocation10 + $0x230] sm:$0xff]
        %v1055 = vld [vmem:[#allocation10 + $0x238] sm:$0xff]
        %v1056 = vld [vmem:[#allocation10 + $0x240] sm:$0xff]
        %v1057 = vld [vmem:[#allocation10 + $0x248] sm:$0xff]
        %v1058 = vld [vmem:[#allocation10 + $0x250] sm:$0xff]
        %v1059 = vld [vmem:[#allocation10 + $0x258] sm:$0xff]
        %v1060 = vld [vmem:[#allocation10 + $0x260] sm:$0xff]
        %v1061 = vld [vmem:[#allocation10 + $0x268] sm:$0xff]
        %v1062 = vld [vmem:[#allocation10 + $0x270] sm:$0xff]
        %v1063 = vld [vmem:[#allocation10 + $0x278] sm:$0xff]
        %v1064 = vld [vmem:[#allocation10 + $0x280] sm:$0xff]
        %v1065 = vld [vmem:[#allocation10 + $0x288] sm:$0xff]
        %v1066 = vld [vmem:[#allocation10 + $0x290] sm:$0xff]
        %v1067 = vld [vmem:[#allocation10 + $0x298] sm:$0xff]
        %v1068 = vld [vmem:[#allocation10 + $0x2a0] sm:$0xff]
        %v1069 = vld [vmem:[#allocation10 + $0x2a8] sm:$0xff]
        %v1070 = vld [vmem:[#allocation10 + $0x2b0] sm:$0xff]
        %v1071 = vld [vmem:[#allocation10 + $0x2b8] sm:$0xff]
        %v1072 = vld [vmem:[#allocation10 + $0x2c0] sm:$0xff]
        %v1073 = vld [vmem:[#allocation10 + $0x2c8] sm:$0xff]
        %v1074 = vld [vmem:[#allocation10 + $0x2d0] sm:$0xff]
        %v1075 = vld [vmem:[#allocation10 + $0x2d8] sm:$0xff]
        %v1076 = vld [vmem:[#allocation10 + $0x2e0] sm:$0xff]
        %v1077 = vld [vmem:[#allocation10 + $0x2e8] sm:$0xff]
        %v1078 = vld [vmem:[#allocation10 + $0x2f0] sm:$0xff]
        %v1079 = vld [vmem:[#allocation10 + $0x2f8] sm:$0xff]
        %v1080 = vld [vmem:[#allocation10 + $0x300] sm:$0xff]
        %v1081 = vld [vmem:[#allocation10 + $0x308] sm:$0xff]
        %v1082 = vld [vmem:[#allocation10 + $0x310] sm:$0xff]
        %v1083 = vld [vmem:[#allocation10 + $0x318] sm:$0xff]
        %v1084 = vld [vmem:[#allocation10 + $0x320] sm:$0xff]
        %v1085 = vld [vmem:[#allocation10 + $0x328] sm:$0xff]
        %v1086 = vld [vmem:[#allocation10 + $0x330] sm:$0xff]
        %v1087 = vld [vmem:[#allocation10 + $0x338] sm:$0xff]
        %v1088 = vld [vmem:[#allocation10 + $0x340] sm:$0xff]
        %v1089 = vld [vmem:[#allocation10 + $0x348] sm:$0xff]
        %v1090 = vld [vmem:[#allocation10 + $0x350] sm:$0xff]
        %v1091 = vld [vmem:[#allocation10 + $0x358] sm:$0xff]
        %v1092 = vld [vmem:[#allocation10 + $0x360] sm:$0xff]
        %v1093 = vld [vmem:[#allocation10 + $0x368] sm:$0xff]
        %v1094 = vld [vmem:[#allocation10 + $0x370] sm:$0xff]
        %v1095 = vld [vmem:[#allocation10 + $0x378] sm:$0xff]
        %v1096 = vld [vmem:[#allocation10 + $0x380] sm:$0xff]
        %v1097 = vld [vmem:[#allocation10 + $0x388] sm:$0xff]
        %v1098 = vld [vmem:[#allocation10 + $0x390] sm:$0xff]
        %v1099 = vld [vmem:[#allocation10 + $0x398] sm:$0xff]
        %v1100 = vld [vmem:[#allocation10 + $0x3a0] sm:$0xff]
        %v1101 = vld [vmem:[#allocation10 + $0x3a8] sm:$0xff]
        %v1102 = vld [vmem:[#allocation10 + $0x3b0] sm:$0xff]
        %v1103 = vld [vmem:[#allocation10 + $0x3b8] sm:$0xff]
        %v1104 = vld [vmem:[#allocation10 + $0x3c0] sm:$0xff]
        %v1105 = vld [vmem:[#allocation10 + $0x3c8] sm:$0xff]
        %v1106 = vld [vmem:[#allocation10 + $0x3d0] sm:$0xff]
        %v1107 = vld [vmem:[#allocation10 + $0x3d8] sm:$0xff]
        %v1108 = vld [vmem:[#allocation10 + $0x3e0] sm:$0xff]
        %v1109 = vld [vmem:[#allocation10 + $0x3e8] sm:$0xff]
        %v1110 = vld [vmem:[#allocation10 + $0x3f0] sm:$0xff]
        %v1111 = vld [vmem:[#allocation10 + $0x3f8] sm:$0xff]
        %v1112 = vld [vmem:[#allocation10 + $0x400] sm:$0xff]
        %v1113 = vld [vmem:[#allocation10 + $0x408] sm:$0xff]
        %v1114 = vld [vmem:[#allocation10 + $0x410] sm:$0xff]
        %v1115 = vld [vmem:[#allocation10 + $0x418] sm:$0xff]
        %v1116 = vld [vmem:[#allocation10 + $0x420] sm:$0xff]
        %v1117 = vld [vmem:[#allocation10 + $0x428] sm:$0xff]
        %v1118 = vld [vmem:[#allocation10 + $0x430] sm:$0xff]
        %v1119 = vld [vmem:[#allocation10 + $0x438] sm:$0xff]
        %v1120 = vld [vmem:[#allocation10 + $0x440] sm:$0xff]
        %v1121 = vld [vmem:[#allocation10 + $0x448] sm:$0xff]
        %v1122 = vld [vmem:[#allocation10 + $0x450] sm:$0xff]
        %v1123 = vld [vmem:[#allocation10 + $0x458] sm:$0xff]
        %v1124 = vld [vmem:[#allocation10 + $0x460] sm:$0xff]
        %v1125 = vld [vmem:[#allocation10 + $0x468] sm:$0xff]
        %v1126 = vld [vmem:[#allocation10 + $0x470] sm:$0xff]
        %v1127 = vld [vmem:[#allocation10 + $0x478] sm:$0xff]
        %v1128 = vld [vmem:[#allocation10 + $0x480] sm:$0xff]
        %v1129 = vld [vmem:[#allocation10 + $0x488] sm:$0xff]
        %v1130 = vld [vmem:[#allocation10 + $0x490] sm:$0xff]
        %v1131 = vld [vmem:[#allocation10 + $0x498] sm:$0xff]
        %v1132 = vld [vmem:[#allocation10 + $0x4a0] sm:$0xff]
        %v1133 = vld [vmem:[#allocation10 + $0x4a8] sm:$0xff]
        %v1134 = vld [vmem:[#allocation10 + $0x4b0] sm:$0xff]
        %v1135 = vld [vmem:[#allocation10 + $0x4b8] sm:$0xff]
        %v1136 = vld [vmem:[#allocation10 + $0x4c0] sm:$0xff]
        %v1137 = vld [vmem:[#allocation10 + $0x4c8] sm:$0xff]
        %v1138 = vld [vmem:[#allocation10 + $0x4d0] sm:$0xff]
        %v1139 = vld [vmem:[#allocation10 + $0x4d8] sm:$0xff]
        %v1140 = vld [vmem:[#allocation10 + $0x4e0] sm:$0xff]
        %v1141 = vld [vmem:[#allocation10 + $0x4e8] sm:$0xff]
        %v1142 = vld [vmem:[#allocation10 + $0x4f0] sm:$0xff]
        %v1143 = vld [vmem:[#allocation10 + $0x4f8] sm:$0xff]
        %v1144 = vld [vmem:[#allocation10 + $0x500] sm:$0xff]
        %v1145 = vld [vmem:[#allocation10 + $0x508] sm:$0xff]
        %v1146 = vld [vmem:[#allocation10 + $0x510] sm:$0xff]
        %v1147 = vld [vmem:[#allocation10 + $0x518] sm:$0xff]
        %v1148 = vld [vmem:[#allocation10 + $0x520] sm:$0xff]
        %v1149 = vld [vmem:[#allocation10 + $0x528] sm:$0xff]
        %v1150 = vld [vmem:[#allocation10 + $0x530] sm:$0xff]
        %v1151 = vld [vmem:[#allocation10 + $0x538] sm:$0xff]
        %v1152 = vld [vmem:[#allocation10 + $0x540] sm:$0xff]
        %v1153 = vld [vmem:[#allocation10 + $0x548] sm:$0xff]
        %v1154 = vld [vmem:[#allocation10 + $0x550] sm:$0xff]
        %v1155 = vld [vmem:[#allocation10 + $0x558] sm:$0xff]
        %v1156 = vld [vmem:[#allocation10 + $0x560] sm:$0xff]
        %v1157 = vld [vmem:[#allocation10 + $0x568] sm:$0xff]
        %v1158 = vld [vmem:[#allocation10 + $0x570] sm:$0xff]
        %v1159 = vld [vmem:[#allocation10 + $0x578] sm:$0xff]
        %v1160 = vld [vmem:[#allocation10 + $0x580] sm:$0xff]
        %v1161 = vld [vmem:[#allocation10 + $0x588] sm:$0xff]
        %v1162 = vld [vmem:[#allocation10 + $0x590] sm:$0xff]
        %v1163 = vld [vmem:[#allocation10 + $0x598] sm:$0xff]
        %v1164 = vld [vmem:[#allocation10 + $0x5a0] sm:$0xff]
        %v1165 = vld [vmem:[#allocation10 + $0x5a8] sm:$0xff]
        %v1166 = vld [vmem:[#allocation10 + $0x5b0] sm:$0xff]
        %v1167 = vld [vmem:[#allocation10 + $0x5b8] sm:$0xff]
        %v1168 = vld [vmem:[#allocation10 + $0x5c0] sm:$0xff]
        %v1169 = vld [vmem:[#allocation10 + $0x5c8] sm:$0xff]
        %v1170 = vld [vmem:[#allocation10 + $0x5d0] sm:$0xff]
        %v1171 = vld [vmem:[#allocation10 + $0x5d8] sm:$0xff]
        %v1172 = vld [vmem:[#allocation10 + $0x5e0] sm:$0xff]
        %v1173 = vld [vmem:[#allocation10 + $0x5e8] sm:$0xff]
        %v1174 = vld [vmem:[#allocation10 + $0x5f0] sm:$0xff]
        %v1175 = vld [vmem:[#allocation10 + $0x5f8] sm:$0xff]
        %v1176 = vld [vmem:[#allocation10 + $0x600] sm:$0xff]
        %v1177 = vld [vmem:[#allocation10 + $0x608] sm:$0xff]
        %v1178 = vld [vmem:[#allocation10 + $0x610] sm:$0xff]
        %v1179 = vld [vmem:[#allocation10 + $0x618] sm:$0xff]
        %v1180 = vld [vmem:[#allocation10 + $0x620] sm:$0xff]
        %v1181 = vld [vmem:[#allocation10 + $0x628] sm:$0xff]
        %v1182 = vld [vmem:[#allocation10 + $0x630] sm:$0xff]
        %v1183 = vld [vmem:[#allocation10 + $0x638] sm:$0xff]
        %v1184 = vld [vmem:[#allocation10 + $0x640] sm:$0xff]
        %v1185 = vld [vmem:[#allocation10 + $0x648] sm:$0xff]
        %v1186 = vld [vmem:[#allocation10 + $0x650] sm:$0xff]
        %v1187 = vld [vmem:[#allocation10 + $0x658] sm:$0xff]
        %v1188 = vld [vmem:[#allocation10 + $0x660] sm:$0xff]
        %v1189 = vld [vmem:[#allocation10 + $0x668] sm:$0xff]
        %v1190 = vld [vmem:[#allocation10 + $0x670] sm:$0xff]
        %v1191 = vld [vmem:[#allocation10 + $0x678] sm:$0xff]
        %v1192 = vld [vmem:[#allocation10 + $0x680] sm:$0xff]
        %v1193 = vld [vmem:[#allocation10 + $0x688] sm:$0xff]
        %v1194 = vld [vmem:[#allocation10 + $0x690] sm:$0xff]
        %v1195 = vld [vmem:[#allocation10 + $0x698] sm:$0xff]
        %v1196 = vld [vmem:[#allocation10 + $0x6a0] sm:$0xff]
        %v1197 = vld [vmem:[#allocation10 + $0x6a8] sm:$0xff]
        %v1198 = vld [vmem:[#allocation10 + $0x6b0] sm:$0xff]
        %v1199 = vld [vmem:[#allocation10 + $0x6b8] sm:$0xff]
        %v1200 = vld [vmem:[#allocation10 + $0x6c0] sm:$0xff]
        %v1201 = vld [vmem:[#allocation10 + $0x6c8] sm:$0xff]
        %v1202 = vld [vmem:[#allocation10 + $0x6d0] sm:$0xff]
        %v1203 = vld [vmem:[#allocation10 + $0x6d8] sm:$0xff]
        %v1204 = vld [vmem:[#allocation10 + $0x6e0] sm:$0xff]
        %v1205 = vld [vmem:[#allocation10 + $0x6e8] sm:$0xff]
        %v1206 = vld [vmem:[#allocation10 + $0x6f0] sm:$0xff]
        %v1207 = vld [vmem:[#allocation10 + $0x6f8] sm:$0xff]
        %v1208 = vld [vmem:[#allocation10 + $0x700] sm:$0xff]
        %v1209 = vld [vmem:[#allocation10 + $0x708] sm:$0xff]
        %v1210 = vld [vmem:[#allocation10 + $0x710] sm:$0xff]
        %v1211 = vld [vmem:[#allocation10 + $0x718] sm:$0xff]
        %v1212 = vld [vmem:[#allocation10 + $0x720] sm:$0xff]
        %v1213 = vld [vmem:[#allocation10 + $0x728] sm:$0xff]
        %v1214 = vld [vmem:[#allocation10 + $0x730] sm:$0xff]
        %v1215 = vld [vmem:[#allocation10 + $0x738] sm:$0xff]
        %v1216 = vld [vmem:[#allocation10 + $0x740] sm:$0xff]
        %v1217 = vld [vmem:[#allocation10 + $0x748] sm:$0xff]
        %v1218 = vld [vmem:[#allocation10 + $0x750] sm:$0xff]
        %v1219 = vld [vmem:[#allocation10 + $0x758] sm:$0xff]
        %v1220 = vld [vmem:[#allocation10 + $0x760] sm:$0xff]
        %v1221 = vld [vmem:[#allocation10 + $0x768] sm:$0xff]
        %v1222 = vld [vmem:[#allocation10 + $0x770] sm:$0xff]
        %v1223 = vld [vmem:[#allocation10 + $0x778] sm:$0xff]
        %v1224 = vld [vmem:[#allocation10 + $0x780] sm:$0xff]
        %v1225 = vld [vmem:[#allocation10 + $0x788] sm:$0xff]
        %v1226 = vld [vmem:[#allocation10 + $0x790] sm:$0xff]
        %v1227 = vld [vmem:[#allocation10 + $0x798] sm:$0xff]
        %v1228 = vld [vmem:[#allocation10 + $0x7a0] sm:$0xff]
        %v1229 = vld [vmem:[#allocation10 + $0x7a8] sm:$0xff]
        %v1230 = vld [vmem:[#allocation10 + $0x7b0] sm:$0xff]
        %v1231 = vld [vmem:[#allocation10 + $0x7b8] sm:$0xff]
        %v1232 = vld [vmem:[#allocation10 + $0x7c0] sm:$0xff]
        %v1233 = vld [vmem:[#allocation10 + $0x7c8] sm:$0xff]
        %v1234 = vld [vmem:[#allocation10 + $0x7d0] sm:$0xff]
        %v1235 = vld [vmem:[#allocation10 + $0x7d8] sm:$0xff]
        %v1236 = vld [vmem:[#allocation10 + $0x7e0] sm:$0xff]
        %v1237 = vld [vmem:[#allocation10 + $0x7e8] sm:$0xff]
        %v1238 = vld [vmem:[#allocation10 + $0x7f0] sm:$0xff]
        %v1239 = vld [vmem:[#allocation10 + $0x7f8] sm:$0xff]
        %v1240 = vld [vmem:[#allocation10 + $0x800] sm:$0xff]
        %v1241 = vld [vmem:[#allocation10 + $0x808] sm:$0xff]
        %v1242 = vld [vmem:[#allocation10 + $0x810] sm:$0xff]
        %v1243 = vld [vmem:[#allocation10 + $0x818] sm:$0xff]
        %v1244 = vld [vmem:[#allocation10 + $0x820] sm:$0xff]
        %v1245 = vld [vmem:[#allocation10 + $0x828] sm:$0xff]
        %v1246 = vld [vmem:[#allocation10 + $0x830] sm:$0xff]
        %v1247 = vld [vmem:[#allocation10 + $0x838] sm:$0xff]
        %v1248 = vld [vmem:[#allocation10 + $0x840] sm:$0xff]
        %v1249 = vld [vmem:[#allocation10 + $0x848] sm:$0xff]
        %v1250 = vld [vmem:[#allocation10 + $0x850] sm:$0xff]
        %v1251 = vld [vmem:[#allocation10 + $0x858] sm:$0xff]
        %v1252 = vld [vmem:[#allocation10 + $0x860] sm:$0xff]
        %v1253 = vld [vmem:[#allocation10 + $0x868] sm:$0xff]
        %v1254 = vld [vmem:[#allocation10 + $0x870] sm:$0xff]
        %v1255 = vld [vmem:[#allocation10 + $0x878] sm:$0xff]
        %v1256 = vld [vmem:[#allocation10 + $0x880] sm:$0xff]
        %v1257 = vld [vmem:[#allocation10 + $0x888] sm:$0xff]
        %v1258 = vld [vmem:[#allocation10 + $0x890] sm:$0xff]
        %v1259 = vld [vmem:[#allocation10 + $0x898] sm:$0xff]
        %v1260 = vld [vmem:[#allocation10 + $0x8a0] sm:$0xff]
        %v1261 = vld [vmem:[#allocation10 + $0x8a8] sm:$0xff]
        %v1262 = vld [vmem:[#allocation10 + $0x8b0] sm:$0xff]
        %v1263 = vld [vmem:[#allocation10 + $0x8b8] sm:$0xff]
        %v1264 = vld [vmem:[#allocation10 + $0x8c0] sm:$0xff]
        %v1265 = vld [vmem:[#allocation10 + $0x8c8] sm:$0xff]
        %v1266 = vld [vmem:[#allocation10 + $0x8d0] sm:$0xff]
        %v1267 = vld [vmem:[#allocation10 + $0x8d8] sm:$0xff]
        %v1268 = vld [vmem:[#allocation10 + $0x8e0] sm:$0xff]
        %v1269 = vld [vmem:[#allocation10 + $0x8e8] sm:$0xff]
        %v1270 = vld [vmem:[#allocation10 + $0x8f0] sm:$0xff]
        %v1271 = vld [vmem:[#allocation10 + $0x8f8] sm:$0xff]
        %v1272 = vld [vmem:[#allocation10 + $0x900] sm:$0xff]
        %v1273 = vld [vmem:[#allocation10 + $0x908] sm:$0xff]
        %v1274 = vld [vmem:[#allocation10 + $0x910] sm:$0xff]
        %v1275 = vld [vmem:[#allocation10 + $0x918] sm:$0xff]
        %v1276 = vld [vmem:[#allocation10 + $0x920] sm:$0xff]
        %v1277 = vld [vmem:[#allocation10 + $0x928] sm:$0xff]
        %v1278 = vld [vmem:[#allocation10 + $0x930] sm:$0xff]
        %v1279 = vld [vmem:[#allocation10 + $0x938] sm:$0xff]
        %v1280 = vld [vmem:[#allocation10 + $0x940] sm:$0xff]
        %v1281 = vld [vmem:[#allocation10 + $0x948] sm:$0xff]
        %v1282 = vld [vmem:[#allocation10 + $0x950] sm:$0xff]
        %v1283 = vld [vmem:[#allocation10 + $0x958] sm:$0xff]
        %v1284 = vld [vmem:[#allocation10 + $0x960] sm:$0xff]
        %v1285 = vld [vmem:[#allocation10 + $0x968] sm:$0xff]
        %v1286 = vld [vmem:[#allocation10 + $0x970] sm:$0xff]
        %v1287 = vld [vmem:[#allocation10 + $0x978] sm:$0xff]
        %v1288 = vld [vmem:[#allocation10 + $0x980] sm:$0xff]
        %v1289 = vld [vmem:[#allocation10 + $0x988] sm:$0xff]
        %v1290 = vld [vmem:[#allocation10 + $0x990] sm:$0xff]
        %v1291 = vld [vmem:[#allocation10 + $0x998] sm:$0xff]
        %v1292 = vld [vmem:[#allocation10 + $0x9a0] sm:$0xff]
        %v1293 = vld [vmem:[#allocation10 + $0x9a8] sm:$0xff]
        %v1294 = vld [vmem:[#allocation10 + $0x9b0] sm:$0xff]
        %v1295 = vld [vmem:[#allocation10 + $0x9b8] sm:$0xff]
        %v1296 = vld [vmem:[#allocation10 + $0x9c0] sm:$0xff]
        %v1297 = vld [vmem:[#allocation10 + $0x9c8] sm:$0xff]
        %v1298 = vld [vmem:[#allocation10 + $0x9d0] sm:$0xff]
        %v1299 = vld [vmem:[#allocation10 + $0x9d8] sm:$0xff]
        %v1300 = vld [vmem:[#allocation10 + $0x9e0] sm:$0xff]
        %v1301 = vld [vmem:[#allocation10 + $0x9e8] sm:$0xff]
        %v1302 = vld [vmem:[#allocation10 + $0x9f0] sm:$0xff]
        %v1303 = vld [vmem:[#allocation10 + $0x9f8] sm:$0xff]
        %v1304 = vld [vmem:[#allocation10 + $0xa00] sm:$0xff]
        %v1305 = vld [vmem:[#allocation10 + $0xa08] sm:$0xff]
        %v1306 = vld [vmem:[#allocation10 + $0xa10] sm:$0xff]
        %v1307 = vld [vmem:[#allocation10 + $0xa18] sm:$0xff]
        %v1308 = vld [vmem:[#allocation10 + $0xa20] sm:$0xff]
        %v1309 = vld [vmem:[#allocation10 + $0xa28] sm:$0xff]
        %v1310 = vld [vmem:[#allocation10 + $0xa30] sm:$0xff]
        %v1311 = vld [vmem:[#allocation10 + $0xa38] sm:$0xff]
        %v1312 = vld [vmem:[#allocation10 + $0xa40] sm:$0xff]
        %v1313 = vld [vmem:[#allocation10 + $0xa48] sm:$0xff]
        %v1314 = vld [vmem:[#allocation10 + $0xa50] sm:$0xff]
        %v1315 = vld [vmem:[#allocation10 + $0xa58] sm:$0xff]
        %v1316 = vld [vmem:[#allocation10 + $0xa60] sm:$0xff]
        %v1317 = vld [vmem:[#allocation10 + $0xa68] sm:$0xff]
        %v1318 = vld [vmem:[#allocation10 + $0xa70] sm:$0xff]
        %v1319 = vld [vmem:[#allocation10 + $0xa78] sm:$0xff]
        %v1320 = vld [vmem:[#allocation10 + $0xa80] sm:$0xff]
        %v1321 = vld [vmem:[#allocation10 + $0xa88] sm:$0xff]
        %v1322 = vld [vmem:[#allocation10 + $0xa90] sm:$0xff]
        %v1323 = vld [vmem:[#allocation10 + $0xa98] sm:$0xff]
        %v1324 = vld [vmem:[#allocation10 + $0xaa0] sm:$0xff]
        %v1325 = vld [vmem:[#allocation10 + $0xaa8] sm:$0xff]
        %v1326 = vld [vmem:[#allocation10 + $0xab0] sm:$0xff]
        %v1327 = vld [vmem:[#allocation10 + $0xab8] sm:$0xff]
        %v1328 = vld [vmem:[#allocation10 + $0xac0] sm:$0xff]
        %v1329 = vld [vmem:[#allocation10 + $0xac8] sm:$0xff]
        %v1330 = vld [vmem:[#allocation10 + $0xad0] sm:$0xff]
        %v1331 = vld [vmem:[#allocation10 + $0xad8] sm:$0xff]
        %v1332 = vld [vmem:[#allocation10 + $0xae0] sm:$0xff]
        %v1333 = vld [vmem:[#allocation10 + $0xae8] sm:$0xff]
        %v1334 = vld [vmem:[#allocation10 + $0xaf0] sm:$0xff]
        %v1335 = vld [vmem:[#allocation10 + $0xaf8] sm:$0xff]
        %v1336 = vld [vmem:[#allocation10 + $0xb00] sm:$0xff]
        %v1337 = vld [vmem:[#allocation10 + $0xb08] sm:$0xff]
        %v1338 = vld [vmem:[#allocation10 + $0xb10] sm:$0xff]
        %v1339 = vld [vmem:[#allocation10 + $0xb18] sm:$0xff]
        %v1340 = vld [vmem:[#allocation10 + $0xb20] sm:$0xff]
        %v1341 = vld [vmem:[#allocation10 + $0xb28] sm:$0xff]
        %v1342 = vld [vmem:[#allocation10 + $0xb30] sm:$0xff]
        %v1343 = vld [vmem:[#allocation10 + $0xb38] sm:$0xff]
        %v1344 = vld [vmem:[#allocation10 + $0xb40] sm:$0xff]
        %v1345 = vld [vmem:[#allocation10 + $0xb48] sm:$0xff]
        %v1346 = vld [vmem:[#allocation10 + $0xb50] sm:$0xff]
        %v1347 = vld [vmem:[#allocation10 + $0xb58] sm:$0xff]
        %v1348 = vld [vmem:[#allocation10 + $0xb60] sm:$0xff]
        %v1349 = vld [vmem:[#allocation10 + $0xb68] sm:$0xff]
        %v1350 = vld [vmem:[#allocation10 + $0xb70] sm:$0xff]
        %v1351 = vld [vmem:[#allocation10 + $0xb78] sm:$0xff]
        %v1352 = vld [vmem:[#allocation10 + $0xb80] sm:$0xff]
        %v1353 = vld [vmem:[#allocation10 + $0xb88] sm:$0xff]
        %v1354 = vld [vmem:[#allocation10 + $0xb90] sm:$0xff]
        %v1355 = vld [vmem:[#allocation10 + $0xb98] sm:$0xff]
        %v1356 = vld [vmem:[#allocation10 + $0xba0] sm:$0xff]
        %v1357 = vld [vmem:[#allocation10 + $0xba8] sm:$0xff]
        %v1358 = vld [vmem:[#allocation10 + $0xbb0] sm:$0xff]
        %v1359 = vld [vmem:[#allocation10 + $0xbb8] sm:$0xff]
        %v1360 = vld [vmem:[#allocation10 + $0xbc0] sm:$0xff]
        %v1361 = vld [vmem:[#allocation10 + $0xbc8] sm:$0xff]
        %v1362 = vld [vmem:[#allocation10 + $0xbd0] sm:$0xff]
        %v1363 = vld [vmem:[#allocation10 + $0xbd8] sm:$0xff]
        %v1364 = vld [vmem:[#allocation10 + $0xbe0] sm:$0xff]
        %v1365 = vld [vmem:[#allocation10 + $0xbe8] sm:$0xff]
        %v1366 = vld [vmem:[#allocation10 + $0xbf0] sm:$0xff]
        %v1367 = vld [vmem:[#allocation10 + $0xbf8] sm:$0xff]
        %v1368 = vld [vmem:[#allocation10 + $0xc00] sm:$0xff]
        %v1369 = vld [vmem:[#allocation10 + $0xc08] sm:$0xff]
        %v1370 = vld [vmem:[#allocation10 + $0xc10] sm:$0xff]
        %v1371 = vld [vmem:[#allocation10 + $0xc18] sm:$0xff]
        %v1372 = vld [vmem:[#allocation10 + $0xc20] sm:$0xff]
        %v1373 = vld [vmem:[#allocation10 + $0xc28] sm:$0xff]
        %v1374 = vld [vmem:[#allocation10 + $0xc30] sm:$0xff]
        %v1375 = vld [vmem:[#allocation10 + $0xc38] sm:$0xff]
        %v1376 = vld [vmem:[#allocation10 + $0xc40] sm:$0xff]
        %v1377 = vld [vmem:[#allocation10 + $0xc48] sm:$0xff]
        %v1378 = vld [vmem:[#allocation10 + $0xc50] sm:$0xff]
        %v1379 = vld [vmem:[#allocation10 + $0xc58] sm:$0xff]
        %v1380 = vld [vmem:[#allocation10 + $0xc60] sm:$0xff]
        %v1381 = vld [vmem:[#allocation10 + $0xc68] sm:$0xff]
        %v1382 = vld [vmem:[#allocation10 + $0xc70] sm:$0xff]
        %v1383 = vld [vmem:[#allocation10 + $0xc78] sm:$0xff]
        %v1384 = vld [vmem:[#allocation10 + $0xc80] sm:$0xff]
        %v1385 = vld [vmem:[#allocation10 + $0xc88] sm:$0xff]
        %v1386 = vld [vmem:[#allocation10 + $0xc90] sm:$0xff]
        %v1387 = vld [vmem:[#allocation10 + $0xc98] sm:$0xff]
        %v1388 = vld [vmem:[#allocation10 + $0xca0] sm:$0xff]
        %v1389 = vld [vmem:[#allocation10 + $0xca8] sm:$0xff]
        %v1390 = vld [vmem:[#allocation10 + $0xcb0] sm:$0xff]
        %v1391 = vld [vmem:[#allocation10 + $0xcb8] sm:$0xff]
        %v1392 = vld [vmem:[#allocation10 + $0xcc0] sm:$0xff]
        %v1393 = vld [vmem:[#allocation10 + $0xcc8] sm:$0xff]
        %v1394 = vld [vmem:[#allocation10 + $0xcd0] sm:$0xff]
        %v1395 = vld [vmem:[#allocation10 + $0xcd8] sm:$0xff]
        %v1396 = vld [vmem:[#allocation10 + $0xce0] sm:$0xff]
        %v1397 = vld [vmem:[#allocation10 + $0xce8] sm:$0xff]
        %v1398 = vld [vmem:[#allocation10 + $0xcf0] sm:$0xff]
        %v1399 = vld [vmem:[#allocation10 + $0xcf8] sm:$0xff]
        %v1400 = vld [vmem:[#allocation10 + $0xd00] sm:$0xff]
        %v1401 = vld [vmem:[#allocation10 + $0xd08] sm:$0xff]
        %v1402 = vld [vmem:[#allocation10 + $0xd10] sm:$0xff]
        %v1403 = vld [vmem:[#allocation10 + $0xd18] sm:$0xff]
        %v1404 = vld [vmem:[#allocation10 + $0xd20] sm:$0xff]
        %v1405 = vld [vmem:[#allocation10 + $0xd28] sm:$0xff]
        %v1406 = vld [vmem:[#allocation10 + $0xd30] sm:$0xff]
        %v1407 = vld [vmem:[#allocation10 + $0xd38] sm:$0xff]
        %v1408 = vld [vmem:[#allocation10 + $0xd40] sm:$0xff]
        %v1409 = vld [vmem:[#allocation10 + $0xd48] sm:$0xff]
        %v1410 = vld [vmem:[#allocation10 + $0xd50] sm:$0xff]
        %v1411 = vld [vmem:[#allocation10 + $0xd58] sm:$0xff]
        %v1412 = vld [vmem:[#allocation10 + $0xd60] sm:$0xff]
        %v1413 = vld [vmem:[#allocation10 + $0xd68] sm:$0xff]
        %v1414 = vld [vmem:[#allocation10 + $0xd70] sm:$0xff]
        %v1415 = vld [vmem:[#allocation10 + $0xd78] sm:$0xff]
        %v1416 = vld [vmem:[#allocation10 + $0xd80] sm:$0xff]
        %v1417 = vld [vmem:[#allocation10 + $0xd88] sm:$0xff]
        %v1418 = vld [vmem:[#allocation10 + $0xd90] sm:$0xff]
        %v1419 = vld [vmem:[#allocation10 + $0xd98] sm:$0xff]
        %v1420 = vld [vmem:[#allocation10 + $0xda0] sm:$0xff]
        %v1421 = vld [vmem:[#allocation10 + $0xda8] sm:$0xff]
        %v1422 = vld [vmem:[#allocation10 + $0xdb0] sm:$0xff]
        %v1423 = vld [vmem:[#allocation10 + $0xdb8] sm:$0xff]
        %v1424 = vld [vmem:[#allocation10 + $0xdc0] sm:$0xff]
        %v1425 = vld [vmem:[#allocation10 + $0xdc8] sm:$0xff]
        %v1426 = vld [vmem:[#allocation10 + $0xdd0] sm:$0xff]
        %v1427 = vld [vmem:[#allocation10 + $0xdd8] sm:$0xff]
        %v1428 = vld [vmem:[#allocation10 + $0xde0] sm:$0xff]
        %v1429 = vld [vmem:[#allocation10 + $0xde8] sm:$0xff]
        %v1430 = vld [vmem:[#allocation10 + $0xdf0] sm:$0xff]
        %v1431 = vld [vmem:[#allocation10 + $0xdf8] sm:$0xff]
        %v1432 = vld [vmem:[#allocation10 + $0xe00] sm:$0xff]
        %v1433 = vld [vmem:[#allocation10 + $0xe08] sm:$0xff]
        %v1434 = vld [vmem:[#allocation10 + $0xe10] sm:$0xff]
        %v1435 = vld [vmem:[#allocation10 + $0xe18] sm:$0xff]
        %v1436 = vld [vmem:[#allocation10 + $0xe20] sm:$0xff]
        %v1437 = vld [vmem:[#allocation10 + $0xe28] sm:$0xff]
        %v1438 = vld [vmem:[#allocation10 + $0xe30] sm:$0xff]
        %v1439 = vld [vmem:[#allocation10 + $0xe38] sm:$0xff]
        %v1440 = vld [vmem:[#allocation10 + $0xe40] sm:$0xff]
        %v1441 = vld [vmem:[#allocation10 + $0xe48] sm:$0xff]
        %v1442 = vld [vmem:[#allocation10 + $0xe50] sm:$0xff]
        %v1443 = vld [vmem:[#allocation10 + $0xe58] sm:$0xff]
        %v1444 = vld [vmem:[#allocation10 + $0xe60] sm:$0xff]
        %v1445 = vld [vmem:[#allocation10 + $0xe68] sm:$0xff]
        %v1446 = vld [vmem:[#allocation10 + $0xe70] sm:$0xff]
        %v1447 = vld [vmem:[#allocation10 + $0xe78] sm:$0xff]
        %v1448 = vld [vmem:[#allocation10 + $0xe80] sm:$0xff]
        %v1449 = vld [vmem:[#allocation10 + $0xe88] sm:$0xff]
        %v1450 = vld [vmem:[#allocation10 + $0xe90] sm:$0xff]
        %v1451 = vld [vmem:[#allocation10 + $0xe98] sm:$0xff]
        %v1452 = vld [vmem:[#allocation10 + $0xea0] sm:$0xff]
        %v1453 = vld [vmem:[#allocation10 + $0xea8] sm:$0xff]
        %v1454 = vld [vmem:[#allocation10 + $0xeb0] sm:$0xff]
        %v1455 = vld [vmem:[#allocation10 + $0xeb8] sm:$0xff]
        %v1456 = vld [vmem:[#allocation10 + $0xec0] sm:$0xff]
        %v1457 = vld [vmem:[#allocation10 + $0xec8] sm:$0xff]
        %v1458 = vld [vmem:[#allocation10 + $0xed0] sm:$0xff]
        %v1459 = vld [vmem:[#allocation10 + $0xed8] sm:$0xff]
        %v1460 = vld [vmem:[#allocation10 + $0xee0] sm:$0xff]
        %v1461 = vld [vmem:[#allocation10 + $0xee8] sm:$0xff]
        %v1462 = vld [vmem:[#allocation10 + $0xef0] sm:$0xff]
        %v1463 = vld [vmem:[#allocation10 + $0xef8] sm:$0xff]
        %v1464 = vld [vmem:[#allocation10 + $0xf00] sm:$0xff]
        %v1465 = vld [vmem:[#allocation10 + $0xf08] sm:$0xff]
        %v1466 = vld [vmem:[#allocation10 + $0xf10] sm:$0xff]
        %v1467 = vld [vmem:[#allocation10 + $0xf18] sm:$0xff]
        %v1468 = vld [vmem:[#allocation10 + $0xf20] sm:$0xff]
        %v1469 = vld [vmem:[#allocation10 + $0xf28] sm:$0xff]
        %v1470 = vld [vmem:[#allocation10 + $0xf30] sm:$0xff]
        %v1471 = vld [vmem:[#allocation10 + $0xf38] sm:$0xff]
        %v1472 = vld [vmem:[#allocation10 + $0xf40] sm:$0xff]
        %v1473 = vld [vmem:[#allocation10 + $0xf48] sm:$0xff]
        %v1474 = vld [vmem:[#allocation10 + $0xf50] sm:$0xff]
        %v1475 = vld [vmem:[#allocation10 + $0xf58] sm:$0xff]
        %v1476 = vld [vmem:[#allocation10 + $0xf60] sm:$0xff]
        %v1477 = vld [vmem:[#allocation10 + $0xf68] sm:$0xff]
        %v1478 = vld [vmem:[#allocation10 + $0xf70] sm:$0xff]
        %v1479 = vld [vmem:[#allocation10 + $0xf78] sm:$0xff]
        %v1480 = vld [vmem:[#allocation10 + $0xf80] sm:$0xff]
        %v1481 = vld [vmem:[#allocation10 + $0xf88] sm:$0xff]
        %v1482 = vld [vmem:[#allocation10 + $0xf90] sm:$0xff]
        %v1483 = vld [vmem:[#allocation10 + $0xf98] sm:$0xff]
        %v1484 = vld [vmem:[#allocation10 + $0xfa0] sm:$0xff]
        %v1485 = vld [vmem:[#allocation10 + $0xfa8] sm:$0xff]
        %v1486 = vld [vmem:[#allocation10 + $0xfb0] sm:$0xff]
        %v1487 = vld [vmem:[#allocation10 + $0xfb8] sm:$0xff]
        %v1488 = vld [vmem:[#allocation10 + $0xfc0] sm:$0xff]
        %v1489 = vld [vmem:[#allocation10 + $0xfc8] sm:$0xff]
        %v1490 = vld [vmem:[#allocation10 + $0xfd0] sm:$0xff]
        %v1491 = vld [vmem:[#allocation10 + $0xfd8] sm:$0xff]
        %v1492 = vld [vmem:[#allocation10 + $0xfe0] sm:$0xff]
        %v1493 = vld [vmem:[#allocation10 + $0xfe8] sm:$0xff]
        %v1494 = vld [vmem:[#allocation10 + $0xff0] sm:$0xff]
        %v1495 = vld [vmem:[#allocation10 + $0xff8] sm:$0xff]
        %v1496 = vld [vmem:[#allocation10 + $0x1000] sm:$0xff]
        %v1497 = vld [vmem:[#allocation10 + $0x1008] sm:$0xff]
        %v1498 = vld [vmem:[#allocation10 + $0x1010] sm:$0xff]
        %v1499 = vld [vmem:[#allocation10 + $0x1018] sm:$0xff]
        %v1500 = vld [vmem:[#allocation10 + $0x1020] sm:$0xff]
        %v1501 = vld [vmem:[#allocation10 + $0x1028] sm:$0xff]
        %v1502 = vld [vmem:[#allocation10 + $0x1030] sm:$0xff]
        %v1503 = vld [vmem:[#allocation10 + $0x1038] sm:$0xff]
        %v1504 = vld [vmem:[#allocation10 + $0x1040] sm:$0xff]
        %v1505 = vld [vmem:[#allocation10 + $0x1048] sm:$0xff]
        %v1506 = vld [vmem:[#allocation10 + $0x1050] sm:$0xff]
        %v1507 = vld [vmem:[#allocation10 + $0x1058] sm:$0xff]
        %v1508 = vld [vmem:[#allocation10 + $0x1060] sm:$0xff]
        %v1509 = vld [vmem:[#allocation10 + $0x1068] sm:$0xff]
        %v1510 = vld [vmem:[#allocation10 + $0x1070] sm:$0xff]
        %v1511 = vld [vmem:[#allocation10 + $0x1078] sm:$0xff]
        %v1512 = vld [vmem:[#allocation10 + $0x1080] sm:$0xff]
        %v1513 = vld [vmem:[#allocation10 + $0x1088] sm:$0xff]
        %v1514 = vld [vmem:[#allocation10 + $0x1090] sm:$0xff]
        %v1515 = vld [vmem:[#allocation10 + $0x1098] sm:$0xff]
        %v1516 = vld [vmem:[#allocation10 + $0x10a0] sm:$0xff]
        %v1517 = vld [vmem:[#allocation10 + $0x10a8] sm:$0xff]
        %v1518 = vld [vmem:[#allocation10 + $0x10b0] sm:$0xff]
        %v1519 = vld [vmem:[#allocation10 + $0x10b8] sm:$0xff]
        %v1520 = vld [vmem:[#allocation10 + $0x10c0] sm:$0xff]
        %v1521 = vld [vmem:[#allocation10 + $0x10c8] sm:$0xff]
        %v1522 = vld [vmem:[#allocation10 + $0x10d0] sm:$0xff]
        %v1523 = vld [vmem:[#allocation10 + $0x10d8] sm:$0xff]
        %v1524 = vld [vmem:[#allocation10 + $0x10e0] sm:$0xff]
        %v1525 = vld [vmem:[#allocation10 + $0x10e8] sm:$0xff]
        %v1526 = vld [vmem:[#allocation10 + $0x10f0] sm:$0xff]
        %v1527 = vld [vmem:[#allocation10 + $0x10f8] sm:$0xff]
        %v1528 = vld [vmem:[#allocation10 + $0x1100] sm:$0xff]
        %v1529 = vld [vmem:[#allocation10 + $0x1108] sm:$0xff]
        %v1530 = vld [vmem:[#allocation10 + $0x1110] sm:$0xff]
        %v1531 = vld [vmem:[#allocation10 + $0x1118] sm:$0xff]
        %v1532 = vld [vmem:[#allocation10 + $0x1120] sm:$0xff]
        %v1533 = vld [vmem:[#allocation10 + $0x1128] sm:$0xff]
        %v1534 = vld [vmem:[#allocation10 + $0x1130] sm:$0xff]
        %v1535 = vld [vmem:[#allocation10 + $0x1138] sm:$0xff]
        %v1536 = vld [vmem:[#allocation10 + $0x1140] sm:$0xff]
        %v1537 = vld [vmem:[#allocation10 + $0x1148] sm:$0xff]
        %v1538 = vld [vmem:[#allocation10 + $0x1150] sm:$0xff]
        %v1539 = vld [vmem:[#allocation10 + $0x1158] sm:$0xff]
        %v1540 = vld [vmem:[#allocation10 + $0x1160] sm:$0xff]
        %v1541 = vld [vmem:[#allocation10 + $0x1168] sm:$0xff]
        %v1542 = vld [vmem:[#allocation10 + $0x1170] sm:$0xff]
        %v1543 = vld [vmem:[#allocation10 + $0x1178] sm:$0xff]
        %v1544 = vld [vmem:[#allocation10 + $0x1180] sm:$0xff]
        %v1545 = vld [vmem:[#allocation10 + $0x1188] sm:$0xff]
        %v1546 = vld [vmem:[#allocation10 + $0x1190] sm:$0xff]
        %v1547 = vld [vmem:[#allocation10 + $0x1198] sm:$0xff]
        %v1548 = vld [vmem:[#allocation10 + $0x11a0] sm:$0xff]
        %v1549 = vld [vmem:[#allocation10 + $0x11a8] sm:$0xff]
        %v1550 = vld [vmem:[#allocation10 + $0x11b0] sm:$0xff]
        %v1551 = vld [vmem:[#allocation10 + $0x11b8] sm:$0xff]
        %v1552 = vld [vmem:[#allocation10 + $0x11c0] sm:$0xff]
        %v1553 = vld [vmem:[#allocation10 + $0x11c8] sm:$0xff]
        %v1554 = vld [vmem:[#allocation10 + $0x11d0] sm:$0xff]
        %v1555 = vld [vmem:[#allocation10 + $0x11d8] sm:$0xff]
        %v1556 = vld [vmem:[#allocation10 + $0x11e0] sm:$0xff]
        %v1557 = vld [vmem:[#allocation10 + $0x11e8] sm:$0xff]
        %v1558 = vld [vmem:[#allocation10 + $0x11f0] sm:$0xff]
        %v1559 = vld [vmem:[#allocation10 + $0x11f8] sm:$0xff]
        %v1560 = vld [vmem:[#allocation10 + $0x1200] sm:$0xff]
        %v1561 = vld [vmem:[#allocation10 + $0x1208] sm:$0xff]
        %v1562 = vld [vmem:[#allocation10 + $0x1210] sm:$0xff]
        %v1563 = vld [vmem:[#allocation10 + $0x1218] sm:$0xff]
        %v1564 = vld [vmem:[#allocation10 + $0x1220] sm:$0xff]
        %v1565 = vld [vmem:[#allocation10 + $0x1228] sm:$0xff]
        %v1566 = vld [vmem:[#allocation10 + $0x1230] sm:$0xff]
        %v1567 = vld [vmem:[#allocation10 + $0x1238] sm:$0xff]
        %v1568 = vld [vmem:[#allocation10 + $0x1240] sm:$0xff]
        %v1569 = vld [vmem:[#allocation10 + $0x1248] sm:$0xff]
        %v1570 = vld [vmem:[#allocation10 + $0x1250] sm:$0xff]
        %v1571 = vld [vmem:[#allocation10 + $0x1258] sm:$0xff]
        %v1572 = vld [vmem:[#allocation10 + $0x1260] sm:$0xff]
        %v1573 = vld [vmem:[#allocation10 + $0x1268] sm:$0xff]
        %v1574 = vld [vmem:[#allocation10 + $0x1270] sm:$0xff]
        %v1575 = vld [vmem:[#allocation10 + $0x1278] sm:$0xff]
        %v1576 = vld [vmem:[#allocation10 + $0x1280] sm:$0xff]
        %v1577 = vld [vmem:[#allocation10 + $0x1288] sm:$0xff]
        %v1578 = vld [vmem:[#allocation10 + $0x1290] sm:$0xff]
        %v1579 = vld [vmem:[#allocation10 + $0x1298] sm:$0xff]
        %v1580 = vld [vmem:[#allocation10 + $0x12a0] sm:$0xff]
        %v1581 = vld [vmem:[#allocation10 + $0x12a8] sm:$0xff]
        %v1582 = vld [vmem:[#allocation10 + $0x12b0] sm:$0xff]
        %v1583 = vld [vmem:[#allocation10 + $0x12b8] sm:$0xff]
        %v1584 = vld [vmem:[#allocation10 + $0x12c0] sm:$0xff]
        %v1585 = vld [vmem:[#allocation10 + $0x12c8] sm:$0xff]
        %v1586 = vld [vmem:[#allocation10 + $0x12d0] sm:$0xff]
        %v1587 = vld [vmem:[#allocation10 + $0x12d8] sm:$0xff]
        %v1588 = vld [vmem:[#allocation10 + $0x12e0] sm:$0xff]
        %v1589 = vld [vmem:[#allocation10 + $0x12e8] sm:$0xff]
        %v1590 = vld [vmem:[#allocation10 + $0x12f0] sm:$0xff]
        %v1591 = vld [vmem:[#allocation10 + $0x12f8] sm:$0xff]
        %v1592 = vld [vmem:[#allocation10 + $0x1300] sm:$0xff]
        %v1593 = vld [vmem:[#allocation10 + $0x1308] sm:$0xff]
        %v1594 = vld [vmem:[#allocation10 + $0x1310] sm:$0xff]
        %v1595 = vld [vmem:[#allocation10 + $0x1318] sm:$0xff]
        %v1596 = vld [vmem:[#allocation10 + $0x1320] sm:$0xff]
        %v1597 = vld [vmem:[#allocation10 + $0x1328] sm:$0xff]
        %v1598 = vld [vmem:[#allocation10 + $0x1330] sm:$0xff]
        %v1599 = vld [vmem:[#allocation10 + $0x1338] sm:$0xff]
        %v1600 = vld [vmem:[#allocation10 + $0x1340] sm:$0xff]
        %v1601 = vld [vmem:[#allocation10 + $0x1348] sm:$0xff]
        %v1602 = vld [vmem:[#allocation10 + $0x1350] sm:$0xff]
        %v1603 = vld [vmem:[#allocation10 + $0x1358] sm:$0xff]
        %v1604 = vld [vmem:[#allocation10 + $0x1360] sm:$0xff]
        %v1605 = vld [vmem:[#allocation10 + $0x1368] sm:$0xff]
        %v1606 = vld [vmem:[#allocation10 + $0x1370] sm:$0xff]
        %v1607 = vld [vmem:[#allocation10 + $0x1378] sm:$0xff]
        %v1608 = vld [vmem:[#allocation10 + $0x1380] sm:$0xff]
        %v1609 = vld [vmem:[#allocation10 + $0x1388] sm:$0xff]
        %v1610 = vld [vmem:[#allocation10 + $0x1390] sm:$0xff]
        %v1611 = vld [vmem:[#allocation10 + $0x1398] sm:$0xff]
        %v1612 = vld [vmem:[#allocation10 + $0x13a0] sm:$0xff]
        %v1613 = vld [vmem:[#allocation10 + $0x13a8] sm:$0xff]
        %v1614 = vld [vmem:[#allocation10 + $0x13b0] sm:$0xff]
        %v1615 = vld [vmem:[#allocation10 + $0x13b8] sm:$0xff]
        %v1616 = vld [vmem:[#allocation10 + $0x13c0] sm:$0xff]
        %v1617 = vld [vmem:[#allocation10 + $0x13c8] sm:$0xff]
        %v1618 = vld [vmem:[#allocation10 + $0x13d0] sm:$0xff]
        %v1619 = vld [vmem:[#allocation10 + $0x13d8] sm:$0xff]
        %v1620 = vld [vmem:[#allocation10 + $0x13e0] sm:$0xff]
        %v1621 = vld [vmem:[#allocation10 + $0x13e8] sm:$0xff]
        %v1622 = vld [vmem:[#allocation10 + $0x13f0] sm:$0xff]
        %v1623 = vld [vmem:[#allocation10 + $0x13f8] sm:$0xff]
        %v1624 = vld [vmem:[#allocation10 + $0x1400] sm:$0xff]
        %v1625 = vld [vmem:[#allocation10 + $0x1408] sm:$0xff]
        %v1626 = vld [vmem:[#allocation10 + $0x1410] sm:$0xff]
        %v1627 = vld [vmem:[#allocation10 + $0x1418] sm:$0xff]
        %v1628 = vld [vmem:[#allocation10 + $0x1420] sm:$0xff]
        %v1629 = vld [vmem:[#allocation10 + $0x1428] sm:$0xff]
        %v1630 = vld [vmem:[#allocation10 + $0x1430] sm:$0xff]
        %v1631 = vld [vmem:[#allocation10 + $0x1438] sm:$0xff]
        %v1632 = vld [vmem:[#allocation10 + $0x1440] sm:$0xff]
        %v1633 = vld [vmem:[#allocation10 + $0x1448] sm:$0xff]
        %v1634 = vld [vmem:[#allocation10 + $0x1450] sm:$0xff]
        %v1635 = vld [vmem:[#allocation10 + $0x1458] sm:$0xff]
        %v1636 = vld [vmem:[#allocation10 + $0x1460] sm:$0xff]
        %v1637 = vld [vmem:[#allocation10 + $0x1468] sm:$0xff]
        %v1638 = vld [vmem:[#allocation10 + $0x1470] sm:$0xff]
        %v1639 = vld [vmem:[#allocation10 + $0x1478] sm:$0xff]
        %v1640 = vld [vmem:[#allocation10 + $0x1480] sm:$0xff]
        %v1641 = vld [vmem:[#allocation10 + $0x1488] sm:$0xff]
        %v1642 = vld [vmem:[#allocation10 + $0x1490] sm:$0xff]
        %v1643 = vld [vmem:[#allocation10 + $0x1498] sm:$0xff]
        %v1644 = vld [vmem:[#allocation10 + $0x14a0] sm:$0xff]
        %v1645 = vld [vmem:[#allocation10 + $0x14a8] sm:$0xff]
        %v1646 = vld [vmem:[#allocation10 + $0x14b0] sm:$0xff]
        %v1647 = vld [vmem:[#allocation10 + $0x14b8] sm:$0xff]
        %v1648 = vld [vmem:[#allocation10 + $0x14c0] sm:$0xff]
        %v1649 = vld [vmem:[#allocation10 + $0x14c8] sm:$0xff]
        %v1650 = vld [vmem:[#allocation10 + $0x14d0] sm:$0xff]
        %v1651 = vld [vmem:[#allocation10 + $0x14d8] sm:$0xff]
        %v1652 = vld [vmem:[#allocation10 + $0x14e0] sm:$0xff]
        %v1653 = vld [vmem:[#allocation10 + $0x14e8] sm:$0xff]
        %v1654 = vld [vmem:[#allocation10 + $0x14f0] sm:$0xff]
        %v1655 = vld [vmem:[#allocation10 + $0x14f8] sm:$0xff]
        %v1656 = vld [vmem:[#allocation10 + $0x1500] sm:$0xff]
        %v1657 = vld [vmem:[#allocation10 + $0x1508] sm:$0xff]
        %v1658 = vld [vmem:[#allocation10 + $0x1510] sm:$0xff]
        %v1659 = vld [vmem:[#allocation10 + $0x1518] sm:$0xff]
        %v1660 = vld [vmem:[#allocation10 + $0x1520] sm:$0xff]
        %v1661 = vld [vmem:[#allocation10 + $0x1528] sm:$0xff]
        %v1662 = vld [vmem:[#allocation10 + $0x1530] sm:$0xff]
        %v1663 = vld [vmem:[#allocation10 + $0x1538] sm:$0xff]
        %v1664 = vld [vmem:[#allocation10 + $0x1540] sm:$0xff]
        %v1665 = vld [vmem:[#allocation10 + $0x1548] sm:$0xff]
        %v1666 = vld [vmem:[#allocation10 + $0x1550] sm:$0xff]
        %v1667 = vld [vmem:[#allocation10 + $0x1558] sm:$0xff]
        %v1668 = vld [vmem:[#allocation10 + $0x1560] sm:$0xff]
        %v1669 = vld [vmem:[#allocation10 + $0x1568] sm:$0xff]
        %v1670 = vld [vmem:[#allocation10 + $0x1570] sm:$0xff]
        %v1671 = vld [vmem:[#allocation10 + $0x1578] sm:$0xff]
        %v1672 = vld [vmem:[#allocation10 + $0x1580] sm:$0xff]
        %v1673 = vld [vmem:[#allocation10 + $0x1588] sm:$0xff]
        %v1674 = vld [vmem:[#allocation10 + $0x1590] sm:$0xff]
        %v1675 = vld [vmem:[#allocation10 + $0x1598] sm:$0xff]
        %v1676 = vld [vmem:[#allocation10 + $0x15a0] sm:$0xff]
        %v1677 = vld [vmem:[#allocation10 + $0x15a8] sm:$0xff]
        %v1678 = vld [vmem:[#allocation10 + $0x15b0] sm:$0xff]
        %v1679 = vld [vmem:[#allocation10 + $0x15b8] sm:$0xff]
        %v1680 = vld [vmem:[#allocation10 + $0x15c0] sm:$0xff]
        %v1681 = vld [vmem:[#allocation10 + $0x15c8] sm:$0xff]
        %v1682 = vld [vmem:[#allocation10 + $0x15d0] sm:$0xff]
        %v1683 = vld [vmem:[#allocation10 + $0x15d8] sm:$0xff]
        %v1684 = vld [vmem:[#allocation10 + $0x15e0] sm:$0xff]
        %v1685 = vld [vmem:[#allocation10 + $0x15e8] sm:$0xff]
        %v1686 = vld [vmem:[#allocation10 + $0x15f0] sm:$0xff]
        %v1687 = vld [vmem:[#allocation10 + $0x15f8] sm:$0xff]
        %v1688 = vld [vmem:[#allocation10 + $0x1600] sm:$0xff]
        %v1689 = vld [vmem:[#allocation10 + $0x1608] sm:$0xff]
        %v1690 = vld [vmem:[#allocation10 + $0x1610] sm:$0xff]
        %v1691 = vld [vmem:[#allocation10 + $0x1618] sm:$0xff]
        %v1692 = vld [vmem:[#allocation10 + $0x1620] sm:$0xff]
        %v1693 = vld [vmem:[#allocation10 + $0x1628] sm:$0xff]
        %v1694 = vld [vmem:[#allocation10 + $0x1630] sm:$0xff]
        %v1695 = vld [vmem:[#allocation10 + $0x1638] sm:$0xff]
        %v1696 = vld [vmem:[#allocation10 + $0x1640] sm:$0xff]
        %v1697 = vld [vmem:[#allocation10 + $0x1648] sm:$0xff]
        %v1698 = vld [vmem:[#allocation10 + $0x1650] sm:$0xff]
        %v1699 = vld [vmem:[#allocation10 + $0x1658] sm:$0xff]
        %v1700 = vld [vmem:[#allocation10 + $0x1660] sm:$0xff]
        %v1701 = vld [vmem:[#allocation10 + $0x1668] sm:$0xff]
        %v1702 = vld [vmem:[#allocation10 + $0x1670] sm:$0xff]
        %v1703 = vld [vmem:[#allocation10 + $0x1678] sm:$0xff]
        %v1704 = vld [vmem:[#allocation10 + $0x1680] sm:$0xff]
        %v1705 = vld [vmem:[#allocation10 + $0x1688] sm:$0xff]
        %v1706 = vld [vmem:[#allocation10 + $0x1690] sm:$0xff]
        %v1707 = vld [vmem:[#allocation10 + $0x1698] sm:$0xff]
        %v1708 = vld [vmem:[#allocation10 + $0x16a0] sm:$0xff]
        %v1709 = vld [vmem:[#allocation10 + $0x16a8] sm:$0xff]
        %v1710 = vld [vmem:[#allocation10 + $0x16b0] sm:$0xff]
        %v1711 = vld [vmem:[#allocation10 + $0x16b8] sm:$0xff]
        %v1712 = vld [vmem:[#allocation10 + $0x16c0] sm:$0xff]
        %v1713 = vld [vmem:[#allocation10 + $0x16c8] sm:$0xff]
        %v1714 = vld [vmem:[#allocation10 + $0x16d0] sm:$0xff]
        %v1715 = vld [vmem:[#allocation10 + $0x16d8] sm:$0xff]
        %v1716 = vld [vmem:[#allocation10 + $0x16e0] sm:$0xff]
        %v1717 = vld [vmem:[#allocation10 + $0x16e8] sm:$0xff]
        %v1718 = vld [vmem:[#allocation10 + $0x16f0] sm:$0xff]
        %v1719 = vld [vmem:[#allocation10 + $0x16f8] sm:$0xff]
        %v1720 = vld [vmem:[#allocation10 + $0x1700] sm:$0xff]
        %v1721 = vld [vmem:[#allocation10 + $0x1708] sm:$0xff]
        %v1722 = vld [vmem:[#allocation10 + $0x1710] sm:$0xff]
        %v1723 = vld [vmem:[#allocation10 + $0x1718] sm:$0xff]
        %v1724 = vld [vmem:[#allocation10 + $0x1720] sm:$0xff]
        %v1725 = vld [vmem:[#allocation10 + $0x1728] sm:$0xff]
        %v1726 = vld [vmem:[#allocation10 + $0x1730] sm:$0xff]
        %v1727 = vld [vmem:[#allocation10 + $0x1738] sm:$0xff]
        %v1728 = vld [vmem:[#allocation10 + $0x1740] sm:$0xff]
        %v1729 = vld [vmem:[#allocation10 + $0x1748] sm:$0xff]
        %v1730 = vld [vmem:[#allocation10 + $0x1750] sm:$0xff]
        %v1731 = vld [vmem:[#allocation10 + $0x1758] sm:$0xff]
        %v1732 = vld [vmem:[#allocation10 + $0x1760] sm:$0xff]
        %v1733 = vld [vmem:[#allocation10 + $0x1768] sm:$0xff]
        %v1734 = vld [vmem:[#allocation10 + $0x1770] sm:$0xff]
        %v1735 = vld [vmem:[#allocation10 + $0x1778] sm:$0xff]
        %v1736 = vld [vmem:[#allocation10 + $0x1780] sm:$0xff]
        %v1737 = vld [vmem:[#allocation10 + $0x1788] sm:$0xff]
        %v1738 = vld [vmem:[#allocation10 + $0x1790] sm:$0xff]
        %v1739 = vld [vmem:[#allocation10 + $0x1798] sm:$0xff]
        %v1740 = vld [vmem:[#allocation10 + $0x17a0] sm:$0xff]
        %v1741 = vld [vmem:[#allocation10 + $0x17a8] sm:$0xff]
        %v1742 = vld [vmem:[#allocation10 + $0x17b0] sm:$0xff]
        %v1743 = vld [vmem:[#allocation10 + $0x17b8] sm:$0xff]
        %v1744 = vld [vmem:[#allocation10 + $0x17c0] sm:$0xff]
        %v1745 = vld [vmem:[#allocation10 + $0x17c8] sm:$0xff]
        %v1746 = vld [vmem:[#allocation10 + $0x17d0] sm:$0xff]
        %v1747 = vld [vmem:[#allocation10 + $0x17d8] sm:$0xff]
        %v1748 = vld [vmem:[#allocation10 + $0x17e0] sm:$0xff]
        %v1749 = vld [vmem:[#allocation10 + $0x17e8] sm:$0xff]
        %v1750 = vld [vmem:[#allocation10 + $0x17f0] sm:$0xff]
        %v1751 = vld [vmem:[#allocation10 + $0x17f8] sm:$0xff]
        %v1752 = vld [vmem:[#allocation10 + $0x1800] sm:$0xff]
        %v1753 = vld [vmem:[#allocation10 + $0x1808] sm:$0xff]
        %v1754 = vld [vmem:[#allocation10 + $0x1810] sm:$0xff]
        %v1755 = vld [vmem:[#allocation10 + $0x1818] sm:$0xff]
        %v1756 = vld [vmem:[#allocation10 + $0x1820] sm:$0xff]
        %v1757 = vld [vmem:[#allocation10 + $0x1828] sm:$0xff]
        %v1758 = vld [vmem:[#allocation10 + $0x1830] sm:$0xff]
        %v1759 = vld [vmem:[#allocation10 + $0x1838] sm:$0xff]
        %v1760 = vld [vmem:[#allocation10 + $0x1840] sm:$0xff]
        %v1761 = vld [vmem:[#allocation10 + $0x1848] sm:$0xff]
        %v1762 = vld [vmem:[#allocation10 + $0x1850] sm:$0xff]
        %v1763 = vld [vmem:[#allocation10 + $0x1858] sm:$0xff]
        %v1764 = vld [vmem:[#allocation10 + $0x1860] sm:$0xff]
        %v1765 = vld [vmem:[#allocation10 + $0x1868] sm:$0xff]
        %v1766 = vld [vmem:[#allocation10 + $0x1870] sm:$0xff]
        %v1767 = vld [vmem:[#allocation10 + $0x1878] sm:$0xff]
        %v1768 = vld [vmem:[#allocation10 + $0x1880] sm:$0xff]
        %v1769 = vld [vmem:[#allocation10 + $0x1888] sm:$0xff]
        %v1770 = vld [vmem:[#allocation10 + $0x1890] sm:$0xff]
        %v1771 = vld [vmem:[#allocation10 + $0x1898] sm:$0xff]
        %v1772 = vld [vmem:[#allocation10 + $0x18a0] sm:$0xff]
        %v1773 = vld [vmem:[#allocation10 + $0x18a8] sm:$0xff]
        %v1774 = vld [vmem:[#allocation10 + $0x18b0] sm:$0xff]
        %v1775 = vld [vmem:[#allocation10 + $0x18b8] sm:$0xff]
        %v1776 = vld [vmem:[#allocation10 + $0x18c0] sm:$0xff]
        %v1777 = vld [vmem:[#allocation10 + $0x18c8] sm:$0xff]
        %v1778 = vld [vmem:[#allocation10 + $0x18d0] sm:$0xff]
        %v1779 = vld [vmem:[#allocation10 + $0x18d8] sm:$0xff]
        %v1780 = vld [vmem:[#allocation10 + $0x18e0] sm:$0xff]
        %v1781 = vld [vmem:[#allocation10 + $0x18e8] sm:$0xff]
        %v1782 = vld [vmem:[#allocation10 + $0x18f0] sm:$0xff]
        %v1783 = vld [vmem:[#allocation10 + $0x18f8] sm:$0xff]
        %v1784 = vld [vmem:[#allocation10 + $0x1900] sm:$0xff]
        %v1785 = vld [vmem:[#allocation10 + $0x1908] sm:$0xff]
        %v1786 = vld [vmem:[#allocation10 + $0x1910] sm:$0xff]
        %v1787 = vld [vmem:[#allocation10 + $0x1918] sm:$0xff]
        %v1788 = vld [vmem:[#allocation10 + $0x1920] sm:$0xff]
        %v1789 = vld [vmem:[#allocation10 + $0x1928] sm:$0xff]
        %v1790 = vld [vmem:[#allocation10 + $0x1930] sm:$0xff]
        %v1791 = vld [vmem:[#allocation10 + $0x1938] sm:$0xff]
        %v1792 = vld [vmem:[#allocation10 + $0x1940] sm:$0xff]
        %v1793 = vld [vmem:[#allocation10 + $0x1948] sm:$0xff]
        %v1794 = vld [vmem:[#allocation10 + $0x1950] sm:$0xff]
        %v1795 = vld [vmem:[#allocation10 + $0x1958] sm:$0xff]
        %v1796 = vld [vmem:[#allocation10 + $0x1960] sm:$0xff]
        %v1797 = vld [vmem:[#allocation10 + $0x1968] sm:$0xff]
        %v1798 = vld [vmem:[#allocation10 + $0x1970] sm:$0xff]
        %v1799 = vld [vmem:[#allocation10 + $0x1978] sm:$0xff]
        %v1800 = vld [vmem:[#allocation10 + $0x1980] sm:$0xff]
        %v1801 = vld [vmem:[#allocation10 + $0x1988] sm:$0xff]
        %v1802 = vld [vmem:[#allocation10 + $0x1990] sm:$0xff]
        %v1803 = vld [vmem:[#allocation10 + $0x1998] sm:$0xff]
        %v1804 = vld [vmem:[#allocation10 + $0x19a0] sm:$0xff]
        %v1805 = vld [vmem:[#allocation10 + $0x19a8] sm:$0xff]
        %v1806 = vld [vmem:[#allocation10 + $0x19b0] sm:$0xff]
        %v1807 = vld [vmem:[#allocation10 + $0x19b8] sm:$0xff]
        %v1808 = vld [vmem:[#allocation10 + $0x19c0] sm:$0xff]
        %v1809 = vld [vmem:[#allocation10 + $0x19c8] sm:$0xff]
        %v1810 = vld [vmem:[#allocation10 + $0x19d0] sm:$0xff]
        %v1811 = vld [vmem:[#allocation10 + $0x19d8] sm:$0xff]
        %v1812 = vld [vmem:[#allocation10 + $0x19e0] sm:$0xff]
        %v1813 = vld [vmem:[#allocation10 + $0x19e8] sm:$0xff]
        %v1814 = vld [vmem:[#allocation10 + $0x19f0] sm:$0xff]
        %v1815 = vld [vmem:[#allocation10 + $0x19f8] sm:$0xff]
        %v1816 = vld [vmem:[#allocation10 + $0x1a00] sm:$0xff]
        %v1817 = vld [vmem:[#allocation10 + $0x1a08] sm:$0xff]
        %v1818 = vld [vmem:[#allocation10 + $0x1a10] sm:$0xff]
        %v1819 = vld [vmem:[#allocation10 + $0x1a18] sm:$0xff]
        %v1820 = vld [vmem:[#allocation10 + $0x1a20] sm:$0xff]
        %v1821 = vld [vmem:[#allocation10 + $0x1a28] sm:$0xff]
        %v1822 = vld [vmem:[#allocation10 + $0x1a30] sm:$0xff]
        %v1823 = vld [vmem:[#allocation10 + $0x1a38] sm:$0xff]
        %v1824 = vld [vmem:[#allocation10 + $0x1a40] sm:$0xff]
        %v1825 = vld [vmem:[#allocation10 + $0x1a48] sm:$0xff]
        %v1826 = vld [vmem:[#allocation10 + $0x1a50] sm:$0xff]
        %v1827 = vld [vmem:[#allocation10 + $0x1a58] sm:$0xff]
        %v1828 = vld [vmem:[#allocation10 + $0x1a60] sm:$0xff]
        %v1829 = vld [vmem:[#allocation10 + $0x1a68] sm:$0xff]
        %v1830 = vld [vmem:[#allocation10 + $0x1a70] sm:$0xff]
        %v1831 = vld [vmem:[#allocation10 + $0x1a78] sm:$0xff]
        %v1832 = vld [vmem:[#allocation10 + $0x1a80] sm:$0xff]
        %v1833 = vld [vmem:[#allocation10 + $0x1a88] sm:$0xff]
        %v1834 = vld [vmem:[#allocation10 + $0x1a90] sm:$0xff]
        %v1835 = vld [vmem:[#allocation10 + $0x1a98] sm:$0xff]
        %v1836 = vld [vmem:[#allocation10 + $0x1aa0] sm:$0xff]
        %v1837 = vld [vmem:[#allocation10 + $0x1aa8] sm:$0xff]
        %v1838 = vld [vmem:[#allocation10 + $0x1ab0] sm:$0xff]
        %v1839 = vld [vmem:[#allocation10 + $0x1ab8] sm:$0xff]
        %v1840 = vld [vmem:[#allocation10 + $0x1ac0] sm:$0xff]
        %v1841 = vld [vmem:[#allocation10 + $0x1ac8] sm:$0xff]
        %v1842 = vld [vmem:[#allocation10 + $0x1ad0] sm:$0xff]
        %v1843 = vld [vmem:[#allocation10 + $0x1ad8] sm:$0xff]
        %v1844 = vld [vmem:[#allocation10 + $0x1ae0] sm:$0xff]
        %v1845 = vld [vmem:[#allocation10 + $0x1ae8] sm:$0xff]
        %v1846 = vld [vmem:[#allocation10 + $0x1af0] sm:$0xff]
        %v1847 = vld [vmem:[#allocation10 + $0x1af8] sm:$0xff]
        %v1848 = vld [vmem:[#allocation10 + $0x1b00] sm:$0xff]
        %v1849 = vld [vmem:[#allocation10 + $0x1b08] sm:$0xff]
        %v1850 = vld [vmem:[#allocation10 + $0x1b10] sm:$0xff]
        %v1851 = vld [vmem:[#allocation10 + $0x1b18] sm:$0xff]
        %v1852 = vld [vmem:[#allocation10 + $0x1b20] sm:$0xff]
        %v1853 = vld [vmem:[#allocation10 + $0x1b28] sm:$0xff]
        %v1854 = vld [vmem:[#allocation10 + $0x1b30] sm:$0xff]
        %v1855 = vld [vmem:[#allocation10 + $0x1b38] sm:$0xff]
        %v1856 = vld [vmem:[#allocation10 + $0x1b40] sm:$0xff]
        %v1857 = vld [vmem:[#allocation10 + $0x1b48] sm:$0xff]
        %v1858 = vld [vmem:[#allocation10 + $0x1b50] sm:$0xff]
        %v1859 = vld [vmem:[#allocation10 + $0x1b58] sm:$0xff]
        %v1860 = vld [vmem:[#allocation10 + $0x1b60] sm:$0xff]
        %v1861 = vld [vmem:[#allocation10 + $0x1b68] sm:$0xff]
        %v1862 = vld [vmem:[#allocation10 + $0x1b70] sm:$0xff]
        %v1863 = vld [vmem:[#allocation10 + $0x1b78] sm:$0xff]
        %v1864 = vld [vmem:[#allocation10 + $0x1b80] sm:$0xff]
        %v1865 = vld [vmem:[#allocation10 + $0x1b88] sm:$0xff]
        %v1866 = vld [vmem:[#allocation10 + $0x1b90] sm:$0xff]
        %v1867 = vld [vmem:[#allocation10 + $0x1b98] sm:$0xff]
        %v1868 = vld [vmem:[#allocation10 + $0x1ba0] sm:$0xff]
        %v1869 = vld [vmem:[#allocation10 + $0x1ba8] sm:$0xff]
        %v1870 = vld [vmem:[#allocation10 + $0x1bb0] sm:$0xff]
        %v1871 = vld [vmem:[#allocation10 + $0x1bb8] sm:$0xff]
        %v1872 = vld [vmem:[#allocation10 + $0x1bc0] sm:$0xff]
        %v1873 = vld [vmem:[#allocation10 + $0x1bc8] sm:$0xff]
        %v1874 = vld [vmem:[#allocation10 + $0x1bd0] sm:$0xff]
        %v1875 = vld [vmem:[#allocation10 + $0x1bd8] sm:$0xff]
        %v1876 = vld [vmem:[#allocation10 + $0x1be0] sm:$0xff]
        %v1877 = vld [vmem:[#allocation10 + $0x1be8] sm:$0xff]
        %v1878 = vld [vmem:[#allocation10 + $0x1bf0] sm:$0xff]
        %v1879 = vld [vmem:[#allocation10 + $0x1bf8] sm:$0xff]
        %v1880 = vld [vmem:[#allocation10 + $0x1c00] sm:$0xff]
        %v1881 = vld [vmem:[#allocation10 + $0x1c08] sm:$0xff]
        %v1882 = vld [vmem:[#allocation10 + $0x1c10] sm:$0xff]
        %v1883 = vld [vmem:[#allocation10 + $0x1c18] sm:$0xff]
        %v1884 = vld [vmem:[#allocation10 + $0x1c20] sm:$0xff]
        %v1885 = vld [vmem:[#allocation10 + $0x1c28] sm:$0xff]
        %v1886 = vld [vmem:[#allocation10 + $0x1c30] sm:$0xff]
        %v1887 = vld [vmem:[#allocation10 + $0x1c38] sm:$0xff]
        %v1888 = vld [vmem:[#allocation10 + $0x1c40] sm:$0xff]
        %v1889 = vld [vmem:[#allocation10 + $0x1c48] sm:$0xff]
        %v1890 = vld [vmem:[#allocation10 + $0x1c50] sm:$0xff]
        %v1891 = vld [vmem:[#allocation10 + $0x1c58] sm:$0xff]
        %v1892 = vld [vmem:[#allocation10 + $0x1c60] sm:$0xff]
        %v1893 = vld [vmem:[#allocation10 + $0x1c68] sm:$0xff]
        %v1894 = vld [vmem:[#allocation10 + $0x1c70] sm:$0xff]
        %v1895 = vld [vmem:[#allocation10 + $0x1c78] sm:$0xff]
        %v1896 = vld [vmem:[#allocation10 + $0x1c80] sm:$0xff]
        %v1897 = vld [vmem:[#allocation10 + $0x1c88] sm:$0xff]
        %v1898 = vld [vmem:[#allocation10 + $0x1c90] sm:$0xff]
        %v1899 = vld [vmem:[#allocation10 + $0x1c98] sm:$0xff]
        %v1900 = vld [vmem:[#allocation10 + $0x1ca0] sm:$0xff]
        %v1901 = vld [vmem:[#allocation10 + $0x1ca8] sm:$0xff]
        %v1902 = vld [vmem:[#allocation10 + $0x1cb0] sm:$0xff]
        %v1903 = vld [vmem:[#allocation10 + $0x1cb8] sm:$0xff]
        %v1904 = vld [vmem:[#allocation10 + $0x1cc0] sm:$0xff]
        %v1905 = vld [vmem:[#allocation10 + $0x1cc8] sm:$0xff]
        %v1906 = vld [vmem:[#allocation10 + $0x1cd0] sm:$0xff]
        %v1907 = vld [vmem:[#allocation10 + $0x1cd8] sm:$0xff]
        %v1908 = vld [vmem:[#allocation10 + $0x1ce0] sm:$0xff]
        %v1909 = vld [vmem:[#allocation10 + $0x1ce8] sm:$0xff]
        %v1910 = vld [vmem:[#allocation10 + $0x1cf0] sm:$0xff]
        %v1911 = vld [vmem:[#allocation10 + $0x1cf8] sm:$0xff]
        %v1912 = vld [vmem:[#allocation10 + $0x1d00] sm:$0xff]
        %v1913 = vld [vmem:[#allocation10 + $0x1d08] sm:$0xff]
        %v1914 = vld [vmem:[#allocation10 + $0x1d10] sm:$0xff]
        %v1915 = vld [vmem:[#allocation10 + $0x1d18] sm:$0xff]
        %v1916 = vld [vmem:[#allocation10 + $0x1d20] sm:$0xff]
        %v1917 = vld [vmem:[#allocation10 + $0x1d28] sm:$0xff]
        %v1918 = vld [vmem:[#allocation10 + $0x1d30] sm:$0xff]
        %v1919 = vld [vmem:[#allocation10 + $0x1d38] sm:$0xff]
        %v1920 = vld [vmem:[#allocation10 + $0x1d40] sm:$0xff]
        %v1921 = vld [vmem:[#allocation10 + $0x1d48] sm:$0xff]
        %v1922 = vld [vmem:[#allocation10 + $0x1d50] sm:$0xff]
        %v1923 = vld [vmem:[#allocation10 + $0x1d58] sm:$0xff]
        %v1924 = vld [vmem:[#allocation10 + $0x1d60] sm:$0xff]
        %v1925 = vld [vmem:[#allocation10 + $0x1d68] sm:$0xff]
        %v1926 = vld [vmem:[#allocation10 + $0x1d70] sm:$0xff]
        %v1927 = vld [vmem:[#allocation10 + $0x1d78] sm:$0xff]
        %v1928 = vld [vmem:[#allocation10 + $0x1d80] sm:$0xff]
        %v1929 = vld [vmem:[#allocation10 + $0x1d88] sm:$0xff]
        %v1930 = vld [vmem:[#allocation10 + $0x1d90] sm:$0xff]
        %v1931 = vld [vmem:[#allocation10 + $0x1d98] sm:$0xff]
        %v1932 = vld [vmem:[#allocation10 + $0x1da0] sm:$0xff]
        %v1933 = vld [vmem:[#allocation10 + $0x1da8] sm:$0xff]
        %v1934 = vld [vmem:[#allocation10 + $0x1db0] sm:$0xff]
        %v1935 = vld [vmem:[#allocation10 + $0x1db8] sm:$0xff]
        %v1936 = vld [vmem:[#allocation10 + $0x1dc0] sm:$0xff]
        %v1937 = vld [vmem:[#allocation10 + $0x1dc8] sm:$0xff]
        %v1938 = vld [vmem:[#allocation10 + $0x1dd0] sm:$0xff]
        %v1939 = vld [vmem:[#allocation10 + $0x1dd8] sm:$0xff]
        %v1940 = vld [vmem:[#allocation10 + $0x1de0] sm:$0xff]
        %v1941 = vld [vmem:[#allocation10 + $0x1de8] sm:$0xff]
        %v1942 = vld [vmem:[#allocation10 + $0x1df0] sm:$0xff]
        %v1943 = vld [vmem:[#allocation10 + $0x1df8] sm:$0xff]
        %v1944 = vld [vmem:[#allocation10 + $0x1e00] sm:$0xff]
        %v1945 = vld [vmem:[#allocation10 + $0x1e08] sm:$0xff]
        %v1946 = vld [vmem:[#allocation10 + $0x1e10] sm:$0xff]
        %v1947 = vld [vmem:[#allocation10 + $0x1e18] sm:$0xff]
        %v1948 = vld [vmem:[#allocation10 + $0x1e20] sm:$0xff]
        %v1949 = vld [vmem:[#allocation10 + $0x1e28] sm:$0xff]
        %v1950 = vld [vmem:[#allocation10 + $0x1e30] sm:$0xff]
        %v1951 = vld [vmem:[#allocation10 + $0x1e38] sm:$0xff]
        %v1952 = vld [vmem:[#allocation10 + $0x1e40] sm:$0xff]
        %v1953 = vld [vmem:[#allocation10 + $0x1e48] sm:$0xff]
        %v1954 = vld [vmem:[#allocation10 + $0x1e50] sm:$0xff]
        %v1955 = vld [vmem:[#allocation10 + $0x1e58] sm:$0xff]
        %v1956 = vld [vmem:[#allocation10 + $0x1e60] sm:$0xff]
        %v1957 = vld [vmem:[#allocation10 + $0x1e68] sm:$0xff]
        %v1958 = vld [vmem:[#allocation10 + $0x1e70] sm:$0xff]
        %v1959 = vld [vmem:[#allocation10 + $0x1e78] sm:$0xff]
        %v1960 = vld [vmem:[#allocation10 + $0x1e80] sm:$0xff]
        %v1961 = vld [vmem:[#allocation10 + $0x1e88] sm:$0xff]
        %v1962 = vld [vmem:[#allocation10 + $0x1e90] sm:$0xff]
        %v1963 = vld [vmem:[#allocation10 + $0x1e98] sm:$0xff]
        %v1964 = vld [vmem:[#allocation10 + $0x1ea0] sm:$0xff]
        %v1965 = vld [vmem:[#allocation10 + $0x1ea8] sm:$0xff]
        %v1966 = vld [vmem:[#allocation10 + $0x1eb0] sm:$0xff]
        %v1967 = vld [vmem:[#allocation10 + $0x1eb8] sm:$0xff]
        %v1968 = vld [vmem:[#allocation10 + $0x1ec0] sm:$0xff]
        %v1969 = vld [vmem:[#allocation10 + $0x1ec8] sm:$0xff]
        %v1970 = vld [vmem:[#allocation10 + $0x1ed0] sm:$0xff]
        %v1971 = vld [vmem:[#allocation10 + $0x1ed8] sm:$0xff]
        %v1972 = vld [vmem:[#allocation10 + $0x1ee0] sm:$0xff]
        %v1973 = vld [vmem:[#allocation10 + $0x1ee8] sm:$0xff]
        %v1974 = vld [vmem:[#allocation10 + $0x1ef0] sm:$0xff]
        %v1975 = vld [vmem:[#allocation10 + $0x1ef8] sm:$0xff]
        %v1976 = vld [vmem:[#allocation10 + $0x1f00] sm:$0xff]
        %v1977 = vld [vmem:[#allocation10 + $0x1f08] sm:$0xff]
        %v1978 = vld [vmem:[#allocation10 + $0x1f10] sm:$0xff]
        %v1979 = vld [vmem:[#allocation10 + $0x1f18] sm:$0xff]
        %v1980 = vld [vmem:[#allocation10 + $0x1f20] sm:$0xff]
        %v1981 = vld [vmem:[#allocation10 + $0x1f28] sm:$0xff]
        %v1982 = vld [vmem:[#allocation10 + $0x1f30] sm:$0xff]
        %v1983 = vld [vmem:[#allocation10 + $0x1f38] sm:$0xff]
        %v1984 = vld [vmem:[#allocation10 + $0x1f40] sm:$0xff]
        %v1985 = vld [vmem:[#allocation10 + $0x1f48] sm:$0xff]
        %v1986 = vld [vmem:[#allocation10 + $0x1f50] sm:$0xff]
        %v1987 = vld [vmem:[#allocation10 + $0x1f58] sm:$0xff]
        %v1988 = vld [vmem:[#allocation10 + $0x1f60] sm:$0xff]
        %v1989 = vld [vmem:[#allocation10 + $0x1f68] sm:$0xff]
        %v1990 = vld [vmem:[#allocation10 + $0x1f70] sm:$0xff]
        %v1991 = vld [vmem:[#allocation10 + $0x1f78] sm:$0xff]
        %v1992 = vld [vmem:[#allocation10 + $0x1f80] sm:$0xff]
        %v1993 = vld [vmem:[#allocation10 + $0x1f88] sm:$0xff]
        %v1994 = vld [vmem:[#allocation10 + $0x1f90] sm:$0xff]
        %v1995 = vld [vmem:[#allocation10 + $0x1f98] sm:$0xff]
        %v1996 = vld [vmem:[#allocation10 + $0x1fa0] sm:$0xff]
        %v1997 = vld [vmem:[#allocation10 + $0x1fa8] sm:$0xff]
        %v1998 = vld [vmem:[#allocation10 + $0x1fb0] sm:$0xff]
        %v1999 = vld [vmem:[#allocation10 + $0x1fb8] sm:$0xff]
        %v2000 = vld [vmem:[#allocation10 + $0x1fc0] sm:$0xff]
        %v2001 = vld [vmem:[#allocation10 + $0x1fc8] sm:$0xff]
        %v2002 = vld [vmem:[#allocation10 + $0x1fd0] sm:$0xff]
        %v2003 = vld [vmem:[#allocation10 + $0x1fd8] sm:$0xff]
        %v2004 = vld [vmem:[#allocation10 + $0x1fe0] sm:$0xff]
        %v2005 = vld [vmem:[#allocation10 + $0x1fe8] sm:$0xff]
        %v2006 = vld [vmem:[#allocation10 + $0x1ff0] sm:$0xff]
        %v2007 = vld [vmem:[#allocation10 + $0x1ff8] sm:$0xff]
        %v2008 = vld [vmem:[#allocation10 + $0x2000] sm:$0xff]
        %v2009 = vld [vmem:[#allocation10 + $0x2008] sm:$0xff]
        %v2010 = vld [vmem:[#allocation10 + $0x2010] sm:$0xff]
        %v2011 = vld [vmem:[#allocation10 + $0x2018] sm:$0xff]
        %v2012 = vld [vmem:[#allocation10 + $0x2020] sm:$0xff]
        %v2013 = vld [vmem:[#allocation10 + $0x2028] sm:$0xff]
        %v2014 = vld [vmem:[#allocation10 + $0x2030] sm:$0xff]
        %v2015 = vld [vmem:[#allocation10 + $0x2038] sm:$0xff]
        %v2016 = vld [vmem:[#allocation10 + $0x2040] sm:$0xff]
        %v2017 = vld [vmem:[#allocation10 + $0x2048] sm:$0xff]
        %v2018 = vld [vmem:[#allocation10 + $0x2050] sm:$0xff]
        %v2019 = vld [vmem:[#allocation10 + $0x2058] sm:$0xff]
        %v2020 = vld [vmem:[#allocation10 + $0x2060] sm:$0xff]
        %v2021 = vld [vmem:[#allocation10 + $0x2068] sm:$0xff]
        %v2022 = vld [vmem:[#allocation10 + $0x2070] sm:$0xff]
        %v2023 = vld [vmem:[#allocation10 + $0x2078] sm:$0xff]
        %v2024 = vld [vmem:[#allocation10 + $0x2080] sm:$0xff]
        %v2025 = vld [vmem:[#allocation10 + $0x2088] sm:$0xff]
        %v2026 = vld [vmem:[#allocation10 + $0x2090] sm:$0xff]
        %v2027 = vld [vmem:[#allocation10 + $0x2098] sm:$0xff]
        %v2028 = vld [vmem:[#allocation10 + $0x20a0] sm:$0xff]
        %v2029 = vld [vmem:[#allocation10 + $0x20a8] sm:$0xff]
        %v2030 = vld [vmem:[#allocation10 + $0x20b0] sm:$0xff]
        %v2031 = vld [vmem:[#allocation10 + $0x20b8] sm:$0xff]
        %v2032 = vld [vmem:[#allocation10 + $0x20c0] sm:$0xff]
        %v2033 = vld [vmem:[#allocation10 + $0x20c8] sm:$0xff]
        %v2034 = vld [vmem:[#allocation10 + $0x20d0] sm:$0xff]
        %v2035 = vld [vmem:[#allocation10 + $0x20d8] sm:$0xff]
        %v2036 = vld [vmem:[#allocation10 + $0x20e0] sm:$0xff]
        %v2037 = vld [vmem:[#allocation10 + $0x20e8] sm:$0xff]
        %v2038 = vld [vmem:[#allocation10 + $0x20f0] sm:$0xff]
        %v2039 = vld [vmem:[#allocation10 + $0x20f8] sm:$0xff]
        %v2040 = vld [vmem:[#allocation10 + $0x2100] sm:$0xff]
        %v2041 = vld [vmem:[#allocation10 + $0x2108] sm:$0xff]
        %v2042 = vld [vmem:[#allocation10 + $0x2110] sm:$0xff]
        %v2043 = vld [vmem:[#allocation10 + $0x2118] sm:$0xff]
        %v2044 = vld [vmem:[#allocation10 + $0x2120] sm:$0xff]
        %v2045 = vld [vmem:[#allocation10 + $0x2128] sm:$0xff]
        %v2046 = vld [vmem:[#allocation10 + $0x2130] sm:$0xff]
        %v2047 = vld [vmem:[#allocation10 + $0x2138] sm:$0xff]
        %v2048 = vld [vmem:[#allocation10 + $0x2140] sm:$0xff]
        %v2049 = vld [vmem:[#allocation10 + $0x2148] sm:$0xff]
        %v2050 = vld [vmem:[#allocation10 + $0x2150] sm:$0xff]
        %v2051 = vld [vmem:[#allocation10 + $0x2158] sm:$0xff]
        %v2052 = vld [vmem:[#allocation10 + $0x2160] sm:$0xff]
        %v2053 = vld [vmem:[#allocation10 + $0x2168] sm:$0xff]
        %v2054 = vld [vmem:[#allocation10 + $0x2170] sm:$0xff]
        %v2055 = vld [vmem:[#allocation10 + $0x2178] sm:$0xff]
        %v2056 = vld [vmem:[#allocation10 + $0x2180] sm:$0xff]
        %v2057 = vld [vmem:[#allocation10 + $0x2188] sm:$0xff]
        %v2058 = vld [vmem:[#allocation10 + $0x2190] sm:$0xff]
        %v2059 = vld [vmem:[#allocation10 + $0x2198] sm:$0xff]
        %v2060 = vld [vmem:[#allocation10 + $0x21a0] sm:$0xff]
        %v2061 = vld [vmem:[#allocation10 + $0x21a8] sm:$0xff]
        %v2062 = vld [vmem:[#allocation10 + $0x21b0] sm:$0xff]
        %v2063 = vld [vmem:[#allocation10 + $0x21b8] sm:$0xff]
        %v2064 = vld [vmem:[#allocation10 + $0x21c0] sm:$0xff]
        %v2065 = vld [vmem:[#allocation10 + $0x21c8] sm:$0xff]
        %v2066 = vld [vmem:[#allocation10 + $0x21d0] sm:$0xff]
        %v2067 = vld [vmem:[#allocation10 + $0x21d8] sm:$0xff]
        %v2068 = vld [vmem:[#allocation10 + $0x21e0] sm:$0xff]
        %v2069 = vld [vmem:[#allocation10 + $0x21e8] sm:$0xff]
        %v2070 = vld [vmem:[#allocation10 + $0x21f0] sm:$0xff]
        %v2071 = vld [vmem:[#allocation10 + $0x21f8] sm:$0xff]
        %v2072 = vld [vmem:[#allocation10 + $0x2200] sm:$0xff]
        %v2073 = vld [vmem:[#allocation10 + $0x2208] sm:$0xff]
        %v2074 = vld [vmem:[#allocation10 + $0x2210] sm:$0xff]
        %v2075 = vld [vmem:[#allocation10 + $0x2218] sm:$0xff]
        %v2076 = vld [vmem:[#allocation10 + $0x2220] sm:$0xff]
        %v2077 = vld [vmem:[#allocation10 + $0x2228] sm:$0xff]
        %v2078 = vld [vmem:[#allocation10 + $0x2230] sm:$0xff]
        %v2079 = vld [vmem:[#allocation10 + $0x2238] sm:$0xff]
        %v2080 = vld [vmem:[#allocation10 + $0x2240] sm:$0xff]
        %v2081 = vld [vmem:[#allocation10 + $0x2248] sm:$0xff]
        %v2082 = vld [vmem:[#allocation10 + $0x2250] sm:$0xff]
        %v2083 = vld [vmem:[#allocation10 + $0x2258] sm:$0xff]
        %v2084 = vld [vmem:[#allocation10 + $0x2260] sm:$0xff]
        %v2085 = vld [vmem:[#allocation10 + $0x2268] sm:$0xff]
        %v2086 = vld [vmem:[#allocation10 + $0x2270] sm:$0xff]
        %v2087 = vld [vmem:[#allocation10 + $0x2278] sm:$0xff]
        %v2088 = vld [vmem:[#allocation10 + $0x2280] sm:$0xff]
        %v2089 = vld [vmem:[#allocation10 + $0x2288] sm:$0xff]
        %v2090 = vld [vmem:[#allocation10 + $0x2290] sm:$0xff]
        %v2091 = vld [vmem:[#allocation10 + $0x2298] sm:$0xff]
        %v2092 = vld [vmem:[#allocation10 + $0x22a0] sm:$0xff]
        %v2093 = vld [vmem:[#allocation10 + $0x22a8] sm:$0xff]
        %v2094 = vld [vmem:[#allocation10 + $0x22b0] sm:$0xff]
        %v2095 = vld [vmem:[#allocation10 + $0x22b8] sm:$0xff]
        %v2096 = vld [vmem:[#allocation10 + $0x22c0] sm:$0xff]
        %v2097 = vld [vmem:[#allocation10 + $0x22c8] sm:$0xff]
        %v2098 = vld [vmem:[#allocation10 + $0x22d0] sm:$0xff]
        %v2099 = vld [vmem:[#allocation10 + $0x22d8] sm:$0xff]
        %v2100 = vld [vmem:[#allocation10 + $0x22e0] sm:$0xff]
        %v2101 = vld [vmem:[#allocation10 + $0x22e8] sm:$0xff]
        %v2102 = vld [vmem:[#allocation10 + $0x22f0] sm:$0xff]
        %v2103 = vld [vmem:[#allocation10 + $0x22f8] sm:$0xff]
        %v2104 = vld [vmem:[#allocation10 + $0x2300] sm:$0xff]
        %v2105 = vld [vmem:[#allocation10 + $0x2308] sm:$0xff]
        %v2106 = vld [vmem:[#allocation10 + $0x2310] sm:$0xff]
        %v2107 = vld [vmem:[#allocation10 + $0x2318] sm:$0xff]
        %v2108 = vld [vmem:[#allocation10 + $0x2320] sm:$0xff]
        %v2109 = vld [vmem:[#allocation10 + $0x2328] sm:$0xff]
        %v2110 = vld [vmem:[#allocation10 + $0x2330] sm:$0xff]
        %v2111 = vld [vmem:[#allocation10 + $0x2338] sm:$0xff]
        %v2112 = vld [vmem:[#allocation10 + $0x2340] sm:$0xff]
        %v2113 = vld [vmem:[#allocation10 + $0x2348] sm:$0xff]
        %v2114 = vld [vmem:[#allocation10 + $0x2350] sm:$0xff]
        %v2115 = vld [vmem:[#allocation10 + $0x2358] sm:$0xff]
        %v2116 = vld [vmem:[#allocation10 + $0x2360] sm:$0xff]
        %v2117 = vld [vmem:[#allocation10 + $0x2368] sm:$0xff]
        %v2118 = vld [vmem:[#allocation10 + $0x2370] sm:$0xff]
        %v2119 = vld [vmem:[#allocation10 + $0x2378] sm:$0xff]
        %v2120 = vld [vmem:[#allocation10 + $0x2380] sm:$0xff]
        %v2121 = vld [vmem:[#allocation10 + $0x2388] sm:$0xff]
        %v2122 = vld [vmem:[#allocation10 + $0x2390] sm:$0xff]
        %v2123 = vld [vmem:[#allocation10 + $0x2398] sm:$0xff]
        %v2124 = vld [vmem:[#allocation10 + $0x23a0] sm:$0xff]
        %v2125 = vld [vmem:[#allocation10 + $0x23a8] sm:$0xff]
        %v2126 = vld [vmem:[#allocation10 + $0x23b0] sm:$0xff]
        %v2127 = vld [vmem:[#allocation10 + $0x23b8] sm:$0xff]
        %v2128 = vld [vmem:[#allocation10 + $0x23c0] sm:$0xff]
        %v2129 = vld [vmem:[#allocation10 + $0x23c8] sm:$0xff]
        %v2130 = vld [vmem:[#allocation10 + $0x23d0] sm:$0xff]
        %v2131 = vld [vmem:[#allocation10 + $0x23d8] sm:$0xff]
        %v2132 = vld [vmem:[#allocation10 + $0x23e0] sm:$0xff]
        %v2133 = vld [vmem:[#allocation10 + $0x23e8] sm:$0xff]
        %v2134 = vld [vmem:[#allocation10 + $0x23f0] sm:$0xff]
        %v2135 = vld [vmem:[#allocation10 + $0x23f8] sm:$0xff]
        %v2136 = vld [vmem:[#allocation11] sm:$0xff]
        %v2137 = vld [vmem:[#allocation11 + $0x8] sm:$0xff]
        %v2138 = vld [vmem:[#allocation11 + $0x10] sm:$0xff]
        %v2142 = vlaneseq
        %v2143 = vshrl.u32 %v2142, 7
        %v2144 = vsub.s32 0, %v2143
        %v2145 = vrot.slane %v2136, %v2144
        %v2146 = vlaneseq
        %v2147 = vshrl.u32 %v2146, 7
        %v2148 = vsub.s32 1, %v2147
        %v2149 = vrot.slane %v2136, %v2148
        %v2150 = vlaneseq
        %v2151 = vshrl.u32 %v2150, 7
        %v2152 = vsub.s32 2, %v2151
        %v2153 = vrot.slane %v2136, %v2152
        %v2154 = vlaneseq
        %v2155 = vshrl.u32 %v2154, 7
        %v2156 = vsub.s32 3, %v2155
        %v2157 = vrot.slane %v2136, %v2156
        %v2158 = vlaneseq
        %v2159 = vshrl.u32 %v2158, 7
        %v2160 = vsub.s32 4, %v2159
        %v2161 = vrot.slane %v2136, %v2160
        %v2162 = vlaneseq
        %v2163 = vshrl.u32 %v2162, 7
        %v2164 = vsub.s32 5, %v2163
        %v2165 = vrot.slane %v2136, %v2164
        %v2166 = vlaneseq
        %v2167 = vshrl.u32 %v2166, 7
        %v2168 = vsub.s32 6, %v2167
        %v2169 = vrot.slane %v2136, %v2168
        %v2170 = vlaneseq
        %v2171 = vshrl.u32 %v2170, 7
        %v2172 = vsub.s32 7, %v2171
        %v2173 = vrot.slane %v2136, %v2172
        %v2174 = vlaneseq
        %v2175 = vshrl.u32 %v2174, 7
        %v2176 = vsub.s32 0, %v2175
        %v2177 = vrot.slane %v2137, %v2176
        %v2178 = vlaneseq
        %v2179 = vshrl.u32 %v2178, 7
        %v2180 = vsub.s32 1, %v2179
        %v2181 = vrot.slane %v2137, %v2180
        %v2182 = vlaneseq
        %v2183 = vshrl.u32 %v2182, 7
        %v2184 = vsub.s32 2, %v2183
        %v2185 = vrot.slane %v2137, %v2184
        %v2186 = vlaneseq
        %v2187 = vshrl.u32 %v2186, 7
        %v2188 = vsub.s32 3, %v2187
        %v2189 = vrot.slane %v2137, %v2188
        %v2190 = vlaneseq
        %v2191 = vshrl.u32 %v2190, 7
        %v2192 = vsub.s32 4, %v2191
        %v2193 = vrot.slane %v2137, %v2192
        %v2194 = vlaneseq
        %v2195 = vshrl.u32 %v2194, 7
        %v2196 = vsub.s32 5, %v2195
        %v2197 = vrot.slane %v2137, %v2196
        %v2198 = vlaneseq
        %v2199 = vshrl.u32 %v2198, 7
        %v2200 = vsub.s32 6, %v2199
        %v2201 = vrot.slane %v2137, %v2200
        %v2202 = vlaneseq
        %v2203 = vshrl.u32 %v2202, 7
        %v2204 = vsub.s32 7, %v2203
        %v2205 = vrot.slane %v2137, %v2204
        %v2206 = vlaneseq
        %v2207 = vshrl.u32 %v2206, 7
        %v2208 = vsub.s32 0, %v2207
        %v2209 = vrot.slane %v2138, %v2208
        %v2210 = vlaneseq
        %v2211 = vshrl.u32 %v2210, 7
        %v2212 = vsub.s32 1, %v2211
        %v2213 = vrot.slane %v2138, %v2212
        %v2214 = vlaneseq
        %v2215 = vshrl.u32 %v2214, 7
        %v2216 = vsub.s32 2, %v2215
        %v2217 = vrot.slane %v2138, %v2216
        %v2218 = vlaneseq
        %v2219 = vshrl.u32 %v2218, 7
        %v2220 = vsub.s32 3, %v2219
        %v2221 = vrot.slane %v2138, %v2220
        %v2222 = vlaneseq
        %v2223 = vshrl.u32 %v2222, 7
        %v2224 = vsub.s32 4, %v2223
        %v2225 = vrot.slane %v2138, %v2224
        %v2226 = vlaneseq
        %v2227 = vshrl.u32 %v2226, 7
        %v2228 = vsub.s32 5, %v2227
        %v2229 = vrot.slane %v2138, %v2228
        %v2230 = vlaneseq
        %v2231 = vshrl.u32 %v2230, 7
        %v2232 = vsub.s32 6, %v2231
        %v2233 = vrot.slane %v2138, %v2232
        %v2234 = vlaneseq
        %v2235 = vshrl.u32 %v2234, 7
        %v2236 = vsub.s32 7, %v2235
        %v2237 = vrot.slane %v2138, %v2236
        %v3414 = vunpack.c.l.b16 %v984
        %v3415 = vunpack.c.h.b16 %v984
        %v3416 = vunpack.c.l.b16 %v985
        %v3417 = vunpack.c.h.b16 %v985
        %v3418 = vunpack.c.l.b16 %v986
        %v3419 = vunpack.c.h.b16 %v986
        %v3420 = vunpack.c.l.b16 %v987
        %v3421 = vunpack.c.h.b16 %v987
        %v3422 = vunpack.c.l.b16 %v988
        %v3423 = vunpack.c.h.b16 %v988
        %v3424 = vunpack.c.l.b16 %v989
        %v3425 = vunpack.c.h.b16 %v989
        %v3426 = vunpack.c.l.b16 %v990
        %v3427 = vunpack.c.h.b16 %v990
        %v3428 = vunpack.c.l.b16 %v991
        %v3429 = vunpack.c.h.b16 %v991
        %v3430 = vunpack.c.l.b16 %v992
        %v3431 = vunpack.c.h.b16 %v992
        %v3432 = vunpack.c.l.b16 %v993
        %v3433 = vunpack.c.h.b16 %v993
        %v3434 = vunpack.c.l.b16 %v994
        %v3435 = vunpack.c.h.b16 %v994
        %v3436 = vunpack.c.l.b16 %v995
        %v3437 = vunpack.c.h.b16 %v995
        %v3438 = vunpack.c.l.b16 %v996
        %v3439 = vunpack.c.h.b16 %v996
        %v3440 = vunpack.c.l.b16 %v997
        %v3441 = vunpack.c.h.b16 %v997
        %v3442 = vunpack.c.l.b16 %v998
        %v3443 = vunpack.c.h.b16 %v998
        %v3444 = vunpack.c.l.b16 %v999
        %v3445 = vunpack.c.h.b16 %v999
        %v3446 = vunpack.c.l.b16 %v1000
        %v3447 = vunpack.c.h.b16 %v1000
        %v3448 = vunpack.c.l.b16 %v1001
        %v3449 = vunpack.c.h.b16 %v1001
        %v3450 = vunpack.c.l.b16 %v1002
        %v3451 = vunpack.c.h.b16 %v1002
        %v3452 = vunpack.c.l.b16 %v1003
        %v3453 = vunpack.c.h.b16 %v1003
        %v3454 = vunpack.c.l.b16 %v1004
        %v3455 = vunpack.c.h.b16 %v1004
        %v3456 = vunpack.c.l.b16 %v1005
        %v3457 = vunpack.c.h.b16 %v1005
        %v3458 = vunpack.c.l.b16 %v1006
        %v3459 = vunpack.c.h.b16 %v1006
        %v3460 = vunpack.c.l.b16 %v1007
        %v3461 = vunpack.c.h.b16 %v1007
        %v3462 = vunpack.c.l.b16 %v1008
        %v3463 = vunpack.c.h.b16 %v1008
        %v3464 = vunpack.c.l.b16 %v1009
        %v3465 = vunpack.c.h.b16 %v1009
        %v3466 = vunpack.c.l.b16 %v1010
        %v3467 = vunpack.c.h.b16 %v1010
        %v3468 = vunpack.c.l.b16 %v1011
        %v3469 = vunpack.c.h.b16 %v1011
        %v3470 = vunpack.c.l.b16 %v1012
        %v3471 = vunpack.c.h.b16 %v1012
        %v3472 = vunpack.c.l.b16 %v1013
        %v3473 = vunpack.c.h.b16 %v1013
        %v3474 = vunpack.c.l.b16 %v1014
        %v3475 = vunpack.c.h.b16 %v1014
        %v3476 = vunpack.c.l.b16 %v1015
        %v3477 = vunpack.c.h.b16 %v1015
        %v3478 = vunpack.c.l.b16 %v1016
        %v3479 = vunpack.c.h.b16 %v1016
        %v3480 = vunpack.c.l.b16 %v1017
        %v3481 = vunpack.c.h.b16 %v1017
        %v3482 = vunpack.c.l.b16 %v1018
        %v3483 = vunpack.c.h.b16 %v1018
        %v3484 = vunpack.c.l.b16 %v1019
        %v3485 = vunpack.c.h.b16 %v1019
        %v3486 = vunpack.c.l.b16 %v1020
        %v3487 = vunpack.c.h.b16 %v1020
        %v3488 = vunpack.c.l.b16 %v1021
        %v3489 = vunpack.c.h.b16 %v1021
        %v3490 = vunpack.c.l.b16 %v1022
        %v3491 = vunpack.c.h.b16 %v1022
        %v3492 = vunpack.c.l.b16 %v1023
        %v3493 = vunpack.c.h.b16 %v1023
        %v3494 = vunpack.c.l.b16 %v1024
        %v3495 = vunpack.c.h.b16 %v1024
        %v3496 = vunpack.c.l.b16 %v1025
        %v3497 = vunpack.c.h.b16 %v1025
        %v3498 = vunpack.c.l.b16 %v1026
        %v3499 = vunpack.c.h.b16 %v1026
        %v3500 = vunpack.c.l.b16 %v1027
        %v3501 = vunpack.c.h.b16 %v1027
        %v3502 = vunpack.c.l.b16 %v1028
        %v3503 = vunpack.c.h.b16 %v1028
        %v3504 = vunpack.c.l.b16 %v1029
        %v3505 = vunpack.c.h.b16 %v1029
        %v3506 = vunpack.c.l.b16 %v1030
        %v3507 = vunpack.c.h.b16 %v1030
        %v3508 = vunpack.c.l.b16 %v1031
        %v3509 = vunpack.c.h.b16 %v1031
        %v3510 = vunpack.c.l.b16 %v1032
        %v3511 = vunpack.c.h.b16 %v1032
        %v3512 = vunpack.c.l.b16 %v1033
        %v3513 = vunpack.c.h.b16 %v1033
        %v3514 = vunpack.c.l.b16 %v1034
        %v3515 = vunpack.c.h.b16 %v1034
        %v3516 = vunpack.c.l.b16 %v1035
        %v3517 = vunpack.c.h.b16 %v1035
        %v3518 = vunpack.c.l.b16 %v1036
        %v3519 = vunpack.c.h.b16 %v1036
        %v3520 = vunpack.c.l.b16 %v1037
        %v3521 = vunpack.c.h.b16 %v1037
        %v3522 = vunpack.c.l.b16 %v1038
        %v3523 = vunpack.c.h.b16 %v1038
        %v3524 = vunpack.c.l.b16 %v1039
        %v3525 = vunpack.c.h.b16 %v1039
        %v3526 = vunpack.c.l.b16 %v1040
        %v3527 = vunpack.c.h.b16 %v1040
        %v3528 = vunpack.c.l.b16 %v1041
        %v3529 = vunpack.c.h.b16 %v1041
        %v3530 = vunpack.c.l.b16 %v1042
        %v3531 = vunpack.c.h.b16 %v1042
        %v3532 = vunpack.c.l.b16 %v1043
        %v3533 = vunpack.c.h.b16 %v1043
        %v3534 = vunpack.c.l.b16 %v1044
        %v3535 = vunpack.c.h.b16 %v1044
        %v3536 = vunpack.c.l.b16 %v1045
        %v3537 = vunpack.c.h.b16 %v1045
        %v3538 = vunpack.c.l.b16 %v1046
        %v3539 = vunpack.c.h.b16 %v1046
        %v3540 = vunpack.c.l.b16 %v1047
        %v3541 = vunpack.c.h.b16 %v1047
        %v3542 = vunpack.c.l.b16 %v1048
        %v3543 = vunpack.c.h.b16 %v1048
        %v3544 = vunpack.c.l.b16 %v1049
        %v3545 = vunpack.c.h.b16 %v1049
        %v3546 = vunpack.c.l.b16 %v1050
        %v3547 = vunpack.c.h.b16 %v1050
        %v3548 = vunpack.c.l.b16 %v1051
        %v3549 = vunpack.c.h.b16 %v1051
        %v3550 = vunpack.c.l.b16 %v1052
        %v3551 = vunpack.c.h.b16 %v1052
        %v3552 = vunpack.c.l.b16 %v1053
        %v3553 = vunpack.c.h.b16 %v1053
        %v3554 = vunpack.c.l.b16 %v1054
        %v3555 = vunpack.c.h.b16 %v1054
        %v3556 = vunpack.c.l.b16 %v1055
        %v3557 = vunpack.c.h.b16 %v1055
        %v3558 = vunpack.c.l.b16 %v1056
        %v3559 = vunpack.c.h.b16 %v1056
        %v3560 = vunpack.c.l.b16 %v1057
        %v3561 = vunpack.c.h.b16 %v1057
        %v3562 = vunpack.c.l.b16 %v1058
        %v3563 = vunpack.c.h.b16 %v1058
        %v3564 = vunpack.c.l.b16 %v1059
        %v3565 = vunpack.c.h.b16 %v1059
        %v3566 = vunpack.c.l.b16 %v1060
        %v3567 = vunpack.c.h.b16 %v1060
        %v3568 = vunpack.c.l.b16 %v1061
        %v3569 = vunpack.c.h.b16 %v1061
        %v3570 = vunpack.c.l.b16 %v1062
        %v3571 = vunpack.c.h.b16 %v1062
        %v3572 = vunpack.c.l.b16 %v1063
        %v3573 = vunpack.c.h.b16 %v1063
        %v3574 = vunpack.c.l.b16 %v1064
        %v3575 = vunpack.c.h.b16 %v1064
        %v3576 = vunpack.c.l.b16 %v1065
        %v3577 = vunpack.c.h.b16 %v1065
        %v3578 = vunpack.c.l.b16 %v1066
        %v3579 = vunpack.c.h.b16 %v1066
        %v3580 = vunpack.c.l.b16 %v1067
        %v3581 = vunpack.c.h.b16 %v1067
        %v3582 = vunpack.c.l.b16 %v1068
        %v3583 = vunpack.c.h.b16 %v1068
        %v3584 = vunpack.c.l.b16 %v1069
        %v3585 = vunpack.c.h.b16 %v1069
        %v3586 = vunpack.c.l.b16 %v1070
        %v3587 = vunpack.c.h.b16 %v1070
        %v3588 = vunpack.c.l.b16 %v1071
        %v3589 = vunpack.c.h.b16 %v1071
        %v3590 = vunpack.c.l.b16 %v1072
        %v3591 = vunpack.c.h.b16 %v1072
        %v3592 = vunpack.c.l.b16 %v1073
        %v3593 = vunpack.c.h.b16 %v1073
        %v3594 = vunpack.c.l.b16 %v1074
        %v3595 = vunpack.c.h.b16 %v1074
        %v3596 = vunpack.c.l.b16 %v1075
        %v3597 = vunpack.c.h.b16 %v1075
        %v3598 = vunpack.c.l.b16 %v1076
        %v3599 = vunpack.c.h.b16 %v1076
        %v3600 = vunpack.c.l.b16 %v1077
        %v3601 = vunpack.c.h.b16 %v1077
        %v3602 = vunpack.c.l.b16 %v1078
        %v3603 = vunpack.c.h.b16 %v1078
        %v3604 = vunpack.c.l.b16 %v1079
        %v3605 = vunpack.c.h.b16 %v1079
        %v3606 = vunpack.c.l.b16 %v1080
        %v3607 = vunpack.c.h.b16 %v1080
        %v3608 = vunpack.c.l.b16 %v1081
        %v3609 = vunpack.c.h.b16 %v1081
        %v3610 = vunpack.c.l.b16 %v1082
        %v3611 = vunpack.c.h.b16 %v1082
        %v3612 = vunpack.c.l.b16 %v1083
        %v3613 = vunpack.c.h.b16 %v1083
        %v3614 = vunpack.c.l.b16 %v1084
        %v3615 = vunpack.c.h.b16 %v1084
        %v3616 = vunpack.c.l.b16 %v1085
        %v3617 = vunpack.c.h.b16 %v1085
        %v3618 = vunpack.c.l.b16 %v1086
        %v3619 = vunpack.c.h.b16 %v1086
        %v3620 = vunpack.c.l.b16 %v1087
        %v3621 = vunpack.c.h.b16 %v1087
        %v3622 = vunpack.c.l.b16 %v1088
        %v3623 = vunpack.c.h.b16 %v1088
        %v3624 = vunpack.c.l.b16 %v1089
        %v3625 = vunpack.c.h.b16 %v1089
        %v3626 = vunpack.c.l.b16 %v1090
        %v3627 = vunpack.c.h.b16 %v1090
        %v3628 = vunpack.c.l.b16 %v1091
        %v3629 = vunpack.c.h.b16 %v1091
        %v3630 = vunpack.c.l.b16 %v1092
        %v3631 = vunpack.c.h.b16 %v1092
        %v3632 = vunpack.c.l.b16 %v1093
        %v3633 = vunpack.c.h.b16 %v1093
        %v3634 = vunpack.c.l.b16 %v1094
        %v3635 = vunpack.c.h.b16 %v1094
        %v3636 = vunpack.c.l.b16 %v1095
        %v3637 = vunpack.c.h.b16 %v1095
        %v3638 = vunpack.c.l.b16 %v1096
        %v3639 = vunpack.c.h.b16 %v1096
        %v3640 = vunpack.c.l.b16 %v1097
        %v3641 = vunpack.c.h.b16 %v1097
        %v3642 = vunpack.c.l.b16 %v1098
        %v3643 = vunpack.c.h.b16 %v1098
        %v3644 = vunpack.c.l.b16 %v1099
        %v3645 = vunpack.c.h.b16 %v1099
        %v3646 = vunpack.c.l.b16 %v1100
        %v3647 = vunpack.c.h.b16 %v1100
        %v3648 = vunpack.c.l.b16 %v1101
        %v3649 = vunpack.c.h.b16 %v1101
        %v3650 = vunpack.c.l.b16 %v1102
        %v3651 = vunpack.c.h.b16 %v1102
        %v3652 = vunpack.c.l.b16 %v1103
        %v3653 = vunpack.c.h.b16 %v1103
        %v3654 = vunpack.c.l.b16 %v1104
        %v3655 = vunpack.c.h.b16 %v1104
        %v3656 = vunpack.c.l.b16 %v1105
        %v3657 = vunpack.c.h.b16 %v1105
        %v3658 = vunpack.c.l.b16 %v1106
        %v3659 = vunpack.c.h.b16 %v1106
        %v3660 = vunpack.c.l.b16 %v1107
        %v3661 = vunpack.c.h.b16 %v1107
        %v3662 = vunpack.c.l.b16 %v1108
        %v3663 = vunpack.c.h.b16 %v1108
        %v3664 = vunpack.c.l.b16 %v1109
        %v3665 = vunpack.c.h.b16 %v1109
        %v3666 = vunpack.c.l.b16 %v1110
        %v3667 = vunpack.c.h.b16 %v1110
        %v3668 = vunpack.c.l.b16 %v1111
        %v3669 = vunpack.c.h.b16 %v1111
        %v3670 = vunpack.c.l.b16 %v1112
        %v3671 = vunpack.c.h.b16 %v1112
        %v3672 = vunpack.c.l.b16 %v1113
        %v3673 = vunpack.c.h.b16 %v1113
        %v3674 = vunpack.c.l.b16 %v1114
        %v3675 = vunpack.c.h.b16 %v1114
        %v3676 = vunpack.c.l.b16 %v1115
        %v3677 = vunpack.c.h.b16 %v1115
        %v3678 = vunpack.c.l.b16 %v1116
        %v3679 = vunpack.c.h.b16 %v1116
        %v3680 = vunpack.c.l.b16 %v1117
        %v3681 = vunpack.c.h.b16 %v1117
        %v3682 = vunpack.c.l.b16 %v1118
        %v3683 = vunpack.c.h.b16 %v1118
        %v3684 = vunpack.c.l.b16 %v1119
        %v3685 = vunpack.c.h.b16 %v1119
        %v3686 = vunpack.c.l.b16 %v1120
        %v3687 = vunpack.c.h.b16 %v1120
        %v3688 = vunpack.c.l.b16 %v1121
        %v3689 = vunpack.c.h.b16 %v1121
        %v3690 = vunpack.c.l.b16 %v1122
        %v3691 = vunpack.c.h.b16 %v1122
        %v3692 = vunpack.c.l.b16 %v1123
        %v3693 = vunpack.c.h.b16 %v1123
        %v3694 = vunpack.c.l.b16 %v1124
        %v3695 = vunpack.c.h.b16 %v1124
        %v3696 = vunpack.c.l.b16 %v1125
        %v3697 = vunpack.c.h.b16 %v1125
        %v3698 = vunpack.c.l.b16 %v1126
        %v3699 = vunpack.c.h.b16 %v1126
        %v3700 = vunpack.c.l.b16 %v1127
        %v3701 = vunpack.c.h.b16 %v1127
        %v3702 = vunpack.c.l.b16 %v1128
        %v3703 = vunpack.c.h.b16 %v1128
        %v3704 = vunpack.c.l.b16 %v1129
        %v3705 = vunpack.c.h.b16 %v1129
        %v3706 = vunpack.c.l.b16 %v1130
        %v3707 = vunpack.c.h.b16 %v1130
        %v3708 = vunpack.c.l.b16 %v1131
        %v3709 = vunpack.c.h.b16 %v1131
        %v3710 = vunpack.c.l.b16 %v1132
        %v3711 = vunpack.c.h.b16 %v1132
        %v3712 = vunpack.c.l.b16 %v1133
        %v3713 = vunpack.c.h.b16 %v1133
        %v3714 = vunpack.c.l.b16 %v1134
        %v3715 = vunpack.c.h.b16 %v1134
        %v3716 = vunpack.c.l.b16 %v1135
        %v3717 = vunpack.c.h.b16 %v1135
        %v3718 = vunpack.c.l.b16 %v1136
        %v3719 = vunpack.c.h.b16 %v1136
        %v3720 = vunpack.c.l.b16 %v1137
        %v3721 = vunpack.c.h.b16 %v1137
        %v3722 = vunpack.c.l.b16 %v1138
        %v3723 = vunpack.c.h.b16 %v1138
        %v3724 = vunpack.c.l.b16 %v1139
        %v3725 = vunpack.c.h.b16 %v1139
        %v3726 = vunpack.c.l.b16 %v1140
        %v3727 = vunpack.c.h.b16 %v1140
        %v3728 = vunpack.c.l.b16 %v1141
        %v3729 = vunpack.c.h.b16 %v1141
        %v3730 = vunpack.c.l.b16 %v1142
        %v3731 = vunpack.c.h.b16 %v1142
        %v3732 = vunpack.c.l.b16 %v1143
        %v3733 = vunpack.c.h.b16 %v1143
        %v3734 = vunpack.c.l.b16 %v1144
        %v3735 = vunpack.c.h.b16 %v1144
        %v3736 = vunpack.c.l.b16 %v1145
        %v3737 = vunpack.c.h.b16 %v1145
        %v3738 = vunpack.c.l.b16 %v1146
        %v3739 = vunpack.c.h.b16 %v1146
        %v3740 = vunpack.c.l.b16 %v1147
        %v3741 = vunpack.c.h.b16 %v1147
        %v3742 = vunpack.c.l.b16 %v1148
        %v3743 = vunpack.c.h.b16 %v1148
        %v3744 = vunpack.c.l.b16 %v1149
        %v3745 = vunpack.c.h.b16 %v1149
        %v3746 = vunpack.c.l.b16 %v1150
        %v3747 = vunpack.c.h.b16 %v1150
        %v3748 = vunpack.c.l.b16 %v1151
        %v3749 = vunpack.c.h.b16 %v1151
        %v3750 = vunpack.c.l.b16 %v1152
        %v3751 = vunpack.c.h.b16 %v1152
        %v3752 = vunpack.c.l.b16 %v1153
        %v3753 = vunpack.c.h.b16 %v1153
        %v3754 = vunpack.c.l.b16 %v1154
        %v3755 = vunpack.c.h.b16 %v1154
        %v3756 = vunpack.c.l.b16 %v1155
        %v3757 = vunpack.c.h.b16 %v1155
        %v3758 = vunpack.c.l.b16 %v1156
        %v3759 = vunpack.c.h.b16 %v1156
        %v3760 = vunpack.c.l.b16 %v1157
        %v3761 = vunpack.c.h.b16 %v1157
        %v3762 = vunpack.c.l.b16 %v1158
        %v3763 = vunpack.c.h.b16 %v1158
        %v3764 = vunpack.c.l.b16 %v1159
        %v3765 = vunpack.c.h.b16 %v1159
        %v3766 = vunpack.c.l.b16 %v1160
        %v3767 = vunpack.c.h.b16 %v1160
        %v3768 = vunpack.c.l.b16 %v1161
        %v3769 = vunpack.c.h.b16 %v1161
        %v3770 = vunpack.c.l.b16 %v1162
        %v3771 = vunpack.c.h.b16 %v1162
        %v3772 = vunpack.c.l.b16 %v1163
        %v3773 = vunpack.c.h.b16 %v1163
        %v3774 = vunpack.c.l.b16 %v1164
        %v3775 = vunpack.c.h.b16 %v1164
        %v3776 = vunpack.c.l.b16 %v1165
        %v3777 = vunpack.c.h.b16 %v1165
        %v3778 = vunpack.c.l.b16 %v1166
        %v3779 = vunpack.c.h.b16 %v1166
        %v3780 = vunpack.c.l.b16 %v1167
        %v3781 = vunpack.c.h.b16 %v1167
        %v3782 = vunpack.c.l.b16 %v1168
        %v3783 = vunpack.c.h.b16 %v1168
        %v3784 = vunpack.c.l.b16 %v1169
        %v3785 = vunpack.c.h.b16 %v1169
        %v3786 = vunpack.c.l.b16 %v1170
        %v3787 = vunpack.c.h.b16 %v1170
        %v3788 = vunpack.c.l.b16 %v1171
        %v3789 = vunpack.c.h.b16 %v1171
        %v3790 = vunpack.c.l.b16 %v1172
        %v3791 = vunpack.c.h.b16 %v1172
        %v3792 = vunpack.c.l.b16 %v1173
        %v3793 = vunpack.c.h.b16 %v1173
        %v3794 = vunpack.c.l.b16 %v1174
        %v3795 = vunpack.c.h.b16 %v1174
        %v3796 = vunpack.c.l.b16 %v1175
        %v3797 = vunpack.c.h.b16 %v1175
        %v3798 = vunpack.c.l.b16 %v1176
        %v3799 = vunpack.c.h.b16 %v1176
        %v3800 = vunpack.c.l.b16 %v1177
        %v3801 = vunpack.c.h.b16 %v1177
        %v3802 = vunpack.c.l.b16 %v1178
        %v3803 = vunpack.c.h.b16 %v1178
        %v3804 = vunpack.c.l.b16 %v1179
        %v3805 = vunpack.c.h.b16 %v1179
        %v3806 = vunpack.c.l.b16 %v1180
        %v3807 = vunpack.c.h.b16 %v1180
        %v3808 = vunpack.c.l.b16 %v1181
        %v3809 = vunpack.c.h.b16 %v1181
        %v3810 = vunpack.c.l.b16 %v1182
        %v3811 = vunpack.c.h.b16 %v1182
        %v3812 = vunpack.c.l.b16 %v1183
        %v3813 = vunpack.c.h.b16 %v1183
        %v3814 = vunpack.c.l.b16 %v1184
        %v3815 = vunpack.c.h.b16 %v1184
        %v3816 = vunpack.c.l.b16 %v1185
        %v3817 = vunpack.c.h.b16 %v1185
        %v3818 = vunpack.c.l.b16 %v1186
        %v3819 = vunpack.c.h.b16 %v1186
        %v3820 = vunpack.c.l.b16 %v1187
        %v3821 = vunpack.c.h.b16 %v1187
        %v3822 = vunpack.c.l.b16 %v1188
        %v3823 = vunpack.c.h.b16 %v1188
        %v3824 = vunpack.c.l.b16 %v1189
        %v3825 = vunpack.c.h.b16 %v1189
        %v3826 = vunpack.c.l.b16 %v1190
        %v3827 = vunpack.c.h.b16 %v1190
        %v3828 = vunpack.c.l.b16 %v1191
        %v3829 = vunpack.c.h.b16 %v1191
        %v3830 = vunpack.c.l.b16 %v1192
        %v3831 = vunpack.c.h.b16 %v1192
        %v3832 = vunpack.c.l.b16 %v1193
        %v3833 = vunpack.c.h.b16 %v1193
        %v3834 = vunpack.c.l.b16 %v1194
        %v3835 = vunpack.c.h.b16 %v1194
        %v3836 = vunpack.c.l.b16 %v1195
        %v3837 = vunpack.c.h.b16 %v1195
        %v3838 = vunpack.c.l.b16 %v1196
        %v3839 = vunpack.c.h.b16 %v1196
        %v3840 = vunpack.c.l.b16 %v1197
        %v3841 = vunpack.c.h.b16 %v1197
        %v3842 = vunpack.c.l.b16 %v1198
        %v3843 = vunpack.c.h.b16 %v1198
        %v3844 = vunpack.c.l.b16 %v1199
        %v3845 = vunpack.c.h.b16 %v1199
        %v3846 = vunpack.c.l.b16 %v1200
        %v3847 = vunpack.c.h.b16 %v1200
        %v3848 = vunpack.c.l.b16 %v1201
        %v3849 = vunpack.c.h.b16 %v1201
        %v3850 = vunpack.c.l.b16 %v1202
        %v3851 = vunpack.c.h.b16 %v1202
        %v3852 = vunpack.c.l.b16 %v1203
        %v3853 = vunpack.c.h.b16 %v1203
        %v3854 = vunpack.c.l.b16 %v1204
        %v3855 = vunpack.c.h.b16 %v1204
        %v3856 = vunpack.c.l.b16 %v1205
        %v3857 = vunpack.c.h.b16 %v1205
        %v3858 = vunpack.c.l.b16 %v1206
        %v3859 = vunpack.c.h.b16 %v1206
        %v3860 = vunpack.c.l.b16 %v1207
        %v3861 = vunpack.c.h.b16 %v1207
        %v3862 = vunpack.c.l.b16 %v1208
        %v3863 = vunpack.c.h.b16 %v1208
        %v3864 = vunpack.c.l.b16 %v1209
        %v3865 = vunpack.c.h.b16 %v1209
        %v3866 = vunpack.c.l.b16 %v1210
        %v3867 = vunpack.c.h.b16 %v1210
        %v3868 = vunpack.c.l.b16 %v1211
        %v3869 = vunpack.c.h.b16 %v1211
        %v3870 = vunpack.c.l.b16 %v1212
        %v3871 = vunpack.c.h.b16 %v1212
        %v3872 = vunpack.c.l.b16 %v1213
        %v3873 = vunpack.c.h.b16 %v1213
        %v3874 = vunpack.c.l.b16 %v1214
        %v3875 = vunpack.c.h.b16 %v1214
        %v3876 = vunpack.c.l.b16 %v1215
        %v3877 = vunpack.c.h.b16 %v1215
        %v3878 = vunpack.c.l.b16 %v1216
        %v3879 = vunpack.c.h.b16 %v1216
        %v3880 = vunpack.c.l.b16 %v1217
        %v3881 = vunpack.c.h.b16 %v1217
        %v3882 = vunpack.c.l.b16 %v1218
        %v3883 = vunpack.c.h.b16 %v1218
        %v3884 = vunpack.c.l.b16 %v1219
        %v3885 = vunpack.c.h.b16 %v1219
        %v3886 = vunpack.c.l.b16 %v1220
        %v3887 = vunpack.c.h.b16 %v1220
        %v3888 = vunpack.c.l.b16 %v1221
        %v3889 = vunpack.c.h.b16 %v1221
        %v3890 = vunpack.c.l.b16 %v1222
        %v3891 = vunpack.c.h.b16 %v1222
        %v3892 = vunpack.c.l.b16 %v1223
        %v3893 = vunpack.c.h.b16 %v1223
        %v3894 = vunpack.c.l.b16 %v1224
        %v3895 = vunpack.c.h.b16 %v1224
        %v3896 = vunpack.c.l.b16 %v1225
        %v3897 = vunpack.c.h.b16 %v1225
        %v3898 = vunpack.c.l.b16 %v1226
        %v3899 = vunpack.c.h.b16 %v1226
        %v3900 = vunpack.c.l.b16 %v1227
        %v3901 = vunpack.c.h.b16 %v1227
        %v3902 = vunpack.c.l.b16 %v1228
        %v3903 = vunpack.c.h.b16 %v1228
        %v3904 = vunpack.c.l.b16 %v1229
        %v3905 = vunpack.c.h.b16 %v1229
        %v3906 = vunpack.c.l.b16 %v1230
        %v3907 = vunpack.c.h.b16 %v1230
        %v3908 = vunpack.c.l.b16 %v1231
        %v3909 = vunpack.c.h.b16 %v1231
        %v3910 = vunpack.c.l.b16 %v1232
        %v3911 = vunpack.c.h.b16 %v1232
        %v3912 = vunpack.c.l.b16 %v1233
        %v3913 = vunpack.c.h.b16 %v1233
        %v3914 = vunpack.c.l.b16 %v1234
        %v3915 = vunpack.c.h.b16 %v1234
        %v3916 = vunpack.c.l.b16 %v1235
        %v3917 = vunpack.c.h.b16 %v1235
        %v3918 = vunpack.c.l.b16 %v1236
        %v3919 = vunpack.c.h.b16 %v1236
        %v3920 = vunpack.c.l.b16 %v1237
        %v3921 = vunpack.c.h.b16 %v1237
        %v3922 = vunpack.c.l.b16 %v1238
        %v3923 = vunpack.c.h.b16 %v1238
        %v3924 = vunpack.c.l.b16 %v1239
        %v3925 = vunpack.c.h.b16 %v1239
        %v3926 = vunpack.c.l.b16 %v1240
        %v3927 = vunpack.c.h.b16 %v1240
        %v3928 = vunpack.c.l.b16 %v1241
        %v3929 = vunpack.c.h.b16 %v1241
        %v3930 = vunpack.c.l.b16 %v1242
        %v3931 = vunpack.c.h.b16 %v1242
        %v3932 = vunpack.c.l.b16 %v1243
        %v3933 = vunpack.c.h.b16 %v1243
        %v3934 = vunpack.c.l.b16 %v1244
        %v3935 = vunpack.c.h.b16 %v1244
        %v3936 = vunpack.c.l.b16 %v1245
        %v3937 = vunpack.c.h.b16 %v1245
        %v3938 = vunpack.c.l.b16 %v1246
        %v3939 = vunpack.c.h.b16 %v1246
        %v3940 = vunpack.c.l.b16 %v1247
        %v3941 = vunpack.c.h.b16 %v1247
        %v3942 = vunpack.c.l.b16 %v1248
        %v3943 = vunpack.c.h.b16 %v1248
        %v3944 = vunpack.c.l.b16 %v1249
        %v3945 = vunpack.c.h.b16 %v1249
        %v3946 = vunpack.c.l.b16 %v1250
        %v3947 = vunpack.c.h.b16 %v1250
        %v3948 = vunpack.c.l.b16 %v1251
        %v3949 = vunpack.c.h.b16 %v1251
        %v3950 = vunpack.c.l.b16 %v1252
        %v3951 = vunpack.c.h.b16 %v1252
        %v3952 = vunpack.c.l.b16 %v1253
        %v3953 = vunpack.c.h.b16 %v1253
        %v3954 = vunpack.c.l.b16 %v1254
        %v3955 = vunpack.c.h.b16 %v1254
        %v3956 = vunpack.c.l.b16 %v1255
        %v3957 = vunpack.c.h.b16 %v1255
        %v3958 = vunpack.c.l.b16 %v1256
        %v3959 = vunpack.c.h.b16 %v1256
        %v3960 = vunpack.c.l.b16 %v1257
        %v3961 = vunpack.c.h.b16 %v1257
        %v3962 = vunpack.c.l.b16 %v1258
        %v3963 = vunpack.c.h.b16 %v1258
        %v3964 = vunpack.c.l.b16 %v1259
        %v3965 = vunpack.c.h.b16 %v1259
        %v3966 = vunpack.c.l.b16 %v1260
        %v3967 = vunpack.c.h.b16 %v1260
        %v3968 = vunpack.c.l.b16 %v1261
        %v3969 = vunpack.c.h.b16 %v1261
        %v3970 = vunpack.c.l.b16 %v1262
        %v3971 = vunpack.c.h.b16 %v1262
        %v3972 = vunpack.c.l.b16 %v1263
        %v3973 = vunpack.c.h.b16 %v1263
        %v3974 = vunpack.c.l.b16 %v1264
        %v3975 = vunpack.c.h.b16 %v1264
        %v3976 = vunpack.c.l.b16 %v1265
        %v3977 = vunpack.c.h.b16 %v1265
        %v3978 = vunpack.c.l.b16 %v1266
        %v3979 = vunpack.c.h.b16 %v1266
        %v3980 = vunpack.c.l.b16 %v1267
        %v3981 = vunpack.c.h.b16 %v1267
        %v3982 = vunpack.c.l.b16 %v1268
        %v3983 = vunpack.c.h.b16 %v1268
        %v3984 = vunpack.c.l.b16 %v1269
        %v3985 = vunpack.c.h.b16 %v1269
        %v3986 = vunpack.c.l.b16 %v1270
        %v3987 = vunpack.c.h.b16 %v1270
        %v3988 = vunpack.c.l.b16 %v1271
        %v3989 = vunpack.c.h.b16 %v1271
        %v3990 = vunpack.c.l.b16 %v1272
        %v3991 = vunpack.c.h.b16 %v1272
        %v3992 = vunpack.c.l.b16 %v1273
        %v3993 = vunpack.c.h.b16 %v1273
        %v3994 = vunpack.c.l.b16 %v1274
        %v3995 = vunpack.c.h.b16 %v1274
        %v3996 = vunpack.c.l.b16 %v1275
        %v3997 = vunpack.c.h.b16 %v1275
        %v3998 = vunpack.c.l.b16 %v1276
        %v3999 = vunpack.c.h.b16 %v1276
        %v4000 = vunpack.c.l.b16 %v1277
        %v4001 = vunpack.c.h.b16 %v1277
        %v4002 = vunpack.c.l.b16 %v1278
        %v4003 = vunpack.c.h.b16 %v1278
        %v4004 = vunpack.c.l.b16 %v1279
        %v4005 = vunpack.c.h.b16 %v1279
        %v4006 = vunpack.c.l.b16 %v1280
        %v4007 = vunpack.c.h.b16 %v1280
        %v4008 = vunpack.c.l.b16 %v1281
        %v4009 = vunpack.c.h.b16 %v1281
        %v4010 = vunpack.c.l.b16 %v1282
        %v4011 = vunpack.c.h.b16 %v1282
        %v4012 = vunpack.c.l.b16 %v1283
        %v4013 = vunpack.c.h.b16 %v1283
        %v4014 = vunpack.c.l.b16 %v1284
        %v4015 = vunpack.c.h.b16 %v1284
        %v4016 = vunpack.c.l.b16 %v1285
        %v4017 = vunpack.c.h.b16 %v1285
        %v4018 = vunpack.c.l.b16 %v1286
        %v4019 = vunpack.c.h.b16 %v1286
        %v4020 = vunpack.c.l.b16 %v1287
        %v4021 = vunpack.c.h.b16 %v1287
        %v4022 = vunpack.c.l.b16 %v1288
        %v4023 = vunpack.c.h.b16 %v1288
        %v4024 = vunpack.c.l.b16 %v1289
        %v4025 = vunpack.c.h.b16 %v1289
        %v4026 = vunpack.c.l.b16 %v1290
        %v4027 = vunpack.c.h.b16 %v1290
        %v4028 = vunpack.c.l.b16 %v1291
        %v4029 = vunpack.c.h.b16 %v1291
        %v4030 = vunpack.c.l.b16 %v1292
        %v4031 = vunpack.c.h.b16 %v1292
        %v4032 = vunpack.c.l.b16 %v1293
        %v4033 = vunpack.c.h.b16 %v1293
        %v4034 = vunpack.c.l.b16 %v1294
        %v4035 = vunpack.c.h.b16 %v1294
        %v4036 = vunpack.c.l.b16 %v1295
        %v4037 = vunpack.c.h.b16 %v1295
        %v4038 = vunpack.c.l.b16 %v1296
        %v4039 = vunpack.c.h.b16 %v1296
        %v4040 = vunpack.c.l.b16 %v1297
        %v4041 = vunpack.c.h.b16 %v1297
        %v4042 = vunpack.c.l.b16 %v1298
        %v4043 = vunpack.c.h.b16 %v1298
        %v4044 = vunpack.c.l.b16 %v1299
        %v4045 = vunpack.c.h.b16 %v1299
        %v4046 = vunpack.c.l.b16 %v1300
        %v4047 = vunpack.c.h.b16 %v1300
        %v4048 = vunpack.c.l.b16 %v1301
        %v4049 = vunpack.c.h.b16 %v1301
        %v4050 = vunpack.c.l.b16 %v1302
        %v4051 = vunpack.c.h.b16 %v1302
        %v4052 = vunpack.c.l.b16 %v1303
        %v4053 = vunpack.c.h.b16 %v1303
        %v4054 = vunpack.c.l.b16 %v1304
        %v4055 = vunpack.c.h.b16 %v1304
        %v4056 = vunpack.c.l.b16 %v1305
        %v4057 = vunpack.c.h.b16 %v1305
        %v4058 = vunpack.c.l.b16 %v1306
        %v4059 = vunpack.c.h.b16 %v1306
        %v4060 = vunpack.c.l.b16 %v1307
        %v4061 = vunpack.c.h.b16 %v1307
        %v4062 = vunpack.c.l.b16 %v1308
        %v4063 = vunpack.c.h.b16 %v1308
        %v4064 = vunpack.c.l.b16 %v1309
        %v4065 = vunpack.c.h.b16 %v1309
        %v4066 = vunpack.c.l.b16 %v1310
        %v4067 = vunpack.c.h.b16 %v1310
        %v4068 = vunpack.c.l.b16 %v1311
        %v4069 = vunpack.c.h.b16 %v1311
        %v4070 = vunpack.c.l.b16 %v1312
        %v4071 = vunpack.c.h.b16 %v1312
        %v4072 = vunpack.c.l.b16 %v1313
        %v4073 = vunpack.c.h.b16 %v1313
        %v4074 = vunpack.c.l.b16 %v1314
        %v4075 = vunpack.c.h.b16 %v1314
        %v4076 = vunpack.c.l.b16 %v1315
        %v4077 = vunpack.c.h.b16 %v1315
        %v4078 = vunpack.c.l.b16 %v1316
        %v4079 = vunpack.c.h.b16 %v1316
        %v4080 = vunpack.c.l.b16 %v1317
        %v4081 = vunpack.c.h.b16 %v1317
        %v4082 = vunpack.c.l.b16 %v1318
        %v4083 = vunpack.c.h.b16 %v1318
        %v4084 = vunpack.c.l.b16 %v1319
        %v4085 = vunpack.c.h.b16 %v1319
        %v4086 = vunpack.c.l.b16 %v1320
        %v4087 = vunpack.c.h.b16 %v1320
        %v4088 = vunpack.c.l.b16 %v1321
        %v4089 = vunpack.c.h.b16 %v1321
        %v4090 = vunpack.c.l.b16 %v1322
        %v4091 = vunpack.c.h.b16 %v1322
        %v4092 = vunpack.c.l.b16 %v1323
        %v4093 = vunpack.c.h.b16 %v1323
        %v4094 = vunpack.c.l.b16 %v1324
        %v4095 = vunpack.c.h.b16 %v1324
        %v4096 = vunpack.c.l.b16 %v1325
        %v4097 = vunpack.c.h.b16 %v1325
        %v4098 = vunpack.c.l.b16 %v1326
        %v4099 = vunpack.c.h.b16 %v1326
        %v4100 = vunpack.c.l.b16 %v1327
        %v4101 = vunpack.c.h.b16 %v1327
        %v4102 = vunpack.c.l.b16 %v1328
        %v4103 = vunpack.c.h.b16 %v1328
        %v4104 = vunpack.c.l.b16 %v1329
        %v4105 = vunpack.c.h.b16 %v1329
        %v4106 = vunpack.c.l.b16 %v1330
        %v4107 = vunpack.c.h.b16 %v1330
        %v4108 = vunpack.c.l.b16 %v1331
        %v4109 = vunpack.c.h.b16 %v1331
        %v4110 = vunpack.c.l.b16 %v1332
        %v4111 = vunpack.c.h.b16 %v1332
        %v4112 = vunpack.c.l.b16 %v1333
        %v4113 = vunpack.c.h.b16 %v1333
        %v4114 = vunpack.c.l.b16 %v1334
        %v4115 = vunpack.c.h.b16 %v1334
        %v4116 = vunpack.c.l.b16 %v1335
        %v4117 = vunpack.c.h.b16 %v1335
        %v4118 = vunpack.c.l.b16 %v1336
        %v4119 = vunpack.c.h.b16 %v1336
        %v4120 = vunpack.c.l.b16 %v1337
        %v4121 = vunpack.c.h.b16 %v1337
        %v4122 = vunpack.c.l.b16 %v1338
        %v4123 = vunpack.c.h.b16 %v1338
        %v4124 = vunpack.c.l.b16 %v1339
        %v4125 = vunpack.c.h.b16 %v1339
        %v4126 = vunpack.c.l.b16 %v1340
        %v4127 = vunpack.c.h.b16 %v1340
        %v4128 = vunpack.c.l.b16 %v1341
        %v4129 = vunpack.c.h.b16 %v1341
        %v4130 = vunpack.c.l.b16 %v1342
        %v4131 = vunpack.c.h.b16 %v1342
        %v4132 = vunpack.c.l.b16 %v1343
        %v4133 = vunpack.c.h.b16 %v1343
        %v4134 = vunpack.c.l.b16 %v1344
        %v4135 = vunpack.c.h.b16 %v1344
        %v4136 = vunpack.c.l.b16 %v1345
        %v4137 = vunpack.c.h.b16 %v1345
        %v4138 = vunpack.c.l.b16 %v1346
        %v4139 = vunpack.c.h.b16 %v1346
        %v4140 = vunpack.c.l.b16 %v1347
        %v4141 = vunpack.c.h.b16 %v1347
        %v4142 = vunpack.c.l.b16 %v1348
        %v4143 = vunpack.c.h.b16 %v1348
        %v4144 = vunpack.c.l.b16 %v1349
        %v4145 = vunpack.c.h.b16 %v1349
        %v4146 = vunpack.c.l.b16 %v1350
        %v4147 = vunpack.c.h.b16 %v1350
        %v4148 = vunpack.c.l.b16 %v1351
        %v4149 = vunpack.c.h.b16 %v1351
        %v4150 = vunpack.c.l.b16 %v1352
        %v4151 = vunpack.c.h.b16 %v1352
        %v4152 = vunpack.c.l.b16 %v1353
        %v4153 = vunpack.c.h.b16 %v1353
        %v4154 = vunpack.c.l.b16 %v1354
        %v4155 = vunpack.c.h.b16 %v1354
        %v4156 = vunpack.c.l.b16 %v1355
        %v4157 = vunpack.c.h.b16 %v1355
        %v4158 = vunpack.c.l.b16 %v1356
        %v4159 = vunpack.c.h.b16 %v1356
        %v4160 = vunpack.c.l.b16 %v1357
        %v4161 = vunpack.c.h.b16 %v1357
        %v4162 = vunpack.c.l.b16 %v1358
        %v4163 = vunpack.c.h.b16 %v1358
        %v4164 = vunpack.c.l.b16 %v1359
        %v4165 = vunpack.c.h.b16 %v1359
        %v4166 = vunpack.c.l.b16 %v1360
        %v4167 = vunpack.c.h.b16 %v1360
        %v4168 = vunpack.c.l.b16 %v1361
        %v4169 = vunpack.c.h.b16 %v1361
        %v4170 = vunpack.c.l.b16 %v1362
        %v4171 = vunpack.c.h.b16 %v1362
        %v4172 = vunpack.c.l.b16 %v1363
        %v4173 = vunpack.c.h.b16 %v1363
        %v4174 = vunpack.c.l.b16 %v1364
        %v4175 = vunpack.c.h.b16 %v1364
        %v4176 = vunpack.c.l.b16 %v1365
        %v4177 = vunpack.c.h.b16 %v1365
        %v4178 = vunpack.c.l.b16 %v1366
        %v4179 = vunpack.c.h.b16 %v1366
        %v4180 = vunpack.c.l.b16 %v1367
        %v4181 = vunpack.c.h.b16 %v1367
        %v4182 = vunpack.c.l.b16 %v1368
        %v4183 = vunpack.c.h.b16 %v1368
        %v4184 = vunpack.c.l.b16 %v1369
        %v4185 = vunpack.c.h.b16 %v1369
        %v4186 = vunpack.c.l.b16 %v1370
        %v4187 = vunpack.c.h.b16 %v1370
        %v4188 = vunpack.c.l.b16 %v1371
        %v4189 = vunpack.c.h.b16 %v1371
        %v4190 = vunpack.c.l.b16 %v1372
        %v4191 = vunpack.c.h.b16 %v1372
        %v4192 = vunpack.c.l.b16 %v1373
        %v4193 = vunpack.c.h.b16 %v1373
        %v4194 = vunpack.c.l.b16 %v1374
        %v4195 = vunpack.c.h.b16 %v1374
        %v4196 = vunpack.c.l.b16 %v1375
        %v4197 = vunpack.c.h.b16 %v1375
        %v4198 = vunpack.c.l.b16 %v1376
        %v4199 = vunpack.c.h.b16 %v1376
        %v4200 = vunpack.c.l.b16 %v1377
        %v4201 = vunpack.c.h.b16 %v1377
        %v4202 = vunpack.c.l.b16 %v1378
        %v4203 = vunpack.c.h.b16 %v1378
        %v4204 = vunpack.c.l.b16 %v1379
        %v4205 = vunpack.c.h.b16 %v1379
        %v4206 = vunpack.c.l.b16 %v1380
        %v4207 = vunpack.c.h.b16 %v1380
        %v4208 = vunpack.c.l.b16 %v1381
        %v4209 = vunpack.c.h.b16 %v1381
        %v4210 = vunpack.c.l.b16 %v1382
        %v4211 = vunpack.c.h.b16 %v1382
        %v4212 = vunpack.c.l.b16 %v1383
        %v4213 = vunpack.c.h.b16 %v1383
        %v4214 = vunpack.c.l.b16 %v1384
        %v4215 = vunpack.c.h.b16 %v1384
        %v4216 = vunpack.c.l.b16 %v1385
        %v4217 = vunpack.c.h.b16 %v1385
        %v4218 = vunpack.c.l.b16 %v1386
        %v4219 = vunpack.c.h.b16 %v1386
        %v4220 = vunpack.c.l.b16 %v1387
        %v4221 = vunpack.c.h.b16 %v1387
        %v4222 = vunpack.c.l.b16 %v1388
        %v4223 = vunpack.c.h.b16 %v1388
        %v4224 = vunpack.c.l.b16 %v1389
        %v4225 = vunpack.c.h.b16 %v1389
        %v4226 = vunpack.c.l.b16 %v1390
        %v4227 = vunpack.c.h.b16 %v1390
        %v4228 = vunpack.c.l.b16 %v1391
        %v4229 = vunpack.c.h.b16 %v1391
        %v4230 = vunpack.c.l.b16 %v1392
        %v4231 = vunpack.c.h.b16 %v1392
        %v4232 = vunpack.c.l.b16 %v1393
        %v4233 = vunpack.c.h.b16 %v1393
        %v4234 = vunpack.c.l.b16 %v1394
        %v4235 = vunpack.c.h.b16 %v1394
        %v4236 = vunpack.c.l.b16 %v1395
        %v4237 = vunpack.c.h.b16 %v1395
        %v4238 = vunpack.c.l.b16 %v1396
        %v4239 = vunpack.c.h.b16 %v1396
        %v4240 = vunpack.c.l.b16 %v1397
        %v4241 = vunpack.c.h.b16 %v1397
        %v4242 = vunpack.c.l.b16 %v1398
        %v4243 = vunpack.c.h.b16 %v1398
        %v4244 = vunpack.c.l.b16 %v1399
        %v4245 = vunpack.c.h.b16 %v1399
        %v4246 = vunpack.c.l.b16 %v1400
        %v4247 = vunpack.c.h.b16 %v1400
        %v4248 = vunpack.c.l.b16 %v1401
        %v4249 = vunpack.c.h.b16 %v1401
        %v4250 = vunpack.c.l.b16 %v1402
        %v4251 = vunpack.c.h.b16 %v1402
        %v4252 = vunpack.c.l.b16 %v1403
        %v4253 = vunpack.c.h.b16 %v1403
        %v4254 = vunpack.c.l.b16 %v1404
        %v4255 = vunpack.c.h.b16 %v1404
        %v4256 = vunpack.c.l.b16 %v1405
        %v4257 = vunpack.c.h.b16 %v1405
        %v4258 = vunpack.c.l.b16 %v1406
        %v4259 = vunpack.c.h.b16 %v1406
        %v4260 = vunpack.c.l.b16 %v1407
        %v4261 = vunpack.c.h.b16 %v1407
        %v4262 = vunpack.c.l.b16 %v1408
        %v4263 = vunpack.c.h.b16 %v1408
        %v4264 = vunpack.c.l.b16 %v1409
        %v4265 = vunpack.c.h.b16 %v1409
        %v4266 = vunpack.c.l.b16 %v1410
        %v4267 = vunpack.c.h.b16 %v1410
        %v4268 = vunpack.c.l.b16 %v1411
        %v4269 = vunpack.c.h.b16 %v1411
        %v4270 = vunpack.c.l.b16 %v1412
        %v4271 = vunpack.c.h.b16 %v1412
        %v4272 = vunpack.c.l.b16 %v1413
        %v4273 = vunpack.c.h.b16 %v1413
        %v4274 = vunpack.c.l.b16 %v1414
        %v4275 = vunpack.c.h.b16 %v1414
        %v4276 = vunpack.c.l.b16 %v1415
        %v4277 = vunpack.c.h.b16 %v1415
        %v4278 = vunpack.c.l.b16 %v1416
        %v4279 = vunpack.c.h.b16 %v1416
        %v4280 = vunpack.c.l.b16 %v1417
        %v4281 = vunpack.c.h.b16 %v1417
        %v4282 = vunpack.c.l.b16 %v1418
        %v4283 = vunpack.c.h.b16 %v1418
        %v4284 = vunpack.c.l.b16 %v1419
        %v4285 = vunpack.c.h.b16 %v1419
        %v4286 = vunpack.c.l.b16 %v1420
        %v4287 = vunpack.c.h.b16 %v1420
        %v4288 = vunpack.c.l.b16 %v1421
        %v4289 = vunpack.c.h.b16 %v1421
        %v4290 = vunpack.c.l.b16 %v1422
        %v4291 = vunpack.c.h.b16 %v1422
        %v4292 = vunpack.c.l.b16 %v1423
        %v4293 = vunpack.c.h.b16 %v1423
        %v4294 = vunpack.c.l.b16 %v1424
        %v4295 = vunpack.c.h.b16 %v1424
        %v4296 = vunpack.c.l.b16 %v1425
        %v4297 = vunpack.c.h.b16 %v1425
        %v4298 = vunpack.c.l.b16 %v1426
        %v4299 = vunpack.c.h.b16 %v1426
        %v4300 = vunpack.c.l.b16 %v1427
        %v4301 = vunpack.c.h.b16 %v1427
        %v4302 = vunpack.c.l.b16 %v1428
        %v4303 = vunpack.c.h.b16 %v1428
        %v4304 = vunpack.c.l.b16 %v1429
        %v4305 = vunpack.c.h.b16 %v1429
        %v4306 = vunpack.c.l.b16 %v1430
        %v4307 = vunpack.c.h.b16 %v1430
        %v4308 = vunpack.c.l.b16 %v1431
        %v4309 = vunpack.c.h.b16 %v1431
        %v4310 = vunpack.c.l.b16 %v1432
        %v4311 = vunpack.c.h.b16 %v1432
        %v4312 = vunpack.c.l.b16 %v1433
        %v4313 = vunpack.c.h.b16 %v1433
        %v4314 = vunpack.c.l.b16 %v1434
        %v4315 = vunpack.c.h.b16 %v1434
        %v4316 = vunpack.c.l.b16 %v1435
        %v4317 = vunpack.c.h.b16 %v1435
        %v4318 = vunpack.c.l.b16 %v1436
        %v4319 = vunpack.c.h.b16 %v1436
        %v4320 = vunpack.c.l.b16 %v1437
        %v4321 = vunpack.c.h.b16 %v1437
        %v4322 = vunpack.c.l.b16 %v1438
        %v4323 = vunpack.c.h.b16 %v1438
        %v4324 = vunpack.c.l.b16 %v1439
        %v4325 = vunpack.c.h.b16 %v1439
        %v4326 = vunpack.c.l.b16 %v1440
        %v4327 = vunpack.c.h.b16 %v1440
        %v4328 = vunpack.c.l.b16 %v1441
        %v4329 = vunpack.c.h.b16 %v1441
        %v4330 = vunpack.c.l.b16 %v1442
        %v4331 = vunpack.c.h.b16 %v1442
        %v4332 = vunpack.c.l.b16 %v1443
        %v4333 = vunpack.c.h.b16 %v1443
        %v4334 = vunpack.c.l.b16 %v1444
        %v4335 = vunpack.c.h.b16 %v1444
        %v4336 = vunpack.c.l.b16 %v1445
        %v4337 = vunpack.c.h.b16 %v1445
        %v4338 = vunpack.c.l.b16 %v1446
        %v4339 = vunpack.c.h.b16 %v1446
        %v4340 = vunpack.c.l.b16 %v1447
        %v4341 = vunpack.c.h.b16 %v1447
        %v4342 = vunpack.c.l.b16 %v1448
        %v4343 = vunpack.c.h.b16 %v1448
        %v4344 = vunpack.c.l.b16 %v1449
        %v4345 = vunpack.c.h.b16 %v1449
        %v4346 = vunpack.c.l.b16 %v1450
        %v4347 = vunpack.c.h.b16 %v1450
        %v4348 = vunpack.c.l.b16 %v1451
        %v4349 = vunpack.c.h.b16 %v1451
        %v4350 = vunpack.c.l.b16 %v1452
        %v4351 = vunpack.c.h.b16 %v1452
        %v4352 = vunpack.c.l.b16 %v1453
        %v4353 = vunpack.c.h.b16 %v1453
        %v4354 = vunpack.c.l.b16 %v1454
        %v4355 = vunpack.c.h.b16 %v1454
        %v4356 = vunpack.c.l.b16 %v1455
        %v4357 = vunpack.c.h.b16 %v1455
        %v4358 = vunpack.c.l.b16 %v1456
        %v4359 = vunpack.c.h.b16 %v1456
        %v4360 = vunpack.c.l.b16 %v1457
        %v4361 = vunpack.c.h.b16 %v1457
        %v4362 = vunpack.c.l.b16 %v1458
        %v4363 = vunpack.c.h.b16 %v1458
        %v4364 = vunpack.c.l.b16 %v1459
        %v4365 = vunpack.c.h.b16 %v1459
        %v4366 = vunpack.c.l.b16 %v1460
        %v4367 = vunpack.c.h.b16 %v1460
        %v4368 = vunpack.c.l.b16 %v1461
        %v4369 = vunpack.c.h.b16 %v1461
        %v4370 = vunpack.c.l.b16 %v1462
        %v4371 = vunpack.c.h.b16 %v1462
        %v4372 = vunpack.c.l.b16 %v1463
        %v4373 = vunpack.c.h.b16 %v1463
        %v4374 = vunpack.c.l.b16 %v1464
        %v4375 = vunpack.c.h.b16 %v1464
        %v4376 = vunpack.c.l.b16 %v1465
        %v4377 = vunpack.c.h.b16 %v1465
        %v4378 = vunpack.c.l.b16 %v1466
        %v4379 = vunpack.c.h.b16 %v1466
        %v4380 = vunpack.c.l.b16 %v1467
        %v4381 = vunpack.c.h.b16 %v1467
        %v4382 = vunpack.c.l.b16 %v1468
        %v4383 = vunpack.c.h.b16 %v1468
        %v4384 = vunpack.c.l.b16 %v1469
        %v4385 = vunpack.c.h.b16 %v1469
        %v4386 = vunpack.c.l.b16 %v1470
        %v4387 = vunpack.c.h.b16 %v1470
        %v4388 = vunpack.c.l.b16 %v1471
        %v4389 = vunpack.c.h.b16 %v1471
        %v4390 = vunpack.c.l.b16 %v1472
        %v4391 = vunpack.c.h.b16 %v1472
        %v4392 = vunpack.c.l.b16 %v1473
        %v4393 = vunpack.c.h.b16 %v1473
        %v4394 = vunpack.c.l.b16 %v1474
        %v4395 = vunpack.c.h.b16 %v1474
        %v4396 = vunpack.c.l.b16 %v1475
        %v4397 = vunpack.c.h.b16 %v1475
        %v4398 = vunpack.c.l.b16 %v1476
        %v4399 = vunpack.c.h.b16 %v1476
        %v4400 = vunpack.c.l.b16 %v1477
        %v4401 = vunpack.c.h.b16 %v1477
        %v4402 = vunpack.c.l.b16 %v1478
        %v4403 = vunpack.c.h.b16 %v1478
        %v4404 = vunpack.c.l.b16 %v1479
        %v4405 = vunpack.c.h.b16 %v1479
        %v4406 = vunpack.c.l.b16 %v1480
        %v4407 = vunpack.c.h.b16 %v1480
        %v4408 = vunpack.c.l.b16 %v1481
        %v4409 = vunpack.c.h.b16 %v1481
        %v4410 = vunpack.c.l.b16 %v1482
        %v4411 = vunpack.c.h.b16 %v1482
        %v4412 = vunpack.c.l.b16 %v1483
        %v4413 = vunpack.c.h.b16 %v1483
        %v4414 = vunpack.c.l.b16 %v1484
        %v4415 = vunpack.c.h.b16 %v1484
        %v4416 = vunpack.c.l.b16 %v1485
        %v4417 = vunpack.c.h.b16 %v1485
        %v4418 = vunpack.c.l.b16 %v1486
        %v4419 = vunpack.c.h.b16 %v1486
        %v4420 = vunpack.c.l.b16 %v1487
        %v4421 = vunpack.c.h.b16 %v1487
        %v4422 = vunpack.c.l.b16 %v1488
        %v4423 = vunpack.c.h.b16 %v1488
        %v4424 = vunpack.c.l.b16 %v1489
        %v4425 = vunpack.c.h.b16 %v1489
        %v4426 = vunpack.c.l.b16 %v1490
        %v4427 = vunpack.c.h.b16 %v1490
        %v4428 = vunpack.c.l.b16 %v1491
        %v4429 = vunpack.c.h.b16 %v1491
        %v4430 = vunpack.c.l.b16 %v1492
        %v4431 = vunpack.c.h.b16 %v1492
        %v4432 = vunpack.c.l.b16 %v1493
        %v4433 = vunpack.c.h.b16 %v1493
        %v4434 = vunpack.c.l.b16 %v1494
        %v4435 = vunpack.c.h.b16 %v1494
        %v4436 = vunpack.c.l.b16 %v1495
        %v4437 = vunpack.c.h.b16 %v1495
        %v4438 = vunpack.c.l.b16 %v1496
        %v4439 = vunpack.c.h.b16 %v1496
        %v4440 = vunpack.c.l.b16 %v1497
        %v4441 = vunpack.c.h.b16 %v1497
        %v4442 = vunpack.c.l.b16 %v1498
        %v4443 = vunpack.c.h.b16 %v1498
        %v4444 = vunpack.c.l.b16 %v1499
        %v4445 = vunpack.c.h.b16 %v1499
        %v4446 = vunpack.c.l.b16 %v1500
        %v4447 = vunpack.c.h.b16 %v1500
        %v4448 = vunpack.c.l.b16 %v1501
        %v4449 = vunpack.c.h.b16 %v1501
        %v4450 = vunpack.c.l.b16 %v1502
        %v4451 = vunpack.c.h.b16 %v1502
        %v4452 = vunpack.c.l.b16 %v1503
        %v4453 = vunpack.c.h.b16 %v1503
        %v4454 = vunpack.c.l.b16 %v1504
        %v4455 = vunpack.c.h.b16 %v1504
        %v4456 = vunpack.c.l.b16 %v1505
        %v4457 = vunpack.c.h.b16 %v1505
        %v4458 = vunpack.c.l.b16 %v1506
        %v4459 = vunpack.c.h.b16 %v1506
        %v4460 = vunpack.c.l.b16 %v1507
        %v4461 = vunpack.c.h.b16 %v1507
        %v4462 = vunpack.c.l.b16 %v1508
        %v4463 = vunpack.c.h.b16 %v1508
        %v4464 = vunpack.c.l.b16 %v1509
        %v4465 = vunpack.c.h.b16 %v1509
        %v4466 = vunpack.c.l.b16 %v1510
        %v4467 = vunpack.c.h.b16 %v1510
        %v4468 = vunpack.c.l.b16 %v1511
        %v4469 = vunpack.c.h.b16 %v1511
        %v4470 = vunpack.c.l.b16 %v1512
        %v4471 = vunpack.c.h.b16 %v1512
        %v4472 = vunpack.c.l.b16 %v1513
        %v4473 = vunpack.c.h.b16 %v1513
        %v4474 = vunpack.c.l.b16 %v1514
        %v4475 = vunpack.c.h.b16 %v1514
        %v4476 = vunpack.c.l.b16 %v1515
        %v4477 = vunpack.c.h.b16 %v1515
        %v4478 = vunpack.c.l.b16 %v1516
        %v4479 = vunpack.c.h.b16 %v1516
        %v4480 = vunpack.c.l.b16 %v1517
        %v4481 = vunpack.c.h.b16 %v1517
        %v4482 = vunpack.c.l.b16 %v1518
        %v4483 = vunpack.c.h.b16 %v1518
        %v4484 = vunpack.c.l.b16 %v1519
        %v4485 = vunpack.c.h.b16 %v1519
        %v4486 = vunpack.c.l.b16 %v1520
        %v4487 = vunpack.c.h.b16 %v1520
        %v4488 = vunpack.c.l.b16 %v1521
        %v4489 = vunpack.c.h.b16 %v1521
        %v4490 = vunpack.c.l.b16 %v1522
        %v4491 = vunpack.c.h.b16 %v1522
        %v4492 = vunpack.c.l.b16 %v1523
        %v4493 = vunpack.c.h.b16 %v1523
        %v4494 = vunpack.c.l.b16 %v1524
        %v4495 = vunpack.c.h.b16 %v1524
        %v4496 = vunpack.c.l.b16 %v1525
        %v4497 = vunpack.c.h.b16 %v1525
        %v4498 = vunpack.c.l.b16 %v1526
        %v4499 = vunpack.c.h.b16 %v1526
        %v4500 = vunpack.c.l.b16 %v1527
        %v4501 = vunpack.c.h.b16 %v1527
        %v4502 = vunpack.c.l.b16 %v1528
        %v4503 = vunpack.c.h.b16 %v1528
        %v4504 = vunpack.c.l.b16 %v1529
        %v4505 = vunpack.c.h.b16 %v1529
        %v4506 = vunpack.c.l.b16 %v1530
        %v4507 = vunpack.c.h.b16 %v1530
        %v4508 = vunpack.c.l.b16 %v1531
        %v4509 = vunpack.c.h.b16 %v1531
        %v4510 = vunpack.c.l.b16 %v1532
        %v4511 = vunpack.c.h.b16 %v1532
        %v4512 = vunpack.c.l.b16 %v1533
        %v4513 = vunpack.c.h.b16 %v1533
        %v4514 = vunpack.c.l.b16 %v1534
        %v4515 = vunpack.c.h.b16 %v1534
        %v4516 = vunpack.c.l.b16 %v1535
        %v4517 = vunpack.c.h.b16 %v1535
        %v4518 = vunpack.c.l.b16 %v1536
        %v4519 = vunpack.c.h.b16 %v1536
        %v4520 = vunpack.c.l.b16 %v1537
        %v4521 = vunpack.c.h.b16 %v1537
        %v4522 = vunpack.c.l.b16 %v1538
        %v4523 = vunpack.c.h.b16 %v1538
        %v4524 = vunpack.c.l.b16 %v1539
        %v4525 = vunpack.c.h.b16 %v1539
        %v4526 = vunpack.c.l.b16 %v1540
        %v4527 = vunpack.c.h.b16 %v1540
        %v4528 = vunpack.c.l.b16 %v1541
        %v4529 = vunpack.c.h.b16 %v1541
        %v4530 = vunpack.c.l.b16 %v1542
        %v4531 = vunpack.c.h.b16 %v1542
        %v4532 = vunpack.c.l.b16 %v1543
        %v4533 = vunpack.c.h.b16 %v1543
        %v4534 = vunpack.c.l.b16 %v1544
        %v4535 = vunpack.c.h.b16 %v1544
        %v4536 = vunpack.c.l.b16 %v1545
        %v4537 = vunpack.c.h.b16 %v1545
        %v4538 = vunpack.c.l.b16 %v1546
        %v4539 = vunpack.c.h.b16 %v1546
        %v4540 = vunpack.c.l.b16 %v1547
        %v4541 = vunpack.c.h.b16 %v1547
        %v4542 = vunpack.c.l.b16 %v1548
        %v4543 = vunpack.c.h.b16 %v1548
        %v4544 = vunpack.c.l.b16 %v1549
        %v4545 = vunpack.c.h.b16 %v1549
        %v4546 = vunpack.c.l.b16 %v1550
        %v4547 = vunpack.c.h.b16 %v1550
        %v4548 = vunpack.c.l.b16 %v1551
        %v4549 = vunpack.c.h.b16 %v1551
        %v4550 = vunpack.c.l.b16 %v1552
        %v4551 = vunpack.c.h.b16 %v1552
        %v4552 = vunpack.c.l.b16 %v1553
        %v4553 = vunpack.c.h.b16 %v1553
        %v4554 = vunpack.c.l.b16 %v1554
        %v4555 = vunpack.c.h.b16 %v1554
        %v4556 = vunpack.c.l.b16 %v1555
        %v4557 = vunpack.c.h.b16 %v1555
        %v4558 = vunpack.c.l.b16 %v1556
        %v4559 = vunpack.c.h.b16 %v1556
        %v4560 = vunpack.c.l.b16 %v1557
        %v4561 = vunpack.c.h.b16 %v1557
        %v4562 = vunpack.c.l.b16 %v1558
        %v4563 = vunpack.c.h.b16 %v1558
        %v4564 = vunpack.c.l.b16 %v1559
        %v4565 = vunpack.c.h.b16 %v1559
        %v4566 = vunpack.c.l.b16 %v1560
        %v4567 = vunpack.c.h.b16 %v1560
        %v4568 = vunpack.c.l.b16 %v1561
        %v4569 = vunpack.c.h.b16 %v1561
        %v4570 = vunpack.c.l.b16 %v1562
        %v4571 = vunpack.c.h.b16 %v1562
        %v4572 = vunpack.c.l.b16 %v1563
        %v4573 = vunpack.c.h.b16 %v1563
        %v4574 = vunpack.c.l.b16 %v1564
        %v4575 = vunpack.c.h.b16 %v1564
        %v4576 = vunpack.c.l.b16 %v1565
        %v4577 = vunpack.c.h.b16 %v1565
        %v4578 = vunpack.c.l.b16 %v1566
        %v4579 = vunpack.c.h.b16 %v1566
        %v4580 = vunpack.c.l.b16 %v1567
        %v4581 = vunpack.c.h.b16 %v1567
        %v4582 = vunpack.c.l.b16 %v1568
        %v4583 = vunpack.c.h.b16 %v1568
        %v4584 = vunpack.c.l.b16 %v1569
        %v4585 = vunpack.c.h.b16 %v1569
        %v4586 = vunpack.c.l.b16 %v1570
        %v4587 = vunpack.c.h.b16 %v1570
        %v4588 = vunpack.c.l.b16 %v1571
        %v4589 = vunpack.c.h.b16 %v1571
        %v4590 = vunpack.c.l.b16 %v1572
        %v4591 = vunpack.c.h.b16 %v1572
        %v4592 = vunpack.c.l.b16 %v1573
        %v4593 = vunpack.c.h.b16 %v1573
        %v4594 = vunpack.c.l.b16 %v1574
        %v4595 = vunpack.c.h.b16 %v1574
        %v4596 = vunpack.c.l.b16 %v1575
        %v4597 = vunpack.c.h.b16 %v1575
        %v4598 = vunpack.c.l.b16 %v1576
        %v4599 = vunpack.c.h.b16 %v1576
        %v4600 = vunpack.c.l.b16 %v1577
        %v4601 = vunpack.c.h.b16 %v1577
        %v4602 = vunpack.c.l.b16 %v1578
        %v4603 = vunpack.c.h.b16 %v1578
        %v4604 = vunpack.c.l.b16 %v1579
        %v4605 = vunpack.c.h.b16 %v1579
        %v4606 = vunpack.c.l.b16 %v1580
        %v4607 = vunpack.c.h.b16 %v1580
        %v4608 = vunpack.c.l.b16 %v1581
        %v4609 = vunpack.c.h.b16 %v1581
        %v4610 = vunpack.c.l.b16 %v1582
        %v4611 = vunpack.c.h.b16 %v1582
        %v4612 = vunpack.c.l.b16 %v1583
        %v4613 = vunpack.c.h.b16 %v1583
        %v4614 = vunpack.c.l.b16 %v1584
        %v4615 = vunpack.c.h.b16 %v1584
        %v4616 = vunpack.c.l.b16 %v1585
        %v4617 = vunpack.c.h.b16 %v1585
        %v4618 = vunpack.c.l.b16 %v1586
        %v4619 = vunpack.c.h.b16 %v1586
        %v4620 = vunpack.c.l.b16 %v1587
        %v4621 = vunpack.c.h.b16 %v1587
        %v4622 = vunpack.c.l.b16 %v1588
        %v4623 = vunpack.c.h.b16 %v1588
        %v4624 = vunpack.c.l.b16 %v1589
        %v4625 = vunpack.c.h.b16 %v1589
        %v4626 = vunpack.c.l.b16 %v1590
        %v4627 = vunpack.c.h.b16 %v1590
        %v4628 = vunpack.c.l.b16 %v1591
        %v4629 = vunpack.c.h.b16 %v1591
        %v4630 = vunpack.c.l.b16 %v1592
        %v4631 = vunpack.c.h.b16 %v1592
        %v4632 = vunpack.c.l.b16 %v1593
        %v4633 = vunpack.c.h.b16 %v1593
        %v4634 = vunpack.c.l.b16 %v1594
        %v4635 = vunpack.c.h.b16 %v1594
        %v4636 = vunpack.c.l.b16 %v1595
        %v4637 = vunpack.c.h.b16 %v1595
        %v4638 = vunpack.c.l.b16 %v1596
        %v4639 = vunpack.c.h.b16 %v1596
        %v4640 = vunpack.c.l.b16 %v1597
        %v4641 = vunpack.c.h.b16 %v1597
        %v4642 = vunpack.c.l.b16 %v1598
        %v4643 = vunpack.c.h.b16 %v1598
        %v4644 = vunpack.c.l.b16 %v1599
        %v4645 = vunpack.c.h.b16 %v1599
        %v4646 = vunpack.c.l.b16 %v1600
        %v4647 = vunpack.c.h.b16 %v1600
        %v4648 = vunpack.c.l.b16 %v1601
        %v4649 = vunpack.c.h.b16 %v1601
        %v4650 = vunpack.c.l.b16 %v1602
        %v4651 = vunpack.c.h.b16 %v1602
        %v4652 = vunpack.c.l.b16 %v1603
        %v4653 = vunpack.c.h.b16 %v1603
        %v4654 = vunpack.c.l.b16 %v1604
        %v4655 = vunpack.c.h.b16 %v1604
        %v4656 = vunpack.c.l.b16 %v1605
        %v4657 = vunpack.c.h.b16 %v1605
        %v4658 = vunpack.c.l.b16 %v1606
        %v4659 = vunpack.c.h.b16 %v1606
        %v4660 = vunpack.c.l.b16 %v1607
        %v4661 = vunpack.c.h.b16 %v1607
        %v4662 = vunpack.c.l.b16 %v1608
        %v4663 = vunpack.c.h.b16 %v1608
        %v4664 = vunpack.c.l.b16 %v1609
        %v4665 = vunpack.c.h.b16 %v1609
        %v4666 = vunpack.c.l.b16 %v1610
        %v4667 = vunpack.c.h.b16 %v1610
        %v4668 = vunpack.c.l.b16 %v1611
        %v4669 = vunpack.c.h.b16 %v1611
        %v4670 = vunpack.c.l.b16 %v1612
        %v4671 = vunpack.c.h.b16 %v1612
        %v4672 = vunpack.c.l.b16 %v1613
        %v4673 = vunpack.c.h.b16 %v1613
        %v4674 = vunpack.c.l.b16 %v1614
        %v4675 = vunpack.c.h.b16 %v1614
        %v4676 = vunpack.c.l.b16 %v1615
        %v4677 = vunpack.c.h.b16 %v1615
        %v4678 = vunpack.c.l.b16 %v1616
        %v4679 = vunpack.c.h.b16 %v1616
        %v4680 = vunpack.c.l.b16 %v1617
        %v4681 = vunpack.c.h.b16 %v1617
        %v4682 = vunpack.c.l.b16 %v1618
        %v4683 = vunpack.c.h.b16 %v1618
        %v4684 = vunpack.c.l.b16 %v1619
        %v4685 = vunpack.c.h.b16 %v1619
        %v4686 = vunpack.c.l.b16 %v1620
        %v4687 = vunpack.c.h.b16 %v1620
        %v4688 = vunpack.c.l.b16 %v1621
        %v4689 = vunpack.c.h.b16 %v1621
        %v4690 = vunpack.c.l.b16 %v1622
        %v4691 = vunpack.c.h.b16 %v1622
        %v4692 = vunpack.c.l.b16 %v1623
        %v4693 = vunpack.c.h.b16 %v1623
        %v4694 = vunpack.c.l.b16 %v1624
        %v4695 = vunpack.c.h.b16 %v1624
        %v4696 = vunpack.c.l.b16 %v1625
        %v4697 = vunpack.c.h.b16 %v1625
        %v4698 = vunpack.c.l.b16 %v1626
        %v4699 = vunpack.c.h.b16 %v1626
        %v4700 = vunpack.c.l.b16 %v1627
        %v4701 = vunpack.c.h.b16 %v1627
        %v4702 = vunpack.c.l.b16 %v1628
        %v4703 = vunpack.c.h.b16 %v1628
        %v4704 = vunpack.c.l.b16 %v1629
        %v4705 = vunpack.c.h.b16 %v1629
        %v4706 = vunpack.c.l.b16 %v1630
        %v4707 = vunpack.c.h.b16 %v1630
        %v4708 = vunpack.c.l.b16 %v1631
        %v4709 = vunpack.c.h.b16 %v1631
        %v4710 = vunpack.c.l.b16 %v1632
        %v4711 = vunpack.c.h.b16 %v1632
        %v4712 = vunpack.c.l.b16 %v1633
        %v4713 = vunpack.c.h.b16 %v1633
        %v4714 = vunpack.c.l.b16 %v1634
        %v4715 = vunpack.c.h.b16 %v1634
        %v4716 = vunpack.c.l.b16 %v1635
        %v4717 = vunpack.c.h.b16 %v1635
        %v4718 = vunpack.c.l.b16 %v1636
        %v4719 = vunpack.c.h.b16 %v1636
        %v4720 = vunpack.c.l.b16 %v1637
        %v4721 = vunpack.c.h.b16 %v1637
        %v4722 = vunpack.c.l.b16 %v1638
        %v4723 = vunpack.c.h.b16 %v1638
        %v4724 = vunpack.c.l.b16 %v1639
        %v4725 = vunpack.c.h.b16 %v1639
        %v4726 = vunpack.c.l.b16 %v1640
        %v4727 = vunpack.c.h.b16 %v1640
        %v4728 = vunpack.c.l.b16 %v1641
        %v4729 = vunpack.c.h.b16 %v1641
        %v4730 = vunpack.c.l.b16 %v1642
        %v4731 = vunpack.c.h.b16 %v1642
        %v4732 = vunpack.c.l.b16 %v1643
        %v4733 = vunpack.c.h.b16 %v1643
        %v4734 = vunpack.c.l.b16 %v1644
        %v4735 = vunpack.c.h.b16 %v1644
        %v4736 = vunpack.c.l.b16 %v1645
        %v4737 = vunpack.c.h.b16 %v1645
        %v4738 = vunpack.c.l.b16 %v1646
        %v4739 = vunpack.c.h.b16 %v1646
        %v4740 = vunpack.c.l.b16 %v1647
        %v4741 = vunpack.c.h.b16 %v1647
        %v4742 = vunpack.c.l.b16 %v1648
        %v4743 = vunpack.c.h.b16 %v1648
        %v4744 = vunpack.c.l.b16 %v1649
        %v4745 = vunpack.c.h.b16 %v1649
        %v4746 = vunpack.c.l.b16 %v1650
        %v4747 = vunpack.c.h.b16 %v1650
        %v4748 = vunpack.c.l.b16 %v1651
        %v4749 = vunpack.c.h.b16 %v1651
        %v4750 = vunpack.c.l.b16 %v1652
        %v4751 = vunpack.c.h.b16 %v1652
        %v4752 = vunpack.c.l.b16 %v1653
        %v4753 = vunpack.c.h.b16 %v1653
        %v4754 = vunpack.c.l.b16 %v1654
        %v4755 = vunpack.c.h.b16 %v1654
        %v4756 = vunpack.c.l.b16 %v1655
        %v4757 = vunpack.c.h.b16 %v1655
        %v4758 = vunpack.c.l.b16 %v1656
        %v4759 = vunpack.c.h.b16 %v1656
        %v4760 = vunpack.c.l.b16 %v1657
        %v4761 = vunpack.c.h.b16 %v1657
        %v4762 = vunpack.c.l.b16 %v1658
        %v4763 = vunpack.c.h.b16 %v1658
        %v4764 = vunpack.c.l.b16 %v1659
        %v4765 = vunpack.c.h.b16 %v1659
        %v4766 = vunpack.c.l.b16 %v1660
        %v4767 = vunpack.c.h.b16 %v1660
        %v4768 = vunpack.c.l.b16 %v1661
        %v4769 = vunpack.c.h.b16 %v1661
        %v4770 = vunpack.c.l.b16 %v1662
        %v4771 = vunpack.c.h.b16 %v1662
        %v4772 = vunpack.c.l.b16 %v1663
        %v4773 = vunpack.c.h.b16 %v1663
        %v4774 = vunpack.c.l.b16 %v1664
        %v4775 = vunpack.c.h.b16 %v1664
        %v4776 = vunpack.c.l.b16 %v1665
        %v4777 = vunpack.c.h.b16 %v1665
        %v4778 = vunpack.c.l.b16 %v1666
        %v4779 = vunpack.c.h.b16 %v1666
        %v4780 = vunpack.c.l.b16 %v1667
        %v4781 = vunpack.c.h.b16 %v1667
        %v4782 = vunpack.c.l.b16 %v1668
        %v4783 = vunpack.c.h.b16 %v1668
        %v4784 = vunpack.c.l.b16 %v1669
        %v4785 = vunpack.c.h.b16 %v1669
        %v4786 = vunpack.c.l.b16 %v1670
        %v4787 = vunpack.c.h.b16 %v1670
        %v4788 = vunpack.c.l.b16 %v1671
        %v4789 = vunpack.c.h.b16 %v1671
        %v4790 = vunpack.c.l.b16 %v1672
        %v4791 = vunpack.c.h.b16 %v1672
        %v4792 = vunpack.c.l.b16 %v1673
        %v4793 = vunpack.c.h.b16 %v1673
        %v4794 = vunpack.c.l.b16 %v1674
        %v4795 = vunpack.c.h.b16 %v1674
        %v4796 = vunpack.c.l.b16 %v1675
        %v4797 = vunpack.c.h.b16 %v1675
        %v4798 = vunpack.c.l.b16 %v1676
        %v4799 = vunpack.c.h.b16 %v1676
        %v4800 = vunpack.c.l.b16 %v1677
        %v4801 = vunpack.c.h.b16 %v1677
        %v4802 = vunpack.c.l.b16 %v1678
        %v4803 = vunpack.c.h.b16 %v1678
        %v4804 = vunpack.c.l.b16 %v1679
        %v4805 = vunpack.c.h.b16 %v1679
        %v4806 = vunpack.c.l.b16 %v1680
        %v4807 = vunpack.c.h.b16 %v1680
        %v4808 = vunpack.c.l.b16 %v1681
        %v4809 = vunpack.c.h.b16 %v1681
        %v4810 = vunpack.c.l.b16 %v1682
        %v4811 = vunpack.c.h.b16 %v1682
        %v4812 = vunpack.c.l.b16 %v1683
        %v4813 = vunpack.c.h.b16 %v1683
        %v4814 = vunpack.c.l.b16 %v1684
        %v4815 = vunpack.c.h.b16 %v1684
        %v4816 = vunpack.c.l.b16 %v1685
        %v4817 = vunpack.c.h.b16 %v1685
        %v4818 = vunpack.c.l.b16 %v1686
        %v4819 = vunpack.c.h.b16 %v1686
        %v4820 = vunpack.c.l.b16 %v1687
        %v4821 = vunpack.c.h.b16 %v1687
        %v4822 = vunpack.c.l.b16 %v1688
        %v4823 = vunpack.c.h.b16 %v1688
        %v4824 = vunpack.c.l.b16 %v1689
        %v4825 = vunpack.c.h.b16 %v1689
        %v4826 = vunpack.c.l.b16 %v1690
        %v4827 = vunpack.c.h.b16 %v1690
        %v4828 = vunpack.c.l.b16 %v1691
        %v4829 = vunpack.c.h.b16 %v1691
        %v4830 = vunpack.c.l.b16 %v1692
        %v4831 = vunpack.c.h.b16 %v1692
        %v4832 = vunpack.c.l.b16 %v1693
        %v4833 = vunpack.c.h.b16 %v1693
        %v4834 = vunpack.c.l.b16 %v1694
        %v4835 = vunpack.c.h.b16 %v1694
        %v4836 = vunpack.c.l.b16 %v1695
        %v4837 = vunpack.c.h.b16 %v1695
        %v4838 = vunpack.c.l.b16 %v1696
        %v4839 = vunpack.c.h.b16 %v1696
        %v4840 = vunpack.c.l.b16 %v1697
        %v4841 = vunpack.c.h.b16 %v1697
        %v4842 = vunpack.c.l.b16 %v1698
        %v4843 = vunpack.c.h.b16 %v1698
        %v4844 = vunpack.c.l.b16 %v1699
        %v4845 = vunpack.c.h.b16 %v1699
        %v4846 = vunpack.c.l.b16 %v1700
        %v4847 = vunpack.c.h.b16 %v1700
        %v4848 = vunpack.c.l.b16 %v1701
        %v4849 = vunpack.c.h.b16 %v1701
        %v4850 = vunpack.c.l.b16 %v1702
        %v4851 = vunpack.c.h.b16 %v1702
        %v4852 = vunpack.c.l.b16 %v1703
        %v4853 = vunpack.c.h.b16 %v1703
        %v4854 = vunpack.c.l.b16 %v1704
        %v4855 = vunpack.c.h.b16 %v1704
        %v4856 = vunpack.c.l.b16 %v1705
        %v4857 = vunpack.c.h.b16 %v1705
        %v4858 = vunpack.c.l.b16 %v1706
        %v4859 = vunpack.c.h.b16 %v1706
        %v4860 = vunpack.c.l.b16 %v1707
        %v4861 = vunpack.c.h.b16 %v1707
        %v4862 = vunpack.c.l.b16 %v1708
        %v4863 = vunpack.c.h.b16 %v1708
        %v4864 = vunpack.c.l.b16 %v1709
        %v4865 = vunpack.c.h.b16 %v1709
        %v4866 = vunpack.c.l.b16 %v1710
        %v4867 = vunpack.c.h.b16 %v1710
        %v4868 = vunpack.c.l.b16 %v1711
        %v4869 = vunpack.c.h.b16 %v1711
        %v4870 = vunpack.c.l.b16 %v1712
        %v4871 = vunpack.c.h.b16 %v1712
        %v4872 = vunpack.c.l.b16 %v1713
        %v4873 = vunpack.c.h.b16 %v1713
        %v4874 = vunpack.c.l.b16 %v1714
        %v4875 = vunpack.c.h.b16 %v1714
        %v4876 = vunpack.c.l.b16 %v1715
        %v4877 = vunpack.c.h.b16 %v1715
        %v4878 = vunpack.c.l.b16 %v1716
        %v4879 = vunpack.c.h.b16 %v1716
        %v4880 = vunpack.c.l.b16 %v1717
        %v4881 = vunpack.c.h.b16 %v1717
        %v4882 = vunpack.c.l.b16 %v1718
        %v4883 = vunpack.c.h.b16 %v1718
        %v4884 = vunpack.c.l.b16 %v1719
        %v4885 = vunpack.c.h.b16 %v1719
        %v4886 = vunpack.c.l.b16 %v1720
        %v4887 = vunpack.c.h.b16 %v1720
        %v4888 = vunpack.c.l.b16 %v1721
        %v4889 = vunpack.c.h.b16 %v1721
        %v4890 = vunpack.c.l.b16 %v1722
        %v4891 = vunpack.c.h.b16 %v1722
        %v4892 = vunpack.c.l.b16 %v1723
        %v4893 = vunpack.c.h.b16 %v1723
        %v4894 = vunpack.c.l.b16 %v1724
        %v4895 = vunpack.c.h.b16 %v1724
        %v4896 = vunpack.c.l.b16 %v1725
        %v4897 = vunpack.c.h.b16 %v1725
        %v4898 = vunpack.c.l.b16 %v1726
        %v4899 = vunpack.c.h.b16 %v1726
        %v4900 = vunpack.c.l.b16 %v1727
        %v4901 = vunpack.c.h.b16 %v1727
        %v4902 = vunpack.c.l.b16 %v1728
        %v4903 = vunpack.c.h.b16 %v1728
        %v4904 = vunpack.c.l.b16 %v1729
        %v4905 = vunpack.c.h.b16 %v1729
        %v4906 = vunpack.c.l.b16 %v1730
        %v4907 = vunpack.c.h.b16 %v1730
        %v4908 = vunpack.c.l.b16 %v1731
        %v4909 = vunpack.c.h.b16 %v1731
        %v4910 = vunpack.c.l.b16 %v1732
        %v4911 = vunpack.c.h.b16 %v1732
        %v4912 = vunpack.c.l.b16 %v1733
        %v4913 = vunpack.c.h.b16 %v1733
        %v4914 = vunpack.c.l.b16 %v1734
        %v4915 = vunpack.c.h.b16 %v1734
        %v4916 = vunpack.c.l.b16 %v1735
        %v4917 = vunpack.c.h.b16 %v1735
        %v4918 = vunpack.c.l.b16 %v1736
        %v4919 = vunpack.c.h.b16 %v1736
        %v4920 = vunpack.c.l.b16 %v1737
        %v4921 = vunpack.c.h.b16 %v1737
        %v4922 = vunpack.c.l.b16 %v1738
        %v4923 = vunpack.c.h.b16 %v1738
        %v4924 = vunpack.c.l.b16 %v1739
        %v4925 = vunpack.c.h.b16 %v1739
        %v4926 = vunpack.c.l.b16 %v1740
        %v4927 = vunpack.c.h.b16 %v1740
        %v4928 = vunpack.c.l.b16 %v1741
        %v4929 = vunpack.c.h.b16 %v1741
        %v4930 = vunpack.c.l.b16 %v1742
        %v4931 = vunpack.c.h.b16 %v1742
        %v4932 = vunpack.c.l.b16 %v1743
        %v4933 = vunpack.c.h.b16 %v1743
        %v4934 = vunpack.c.l.b16 %v1744
        %v4935 = vunpack.c.h.b16 %v1744
        %v4936 = vunpack.c.l.b16 %v1745
        %v4937 = vunpack.c.h.b16 %v1745
        %v4938 = vunpack.c.l.b16 %v1746
        %v4939 = vunpack.c.h.b16 %v1746
        %v4940 = vunpack.c.l.b16 %v1747
        %v4941 = vunpack.c.h.b16 %v1747
        %v4942 = vunpack.c.l.b16 %v1748
        %v4943 = vunpack.c.h.b16 %v1748
        %v4944 = vunpack.c.l.b16 %v1749
        %v4945 = vunpack.c.h.b16 %v1749
        %v4946 = vunpack.c.l.b16 %v1750
        %v4947 = vunpack.c.h.b16 %v1750
        %v4948 = vunpack.c.l.b16 %v1751
        %v4949 = vunpack.c.h.b16 %v1751
        %v4950 = vunpack.c.l.b16 %v1752
        %v4951 = vunpack.c.h.b16 %v1752
        %v4952 = vunpack.c.l.b16 %v1753
        %v4953 = vunpack.c.h.b16 %v1753
        %v4954 = vunpack.c.l.b16 %v1754
        %v4955 = vunpack.c.h.b16 %v1754
        %v4956 = vunpack.c.l.b16 %v1755
        %v4957 = vunpack.c.h.b16 %v1755
        %v4958 = vunpack.c.l.b16 %v1756
        %v4959 = vunpack.c.h.b16 %v1756
        %v4960 = vunpack.c.l.b16 %v1757
        %v4961 = vunpack.c.h.b16 %v1757
        %v4962 = vunpack.c.l.b16 %v1758
        %v4963 = vunpack.c.h.b16 %v1758
        %v4964 = vunpack.c.l.b16 %v1759
        %v4965 = vunpack.c.h.b16 %v1759
        %v4966 = vunpack.c.l.b16 %v1760
        %v4967 = vunpack.c.h.b16 %v1760
        %v4968 = vunpack.c.l.b16 %v1761
        %v4969 = vunpack.c.h.b16 %v1761
        %v4970 = vunpack.c.l.b16 %v1762
        %v4971 = vunpack.c.h.b16 %v1762
        %v4972 = vunpack.c.l.b16 %v1763
        %v4973 = vunpack.c.h.b16 %v1763
        %v4974 = vunpack.c.l.b16 %v1764
        %v4975 = vunpack.c.h.b16 %v1764
        %v4976 = vunpack.c.l.b16 %v1765
        %v4977 = vunpack.c.h.b16 %v1765
        %v4978 = vunpack.c.l.b16 %v1766
        %v4979 = vunpack.c.h.b16 %v1766
        %v4980 = vunpack.c.l.b16 %v1767
        %v4981 = vunpack.c.h.b16 %v1767
        %v4982 = vunpack.c.l.b16 %v1768
        %v4983 = vunpack.c.h.b16 %v1768
        %v4984 = vunpack.c.l.b16 %v1769
        %v4985 = vunpack.c.h.b16 %v1769
        %v4986 = vunpack.c.l.b16 %v1770
        %v4987 = vunpack.c.h.b16 %v1770
        %v4988 = vunpack.c.l.b16 %v1771
        %v4989 = vunpack.c.h.b16 %v1771
        %v4990 = vunpack.c.l.b16 %v1772
        %v4991 = vunpack.c.h.b16 %v1772
        %v4992 = vunpack.c.l.b16 %v1773
        %v4993 = vunpack.c.h.b16 %v1773
        %v4994 = vunpack.c.l.b16 %v1774
        %v4995 = vunpack.c.h.b16 %v1774
        %v4996 = vunpack.c.l.b16 %v1775
        %v4997 = vunpack.c.h.b16 %v1775
        %v4998 = vunpack.c.l.b16 %v1776
        %v4999 = vunpack.c.h.b16 %v1776
        %v5000 = vunpack.c.l.b16 %v1777
        %v5001 = vunpack.c.h.b16 %v1777
        %v5002 = vunpack.c.l.b16 %v1778
        %v5003 = vunpack.c.h.b16 %v1778
        %v5004 = vunpack.c.l.b16 %v1779
        %v5005 = vunpack.c.h.b16 %v1779
        %v5006 = vunpack.c.l.b16 %v1780
        %v5007 = vunpack.c.h.b16 %v1780
        %v5008 = vunpack.c.l.b16 %v1781
        %v5009 = vunpack.c.h.b16 %v1781
        %v5010 = vunpack.c.l.b16 %v1782
        %v5011 = vunpack.c.h.b16 %v1782
        %v5012 = vunpack.c.l.b16 %v1783
        %v5013 = vunpack.c.h.b16 %v1783
        %v5014 = vunpack.c.l.b16 %v1784
        %v5015 = vunpack.c.h.b16 %v1784
        %v5016 = vunpack.c.l.b16 %v1785
        %v5017 = vunpack.c.h.b16 %v1785
        %v5018 = vunpack.c.l.b16 %v1786
        %v5019 = vunpack.c.h.b16 %v1786
        %v5020 = vunpack.c.l.b16 %v1787
        %v5021 = vunpack.c.h.b16 %v1787
        %v5022 = vunpack.c.l.b16 %v1788
        %v5023 = vunpack.c.h.b16 %v1788
        %v5024 = vunpack.c.l.b16 %v1789
        %v5025 = vunpack.c.h.b16 %v1789
        %v5026 = vunpack.c.l.b16 %v1790
        %v5027 = vunpack.c.h.b16 %v1790
        %v5028 = vunpack.c.l.b16 %v1791
        %v5029 = vunpack.c.h.b16 %v1791
        %v5030 = vunpack.c.l.b16 %v1792
        %v5031 = vunpack.c.h.b16 %v1792
        %v5032 = vunpack.c.l.b16 %v1793
        %v5033 = vunpack.c.h.b16 %v1793
        %v5034 = vunpack.c.l.b16 %v1794
        %v5035 = vunpack.c.h.b16 %v1794
        %v5036 = vunpack.c.l.b16 %v1795
        %v5037 = vunpack.c.h.b16 %v1795
        %v5038 = vunpack.c.l.b16 %v1796
        %v5039 = vunpack.c.h.b16 %v1796
        %v5040 = vunpack.c.l.b16 %v1797
        %v5041 = vunpack.c.h.b16 %v1797
        %v5042 = vunpack.c.l.b16 %v1798
        %v5043 = vunpack.c.h.b16 %v1798
        %v5044 = vunpack.c.l.b16 %v1799
        %v5045 = vunpack.c.h.b16 %v1799
        %v5046 = vunpack.c.l.b16 %v1800
        %v5047 = vunpack.c.h.b16 %v1800
        %v5048 = vunpack.c.l.b16 %v1801
        %v5049 = vunpack.c.h.b16 %v1801
        %v5050 = vunpack.c.l.b16 %v1802
        %v5051 = vunpack.c.h.b16 %v1802
        %v5052 = vunpack.c.l.b16 %v1803
        %v5053 = vunpack.c.h.b16 %v1803
        %v5054 = vunpack.c.l.b16 %v1804
        %v5055 = vunpack.c.h.b16 %v1804
        %v5056 = vunpack.c.l.b16 %v1805
        %v5057 = vunpack.c.h.b16 %v1805
        %v5058 = vunpack.c.l.b16 %v1806
        %v5059 = vunpack.c.h.b16 %v1806
        %v5060 = vunpack.c.l.b16 %v1807
        %v5061 = vunpack.c.h.b16 %v1807
        %v5062 = vunpack.c.l.b16 %v1808
        %v5063 = vunpack.c.h.b16 %v1808
        %v5064 = vunpack.c.l.b16 %v1809
        %v5065 = vunpack.c.h.b16 %v1809
        %v5066 = vunpack.c.l.b16 %v1810
        %v5067 = vunpack.c.h.b16 %v1810
        %v5068 = vunpack.c.l.b16 %v1811
        %v5069 = vunpack.c.h.b16 %v1811
        %v5070 = vunpack.c.l.b16 %v1812
        %v5071 = vunpack.c.h.b16 %v1812
        %v5072 = vunpack.c.l.b16 %v1813
        %v5073 = vunpack.c.h.b16 %v1813
        %v5074 = vunpack.c.l.b16 %v1814
        %v5075 = vunpack.c.h.b16 %v1814
        %v5076 = vunpack.c.l.b16 %v1815
        %v5077 = vunpack.c.h.b16 %v1815
        %v5078 = vunpack.c.l.b16 %v1816
        %v5079 = vunpack.c.h.b16 %v1816
        %v5080 = vunpack.c.l.b16 %v1817
        %v5081 = vunpack.c.h.b16 %v1817
        %v5082 = vunpack.c.l.b16 %v1818
        %v5083 = vunpack.c.h.b16 %v1818
        %v5084 = vunpack.c.l.b16 %v1819
        %v5085 = vunpack.c.h.b16 %v1819
        %v5086 = vunpack.c.l.b16 %v1820
        %v5087 = vunpack.c.h.b16 %v1820
        %v5088 = vunpack.c.l.b16 %v1821
        %v5089 = vunpack.c.h.b16 %v1821
        %v5090 = vunpack.c.l.b16 %v1822
        %v5091 = vunpack.c.h.b16 %v1822
        %v5092 = vunpack.c.l.b16 %v1823
        %v5093 = vunpack.c.h.b16 %v1823
        %v5094 = vunpack.c.l.b16 %v1824
        %v5095 = vunpack.c.h.b16 %v1824
        %v5096 = vunpack.c.l.b16 %v1825
        %v5097 = vunpack.c.h.b16 %v1825
        %v5098 = vunpack.c.l.b16 %v1826
        %v5099 = vunpack.c.h.b16 %v1826
        %v5100 = vunpack.c.l.b16 %v1827
        %v5101 = vunpack.c.h.b16 %v1827
        %v5102 = vunpack.c.l.b16 %v1828
        %v5103 = vunpack.c.h.b16 %v1828
        %v5104 = vunpack.c.l.b16 %v1829
        %v5105 = vunpack.c.h.b16 %v1829
        %v5106 = vunpack.c.l.b16 %v1830
        %v5107 = vunpack.c.h.b16 %v1830
        %v5108 = vunpack.c.l.b16 %v1831
        %v5109 = vunpack.c.h.b16 %v1831
        %v5110 = vunpack.c.l.b16 %v1832
        %v5111 = vunpack.c.h.b16 %v1832
        %v5112 = vunpack.c.l.b16 %v1833
        %v5113 = vunpack.c.h.b16 %v1833
        %v5114 = vunpack.c.l.b16 %v1834
        %v5115 = vunpack.c.h.b16 %v1834
        %v5116 = vunpack.c.l.b16 %v1835
        %v5117 = vunpack.c.h.b16 %v1835
        %v5118 = vunpack.c.l.b16 %v1836
        %v5119 = vunpack.c.h.b16 %v1836
        %v5120 = vunpack.c.l.b16 %v1837
        %v5121 = vunpack.c.h.b16 %v1837
        %v5122 = vunpack.c.l.b16 %v1838
        %v5123 = vunpack.c.h.b16 %v1838
        %v5124 = vunpack.c.l.b16 %v1839
        %v5125 = vunpack.c.h.b16 %v1839
        %v5126 = vunpack.c.l.b16 %v1840
        %v5127 = vunpack.c.h.b16 %v1840
        %v5128 = vunpack.c.l.b16 %v1841
        %v5129 = vunpack.c.h.b16 %v1841
        %v5130 = vunpack.c.l.b16 %v1842
        %v5131 = vunpack.c.h.b16 %v1842
        %v5132 = vunpack.c.l.b16 %v1843
        %v5133 = vunpack.c.h.b16 %v1843
        %v5134 = vunpack.c.l.b16 %v1844
        %v5135 = vunpack.c.h.b16 %v1844
        %v5136 = vunpack.c.l.b16 %v1845
        %v5137 = vunpack.c.h.b16 %v1845
        %v5138 = vunpack.c.l.b16 %v1846
        %v5139 = vunpack.c.h.b16 %v1846
        %v5140 = vunpack.c.l.b16 %v1847
        %v5141 = vunpack.c.h.b16 %v1847
        %v5142 = vunpack.c.l.b16 %v1848
        %v5143 = vunpack.c.h.b16 %v1848
        %v5144 = vunpack.c.l.b16 %v1849
        %v5145 = vunpack.c.h.b16 %v1849
        %v5146 = vunpack.c.l.b16 %v1850
        %v5147 = vunpack.c.h.b16 %v1850
        %v5148 = vunpack.c.l.b16 %v1851
        %v5149 = vunpack.c.h.b16 %v1851
        %v5150 = vunpack.c.l.b16 %v1852
        %v5151 = vunpack.c.h.b16 %v1852
        %v5152 = vunpack.c.l.b16 %v1853
        %v5153 = vunpack.c.h.b16 %v1853
        %v5154 = vunpack.c.l.b16 %v1854
        %v5155 = vunpack.c.h.b16 %v1854
        %v5156 = vunpack.c.l.b16 %v1855
        %v5157 = vunpack.c.h.b16 %v1855
        %v5158 = vunpack.c.l.b16 %v1856
        %v5159 = vunpack.c.h.b16 %v1856
        %v5160 = vunpack.c.l.b16 %v1857
        %v5161 = vunpack.c.h.b16 %v1857
        %v5162 = vunpack.c.l.b16 %v1858
        %v5163 = vunpack.c.h.b16 %v1858
        %v5164 = vunpack.c.l.b16 %v1859
        %v5165 = vunpack.c.h.b16 %v1859
        %v5166 = vunpack.c.l.b16 %v1860
        %v5167 = vunpack.c.h.b16 %v1860
        %v5168 = vunpack.c.l.b16 %v1861
        %v5169 = vunpack.c.h.b16 %v1861
        %v5170 = vunpack.c.l.b16 %v1862
        %v5171 = vunpack.c.h.b16 %v1862
        %v5172 = vunpack.c.l.b16 %v1863
        %v5173 = vunpack.c.h.b16 %v1863
        %v5174 = vunpack.c.l.b16 %v1864
        %v5175 = vunpack.c.h.b16 %v1864
        %v5176 = vunpack.c.l.b16 %v1865
        %v5177 = vunpack.c.h.b16 %v1865
        %v5178 = vunpack.c.l.b16 %v1866
        %v5179 = vunpack.c.h.b16 %v1866
        %v5180 = vunpack.c.l.b16 %v1867
        %v5181 = vunpack.c.h.b16 %v1867
        %v5182 = vunpack.c.l.b16 %v1868
        %v5183 = vunpack.c.h.b16 %v1868
        %v5184 = vunpack.c.l.b16 %v1869
        %v5185 = vunpack.c.h.b16 %v1869
        %v5186 = vunpack.c.l.b16 %v1870
        %v5187 = vunpack.c.h.b16 %v1870
        %v5188 = vunpack.c.l.b16 %v1871
        %v5189 = vunpack.c.h.b16 %v1871
        %v5190 = vunpack.c.l.b16 %v1872
        %v5191 = vunpack.c.h.b16 %v1872
        %v5192 = vunpack.c.l.b16 %v1873
        %v5193 = vunpack.c.h.b16 %v1873
        %v5194 = vunpack.c.l.b16 %v1874
        %v5195 = vunpack.c.h.b16 %v1874
        %v5196 = vunpack.c.l.b16 %v1875
        %v5197 = vunpack.c.h.b16 %v1875
        %v5198 = vunpack.c.l.b16 %v1876
        %v5199 = vunpack.c.h.b16 %v1876
        %v5200 = vunpack.c.l.b16 %v1877
        %v5201 = vunpack.c.h.b16 %v1877
        %v5202 = vunpack.c.l.b16 %v1878
        %v5203 = vunpack.c.h.b16 %v1878
        %v5204 = vunpack.c.l.b16 %v1879
        %v5205 = vunpack.c.h.b16 %v1879
        %v5206 = vunpack.c.l.b16 %v1880
        %v5207 = vunpack.c.h.b16 %v1880
        %v5208 = vunpack.c.l.b16 %v1881
        %v5209 = vunpack.c.h.b16 %v1881
        %v5210 = vunpack.c.l.b16 %v1882
        %v5211 = vunpack.c.h.b16 %v1882
        %v5212 = vunpack.c.l.b16 %v1883
        %v5213 = vunpack.c.h.b16 %v1883
        %v5214 = vunpack.c.l.b16 %v1884
        %v5215 = vunpack.c.h.b16 %v1884
        %v5216 = vunpack.c.l.b16 %v1885
        %v5217 = vunpack.c.h.b16 %v1885
        %v5218 = vunpack.c.l.b16 %v1886
        %v5219 = vunpack.c.h.b16 %v1886
        %v5220 = vunpack.c.l.b16 %v1887
        %v5221 = vunpack.c.h.b16 %v1887
        %v5222 = vunpack.c.l.b16 %v1888
        %v5223 = vunpack.c.h.b16 %v1888
        %v5224 = vunpack.c.l.b16 %v1889
        %v5225 = vunpack.c.h.b16 %v1889
        %v5226 = vunpack.c.l.b16 %v1890
        %v5227 = vunpack.c.h.b16 %v1890
        %v5228 = vunpack.c.l.b16 %v1891
        %v5229 = vunpack.c.h.b16 %v1891
        %v5230 = vunpack.c.l.b16 %v1892
        %v5231 = vunpack.c.h.b16 %v1892
        %v5232 = vunpack.c.l.b16 %v1893
        %v5233 = vunpack.c.h.b16 %v1893
        %v5234 = vunpack.c.l.b16 %v1894
        %v5235 = vunpack.c.h.b16 %v1894
        %v5236 = vunpack.c.l.b16 %v1895
        %v5237 = vunpack.c.h.b16 %v1895
        %v5238 = vunpack.c.l.b16 %v1896
        %v5239 = vunpack.c.h.b16 %v1896
        %v5240 = vunpack.c.l.b16 %v1897
        %v5241 = vunpack.c.h.b16 %v1897
        %v5242 = vunpack.c.l.b16 %v1898
        %v5243 = vunpack.c.h.b16 %v1898
        %v5244 = vunpack.c.l.b16 %v1899
        %v5245 = vunpack.c.h.b16 %v1899
        %v5246 = vunpack.c.l.b16 %v1900
        %v5247 = vunpack.c.h.b16 %v1900
        %v5248 = vunpack.c.l.b16 %v1901
        %v5249 = vunpack.c.h.b16 %v1901
        %v5250 = vunpack.c.l.b16 %v1902
        %v5251 = vunpack.c.h.b16 %v1902
        %v5252 = vunpack.c.l.b16 %v1903
        %v5253 = vunpack.c.h.b16 %v1903
        %v5254 = vunpack.c.l.b16 %v1904
        %v5255 = vunpack.c.h.b16 %v1904
        %v5256 = vunpack.c.l.b16 %v1905
        %v5257 = vunpack.c.h.b16 %v1905
        %v5258 = vunpack.c.l.b16 %v1906
        %v5259 = vunpack.c.h.b16 %v1906
        %v5260 = vunpack.c.l.b16 %v1907
        %v5261 = vunpack.c.h.b16 %v1907
        %v5262 = vunpack.c.l.b16 %v1908
        %v5263 = vunpack.c.h.b16 %v1908
        %v5264 = vunpack.c.l.b16 %v1909
        %v5265 = vunpack.c.h.b16 %v1909
        %v5266 = vunpack.c.l.b16 %v1910
        %v5267 = vunpack.c.h.b16 %v1910
        %v5268 = vunpack.c.l.b16 %v1911
        %v5269 = vunpack.c.h.b16 %v1911
        %v5270 = vunpack.c.l.b16 %v1912
        %v5271 = vunpack.c.h.b16 %v1912
        %v5272 = vunpack.c.l.b16 %v1913
        %v5273 = vunpack.c.h.b16 %v1913
        %v5274 = vunpack.c.l.b16 %v1914
        %v5275 = vunpack.c.h.b16 %v1914
        %v5276 = vunpack.c.l.b16 %v1915
        %v5277 = vunpack.c.h.b16 %v1915
        %v5278 = vunpack.c.l.b16 %v1916
        %v5279 = vunpack.c.h.b16 %v1916
        %v5280 = vunpack.c.l.b16 %v1917
        %v5281 = vunpack.c.h.b16 %v1917
        %v5282 = vunpack.c.l.b16 %v1918
        %v5283 = vunpack.c.h.b16 %v1918
        %v5284 = vunpack.c.l.b16 %v1919
        %v5285 = vunpack.c.h.b16 %v1919
        %v5286 = vunpack.c.l.b16 %v1920
        %v5287 = vunpack.c.h.b16 %v1920
        %v5288 = vunpack.c.l.b16 %v1921
        %v5289 = vunpack.c.h.b16 %v1921
        %v5290 = vunpack.c.l.b16 %v1922
        %v5291 = vunpack.c.h.b16 %v1922
        %v5292 = vunpack.c.l.b16 %v1923
        %v5293 = vunpack.c.h.b16 %v1923
        %v5294 = vunpack.c.l.b16 %v1924
        %v5295 = vunpack.c.h.b16 %v1924
        %v5296 = vunpack.c.l.b16 %v1925
        %v5297 = vunpack.c.h.b16 %v1925
        %v5298 = vunpack.c.l.b16 %v1926
        %v5299 = vunpack.c.h.b16 %v1926
        %v5300 = vunpack.c.l.b16 %v1927
        %v5301 = vunpack.c.h.b16 %v1927
        %v5302 = vunpack.c.l.b16 %v1928
        %v5303 = vunpack.c.h.b16 %v1928
        %v5304 = vunpack.c.l.b16 %v1929
        %v5305 = vunpack.c.h.b16 %v1929
        %v5306 = vunpack.c.l.b16 %v1930
        %v5307 = vunpack.c.h.b16 %v1930
        %v5308 = vunpack.c.l.b16 %v1931
        %v5309 = vunpack.c.h.b16 %v1931
        %v5310 = vunpack.c.l.b16 %v1932
        %v5311 = vunpack.c.h.b16 %v1932
        %v5312 = vunpack.c.l.b16 %v1933
        %v5313 = vunpack.c.h.b16 %v1933
        %v5314 = vunpack.c.l.b16 %v1934
        %v5315 = vunpack.c.h.b16 %v1934
        %v5316 = vunpack.c.l.b16 %v1935
        %v5317 = vunpack.c.h.b16 %v1935
        %v5318 = vunpack.c.l.b16 %v1936
        %v5319 = vunpack.c.h.b16 %v1936
        %v5320 = vunpack.c.l.b16 %v1937
        %v5321 = vunpack.c.h.b16 %v1937
        %v5322 = vunpack.c.l.b16 %v1938
        %v5323 = vunpack.c.h.b16 %v1938
        %v5324 = vunpack.c.l.b16 %v1939
        %v5325 = vunpack.c.h.b16 %v1939
        %v5326 = vunpack.c.l.b16 %v1940
        %v5327 = vunpack.c.h.b16 %v1940
        %v5328 = vunpack.c.l.b16 %v1941
        %v5329 = vunpack.c.h.b16 %v1941
        %v5330 = vunpack.c.l.b16 %v1942
        %v5331 = vunpack.c.h.b16 %v1942
        %v5332 = vunpack.c.l.b16 %v1943
        %v5333 = vunpack.c.h.b16 %v1943
        %v5334 = vunpack.c.l.b16 %v1944
        %v5335 = vunpack.c.h.b16 %v1944
        %v5336 = vunpack.c.l.b16 %v1945
        %v5337 = vunpack.c.h.b16 %v1945
        %v5338 = vunpack.c.l.b16 %v1946
        %v5339 = vunpack.c.h.b16 %v1946
        %v5340 = vunpack.c.l.b16 %v1947
        %v5341 = vunpack.c.h.b16 %v1947
        %v5342 = vunpack.c.l.b16 %v1948
        %v5343 = vunpack.c.h.b16 %v1948
        %v5344 = vunpack.c.l.b16 %v1949
        %v5345 = vunpack.c.h.b16 %v1949
        %v5346 = vunpack.c.l.b16 %v1950
        %v5347 = vunpack.c.h.b16 %v1950
        %v5348 = vunpack.c.l.b16 %v1951
        %v5349 = vunpack.c.h.b16 %v1951
        %v5350 = vunpack.c.l.b16 %v1952
        %v5351 = vunpack.c.h.b16 %v1952
        %v5352 = vunpack.c.l.b16 %v1953
        %v5353 = vunpack.c.h.b16 %v1953
        %v5354 = vunpack.c.l.b16 %v1954
        %v5355 = vunpack.c.h.b16 %v1954
        %v5356 = vunpack.c.l.b16 %v1955
        %v5357 = vunpack.c.h.b16 %v1955
        %v5358 = vunpack.c.l.b16 %v1956
        %v5359 = vunpack.c.h.b16 %v1956
        %v5360 = vunpack.c.l.b16 %v1957
        %v5361 = vunpack.c.h.b16 %v1957
        %v5362 = vunpack.c.l.b16 %v1958
        %v5363 = vunpack.c.h.b16 %v1958
        %v5364 = vunpack.c.l.b16 %v1959
        %v5365 = vunpack.c.h.b16 %v1959
        %v5366 = vunpack.c.l.b16 %v1960
        %v5367 = vunpack.c.h.b16 %v1960
        %v5368 = vunpack.c.l.b16 %v1961
        %v5369 = vunpack.c.h.b16 %v1961
        %v5370 = vunpack.c.l.b16 %v1962
        %v5371 = vunpack.c.h.b16 %v1962
        %v5372 = vunpack.c.l.b16 %v1963
        %v5373 = vunpack.c.h.b16 %v1963
        %v5374 = vunpack.c.l.b16 %v1964
        %v5375 = vunpack.c.h.b16 %v1964
        %v5376 = vunpack.c.l.b16 %v1965
        %v5377 = vunpack.c.h.b16 %v1965
        %v5378 = vunpack.c.l.b16 %v1966
        %v5379 = vunpack.c.h.b16 %v1966
        %v5380 = vunpack.c.l.b16 %v1967
        %v5381 = vunpack.c.h.b16 %v1967
        %v5382 = vunpack.c.l.b16 %v1968
        %v5383 = vunpack.c.h.b16 %v1968
        %v5384 = vunpack.c.l.b16 %v1969
        %v5385 = vunpack.c.h.b16 %v1969
        %v5386 = vunpack.c.l.b16 %v1970
        %v5387 = vunpack.c.h.b16 %v1970
        %v5388 = vunpack.c.l.b16 %v1971
        %v5389 = vunpack.c.h.b16 %v1971
        %v5390 = vunpack.c.l.b16 %v1972
        %v5391 = vunpack.c.h.b16 %v1972
        %v5392 = vunpack.c.l.b16 %v1973
        %v5393 = vunpack.c.h.b16 %v1973
        %v5394 = vunpack.c.l.b16 %v1974
        %v5395 = vunpack.c.h.b16 %v1974
        %v5396 = vunpack.c.l.b16 %v1975
        %v5397 = vunpack.c.h.b16 %v1975
        %v5398 = vunpack.c.l.b16 %v1976
        %v5399 = vunpack.c.h.b16 %v1976
        %v5400 = vunpack.c.l.b16 %v1977
        %v5401 = vunpack.c.h.b16 %v1977
        %v5402 = vunpack.c.l.b16 %v1978
        %v5403 = vunpack.c.h.b16 %v1978
        %v5404 = vunpack.c.l.b16 %v1979
        %v5405 = vunpack.c.h.b16 %v1979
        %v5406 = vunpack.c.l.b16 %v1980
        %v5407 = vunpack.c.h.b16 %v1980
        %v5408 = vunpack.c.l.b16 %v1981
        %v5409 = vunpack.c.h.b16 %v1981
        %v5410 = vunpack.c.l.b16 %v1982
        %v5411 = vunpack.c.h.b16 %v1982
        %v5412 = vunpack.c.l.b16 %v1983
        %v5413 = vunpack.c.h.b16 %v1983
        %v5414 = vunpack.c.l.b16 %v1984
        %v5415 = vunpack.c.h.b16 %v1984
        %v5416 = vunpack.c.l.b16 %v1985
        %v5417 = vunpack.c.h.b16 %v1985
        %v5418 = vunpack.c.l.b16 %v1986
        %v5419 = vunpack.c.h.b16 %v1986
        %v5420 = vunpack.c.l.b16 %v1987
        %v5421 = vunpack.c.h.b16 %v1987
        %v5422 = vunpack.c.l.b16 %v1988
        %v5423 = vunpack.c.h.b16 %v1988
        %v5424 = vunpack.c.l.b16 %v1989
        %v5425 = vunpack.c.h.b16 %v1989
        %v5426 = vunpack.c.l.b16 %v1990
        %v5427 = vunpack.c.h.b16 %v1990
        %v5428 = vunpack.c.l.b16 %v1991
        %v5429 = vunpack.c.h.b16 %v1991
        %v5430 = vunpack.c.l.b16 %v1992
        %v5431 = vunpack.c.h.b16 %v1992
        %v5432 = vunpack.c.l.b16 %v1993
        %v5433 = vunpack.c.h.b16 %v1993
        %v5434 = vunpack.c.l.b16 %v1994
        %v5435 = vunpack.c.h.b16 %v1994
        %v5436 = vunpack.c.l.b16 %v1995
        %v5437 = vunpack.c.h.b16 %v1995
        %v5438 = vunpack.c.l.b16 %v1996
        %v5439 = vunpack.c.h.b16 %v1996
        %v5440 = vunpack.c.l.b16 %v1997
        %v5441 = vunpack.c.h.b16 %v1997
        %v5442 = vunpack.c.l.b16 %v1998
        %v5443 = vunpack.c.h.b16 %v1998
        %v5444 = vunpack.c.l.b16 %v1999
        %v5445 = vunpack.c.h.b16 %v1999
        %v5446 = vunpack.c.l.b16 %v2000
        %v5447 = vunpack.c.h.b16 %v2000
        %v5448 = vunpack.c.l.b16 %v2001
        %v5449 = vunpack.c.h.b16 %v2001
        %v5450 = vunpack.c.l.b16 %v2002
        %v5451 = vunpack.c.h.b16 %v2002
        %v5452 = vunpack.c.l.b16 %v2003
        %v5453 = vunpack.c.h.b16 %v2003
        %v5454 = vunpack.c.l.b16 %v2004
        %v5455 = vunpack.c.h.b16 %v2004
        %v5456 = vunpack.c.l.b16 %v2005
        %v5457 = vunpack.c.h.b16 %v2005
        %v5458 = vunpack.c.l.b16 %v2006
        %v5459 = vunpack.c.h.b16 %v2006
        %v5460 = vunpack.c.l.b16 %v2007
        %v5461 = vunpack.c.h.b16 %v2007
        %v5462 = vunpack.c.l.b16 %v2008
        %v5463 = vunpack.c.h.b16 %v2008
        %v5464 = vunpack.c.l.b16 %v2009
        %v5465 = vunpack.c.h.b16 %v2009
        %v5466 = vunpack.c.l.b16 %v2010
        %v5467 = vunpack.c.h.b16 %v2010
        %v5468 = vunpack.c.l.b16 %v2011
        %v5469 = vunpack.c.h.b16 %v2011
        %v5470 = vunpack.c.l.b16 %v2012
        %v5471 = vunpack.c.h.b16 %v2012
        %v5472 = vunpack.c.l.b16 %v2013
        %v5473 = vunpack.c.h.b16 %v2013
        %v5474 = vunpack.c.l.b16 %v2014
        %v5475 = vunpack.c.h.b16 %v2014
        %v5476 = vunpack.c.l.b16 %v2015
        %v5477 = vunpack.c.h.b16 %v2015
        %v5478 = vunpack.c.l.b16 %v2016
        %v5479 = vunpack.c.h.b16 %v2016
        %v5480 = vunpack.c.l.b16 %v2017
        %v5481 = vunpack.c.h.b16 %v2017
        %v5482 = vunpack.c.l.b16 %v2018
        %v5483 = vunpack.c.h.b16 %v2018
        %v5484 = vunpack.c.l.b16 %v2019
        %v5485 = vunpack.c.h.b16 %v2019
        %v5486 = vunpack.c.l.b16 %v2020
        %v5487 = vunpack.c.h.b16 %v2020
        %v5488 = vunpack.c.l.b16 %v2021
        %v5489 = vunpack.c.h.b16 %v2021
        %v5490 = vunpack.c.l.b16 %v2022
        %v5491 = vunpack.c.h.b16 %v2022
        %v5492 = vunpack.c.l.b16 %v2023
        %v5493 = vunpack.c.h.b16 %v2023
        %v5494 = vunpack.c.l.b16 %v2024
        %v5495 = vunpack.c.h.b16 %v2024
        %v5496 = vunpack.c.l.b16 %v2025
        %v5497 = vunpack.c.h.b16 %v2025
        %v5498 = vunpack.c.l.b16 %v2026
        %v5499 = vunpack.c.h.b16 %v2026
        %v5500 = vunpack.c.l.b16 %v2027
        %v5501 = vunpack.c.h.b16 %v2027
        %v5502 = vunpack.c.l.b16 %v2028
        %v5503 = vunpack.c.h.b16 %v2028
        %v5504 = vunpack.c.l.b16 %v2029
        %v5505 = vunpack.c.h.b16 %v2029
        %v5506 = vunpack.c.l.b16 %v2030
        %v5507 = vunpack.c.h.b16 %v2030
        %v5508 = vunpack.c.l.b16 %v2031
        %v5509 = vunpack.c.h.b16 %v2031
        %v5510 = vunpack.c.l.b16 %v2032
        %v5511 = vunpack.c.h.b16 %v2032
        %v5512 = vunpack.c.l.b16 %v2033
        %v5513 = vunpack.c.h.b16 %v2033
        %v5514 = vunpack.c.l.b16 %v2034
        %v5515 = vunpack.c.h.b16 %v2034
        %v5516 = vunpack.c.l.b16 %v2035
        %v5517 = vunpack.c.h.b16 %v2035
        %v5518 = vunpack.c.l.b16 %v2036
        %v5519 = vunpack.c.h.b16 %v2036
        %v5520 = vunpack.c.l.b16 %v2037
        %v5521 = vunpack.c.h.b16 %v2037
        %v5522 = vunpack.c.l.b16 %v2038
        %v5523 = vunpack.c.h.b16 %v2038
        %v5524 = vunpack.c.l.b16 %v2039
        %v5525 = vunpack.c.h.b16 %v2039
        %v5526 = vunpack.c.l.b16 %v2040
        %v5527 = vunpack.c.h.b16 %v2040
        %v5528 = vunpack.c.l.b16 %v2041
        %v5529 = vunpack.c.h.b16 %v2041
        %v5530 = vunpack.c.l.b16 %v2042
        %v5531 = vunpack.c.h.b16 %v2042
        %v5532 = vunpack.c.l.b16 %v2043
        %v5533 = vunpack.c.h.b16 %v2043
        %v5534 = vunpack.c.l.b16 %v2044
        %v5535 = vunpack.c.h.b16 %v2044
        %v5536 = vunpack.c.l.b16 %v2045
        %v5537 = vunpack.c.h.b16 %v2045
        %v5538 = vunpack.c.l.b16 %v2046
        %v5539 = vunpack.c.h.b16 %v2046
        %v5540 = vunpack.c.l.b16 %v2047
        %v5541 = vunpack.c.h.b16 %v2047
        %v5542 = vunpack.c.l.b16 %v2048
        %v5543 = vunpack.c.h.b16 %v2048
        %v5544 = vunpack.c.l.b16 %v2049
        %v5545 = vunpack.c.h.b16 %v2049
        %v5546 = vunpack.c.l.b16 %v2050
        %v5547 = vunpack.c.h.b16 %v2050
        %v5548 = vunpack.c.l.b16 %v2051
        %v5549 = vunpack.c.h.b16 %v2051
        %v5550 = vunpack.c.l.b16 %v2052
        %v5551 = vunpack.c.h.b16 %v2052
        %v5552 = vunpack.c.l.b16 %v2053
        %v5553 = vunpack.c.h.b16 %v2053
        %v5554 = vunpack.c.l.b16 %v2054
        %v5555 = vunpack.c.h.b16 %v2054
        %v5556 = vunpack.c.l.b16 %v2055
        %v5557 = vunpack.c.h.b16 %v2055
        %v5558 = vunpack.c.l.b16 %v2056
        %v5559 = vunpack.c.h.b16 %v2056
        %v5560 = vunpack.c.l.b16 %v2057
        %v5561 = vunpack.c.h.b16 %v2057
        %v5562 = vunpack.c.l.b16 %v2058
        %v5563 = vunpack.c.h.b16 %v2058
        %v5564 = vunpack.c.l.b16 %v2059
        %v5565 = vunpack.c.h.b16 %v2059
        %v5566 = vunpack.c.l.b16 %v2060
        %v5567 = vunpack.c.h.b16 %v2060
        %v5568 = vunpack.c.l.b16 %v2061
        %v5569 = vunpack.c.h.b16 %v2061
        %v5570 = vunpack.c.l.b16 %v2062
        %v5571 = vunpack.c.h.b16 %v2062
        %v5572 = vunpack.c.l.b16 %v2063
        %v5573 = vunpack.c.h.b16 %v2063
        %v5574 = vunpack.c.l.b16 %v2064
        %v5575 = vunpack.c.h.b16 %v2064
        %v5576 = vunpack.c.l.b16 %v2065
        %v5577 = vunpack.c.h.b16 %v2065
        %v5578 = vunpack.c.l.b16 %v2066
        %v5579 = vunpack.c.h.b16 %v2066
        %v5580 = vunpack.c.l.b16 %v2067
        %v5581 = vunpack.c.h.b16 %v2067
        %v5582 = vunpack.c.l.b16 %v2068
        %v5583 = vunpack.c.h.b16 %v2068
        %v5584 = vunpack.c.l.b16 %v2069
        %v5585 = vunpack.c.h.b16 %v2069
        %v5586 = vunpack.c.l.b16 %v2070
        %v5587 = vunpack.c.h.b16 %v2070
        %v5588 = vunpack.c.l.b16 %v2071
        %v5589 = vunpack.c.h.b16 %v2071
        %v5590 = vunpack.c.l.b16 %v2072
        %v5591 = vunpack.c.h.b16 %v2072
        %v5592 = vunpack.c.l.b16 %v2073
        %v5593 = vunpack.c.h.b16 %v2073
        %v5594 = vunpack.c.l.b16 %v2074
        %v5595 = vunpack.c.h.b16 %v2074
        %v5596 = vunpack.c.l.b16 %v2075
        %v5597 = vunpack.c.h.b16 %v2075
        %v5598 = vunpack.c.l.b16 %v2076
        %v5599 = vunpack.c.h.b16 %v2076
        %v5600 = vunpack.c.l.b16 %v2077
        %v5601 = vunpack.c.h.b16 %v2077
        %v5602 = vunpack.c.l.b16 %v2078
        %v5603 = vunpack.c.h.b16 %v2078
        %v5604 = vunpack.c.l.b16 %v2079
        %v5605 = vunpack.c.h.b16 %v2079
        %v5606 = vunpack.c.l.b16 %v2080
        %v5607 = vunpack.c.h.b16 %v2080
        %v5608 = vunpack.c.l.b16 %v2081
        %v5609 = vunpack.c.h.b16 %v2081
        %v5610 = vunpack.c.l.b16 %v2082
        %v5611 = vunpack.c.h.b16 %v2082
        %v5612 = vunpack.c.l.b16 %v2083
        %v5613 = vunpack.c.h.b16 %v2083
        %v5614 = vunpack.c.l.b16 %v2084
        %v5615 = vunpack.c.h.b16 %v2084
        %v5616 = vunpack.c.l.b16 %v2085
        %v5617 = vunpack.c.h.b16 %v2085
        %v5618 = vunpack.c.l.b16 %v2086
        %v5619 = vunpack.c.h.b16 %v2086
        %v5620 = vunpack.c.l.b16 %v2087
        %v5621 = vunpack.c.h.b16 %v2087
        %v5622 = vunpack.c.l.b16 %v2088
        %v5623 = vunpack.c.h.b16 %v2088
        %v5624 = vunpack.c.l.b16 %v2089
        %v5625 = vunpack.c.h.b16 %v2089
        %v5626 = vunpack.c.l.b16 %v2090
        %v5627 = vunpack.c.h.b16 %v2090
        %v5628 = vunpack.c.l.b16 %v2091
        %v5629 = vunpack.c.h.b16 %v2091
        %v5630 = vunpack.c.l.b16 %v2092
        %v5631 = vunpack.c.h.b16 %v2092
        %v5632 = vunpack.c.l.b16 %v2093
        %v5633 = vunpack.c.h.b16 %v2093
        %v5634 = vunpack.c.l.b16 %v2094
        %v5635 = vunpack.c.h.b16 %v2094
        %v5636 = vunpack.c.l.b16 %v2095
        %v5637 = vunpack.c.h.b16 %v2095
        %v5638 = vunpack.c.l.b16 %v2096
        %v5639 = vunpack.c.h.b16 %v2096
        %v5640 = vunpack.c.l.b16 %v2097
        %v5641 = vunpack.c.h.b16 %v2097
        %v5642 = vunpack.c.l.b16 %v2098
        %v5643 = vunpack.c.h.b16 %v2098
        %v5644 = vunpack.c.l.b16 %v2099
        %v5645 = vunpack.c.h.b16 %v2099
        %v5646 = vunpack.c.l.b16 %v2100
        %v5647 = vunpack.c.h.b16 %v2100
        %v5648 = vunpack.c.l.b16 %v2101
        %v5649 = vunpack.c.h.b16 %v2101
        %v5650 = vunpack.c.l.b16 %v2102
        %v5651 = vunpack.c.h.b16 %v2102
        %v5652 = vunpack.c.l.b16 %v2103
        %v5653 = vunpack.c.h.b16 %v2103
        %v5654 = vunpack.c.l.b16 %v2104
        %v5655 = vunpack.c.h.b16 %v2104
        %v5656 = vunpack.c.l.b16 %v2105
        %v5657 = vunpack.c.h.b16 %v2105
        %v5658 = vunpack.c.l.b16 %v2106
        %v5659 = vunpack.c.h.b16 %v2106
        %v5660 = vunpack.c.l.b16 %v2107
        %v5661 = vunpack.c.h.b16 %v2107
        %v5662 = vunpack.c.l.b16 %v2108
        %v5663 = vunpack.c.h.b16 %v2108
        %v5664 = vunpack.c.l.b16 %v2109
        %v5665 = vunpack.c.h.b16 %v2109
        %v5666 = vunpack.c.l.b16 %v2110
        %v5667 = vunpack.c.h.b16 %v2110
        %v5668 = vunpack.c.l.b16 %v2111
        %v5669 = vunpack.c.h.b16 %v2111
        %v5670 = vunpack.c.l.b16 %v2112
        %v5671 = vunpack.c.h.b16 %v2112
        %v5672 = vunpack.c.l.b16 %v2113
        %v5673 = vunpack.c.h.b16 %v2113
        %v5674 = vunpack.c.l.b16 %v2114
        %v5675 = vunpack.c.h.b16 %v2114
        %v5676 = vunpack.c.l.b16 %v2115
        %v5677 = vunpack.c.h.b16 %v2115
        %v5678 = vunpack.c.l.b16 %v2116
        %v5679 = vunpack.c.h.b16 %v2116
        %v5680 = vunpack.c.l.b16 %v2117
        %v5681 = vunpack.c.h.b16 %v2117
        %v5682 = vunpack.c.l.b16 %v2118
        %v5683 = vunpack.c.h.b16 %v2118
        %v5684 = vunpack.c.l.b16 %v2119
        %v5685 = vunpack.c.h.b16 %v2119
        %v5686 = vunpack.c.l.b16 %v2120
        %v5687 = vunpack.c.h.b16 %v2120
        %v5688 = vunpack.c.l.b16 %v2121
        %v5689 = vunpack.c.h.b16 %v2121
        %v5690 = vunpack.c.l.b16 %v2122
        %v5691 = vunpack.c.h.b16 %v2122
        %v5692 = vunpack.c.l.b16 %v2123
        %v5693 = vunpack.c.h.b16 %v2123
        %v5694 = vunpack.c.l.b16 %v2124
        %v5695 = vunpack.c.h.b16 %v2124
        %v5696 = vunpack.c.l.b16 %v2125
        %v5697 = vunpack.c.h.b16 %v2125
        %v5698 = vunpack.c.l.b16 %v2126
        %v5699 = vunpack.c.h.b16 %v2126
        %v5700 = vunpack.c.l.b16 %v2127
        %v5701 = vunpack.c.h.b16 %v2127
        %v5702 = vunpack.c.l.b16 %v2128
        %v5703 = vunpack.c.h.b16 %v2128
        %v5704 = vunpack.c.l.b16 %v2129
        %v5705 = vunpack.c.h.b16 %v2129
        %v5706 = vunpack.c.l.b16 %v2130
        %v5707 = vunpack.c.h.b16 %v2130
        %v5708 = vunpack.c.l.b16 %v2131
        %v5709 = vunpack.c.h.b16 %v2131
        %v5710 = vunpack.c.l.b16 %v2132
        %v5711 = vunpack.c.h.b16 %v2132
        %v5712 = vunpack.c.l.b16 %v2133
        %v5713 = vunpack.c.h.b16 %v2133
        %v5714 = vunpack.c.l.b16 %v2134
        %v5715 = vunpack.c.h.b16 %v2134
        %v5716 = vunpack.c.l.b16 %v2135
        %v5717 = vunpack.c.h.b16 %v2135
        %v5718 = vpack.c.b16 %v3438, %v3414
        %v5719 = vpack.c.b16 %v3439, %v3415
        %v5720 = vpack.c.b16 %v3440, %v3416
        %v5721 = vpack.c.b16 %v3441, %v3417
        %v5722 = vpack.c.b16 %v3442, %v3418
        %v5723 = vpack.c.b16 %v3443, %v3419
        %v5724 = vpack.c.b16 %v3444, %v3420
        %v5725 = vpack.c.b16 %v3445, %v3421
        %v5726 = vpack.c.b16 %v3446, %v3422
        %v5727 = vpack.c.b16 %v3447, %v3423
        %v5728 = vpack.c.b16 %v3448, %v3424
        %v5729 = vpack.c.b16 %v3449, %v3425
        %v5730 = vpack.c.b16 %v3450, %v3426
        %v5731 = vpack.c.b16 %v3451, %v3427
        %v5732 = vpack.c.b16 %v3452, %v3428
        %v5733 = vpack.c.b16 %v3453, %v3429
        %v5734 = vpack.c.b16 %v3454, %v3430
        %v5735 = vpack.c.b16 %v3455, %v3431
        %v5736 = vpack.c.b16 %v3456, %v3432
        %v5737 = vpack.c.b16 %v3457, %v3433
        %v5738 = vpack.c.b16 %v3458, %v3434
        %v5739 = vpack.c.b16 %v3459, %v3435
        %v5740 = vpack.c.b16 %v3460, %v3436
        %v5741 = vpack.c.b16 %v3461, %v3437
        %v5742 = vpack.c.b16 %v3486, %v3462
        %v5743 = vpack.c.b16 %v3487, %v3463
        %v5744 = vpack.c.b16 %v3488, %v3464
        %v5745 = vpack.c.b16 %v3489, %v3465
        %v5746 = vpack.c.b16 %v3490, %v3466
        %v5747 = vpack.c.b16 %v3491, %v3467
        %v5748 = vpack.c.b16 %v3492, %v3468
        %v5749 = vpack.c.b16 %v3493, %v3469
        %v5750 = vpack.c.b16 %v3494, %v3470
        %v5751 = vpack.c.b16 %v3495, %v3471
        %v5752 = vpack.c.b16 %v3496, %v3472
        %v5753 = vpack.c.b16 %v3497, %v3473
        %v5754 = vpack.c.b16 %v3498, %v3474
        %v5755 = vpack.c.b16 %v3499, %v3475
        %v5756 = vpack.c.b16 %v3500, %v3476
        %v5757 = vpack.c.b16 %v3501, %v3477
        %v5758 = vpack.c.b16 %v3502, %v3478
        %v5759 = vpack.c.b16 %v3503, %v3479
        %v5760 = vpack.c.b16 %v3504, %v3480
        %v5761 = vpack.c.b16 %v3505, %v3481
        %v5762 = vpack.c.b16 %v3506, %v3482
        %v5763 = vpack.c.b16 %v3507, %v3483
        %v5764 = vpack.c.b16 %v3508, %v3484
        %v5765 = vpack.c.b16 %v3509, %v3485
        %v5766 = vpack.c.b16 %v3534, %v3510
        %v5767 = vpack.c.b16 %v3535, %v3511
        %v5768 = vpack.c.b16 %v3536, %v3512
        %v5769 = vpack.c.b16 %v3537, %v3513
        %v5770 = vpack.c.b16 %v3538, %v3514
        %v5771 = vpack.c.b16 %v3539, %v3515
        %v5772 = vpack.c.b16 %v3540, %v3516
        %v5773 = vpack.c.b16 %v3541, %v3517
        %v5774 = vpack.c.b16 %v3542, %v3518
        %v5775 = vpack.c.b16 %v3543, %v3519
        %v5776 = vpack.c.b16 %v3544, %v3520
        %v5777 = vpack.c.b16 %v3545, %v3521
        %v5778 = vpack.c.b16 %v3546, %v3522
        %v5779 = vpack.c.b16 %v3547, %v3523
        %v5780 = vpack.c.b16 %v3548, %v3524
        %v5781 = vpack.c.b16 %v3549, %v3525
        %v5782 = vpack.c.b16 %v3550, %v3526
        %v5783 = vpack.c.b16 %v3551, %v3527
        %v5784 = vpack.c.b16 %v3552, %v3528
        %v5785 = vpack.c.b16 %v3553, %v3529
        %v5786 = vpack.c.b16 %v3554, %v3530
        %v5787 = vpack.c.b16 %v3555, %v3531
        %v5788 = vpack.c.b16 %v3556, %v3532
        %v5789 = vpack.c.b16 %v3557, %v3533
        %v5790 = vpack.c.b16 %v3582, %v3558
        %v5791 = vpack.c.b16 %v3583, %v3559
        %v5792 = vpack.c.b16 %v3584, %v3560
        %v5793 = vpack.c.b16 %v3585, %v3561
        %v5794 = vpack.c.b16 %v3586, %v3562
        %v5795 = vpack.c.b16 %v3587, %v3563
        %v5796 = vpack.c.b16 %v3588, %v3564
        %v5797 = vpack.c.b16 %v3589, %v3565
        %v5798 = vpack.c.b16 %v3590, %v3566
        %v5799 = vpack.c.b16 %v3591, %v3567
        %v5800 = vpack.c.b16 %v3592, %v3568
        %v5801 = vpack.c.b16 %v3593, %v3569
        %v5802 = vpack.c.b16 %v3594, %v3570
        %v5803 = vpack.c.b16 %v3595, %v3571
        %v5804 = vpack.c.b16 %v3596, %v3572
        %v5805 = vpack.c.b16 %v3597, %v3573
        %v5806 = vpack.c.b16 %v3598, %v3574
        %v5807 = vpack.c.b16 %v3599, %v3575
        %v5808 = vpack.c.b16 %v3600, %v3576
        %v5809 = vpack.c.b16 %v3601, %v3577
        %v5810 = vpack.c.b16 %v3602, %v3578
        %v5811 = vpack.c.b16 %v3603, %v3579
        %v5812 = vpack.c.b16 %v3604, %v3580
        %v5813 = vpack.c.b16 %v3605, %v3581
        %v5814 = vpack.c.b16 %v3630, %v3606
        %v5815 = vpack.c.b16 %v3631, %v3607
        %v5816 = vpack.c.b16 %v3632, %v3608
        %v5817 = vpack.c.b16 %v3633, %v3609
        %v5818 = vpack.c.b16 %v3634, %v3610
        %v5819 = vpack.c.b16 %v3635, %v3611
        %v5820 = vpack.c.b16 %v3636, %v3612
        %v5821 = vpack.c.b16 %v3637, %v3613
        %v5822 = vpack.c.b16 %v3638, %v3614
        %v5823 = vpack.c.b16 %v3639, %v3615
        %v5824 = vpack.c.b16 %v3640, %v3616
        %v5825 = vpack.c.b16 %v3641, %v3617
        %v5826 = vpack.c.b16 %v3642, %v3618
        %v5827 = vpack.c.b16 %v3643, %v3619
        %v5828 = vpack.c.b16 %v3644, %v3620
        %v5829 = vpack.c.b16 %v3645, %v3621
        %v5830 = vpack.c.b16 %v3646, %v3622
        %v5831 = vpack.c.b16 %v3647, %v3623
        %v5832 = vpack.c.b16 %v3648, %v3624
        %v5833 = vpack.c.b16 %v3649, %v3625
        %v5834 = vpack.c.b16 %v3650, %v3626
        %v5835 = vpack.c.b16 %v3651, %v3627
        %v5836 = vpack.c.b16 %v3652, %v3628
        %v5837 = vpack.c.b16 %v3653, %v3629
        %v5838 = vpack.c.b16 %v3678, %v3654
        %v5839 = vpack.c.b16 %v3679, %v3655
        %v5840 = vpack.c.b16 %v3680, %v3656
        %v5841 = vpack.c.b16 %v3681, %v3657
        %v5842 = vpack.c.b16 %v3682, %v3658
        %v5843 = vpack.c.b16 %v3683, %v3659
        %v5844 = vpack.c.b16 %v3684, %v3660
        %v5845 = vpack.c.b16 %v3685, %v3661
        %v5846 = vpack.c.b16 %v3686, %v3662
        %v5847 = vpack.c.b16 %v3687, %v3663
        %v5848 = vpack.c.b16 %v3688, %v3664
        %v5849 = vpack.c.b16 %v3689, %v3665
        %v5850 = vpack.c.b16 %v3690, %v3666
        %v5851 = vpack.c.b16 %v3691, %v3667
        %v5852 = vpack.c.b16 %v3692, %v3668
        %v5853 = vpack.c.b16 %v3693, %v3669
        %v5854 = vpack.c.b16 %v3694, %v3670
        %v5855 = vpack.c.b16 %v3695, %v3671
        %v5856 = vpack.c.b16 %v3696, %v3672
        %v5857 = vpack.c.b16 %v3697, %v3673
        %v5858 = vpack.c.b16 %v3698, %v3674
        %v5859 = vpack.c.b16 %v3699, %v3675
        %v5860 = vpack.c.b16 %v3700, %v3676
        %v5861 = vpack.c.b16 %v3701, %v3677
        %v5862 = vpack.c.b16 %v3726, %v3702
        %v5863 = vpack.c.b16 %v3727, %v3703
        %v5864 = vpack.c.b16 %v3728, %v3704
        %v5865 = vpack.c.b16 %v3729, %v3705
        %v5866 = vpack.c.b16 %v3730, %v3706
        %v5867 = vpack.c.b16 %v3731, %v3707
        %v5868 = vpack.c.b16 %v3732, %v3708
        %v5869 = vpack.c.b16 %v3733, %v3709
        %v5870 = vpack.c.b16 %v3734, %v3710
        %v5871 = vpack.c.b16 %v3735, %v3711
        %v5872 = vpack.c.b16 %v3736, %v3712
        %v5873 = vpack.c.b16 %v3737, %v3713
        %v5874 = vpack.c.b16 %v3738, %v3714
        %v5875 = vpack.c.b16 %v3739, %v3715
        %v5876 = vpack.c.b16 %v3740, %v3716
        %v5877 = vpack.c.b16 %v3741, %v3717
        %v5878 = vpack.c.b16 %v3742, %v3718
        %v5879 = vpack.c.b16 %v3743, %v3719
        %v5880 = vpack.c.b16 %v3744, %v3720
        %v5881 = vpack.c.b16 %v3745, %v3721
        %v5882 = vpack.c.b16 %v3746, %v3722
        %v5883 = vpack.c.b16 %v3747, %v3723
        %v5884 = vpack.c.b16 %v3748, %v3724
        %v5885 = vpack.c.b16 %v3749, %v3725
        %v5886 = vpack.c.b16 %v3774, %v3750
        %v5887 = vpack.c.b16 %v3775, %v3751
        %v5888 = vpack.c.b16 %v3776, %v3752
        %v5889 = vpack.c.b16 %v3777, %v3753
        %v5890 = vpack.c.b16 %v3778, %v3754
        %v5891 = vpack.c.b16 %v3779, %v3755
        %v5892 = vpack.c.b16 %v3780, %v3756
        %v5893 = vpack.c.b16 %v3781, %v3757
        %v5894 = vpack.c.b16 %v3782, %v3758
        %v5895 = vpack.c.b16 %v3783, %v3759
        %v5896 = vpack.c.b16 %v3784, %v3760
        %v5897 = vpack.c.b16 %v3785, %v3761
        %v5898 = vpack.c.b16 %v3786, %v3762
        %v5899 = vpack.c.b16 %v3787, %v3763
        %v5900 = vpack.c.b16 %v3788, %v3764
        %v5901 = vpack.c.b16 %v3789, %v3765
        %v5902 = vpack.c.b16 %v3790, %v3766
        %v5903 = vpack.c.b16 %v3791, %v3767
        %v5904 = vpack.c.b16 %v3792, %v3768
        %v5905 = vpack.c.b16 %v3793, %v3769
        %v5906 = vpack.c.b16 %v3794, %v3770
        %v5907 = vpack.c.b16 %v3795, %v3771
        %v5908 = vpack.c.b16 %v3796, %v3772
        %v5909 = vpack.c.b16 %v3797, %v3773
        %v5910 = vpack.c.b16 %v3822, %v3798
        %v5911 = vpack.c.b16 %v3823, %v3799
        %v5912 = vpack.c.b16 %v3824, %v3800
        %v5913 = vpack.c.b16 %v3825, %v3801
        %v5914 = vpack.c.b16 %v3826, %v3802
        %v5915 = vpack.c.b16 %v3827, %v3803
        %v5916 = vpack.c.b16 %v3828, %v3804
        %v5917 = vpack.c.b16 %v3829, %v3805
        %v5918 = vpack.c.b16 %v3830, %v3806
        %v5919 = vpack.c.b16 %v3831, %v3807
        %v5920 = vpack.c.b16 %v3832, %v3808
        %v5921 = vpack.c.b16 %v3833, %v3809
        %v5922 = vpack.c.b16 %v3834, %v3810
        %v5923 = vpack.c.b16 %v3835, %v3811
        %v5924 = vpack.c.b16 %v3836, %v3812
        %v5925 = vpack.c.b16 %v3837, %v3813
        %v5926 = vpack.c.b16 %v3838, %v3814
        %v5927 = vpack.c.b16 %v3839, %v3815
        %v5928 = vpack.c.b16 %v3840, %v3816
        %v5929 = vpack.c.b16 %v3841, %v3817
        %v5930 = vpack.c.b16 %v3842, %v3818
        %v5931 = vpack.c.b16 %v3843, %v3819
        %v5932 = vpack.c.b16 %v3844, %v3820
        %v5933 = vpack.c.b16 %v3845, %v3821
        %v5934 = vpack.c.b16 %v3870, %v3846
        %v5935 = vpack.c.b16 %v3871, %v3847
        %v5936 = vpack.c.b16 %v3872, %v3848
        %v5937 = vpack.c.b16 %v3873, %v3849
        %v5938 = vpack.c.b16 %v3874, %v3850
        %v5939 = vpack.c.b16 %v3875, %v3851
        %v5940 = vpack.c.b16 %v3876, %v3852
        %v5941 = vpack.c.b16 %v3877, %v3853
        %v5942 = vpack.c.b16 %v3878, %v3854
        %v5943 = vpack.c.b16 %v3879, %v3855
        %v5944 = vpack.c.b16 %v3880, %v3856
        %v5945 = vpack.c.b16 %v3881, %v3857
        %v5946 = vpack.c.b16 %v3882, %v3858
        %v5947 = vpack.c.b16 %v3883, %v3859
        %v5948 = vpack.c.b16 %v3884, %v3860
        %v5949 = vpack.c.b16 %v3885, %v3861
        %v5950 = vpack.c.b16 %v3886, %v3862
        %v5951 = vpack.c.b16 %v3887, %v3863
        %v5952 = vpack.c.b16 %v3888, %v3864
        %v5953 = vpack.c.b16 %v3889, %v3865
        %v5954 = vpack.c.b16 %v3890, %v3866
        %v5955 = vpack.c.b16 %v3891, %v3867
        %v5956 = vpack.c.b16 %v3892, %v3868
        %v5957 = vpack.c.b16 %v3893, %v3869
        %v5958 = vpack.c.b16 %v3918, %v3894
        %v5959 = vpack.c.b16 %v3919, %v3895
        %v5960 = vpack.c.b16 %v3920, %v3896
        %v5961 = vpack.c.b16 %v3921, %v3897
        %v5962 = vpack.c.b16 %v3922, %v3898
        %v5963 = vpack.c.b16 %v3923, %v3899
        %v5964 = vpack.c.b16 %v3924, %v3900
        %v5965 = vpack.c.b16 %v3925, %v3901
        %v5966 = vpack.c.b16 %v3926, %v3902
        %v5967 = vpack.c.b16 %v3927, %v3903
        %v5968 = vpack.c.b16 %v3928, %v3904
        %v5969 = vpack.c.b16 %v3929, %v3905
        %v5970 = vpack.c.b16 %v3930, %v3906
        %v5971 = vpack.c.b16 %v3931, %v3907
        %v5972 = vpack.c.b16 %v3932, %v3908
        %v5973 = vpack.c.b16 %v3933, %v3909
        %v5974 = vpack.c.b16 %v3934, %v3910
        %v5975 = vpack.c.b16 %v3935, %v3911
        %v5976 = vpack.c.b16 %v3936, %v3912
        %v5977 = vpack.c.b16 %v3937, %v3913
        %v5978 = vpack.c.b16 %v3938, %v3914
        %v5979 = vpack.c.b16 %v3939, %v3915
        %v5980 = vpack.c.b16 %v3940, %v3916
        %v5981 = vpack.c.b16 %v3941, %v3917
        %v5982 = vpack.c.b16 %v3966, %v3942
        %v5983 = vpack.c.b16 %v3967, %v3943
        %v5984 = vpack.c.b16 %v3968, %v3944
        %v5985 = vpack.c.b16 %v3969, %v3945
        %v5986 = vpack.c.b16 %v3970, %v3946
        %v5987 = vpack.c.b16 %v3971, %v3947
        %v5988 = vpack.c.b16 %v3972, %v3948
        %v5989 = vpack.c.b16 %v3973, %v3949
        %v5990 = vpack.c.b16 %v3974, %v3950
        %v5991 = vpack.c.b16 %v3975, %v3951
        %v5992 = vpack.c.b16 %v3976, %v3952
        %v5993 = vpack.c.b16 %v3977, %v3953
        %v5994 = vpack.c.b16 %v3978, %v3954
        %v5995 = vpack.c.b16 %v3979, %v3955
        %v5996 = vpack.c.b16 %v3980, %v3956
        %v5997 = vpack.c.b16 %v3981, %v3957
        %v5998 = vpack.c.b16 %v3982, %v3958
        %v5999 = vpack.c.b16 %v3983, %v3959
        %v6000 = vpack.c.b16 %v3984, %v3960
        %v6001 = vpack.c.b16 %v3985, %v3961
        %v6002 = vpack.c.b16 %v3986, %v3962
        %v6003 = vpack.c.b16 %v3987, %v3963
        %v6004 = vpack.c.b16 %v3988, %v3964
        %v6005 = vpack.c.b16 %v3989, %v3965
        %v6006 = vpack.c.b16 %v4014, %v3990
        %v6007 = vpack.c.b16 %v4015, %v3991
        %v6008 = vpack.c.b16 %v4016, %v3992
        %v6009 = vpack.c.b16 %v4017, %v3993
        %v6010 = vpack.c.b16 %v4018, %v3994
        %v6011 = vpack.c.b16 %v4019, %v3995
        %v6012 = vpack.c.b16 %v4020, %v3996
        %v6013 = vpack.c.b16 %v4021, %v3997
        %v6014 = vpack.c.b16 %v4022, %v3998
        %v6015 = vpack.c.b16 %v4023, %v3999
        %v6016 = vpack.c.b16 %v4024, %v4000
        %v6017 = vpack.c.b16 %v4025, %v4001
        %v6018 = vpack.c.b16 %v4026, %v4002
        %v6019 = vpack.c.b16 %v4027, %v4003
        %v6020 = vpack.c.b16 %v4028, %v4004
        %v6021 = vpack.c.b16 %v4029, %v4005
        %v6022 = vpack.c.b16 %v4030, %v4006
        %v6023 = vpack.c.b16 %v4031, %v4007
        %v6024 = vpack.c.b16 %v4032, %v4008
        %v6025 = vpack.c.b16 %v4033, %v4009
        %v6026 = vpack.c.b16 %v4034, %v4010
        %v6027 = vpack.c.b16 %v4035, %v4011
        %v6028 = vpack.c.b16 %v4036, %v4012
        %v6029 = vpack.c.b16 %v4037, %v4013
        %v6030 = vpack.c.b16 %v4062, %v4038
        %v6031 = vpack.c.b16 %v4063, %v4039
        %v6032 = vpack.c.b16 %v4064, %v4040
        %v6033 = vpack.c.b16 %v4065, %v4041
        %v6034 = vpack.c.b16 %v4066, %v4042
        %v6035 = vpack.c.b16 %v4067, %v4043
        %v6036 = vpack.c.b16 %v4068, %v4044
        %v6037 = vpack.c.b16 %v4069, %v4045
        %v6038 = vpack.c.b16 %v4070, %v4046
        %v6039 = vpack.c.b16 %v4071, %v4047
        %v6040 = vpack.c.b16 %v4072, %v4048
        %v6041 = vpack.c.b16 %v4073, %v4049
        %v6042 = vpack.c.b16 %v4074, %v4050
        %v6043 = vpack.c.b16 %v4075, %v4051
        %v6044 = vpack.c.b16 %v4076, %v4052
        %v6045 = vpack.c.b16 %v4077, %v4053
        %v6046 = vpack.c.b16 %v4078, %v4054
        %v6047 = vpack.c.b16 %v4079, %v4055
        %v6048 = vpack.c.b16 %v4080, %v4056
        %v6049 = vpack.c.b16 %v4081, %v4057
        %v6050 = vpack.c.b16 %v4082, %v4058
        %v6051 = vpack.c.b16 %v4083, %v4059
        %v6052 = vpack.c.b16 %v4084, %v4060
        %v6053 = vpack.c.b16 %v4085, %v4061
        %v6054 = vpack.c.b16 %v4110, %v4086
        %v6055 = vpack.c.b16 %v4111, %v4087
        %v6056 = vpack.c.b16 %v4112, %v4088
        %v6057 = vpack.c.b16 %v4113, %v4089
        %v6058 = vpack.c.b16 %v4114, %v4090
        %v6059 = vpack.c.b16 %v4115, %v4091
        %v6060 = vpack.c.b16 %v4116, %v4092
        %v6061 = vpack.c.b16 %v4117, %v4093
        %v6062 = vpack.c.b16 %v4118, %v4094
        %v6063 = vpack.c.b16 %v4119, %v4095
        %v6064 = vpack.c.b16 %v4120, %v4096
        %v6065 = vpack.c.b16 %v4121, %v4097
        %v6066 = vpack.c.b16 %v4122, %v4098
        %v6067 = vpack.c.b16 %v4123, %v4099
        %v6068 = vpack.c.b16 %v4124, %v4100
        %v6069 = vpack.c.b16 %v4125, %v4101
        %v6070 = vpack.c.b16 %v4126, %v4102
        %v6071 = vpack.c.b16 %v4127, %v4103
        %v6072 = vpack.c.b16 %v4128, %v4104
        %v6073 = vpack.c.b16 %v4129, %v4105
        %v6074 = vpack.c.b16 %v4130, %v4106
        %v6075 = vpack.c.b16 %v4131, %v4107
        %v6076 = vpack.c.b16 %v4132, %v4108
        %v6077 = vpack.c.b16 %v4133, %v4109
        %v6078 = vpack.c.b16 %v4158, %v4134
        %v6079 = vpack.c.b16 %v4159, %v4135
        %v6080 = vpack.c.b16 %v4160, %v4136
        %v6081 = vpack.c.b16 %v4161, %v4137
        %v6082 = vpack.c.b16 %v4162, %v4138
        %v6083 = vpack.c.b16 %v4163, %v4139
        %v6084 = vpack.c.b16 %v4164, %v4140
        %v6085 = vpack.c.b16 %v4165, %v4141
        %v6086 = vpack.c.b16 %v4166, %v4142
        %v6087 = vpack.c.b16 %v4167, %v4143
        %v6088 = vpack.c.b16 %v4168, %v4144
        %v6089 = vpack.c.b16 %v4169, %v4145
        %v6090 = vpack.c.b16 %v4170, %v4146
        %v6091 = vpack.c.b16 %v4171, %v4147
        %v6092 = vpack.c.b16 %v4172, %v4148
        %v6093 = vpack.c.b16 %v4173, %v4149
        %v6094 = vpack.c.b16 %v4174, %v4150
        %v6095 = vpack.c.b16 %v4175, %v4151
        %v6096 = vpack.c.b16 %v4176, %v4152
        %v6097 = vpack.c.b16 %v4177, %v4153
        %v6098 = vpack.c.b16 %v4178, %v4154
        %v6099 = vpack.c.b16 %v4179, %v4155
        %v6100 = vpack.c.b16 %v4180, %v4156
        %v6101 = vpack.c.b16 %v4181, %v4157
        %v6102 = vpack.c.b16 %v4206, %v4182
        %v6103 = vpack.c.b16 %v4207, %v4183
        %v6104 = vpack.c.b16 %v4208, %v4184
        %v6105 = vpack.c.b16 %v4209, %v4185
        %v6106 = vpack.c.b16 %v4210, %v4186
        %v6107 = vpack.c.b16 %v4211, %v4187
        %v6108 = vpack.c.b16 %v4212, %v4188
        %v6109 = vpack.c.b16 %v4213, %v4189
        %v6110 = vpack.c.b16 %v4214, %v4190
        %v6111 = vpack.c.b16 %v4215, %v4191
        %v6112 = vpack.c.b16 %v4216, %v4192
        %v6113 = vpack.c.b16 %v4217, %v4193
        %v6114 = vpack.c.b16 %v4218, %v4194
        %v6115 = vpack.c.b16 %v4219, %v4195
        %v6116 = vpack.c.b16 %v4220, %v4196
        %v6117 = vpack.c.b16 %v4221, %v4197
        %v6118 = vpack.c.b16 %v4222, %v4198
        %v6119 = vpack.c.b16 %v4223, %v4199
        %v6120 = vpack.c.b16 %v4224, %v4200
        %v6121 = vpack.c.b16 %v4225, %v4201
        %v6122 = vpack.c.b16 %v4226, %v4202
        %v6123 = vpack.c.b16 %v4227, %v4203
        %v6124 = vpack.c.b16 %v4228, %v4204
        %v6125 = vpack.c.b16 %v4229, %v4205
        %v6126 = vpack.c.b16 %v4254, %v4230
        %v6127 = vpack.c.b16 %v4255, %v4231
        %v6128 = vpack.c.b16 %v4256, %v4232
        %v6129 = vpack.c.b16 %v4257, %v4233
        %v6130 = vpack.c.b16 %v4258, %v4234
        %v6131 = vpack.c.b16 %v4259, %v4235
        %v6132 = vpack.c.b16 %v4260, %v4236
        %v6133 = vpack.c.b16 %v4261, %v4237
        %v6134 = vpack.c.b16 %v4262, %v4238
        %v6135 = vpack.c.b16 %v4263, %v4239
        %v6136 = vpack.c.b16 %v4264, %v4240
        %v6137 = vpack.c.b16 %v4265, %v4241
        %v6138 = vpack.c.b16 %v4266, %v4242
        %v6139 = vpack.c.b16 %v4267, %v4243
        %v6140 = vpack.c.b16 %v4268, %v4244
        %v6141 = vpack.c.b16 %v4269, %v4245
        %v6142 = vpack.c.b16 %v4270, %v4246
        %v6143 = vpack.c.b16 %v4271, %v4247
        %v6144 = vpack.c.b16 %v4272, %v4248
        %v6145 = vpack.c.b16 %v4273, %v4249
        %v6146 = vpack.c.b16 %v4274, %v4250
        %v6147 = vpack.c.b16 %v4275, %v4251
        %v6148 = vpack.c.b16 %v4276, %v4252
        %v6149 = vpack.c.b16 %v4277, %v4253
        %v6150 = vpack.c.b16 %v4302, %v4278
        %v6151 = vpack.c.b16 %v4303, %v4279
        %v6152 = vpack.c.b16 %v4304, %v4280
        %v6153 = vpack.c.b16 %v4305, %v4281
        %v6154 = vpack.c.b16 %v4306, %v4282
        %v6155 = vpack.c.b16 %v4307, %v4283
        %v6156 = vpack.c.b16 %v4308, %v4284
        %v6157 = vpack.c.b16 %v4309, %v4285
        %v6158 = vpack.c.b16 %v4310, %v4286
        %v6159 = vpack.c.b16 %v4311, %v4287
        %v6160 = vpack.c.b16 %v4312, %v4288
        %v6161 = vpack.c.b16 %v4313, %v4289
        %v6162 = vpack.c.b16 %v4314, %v4290
        %v6163 = vpack.c.b16 %v4315, %v4291
        %v6164 = vpack.c.b16 %v4316, %v4292
        %v6165 = vpack.c.b16 %v4317, %v4293
        %v6166 = vpack.c.b16 %v4318, %v4294
        %v6167 = vpack.c.b16 %v4319, %v4295
        %v6168 = vpack.c.b16 %v4320, %v4296
        %v6169 = vpack.c.b16 %v4321, %v4297
        %v6170 = vpack.c.b16 %v4322, %v4298
        %v6171 = vpack.c.b16 %v4323, %v4299
        %v6172 = vpack.c.b16 %v4324, %v4300
        %v6173 = vpack.c.b16 %v4325, %v4301
        %v6174 = vpack.c.b16 %v4350, %v4326
        %v6175 = vpack.c.b16 %v4351, %v4327
        %v6176 = vpack.c.b16 %v4352, %v4328
        %v6177 = vpack.c.b16 %v4353, %v4329
        %v6178 = vpack.c.b16 %v4354, %v4330
        %v6179 = vpack.c.b16 %v4355, %v4331
        %v6180 = vpack.c.b16 %v4356, %v4332
        %v6181 = vpack.c.b16 %v4357, %v4333
        %v6182 = vpack.c.b16 %v4358, %v4334
        %v6183 = vpack.c.b16 %v4359, %v4335
        %v6184 = vpack.c.b16 %v4360, %v4336
        %v6185 = vpack.c.b16 %v4361, %v4337
        %v6186 = vpack.c.b16 %v4362, %v4338
        %v6187 = vpack.c.b16 %v4363, %v4339
        %v6188 = vpack.c.b16 %v4364, %v4340
        %v6189 = vpack.c.b16 %v4365, %v4341
        %v6190 = vpack.c.b16 %v4366, %v4342
        %v6191 = vpack.c.b16 %v4367, %v4343
        %v6192 = vpack.c.b16 %v4368, %v4344
        %v6193 = vpack.c.b16 %v4369, %v4345
        %v6194 = vpack.c.b16 %v4370, %v4346
        %v6195 = vpack.c.b16 %v4371, %v4347
        %v6196 = vpack.c.b16 %v4372, %v4348
        %v6197 = vpack.c.b16 %v4373, %v4349
        %v6198 = vpack.c.b16 %v4398, %v4374
        %v6199 = vpack.c.b16 %v4399, %v4375
        %v6200 = vpack.c.b16 %v4400, %v4376
        %v6201 = vpack.c.b16 %v4401, %v4377
        %v6202 = vpack.c.b16 %v4402, %v4378
        %v6203 = vpack.c.b16 %v4403, %v4379
        %v6204 = vpack.c.b16 %v4404, %v4380
        %v6205 = vpack.c.b16 %v4405, %v4381
        %v6206 = vpack.c.b16 %v4406, %v4382
        %v6207 = vpack.c.b16 %v4407, %v4383
        %v6208 = vpack.c.b16 %v4408, %v4384
        %v6209 = vpack.c.b16 %v4409, %v4385
        %v6210 = vpack.c.b16 %v4410, %v4386
        %v6211 = vpack.c.b16 %v4411, %v4387
        %v6212 = vpack.c.b16 %v4412, %v4388
        %v6213 = vpack.c.b16 %v4413, %v4389
        %v6214 = vpack.c.b16 %v4414, %v4390
        %v6215 = vpack.c.b16 %v4415, %v4391
        %v6216 = vpack.c.b16 %v4416, %v4392
        %v6217 = vpack.c.b16 %v4417, %v4393
        %v6218 = vpack.c.b16 %v4418, %v4394
        %v6219 = vpack.c.b16 %v4419, %v4395
        %v6220 = vpack.c.b16 %v4420, %v4396
        %v6221 = vpack.c.b16 %v4421, %v4397
        %v6222 = vpack.c.b16 %v4446, %v4422
        %v6223 = vpack.c.b16 %v4447, %v4423
        %v6224 = vpack.c.b16 %v4448, %v4424
        %v6225 = vpack.c.b16 %v4449, %v4425
        %v6226 = vpack.c.b16 %v4450, %v4426
        %v6227 = vpack.c.b16 %v4451, %v4427
        %v6228 = vpack.c.b16 %v4452, %v4428
        %v6229 = vpack.c.b16 %v4453, %v4429
        %v6230 = vpack.c.b16 %v4454, %v4430
        %v6231 = vpack.c.b16 %v4455, %v4431
        %v6232 = vpack.c.b16 %v4456, %v4432
        %v6233 = vpack.c.b16 %v4457, %v4433
        %v6234 = vpack.c.b16 %v4458, %v4434
        %v6235 = vpack.c.b16 %v4459, %v4435
        %v6236 = vpack.c.b16 %v4460, %v4436
        %v6237 = vpack.c.b16 %v4461, %v4437
        %v6238 = vpack.c.b16 %v4462, %v4438
        %v6239 = vpack.c.b16 %v4463, %v4439
        %v6240 = vpack.c.b16 %v4464, %v4440
        %v6241 = vpack.c.b16 %v4465, %v4441
        %v6242 = vpack.c.b16 %v4466, %v4442
        %v6243 = vpack.c.b16 %v4467, %v4443
        %v6244 = vpack.c.b16 %v4468, %v4444
        %v6245 = vpack.c.b16 %v4469, %v4445
        %v6246 = vpack.c.b16 %v4494, %v4470
        %v6247 = vpack.c.b16 %v4495, %v4471
        %v6248 = vpack.c.b16 %v4496, %v4472
        %v6249 = vpack.c.b16 %v4497, %v4473
        %v6250 = vpack.c.b16 %v4498, %v4474
        %v6251 = vpack.c.b16 %v4499, %v4475
        %v6252 = vpack.c.b16 %v4500, %v4476
        %v6253 = vpack.c.b16 %v4501, %v4477
        %v6254 = vpack.c.b16 %v4502, %v4478
        %v6255 = vpack.c.b16 %v4503, %v4479
        %v6256 = vpack.c.b16 %v4504, %v4480
        %v6257 = vpack.c.b16 %v4505, %v4481
        %v6258 = vpack.c.b16 %v4506, %v4482
        %v6259 = vpack.c.b16 %v4507, %v4483
        %v6260 = vpack.c.b16 %v4508, %v4484
        %v6261 = vpack.c.b16 %v4509, %v4485
        %v6262 = vpack.c.b16 %v4510, %v4486
        %v6263 = vpack.c.b16 %v4511, %v4487
        %v6264 = vpack.c.b16 %v4512, %v4488
        %v6265 = vpack.c.b16 %v4513, %v4489
        %v6266 = vpack.c.b16 %v4514, %v4490
        %v6267 = vpack.c.b16 %v4515, %v4491
        %v6268 = vpack.c.b16 %v4516, %v4492
        %v6269 = vpack.c.b16 %v4517, %v4493
        %v6270 = vpack.c.b16 %v4542, %v4518
        %v6271 = vpack.c.b16 %v4543, %v4519
        %v6272 = vpack.c.b16 %v4544, %v4520
        %v6273 = vpack.c.b16 %v4545, %v4521
        %v6274 = vpack.c.b16 %v4546, %v4522
        %v6275 = vpack.c.b16 %v4547, %v4523
        %v6276 = vpack.c.b16 %v4548, %v4524
        %v6277 = vpack.c.b16 %v4549, %v4525
        %v6278 = vpack.c.b16 %v4550, %v4526
        %v6279 = vpack.c.b16 %v4551, %v4527
        %v6280 = vpack.c.b16 %v4552, %v4528
        %v6281 = vpack.c.b16 %v4553, %v4529
        %v6282 = vpack.c.b16 %v4554, %v4530
        %v6283 = vpack.c.b16 %v4555, %v4531
        %v6284 = vpack.c.b16 %v4556, %v4532
        %v6285 = vpack.c.b16 %v4557, %v4533
        %v6286 = vpack.c.b16 %v4558, %v4534
        %v6287 = vpack.c.b16 %v4559, %v4535
        %v6288 = vpack.c.b16 %v4560, %v4536
        %v6289 = vpack.c.b16 %v4561, %v4537
        %v6290 = vpack.c.b16 %v4562, %v4538
        %v6291 = vpack.c.b16 %v4563, %v4539
        %v6292 = vpack.c.b16 %v4564, %v4540
        %v6293 = vpack.c.b16 %v4565, %v4541
        %v6294 = vpack.c.b16 %v4590, %v4566
        %v6295 = vpack.c.b16 %v4591, %v4567
        %v6296 = vpack.c.b16 %v4592, %v4568
        %v6297 = vpack.c.b16 %v4593, %v4569
        %v6298 = vpack.c.b16 %v4594, %v4570
        %v6299 = vpack.c.b16 %v4595, %v4571
        %v6300 = vpack.c.b16 %v4596, %v4572
        %v6301 = vpack.c.b16 %v4597, %v4573
        %v6302 = vpack.c.b16 %v4598, %v4574
        %v6303 = vpack.c.b16 %v4599, %v4575
        %v6304 = vpack.c.b16 %v4600, %v4576
        %v6305 = vpack.c.b16 %v4601, %v4577
        %v6306 = vpack.c.b16 %v4602, %v4578
        %v6307 = vpack.c.b16 %v4603, %v4579
        %v6308 = vpack.c.b16 %v4604, %v4580
        %v6309 = vpack.c.b16 %v4605, %v4581
        %v6310 = vpack.c.b16 %v4606, %v4582
        %v6311 = vpack.c.b16 %v4607, %v4583
        %v6312 = vpack.c.b16 %v4608, %v4584
        %v6313 = vpack.c.b16 %v4609, %v4585
        %v6314 = vpack.c.b16 %v4610, %v4586
        %v6315 = vpack.c.b16 %v4611, %v4587
        %v6316 = vpack.c.b16 %v4612, %v4588
        %v6317 = vpack.c.b16 %v4613, %v4589
        %v6318 = vpack.c.b16 %v4638, %v4614
        %v6319 = vpack.c.b16 %v4639, %v4615
        %v6320 = vpack.c.b16 %v4640, %v4616
        %v6321 = vpack.c.b16 %v4641, %v4617
        %v6322 = vpack.c.b16 %v4642, %v4618
        %v6323 = vpack.c.b16 %v4643, %v4619
        %v6324 = vpack.c.b16 %v4644, %v4620
        %v6325 = vpack.c.b16 %v4645, %v4621
        %v6326 = vpack.c.b16 %v4646, %v4622
        %v6327 = vpack.c.b16 %v4647, %v4623
        %v6328 = vpack.c.b16 %v4648, %v4624
        %v6329 = vpack.c.b16 %v4649, %v4625
        %v6330 = vpack.c.b16 %v4650, %v4626
        %v6331 = vpack.c.b16 %v4651, %v4627
        %v6332 = vpack.c.b16 %v4652, %v4628
        %v6333 = vpack.c.b16 %v4653, %v4629
        %v6334 = vpack.c.b16 %v4654, %v4630
        %v6335 = vpack.c.b16 %v4655, %v4631
        %v6336 = vpack.c.b16 %v4656, %v4632
        %v6337 = vpack.c.b16 %v4657, %v4633
        %v6338 = vpack.c.b16 %v4658, %v4634
        %v6339 = vpack.c.b16 %v4659, %v4635
        %v6340 = vpack.c.b16 %v4660, %v4636
        %v6341 = vpack.c.b16 %v4661, %v4637
        %v6342 = vpack.c.b16 %v4686, %v4662
        %v6343 = vpack.c.b16 %v4687, %v4663
        %v6344 = vpack.c.b16 %v4688, %v4664
        %v6345 = vpack.c.b16 %v4689, %v4665
        %v6346 = vpack.c.b16 %v4690, %v4666
        %v6347 = vpack.c.b16 %v4691, %v4667
        %v6348 = vpack.c.b16 %v4692, %v4668
        %v6349 = vpack.c.b16 %v4693, %v4669
        %v6350 = vpack.c.b16 %v4694, %v4670
        %v6351 = vpack.c.b16 %v4695, %v4671
        %v6352 = vpack.c.b16 %v4696, %v4672
        %v6353 = vpack.c.b16 %v4697, %v4673
        %v6354 = vpack.c.b16 %v4698, %v4674
        %v6355 = vpack.c.b16 %v4699, %v4675
        %v6356 = vpack.c.b16 %v4700, %v4676
        %v6357 = vpack.c.b16 %v4701, %v4677
        %v6358 = vpack.c.b16 %v4702, %v4678
        %v6359 = vpack.c.b16 %v4703, %v4679
        %v6360 = vpack.c.b16 %v4704, %v4680
        %v6361 = vpack.c.b16 %v4705, %v4681
        %v6362 = vpack.c.b16 %v4706, %v4682
        %v6363 = vpack.c.b16 %v4707, %v4683
        %v6364 = vpack.c.b16 %v4708, %v4684
        %v6365 = vpack.c.b16 %v4709, %v4685
        %v6366 = vpack.c.b16 %v4734, %v4710
        %v6367 = vpack.c.b16 %v4735, %v4711
        %v6368 = vpack.c.b16 %v4736, %v4712
        %v6369 = vpack.c.b16 %v4737, %v4713
        %v6370 = vpack.c.b16 %v4738, %v4714
        %v6371 = vpack.c.b16 %v4739, %v4715
        %v6372 = vpack.c.b16 %v4740, %v4716
        %v6373 = vpack.c.b16 %v4741, %v4717
        %v6374 = vpack.c.b16 %v4742, %v4718
        %v6375 = vpack.c.b16 %v4743, %v4719
        %v6376 = vpack.c.b16 %v4744, %v4720
        %v6377 = vpack.c.b16 %v4745, %v4721
        %v6378 = vpack.c.b16 %v4746, %v4722
        %v6379 = vpack.c.b16 %v4747, %v4723
        %v6380 = vpack.c.b16 %v4748, %v4724
        %v6381 = vpack.c.b16 %v4749, %v4725
        %v6382 = vpack.c.b16 %v4750, %v4726
        %v6383 = vpack.c.b16 %v4751, %v4727
        %v6384 = vpack.c.b16 %v4752, %v4728
        %v6385 = vpack.c.b16 %v4753, %v4729
        %v6386 = vpack.c.b16 %v4754, %v4730
        %v6387 = vpack.c.b16 %v4755, %v4731
        %v6388 = vpack.c.b16 %v4756, %v4732
        %v6389 = vpack.c.b16 %v4757, %v4733
        %v6390 = vpack.c.b16 %v4782, %v4758
        %v6391 = vpack.c.b16 %v4783, %v4759
        %v6392 = vpack.c.b16 %v4784, %v4760
        %v6393 = vpack.c.b16 %v4785, %v4761
        %v6394 = vpack.c.b16 %v4786, %v4762
        %v6395 = vpack.c.b16 %v4787, %v4763
        %v6396 = vpack.c.b16 %v4788, %v4764
        %v6397 = vpack.c.b16 %v4789, %v4765
        %v6398 = vpack.c.b16 %v4790, %v4766
        %v6399 = vpack.c.b16 %v4791, %v4767
        %v6400 = vpack.c.b16 %v4792, %v4768
        %v6401 = vpack.c.b16 %v4793, %v4769
        %v6402 = vpack.c.b16 %v4794, %v4770
        %v6403 = vpack.c.b16 %v4795, %v4771
        %v6404 = vpack.c.b16 %v4796, %v4772
        %v6405 = vpack.c.b16 %v4797, %v4773
        %v6406 = vpack.c.b16 %v4798, %v4774
        %v6407 = vpack.c.b16 %v4799, %v4775
        %v6408 = vpack.c.b16 %v4800, %v4776
        %v6409 = vpack.c.b16 %v4801, %v4777
        %v6410 = vpack.c.b16 %v4802, %v4778
        %v6411 = vpack.c.b16 %v4803, %v4779
        %v6412 = vpack.c.b16 %v4804, %v4780
        %v6413 = vpack.c.b16 %v4805, %v4781
        %v6414 = vpack.c.b16 %v4830, %v4806
        %v6415 = vpack.c.b16 %v4831, %v4807
        %v6416 = vpack.c.b16 %v4832, %v4808
        %v6417 = vpack.c.b16 %v4833, %v4809
        %v6418 = vpack.c.b16 %v4834, %v4810
        %v6419 = vpack.c.b16 %v4835, %v4811
        %v6420 = vpack.c.b16 %v4836, %v4812
        %v6421 = vpack.c.b16 %v4837, %v4813
        %v6422 = vpack.c.b16 %v4838, %v4814
        %v6423 = vpack.c.b16 %v4839, %v4815
        %v6424 = vpack.c.b16 %v4840, %v4816
        %v6425 = vpack.c.b16 %v4841, %v4817
        %v6426 = vpack.c.b16 %v4842, %v4818
        %v6427 = vpack.c.b16 %v4843, %v4819
        %v6428 = vpack.c.b16 %v4844, %v4820
        %v6429 = vpack.c.b16 %v4845, %v4821
        %v6430 = vpack.c.b16 %v4846, %v4822
        %v6431 = vpack.c.b16 %v4847, %v4823
        %v6432 = vpack.c.b16 %v4848, %v4824
        %v6433 = vpack.c.b16 %v4849, %v4825
        %v6434 = vpack.c.b16 %v4850, %v4826
        %v6435 = vpack.c.b16 %v4851, %v4827
        %v6436 = vpack.c.b16 %v4852, %v4828
        %v6437 = vpack.c.b16 %v4853, %v4829
        %v6438 = vpack.c.b16 %v4878, %v4854
        %v6439 = vpack.c.b16 %v4879, %v4855
        %v6440 = vpack.c.b16 %v4880, %v4856
        %v6441 = vpack.c.b16 %v4881, %v4857
        %v6442 = vpack.c.b16 %v4882, %v4858
        %v6443 = vpack.c.b16 %v4883, %v4859
        %v6444 = vpack.c.b16 %v4884, %v4860
        %v6445 = vpack.c.b16 %v4885, %v4861
        %v6446 = vpack.c.b16 %v4886, %v4862
        %v6447 = vpack.c.b16 %v4887, %v4863
        %v6448 = vpack.c.b16 %v4888, %v4864
        %v6449 = vpack.c.b16 %v4889, %v4865
        %v6450 = vpack.c.b16 %v4890, %v4866
        %v6451 = vpack.c.b16 %v4891, %v4867
        %v6452 = vpack.c.b16 %v4892, %v4868
        %v6453 = vpack.c.b16 %v4893, %v4869
        %v6454 = vpack.c.b16 %v4894, %v4870
        %v6455 = vpack.c.b16 %v4895, %v4871
        %v6456 = vpack.c.b16 %v4896, %v4872
        %v6457 = vpack.c.b16 %v4897, %v4873
        %v6458 = vpack.c.b16 %v4898, %v4874
        %v6459 = vpack.c.b16 %v4899, %v4875
        %v6460 = vpack.c.b16 %v4900, %v4876
        %v6461 = vpack.c.b16 %v4901, %v4877
        %v6462 = vpack.c.b16 %v4926, %v4902
        %v6463 = vpack.c.b16 %v4927, %v4903
        %v6464 = vpack.c.b16 %v4928, %v4904
        %v6465 = vpack.c.b16 %v4929, %v4905
        %v6466 = vpack.c.b16 %v4930, %v4906
        %v6467 = vpack.c.b16 %v4931, %v4907
        %v6468 = vpack.c.b16 %v4932, %v4908
        %v6469 = vpack.c.b16 %v4933, %v4909
        %v6470 = vpack.c.b16 %v4934, %v4910
        %v6471 = vpack.c.b16 %v4935, %v4911
        %v6472 = vpack.c.b16 %v4936, %v4912
        %v6473 = vpack.c.b16 %v4937, %v4913
        %v6474 = vpack.c.b16 %v4938, %v4914
        %v6475 = vpack.c.b16 %v4939, %v4915
        %v6476 = vpack.c.b16 %v4940, %v4916
        %v6477 = vpack.c.b16 %v4941, %v4917
        %v6478 = vpack.c.b16 %v4942, %v4918
        %v6479 = vpack.c.b16 %v4943, %v4919
        %v6480 = vpack.c.b16 %v4944, %v4920
        %v6481 = vpack.c.b16 %v4945, %v4921
        %v6482 = vpack.c.b16 %v4946, %v4922
        %v6483 = vpack.c.b16 %v4947, %v4923
        %v6484 = vpack.c.b16 %v4948, %v4924
        %v6485 = vpack.c.b16 %v4949, %v4925
        %v6486 = vpack.c.b16 %v4974, %v4950
        %v6487 = vpack.c.b16 %v4975, %v4951
        %v6488 = vpack.c.b16 %v4976, %v4952
        %v6489 = vpack.c.b16 %v4977, %v4953
        %v6490 = vpack.c.b16 %v4978, %v4954
        %v6491 = vpack.c.b16 %v4979, %v4955
        %v6492 = vpack.c.b16 %v4980, %v4956
        %v6493 = vpack.c.b16 %v4981, %v4957
        %v6494 = vpack.c.b16 %v4982, %v4958
        %v6495 = vpack.c.b16 %v4983, %v4959
        %v6496 = vpack.c.b16 %v4984, %v4960
        %v6497 = vpack.c.b16 %v4985, %v4961
        %v6498 = vpack.c.b16 %v4986, %v4962
        %v6499 = vpack.c.b16 %v4987, %v4963
        %v6500 = vpack.c.b16 %v4988, %v4964
        %v6501 = vpack.c.b16 %v4989, %v4965
        %v6502 = vpack.c.b16 %v4990, %v4966
        %v6503 = vpack.c.b16 %v4991, %v4967
        %v6504 = vpack.c.b16 %v4992, %v4968
        %v6505 = vpack.c.b16 %v4993, %v4969
        %v6506 = vpack.c.b16 %v4994, %v4970
        %v6507 = vpack.c.b16 %v4995, %v4971
        %v6508 = vpack.c.b16 %v4996, %v4972
        %v6509 = vpack.c.b16 %v4997, %v4973
        %v6510 = vpack.c.b16 %v5022, %v4998
        %v6511 = vpack.c.b16 %v5023, %v4999
        %v6512 = vpack.c.b16 %v5024, %v5000
        %v6513 = vpack.c.b16 %v5025, %v5001
        %v6514 = vpack.c.b16 %v5026, %v5002
        %v6515 = vpack.c.b16 %v5027, %v5003
        %v6516 = vpack.c.b16 %v5028, %v5004
        %v6517 = vpack.c.b16 %v5029, %v5005
        %v6518 = vpack.c.b16 %v5030, %v5006
        %v6519 = vpack.c.b16 %v5031, %v5007
        %v6520 = vpack.c.b16 %v5032, %v5008
        %v6521 = vpack.c.b16 %v5033, %v5009
        %v6522 = vpack.c.b16 %v5034, %v5010
        %v6523 = vpack.c.b16 %v5035, %v5011
        %v6524 = vpack.c.b16 %v5036, %v5012
        %v6525 = vpack.c.b16 %v5037, %v5013
        %v6526 = vpack.c.b16 %v5038, %v5014
        %v6527 = vpack.c.b16 %v5039, %v5015
        %v6528 = vpack.c.b16 %v5040, %v5016
        %v6529 = vpack.c.b16 %v5041, %v5017
        %v6530 = vpack.c.b16 %v5042, %v5018
        %v6531 = vpack.c.b16 %v5043, %v5019
        %v6532 = vpack.c.b16 %v5044, %v5020
        %v6533 = vpack.c.b16 %v5045, %v5021
        %v6534 = vpack.c.b16 %v5070, %v5046
        %v6535 = vpack.c.b16 %v5071, %v5047
        %v6536 = vpack.c.b16 %v5072, %v5048
        %v6537 = vpack.c.b16 %v5073, %v5049
        %v6538 = vpack.c.b16 %v5074, %v5050
        %v6539 = vpack.c.b16 %v5075, %v5051
        %v6540 = vpack.c.b16 %v5076, %v5052
        %v6541 = vpack.c.b16 %v5077, %v5053
        %v6542 = vpack.c.b16 %v5078, %v5054
        %v6543 = vpack.c.b16 %v5079, %v5055
        %v6544 = vpack.c.b16 %v5080, %v5056
        %v6545 = vpack.c.b16 %v5081, %v5057
        %v6546 = vpack.c.b16 %v5082, %v5058
        %v6547 = vpack.c.b16 %v5083, %v5059
        %v6548 = vpack.c.b16 %v5084, %v5060
        %v6549 = vpack.c.b16 %v5085, %v5061
        %v6550 = vpack.c.b16 %v5086, %v5062
        %v6551 = vpack.c.b16 %v5087, %v5063
        %v6552 = vpack.c.b16 %v5088, %v5064
        %v6553 = vpack.c.b16 %v5089, %v5065
        %v6554 = vpack.c.b16 %v5090, %v5066
        %v6555 = vpack.c.b16 %v5091, %v5067
        %v6556 = vpack.c.b16 %v5092, %v5068
        %v6557 = vpack.c.b16 %v5093, %v5069
        %v6558 = vpack.c.b16 %v5118, %v5094
        %v6559 = vpack.c.b16 %v5119, %v5095
        %v6560 = vpack.c.b16 %v5120, %v5096
        %v6561 = vpack.c.b16 %v5121, %v5097
        %v6562 = vpack.c.b16 %v5122, %v5098
        %v6563 = vpack.c.b16 %v5123, %v5099
        %v6564 = vpack.c.b16 %v5124, %v5100
        %v6565 = vpack.c.b16 %v5125, %v5101
        %v6566 = vpack.c.b16 %v5126, %v5102
        %v6567 = vpack.c.b16 %v5127, %v5103
        %v6568 = vpack.c.b16 %v5128, %v5104
        %v6569 = vpack.c.b16 %v5129, %v5105
        %v6570 = vpack.c.b16 %v5130, %v5106
        %v6571 = vpack.c.b16 %v5131, %v5107
        %v6572 = vpack.c.b16 %v5132, %v5108
        %v6573 = vpack.c.b16 %v5133, %v5109
        %v6574 = vpack.c.b16 %v5134, %v5110
        %v6575 = vpack.c.b16 %v5135, %v5111
        %v6576 = vpack.c.b16 %v5136, %v5112
        %v6577 = vpack.c.b16 %v5137, %v5113
        %v6578 = vpack.c.b16 %v5138, %v5114
        %v6579 = vpack.c.b16 %v5139, %v5115
        %v6580 = vpack.c.b16 %v5140, %v5116
        %v6581 = vpack.c.b16 %v5141, %v5117
        %v6582 = vpack.c.b16 %v5166, %v5142
        %v6583 = vpack.c.b16 %v5167, %v5143
        %v6584 = vpack.c.b16 %v5168, %v5144
        %v6585 = vpack.c.b16 %v5169, %v5145
        %v6586 = vpack.c.b16 %v5170, %v5146
        %v6587 = vpack.c.b16 %v5171, %v5147
        %v6588 = vpack.c.b16 %v5172, %v5148
        %v6589 = vpack.c.b16 %v5173, %v5149
        %v6590 = vpack.c.b16 %v5174, %v5150
        %v6591 = vpack.c.b16 %v5175, %v5151
        %v6592 = vpack.c.b16 %v5176, %v5152
        %v6593 = vpack.c.b16 %v5177, %v5153
        %v6594 = vpack.c.b16 %v5178, %v5154
        %v6595 = vpack.c.b16 %v5179, %v5155
        %v6596 = vpack.c.b16 %v5180, %v5156
        %v6597 = vpack.c.b16 %v5181, %v5157
        %v6598 = vpack.c.b16 %v5182, %v5158
        %v6599 = vpack.c.b16 %v5183, %v5159
        %v6600 = vpack.c.b16 %v5184, %v5160
        %v6601 = vpack.c.b16 %v5185, %v5161
        %v6602 = vpack.c.b16 %v5186, %v5162
        %v6603 = vpack.c.b16 %v5187, %v5163
        %v6604 = vpack.c.b16 %v5188, %v5164
        %v6605 = vpack.c.b16 %v5189, %v5165
        %v6606 = vpack.c.b16 %v5214, %v5190
        %v6607 = vpack.c.b16 %v5215, %v5191
        %v6608 = vpack.c.b16 %v5216, %v5192
        %v6609 = vpack.c.b16 %v5217, %v5193
        %v6610 = vpack.c.b16 %v5218, %v5194
        %v6611 = vpack.c.b16 %v5219, %v5195
        %v6612 = vpack.c.b16 %v5220, %v5196
        %v6613 = vpack.c.b16 %v5221, %v5197
        %v6614 = vpack.c.b16 %v5222, %v5198
        %v6615 = vpack.c.b16 %v5223, %v5199
        %v6616 = vpack.c.b16 %v5224, %v5200
        %v6617 = vpack.c.b16 %v5225, %v5201
        %v6618 = vpack.c.b16 %v5226, %v5202
        %v6619 = vpack.c.b16 %v5227, %v5203
        %v6620 = vpack.c.b16 %v5228, %v5204
        %v6621 = vpack.c.b16 %v5229, %v5205
        %v6622 = vpack.c.b16 %v5230, %v5206
        %v6623 = vpack.c.b16 %v5231, %v5207
        %v6624 = vpack.c.b16 %v5232, %v5208
        %v6625 = vpack.c.b16 %v5233, %v5209
        %v6626 = vpack.c.b16 %v5234, %v5210
        %v6627 = vpack.c.b16 %v5235, %v5211
        %v6628 = vpack.c.b16 %v5236, %v5212
        %v6629 = vpack.c.b16 %v5237, %v5213
        %v6630 = vpack.c.b16 %v5262, %v5238
        %v6631 = vpack.c.b16 %v5263, %v5239
        %v6632 = vpack.c.b16 %v5264, %v5240
        %v6633 = vpack.c.b16 %v5265, %v5241
        %v6634 = vpack.c.b16 %v5266, %v5242
        %v6635 = vpack.c.b16 %v5267, %v5243
        %v6636 = vpack.c.b16 %v5268, %v5244
        %v6637 = vpack.c.b16 %v5269, %v5245
        %v6638 = vpack.c.b16 %v5270, %v5246
        %v6639 = vpack.c.b16 %v5271, %v5247
        %v6640 = vpack.c.b16 %v5272, %v5248
        %v6641 = vpack.c.b16 %v5273, %v5249
        %v6642 = vpack.c.b16 %v5274, %v5250
        %v6643 = vpack.c.b16 %v5275, %v5251
        %v6644 = vpack.c.b16 %v5276, %v5252
        %v6645 = vpack.c.b16 %v5277, %v5253
        %v6646 = vpack.c.b16 %v5278, %v5254
        %v6647 = vpack.c.b16 %v5279, %v5255
        %v6648 = vpack.c.b16 %v5280, %v5256
        %v6649 = vpack.c.b16 %v5281, %v5257
        %v6650 = vpack.c.b16 %v5282, %v5258
        %v6651 = vpack.c.b16 %v5283, %v5259
        %v6652 = vpack.c.b16 %v5284, %v5260
        %v6653 = vpack.c.b16 %v5285, %v5261
        %v6654 = vpack.c.b16 %v5310, %v5286
        %v6655 = vpack.c.b16 %v5311, %v5287
        %v6656 = vpack.c.b16 %v5312, %v5288
        %v6657 = vpack.c.b16 %v5313, %v5289
        %v6658 = vpack.c.b16 %v5314, %v5290
        %v6659 = vpack.c.b16 %v5315, %v5291
        %v6660 = vpack.c.b16 %v5316, %v5292
        %v6661 = vpack.c.b16 %v5317, %v5293
        %v6662 = vpack.c.b16 %v5318, %v5294
        %v6663 = vpack.c.b16 %v5319, %v5295
        %v6664 = vpack.c.b16 %v5320, %v5296
        %v6665 = vpack.c.b16 %v5321, %v5297
        %v6666 = vpack.c.b16 %v5322, %v5298
        %v6667 = vpack.c.b16 %v5323, %v5299
        %v6668 = vpack.c.b16 %v5324, %v5300
        %v6669 = vpack.c.b16 %v5325, %v5301
        %v6670 = vpack.c.b16 %v5326, %v5302
        %v6671 = vpack.c.b16 %v5327, %v5303
        %v6672 = vpack.c.b16 %v5328, %v5304
        %v6673 = vpack.c.b16 %v5329, %v5305
        %v6674 = vpack.c.b16 %v5330, %v5306
        %v6675 = vpack.c.b16 %v5331, %v5307
        %v6676 = vpack.c.b16 %v5332, %v5308
        %v6677 = vpack.c.b16 %v5333, %v5309
        %v6678 = vpack.c.b16 %v5358, %v5334
        %v6679 = vpack.c.b16 %v5359, %v5335
        %v6680 = vpack.c.b16 %v5360, %v5336
        %v6681 = vpack.c.b16 %v5361, %v5337
        %v6682 = vpack.c.b16 %v5362, %v5338
        %v6683 = vpack.c.b16 %v5363, %v5339
        %v6684 = vpack.c.b16 %v5364, %v5340
        %v6685 = vpack.c.b16 %v5365, %v5341
        %v6686 = vpack.c.b16 %v5366, %v5342
        %v6687 = vpack.c.b16 %v5367, %v5343
        %v6688 = vpack.c.b16 %v5368, %v5344
        %v6689 = vpack.c.b16 %v5369, %v5345
        %v6690 = vpack.c.b16 %v5370, %v5346
        %v6691 = vpack.c.b16 %v5371, %v5347
        %v6692 = vpack.c.b16 %v5372, %v5348
        %v6693 = vpack.c.b16 %v5373, %v5349
        %v6694 = vpack.c.b16 %v5374, %v5350
        %v6695 = vpack.c.b16 %v5375, %v5351
        %v6696 = vpack.c.b16 %v5376, %v5352
        %v6697 = vpack.c.b16 %v5377, %v5353
        %v6698 = vpack.c.b16 %v5378, %v5354
        %v6699 = vpack.c.b16 %v5379, %v5355
        %v6700 = vpack.c.b16 %v5380, %v5356
        %v6701 = vpack.c.b16 %v5381, %v5357
        %v6702 = vpack.c.b16 %v5406, %v5382
        %v6703 = vpack.c.b16 %v5407, %v5383
        %v6704 = vpack.c.b16 %v5408, %v5384
        %v6705 = vpack.c.b16 %v5409, %v5385
        %v6706 = vpack.c.b16 %v5410, %v5386
        %v6707 = vpack.c.b16 %v5411, %v5387
        %v6708 = vpack.c.b16 %v5412, %v5388
        %v6709 = vpack.c.b16 %v5413, %v5389
        %v6710 = vpack.c.b16 %v5414, %v5390
        %v6711 = vpack.c.b16 %v5415, %v5391
        %v6712 = vpack.c.b16 %v5416, %v5392
        %v6713 = vpack.c.b16 %v5417, %v5393
        %v6714 = vpack.c.b16 %v5418, %v5394
        %v6715 = vpack.c.b16 %v5419, %v5395
        %v6716 = vpack.c.b16 %v5420, %v5396
        %v6717 = vpack.c.b16 %v5421, %v5397
        %v6718 = vpack.c.b16 %v5422, %v5398
        %v6719 = vpack.c.b16 %v5423, %v5399
        %v6720 = vpack.c.b16 %v5424, %v5400
        %v6721 = vpack.c.b16 %v5425, %v5401
        %v6722 = vpack.c.b16 %v5426, %v5402
        %v6723 = vpack.c.b16 %v5427, %v5403
        %v6724 = vpack.c.b16 %v5428, %v5404
        %v6725 = vpack.c.b16 %v5429, %v5405
        %v6726 = vpack.c.b16 %v5454, %v5430
        %v6727 = vpack.c.b16 %v5455, %v5431
        %v6728 = vpack.c.b16 %v5456, %v5432
        %v6729 = vpack.c.b16 %v5457, %v5433
        %v6730 = vpack.c.b16 %v5458, %v5434
        %v6731 = vpack.c.b16 %v5459, %v5435
        %v6732 = vpack.c.b16 %v5460, %v5436
        %v6733 = vpack.c.b16 %v5461, %v5437
        %v6734 = vpack.c.b16 %v5462, %v5438
        %v6735 = vpack.c.b16 %v5463, %v5439
        %v6736 = vpack.c.b16 %v5464, %v5440
        %v6737 = vpack.c.b16 %v5465, %v5441
        %v6738 = vpack.c.b16 %v5466, %v5442
        %v6739 = vpack.c.b16 %v5467, %v5443
        %v6740 = vpack.c.b16 %v5468, %v5444
        %v6741 = vpack.c.b16 %v5469, %v5445
        %v6742 = vpack.c.b16 %v5470, %v5446
        %v6743 = vpack.c.b16 %v5471, %v5447
        %v6744 = vpack.c.b16 %v5472, %v5448
        %v6745 = vpack.c.b16 %v5473, %v5449
        %v6746 = vpack.c.b16 %v5474, %v5450
        %v6747 = vpack.c.b16 %v5475, %v5451
        %v6748 = vpack.c.b16 %v5476, %v5452
        %v6749 = vpack.c.b16 %v5477, %v5453
        %v6750 = vpack.c.b16 %v5502, %v5478
        %v6751 = vpack.c.b16 %v5503, %v5479
        %v6752 = vpack.c.b16 %v5504, %v5480
        %v6753 = vpack.c.b16 %v5505, %v5481
        %v6754 = vpack.c.b16 %v5506, %v5482
        %v6755 = vpack.c.b16 %v5507, %v5483
        %v6756 = vpack.c.b16 %v5508, %v5484
        %v6757 = vpack.c.b16 %v5509, %v5485
        %v6758 = vpack.c.b16 %v5510, %v5486
        %v6759 = vpack.c.b16 %v5511, %v5487
        %v6760 = vpack.c.b16 %v5512, %v5488
        %v6761 = vpack.c.b16 %v5513, %v5489
        %v6762 = vpack.c.b16 %v5514, %v5490
        %v6763 = vpack.c.b16 %v5515, %v5491
        %v6764 = vpack.c.b16 %v5516, %v5492
        %v6765 = vpack.c.b16 %v5517, %v5493
        %v6766 = vpack.c.b16 %v5518, %v5494
        %v6767 = vpack.c.b16 %v5519, %v5495
        %v6768 = vpack.c.b16 %v5520, %v5496
        %v6769 = vpack.c.b16 %v5521, %v5497
        %v6770 = vpack.c.b16 %v5522, %v5498
        %v6771 = vpack.c.b16 %v5523, %v5499
        %v6772 = vpack.c.b16 %v5524, %v5500
        %v6773 = vpack.c.b16 %v5525, %v5501
        %v6774 = vpack.c.b16 %v5550, %v5526
        %v6775 = vpack.c.b16 %v5551, %v5527
        %v6776 = vpack.c.b16 %v5552, %v5528
        %v6777 = vpack.c.b16 %v5553, %v5529
        %v6778 = vpack.c.b16 %v5554, %v5530
        %v6779 = vpack.c.b16 %v5555, %v5531
        %v6780 = vpack.c.b16 %v5556, %v5532
        %v6781 = vpack.c.b16 %v5557, %v5533
        %v6782 = vpack.c.b16 %v5558, %v5534
        %v6783 = vpack.c.b16 %v5559, %v5535
        %v6784 = vpack.c.b16 %v5560, %v5536
        %v6785 = vpack.c.b16 %v5561, %v5537
        %v6786 = vpack.c.b16 %v5562, %v5538
        %v6787 = vpack.c.b16 %v5563, %v5539
        %v6788 = vpack.c.b16 %v5564, %v5540
        %v6789 = vpack.c.b16 %v5565, %v5541
        %v6790 = vpack.c.b16 %v5566, %v5542
        %v6791 = vpack.c.b16 %v5567, %v5543
        %v6792 = vpack.c.b16 %v5568, %v5544
        %v6793 = vpack.c.b16 %v5569, %v5545
        %v6794 = vpack.c.b16 %v5570, %v5546
        %v6795 = vpack.c.b16 %v5571, %v5547
        %v6796 = vpack.c.b16 %v5572, %v5548
        %v6797 = vpack.c.b16 %v5573, %v5549
        %v6798 = vpack.c.b16 %v5598, %v5574
        %v6799 = vpack.c.b16 %v5599, %v5575
        %v6800 = vpack.c.b16 %v5600, %v5576
        %v6801 = vpack.c.b16 %v5601, %v5577
        %v6802 = vpack.c.b16 %v5602, %v5578
        %v6803 = vpack.c.b16 %v5603, %v5579
        %v6804 = vpack.c.b16 %v5604, %v5580
        %v6805 = vpack.c.b16 %v5605, %v5581
        %v6806 = vpack.c.b16 %v5606, %v5582
        %v6807 = vpack.c.b16 %v5607, %v5583
        %v6808 = vpack.c.b16 %v5608, %v5584
        %v6809 = vpack.c.b16 %v5609, %v5585
        %v6810 = vpack.c.b16 %v5610, %v5586
        %v6811 = vpack.c.b16 %v5611, %v5587
        %v6812 = vpack.c.b16 %v5612, %v5588
        %v6813 = vpack.c.b16 %v5613, %v5589
        %v6814 = vpack.c.b16 %v5614, %v5590
        %v6815 = vpack.c.b16 %v5615, %v5591
        %v6816 = vpack.c.b16 %v5616, %v5592
        %v6817 = vpack.c.b16 %v5617, %v5593
        %v6818 = vpack.c.b16 %v5618, %v5594
        %v6819 = vpack.c.b16 %v5619, %v5595
        %v6820 = vpack.c.b16 %v5620, %v5596
        %v6821 = vpack.c.b16 %v5621, %v5597
        %v6822 = vpack.c.b16 %v5646, %v5622
        %v6823 = vpack.c.b16 %v5647, %v5623
        %v6824 = vpack.c.b16 %v5648, %v5624
        %v6825 = vpack.c.b16 %v5649, %v5625
        %v6826 = vpack.c.b16 %v5650, %v5626
        %v6827 = vpack.c.b16 %v5651, %v5627
        %v6828 = vpack.c.b16 %v5652, %v5628
        %v6829 = vpack.c.b16 %v5653, %v5629
        %v6830 = vpack.c.b16 %v5654, %v5630
        %v6831 = vpack.c.b16 %v5655, %v5631
        %v6832 = vpack.c.b16 %v5656, %v5632
        %v6833 = vpack.c.b16 %v5657, %v5633
        %v6834 = vpack.c.b16 %v5658, %v5634
        %v6835 = vpack.c.b16 %v5659, %v5635
        %v6836 = vpack.c.b16 %v5660, %v5636
        %v6837 = vpack.c.b16 %v5661, %v5637
        %v6838 = vpack.c.b16 %v5662, %v5638
        %v6839 = vpack.c.b16 %v5663, %v5639
        %v6840 = vpack.c.b16 %v5664, %v5640
        %v6841 = vpack.c.b16 %v5665, %v5641
        %v6842 = vpack.c.b16 %v5666, %v5642
        %v6843 = vpack.c.b16 %v5667, %v5643
        %v6844 = vpack.c.b16 %v5668, %v5644
        %v6845 = vpack.c.b16 %v5669, %v5645
        %v6846 = vpack.c.b16 %v5694, %v5670
        %v6847 = vpack.c.b16 %v5695, %v5671
        %v6848 = vpack.c.b16 %v5696, %v5672
        %v6849 = vpack.c.b16 %v5697, %v5673
        %v6850 = vpack.c.b16 %v5698, %v5674
        %v6851 = vpack.c.b16 %v5699, %v5675
        %v6852 = vpack.c.b16 %v5700, %v5676
        %v6853 = vpack.c.b16 %v5701, %v5677
        %v6854 = vpack.c.b16 %v5702, %v5678
        %v6855 = vpack.c.b16 %v5703, %v5679
        %v6856 = vpack.c.b16 %v5704, %v5680
        %v6857 = vpack.c.b16 %v5705, %v5681
        %v6858 = vpack.c.b16 %v5706, %v5682
        %v6859 = vpack.c.b16 %v5707, %v5683
        %v6860 = vpack.c.b16 %v5708, %v5684
        %v6861 = vpack.c.b16 %v5709, %v5685
        %v6862 = vpack.c.b16 %v5710, %v5686
        %v6863 = vpack.c.b16 %v5711, %v5687
        %v6864 = vpack.c.b16 %v5712, %v5688
        %v6865 = vpack.c.b16 %v5713, %v5689
        %v6866 = vpack.c.b16 %v5714, %v5690
        %v6867 = vpack.c.b16 %v5715, %v5691
        %v6868 = vpack.c.b16 %v5716, %v5692
        %v6869 = vpack.c.b16 %v5717, %v5693
        %8022 = vmatprep.subr.bf16.mxu0 %v5719
        %8023 = vmatpush1.bf16.msra.mxu0 %v5718
        %8024 = vmatprep.subr.bf16.mxu0 %v5743
        %8025 = vmatpush1.bf16.msra.mxu0 %v5742
        %8026 = vmatprep.subr.bf16.mxu0 %v5767
        %8027 = vmatpush1.bf16.msra.mxu0 %v5766
        %8028 = vmatprep.subr.bf16.mxu0 %v5791
        %8029 = vmatpush1.bf16.msra.mxu0 %v5790
        %8030 = vmatprep.subr.bf16.mxu0 %v5815
        %8031 = vmatpush1.bf16.msra.mxu0 %v5814
        %8032 = vmatprep.subr.bf16.mxu0 %v5839
        %8033 = vmatpush1.bf16.msra.mxu0 %v5838
        %8034 = vmatprep.subr.bf16.mxu0 %v5863
        %8035 = vmatpush1.bf16.msra.mxu0 %v5862
        %8036 = vmatprep.subr.bf16.mxu0 %v5887
        %8037 = vmatpush1.bf16.msra.mxu0 %v5886
        %8038 = vmatprep.subr.bf16.mxu0 %v5911
        %8039 = vmatpush1.bf16.msra.mxu0 %v5910
        %8040 = vmatprep.subr.bf16.mxu0 %v5935
        %8041 = vmatpush1.bf16.msra.mxu0 %v5934
        %8042 = vmatprep.subr.bf16.mxu0 %v5959
        %8043 = vmatpush1.bf16.msra.mxu0 %v5958
        %8044 = vmatprep.subr.bf16.mxu0 %v5983
        %8045 = vmatpush1.bf16.msra.mxu0 %v5982
        %8046 = vmatprep.subr.bf16.mxu0 %v6007
        %8047 = vmatpush1.bf16.msra.mxu0 %v6006
        %8048 = vmatprep.subr.bf16.mxu0 %v6031
        %8049 = vmatpush1.bf16.msra.mxu0 %v6030
        %8050 = vmatprep.subr.bf16.mxu0 %v6055
        %8051 = vmatpush1.bf16.msra.mxu0 %v6054
        %8052 = vmatprep.subr.bf16.mxu0 %v6079
        %8053 = vmatpush1.bf16.msra.mxu0 %v6078
        %8054 = vmatprep.mubr.bf16.mxu0 %v961
        %8055 = vmatmul.mubr.bf16.gmra.mrb[0].mxu0 %v960
        %v8056 = vpop.f32.mrb[0].mxu0
        %v8057 = vadd.f32 %v2145, %v8056
        %v8058 = vpop.f32.mrb[0].mxu0
        %v8059 = vadd.f32 %v2149, %v8058
        %v8060 = vpop.f32.mrb[0].mxu0
        %v8061 = vadd.f32 %v2145, %v8060
        %v8062 = vpop.f32.mrb[0].mxu0
        %v8063 = vadd.f32 %v2149, %v8062
        %8064 = vmatprep.mubr.bf16.mxu0 %v967
        %8065 = vmatmul.mubr.bf16.gmra.mrb[0].mxu0 %v966
        %v8066 = vpop.f32.mrb[0].mxu0
        %v8067 = vadd.f32 %v2145, %v8066
        %v8068 = vpop.f32.mrb[0].mxu0
        %v8069 = vadd.f32 %v2149, %v8068
        %v8070 = vpop.f32.mrb[0].mxu0
        %v8071 = vadd.f32 %v2145, %v8070
        %v8072 = vpop.f32.mrb[0].mxu0
        %v8073 = vadd.f32 %v2149, %v8072
        %8074 = vmatprep.mubr.bf16.mxu0 %v973
        %8075 = vmatmul.mubr.bf16.gmra.mrb[0].mxu0 %v972
        %v8076 = vpop.f32.mrb[0].mxu0
        %v8077 = vadd.f32 %v2145, %v8076
        %v8078 = vpop.f32.mrb[0].mxu0
        %v8079 = vadd.f32 %v2149, %v8078
        %v8080 = vpop.f32.mrb[0].mxu0
        %v8081 = vadd.f32 %v2145, %v8080
        %v8082 = vpop.f32.mrb[0].mxu0
        %v8083 = vadd.f32 %v2149, %v8082
        %8084 = vmatprep.mubr.bf16.mxu0 %v979
        %8085 = vmatmul.mubr.bf16.gmra.mrb[0].mxu0 %v978
        %v8086 = vpop.f32.mrb[0].mxu0
        %v8087 = vadd.f32 %v2145, %v8086
        %v8088 = vpop.f32.mrb[0].mxu0
        %v8089 = vadd.f32 %v2149, %v8088
        %v8090 = vpop.f32.mrb[0].mxu0
        %v8091 = vadd.f32 %v2145, %v8090
        %v8092 = vpop.f32.mrb[0].mxu0
        %v8093 = vadd.f32 %v2149, %v8092
        %8094 = vdwg.mxu0
        %8095 = vmatprep.subr.bf16.mxu0 %v6103
        %8096 = vmatpush1.bf16.msra.mxu0 %v6102
        %8097 = vmatprep.subr.bf16.mxu0 %v6127
        %8098 = vmatpush1.bf16.msra.mxu0 %v6126
        %8099 = vmatprep.subr.bf16.mxu0 %v6151
        %8100 = vmatpush1.bf16.msra.mxu0 %v6150
        %8101 = vmatprep.subr.bf16.mxu0 %v6175
        %8102 = vmatpush1.bf16.msra.mxu0 %v6174
        %8103 = vmatprep.subr.bf16.mxu0 %v6199
        %8104 = vmatpush1.bf16.msra.mxu0 %v6198
        %8105 = vmatprep.subr.bf16.mxu0 %v6223
        %8106 = vmatpush1.bf16.msra.mxu0 %v6222
        %8107 = vmatprep.subr.bf16.mxu0 %v6247
        %8108 = vmatpush1.bf16.msra.mxu0 %v6246
        %8109 = vmatprep.subr.bf16.mxu0 %v6271
        %8110 = vmatpush1.bf16.msra.mxu0 %v6270
        %8111 = vmatprep.subr.bf16.mxu0 %v6295
        %8112 = vmatpush1.bf16.msra.mxu0 %v6294
        %8113 = vmatprep.subr.bf16.mxu0 %v6319
        %8114 = vmatpush1.bf16.msra.mxu0 %v6318
        %8115 = vmatprep.subr.bf16.mxu0 %v6343
        %8116 = vmatpush1.bf16.msra.mxu0 %v6342
        %8117 = vmatprep.subr.bf16.mxu0 %v6367
        %8118 = vmatpush1.bf16.msra.mxu0 %v6366
        %8119 = vmatprep.subr.bf16.mxu0 %v6391
        %8120 = vmatpush1.bf16.msra.mxu0 %v6390
        %8121 = vmatprep.subr.bf16.mxu0 %v6415
        %8122 = vmatpush1.bf16.msra.mxu0 %v6414
        %8123 = vmatprep.subr.bf16.mxu0 %v6439
        %8124 = vmatpush1.bf16.msra.mxu0 %v6438
        %8125 = vmatprep.subr.bf16.mxu0 %v6463
        %8126 = vmatpush1.bf16.msra.mxu0 %v6462
        %8127 = vmatprep.mubr.bf16.mxu0 %v963
        %8128 = vmatmul.mubr.bf16.gmra.mrb[0].mxu0 %v962
        %v8129 = vpop.f32.mrb[0].mxu0
        %v8130 = vadd.f32 %v8057, %v8129
        %v8131 = vpop.f32.mrb[0].mxu0
        %v8132 = vadd.f32 %v8059, %v8131
        %v8133 = vpop.f32.mrb[0].mxu0
        %v8134 = vadd.f32 %v8061, %v8133
        %v8135 = vpop.f32.mrb[0].mxu0
        %v8136 = vadd.f32 %v8063, %v8135
        %8137 = vmatprep.mubr.bf16.mxu0 %v969
        %8138 = vmatmul.mubr.bf16.gmra.mrb[0].mxu0 %v968
        %v8139 = vpop.f32.mrb[0].mxu0
        %v8140 = vadd.f32 %v8067, %v8139
        %v8141 = vpop.f32.mrb[0].mxu0
        %v8142 = vadd.f32 %v8069, %v8141
        %v8143 = vpop.f32.mrb[0].mxu0
        %v8144 = vadd.f32 %v8071, %v8143
        %v8145 = vpop.f32.mrb[0].mxu0
        %v8146 = vadd.f32 %v8073, %v8145
        %8147 = vmatprep.mubr.bf16.mxu0 %v975
        %8148 = vmatmul.mubr.bf16.gmra.mrb[0].mxu0 %v974
        %v8149 = vpop.f32.mrb[0].mxu0
        %v8150 = vadd.f32 %v8077, %v8149
        %v8151 = vpop.f32.mrb[0].mxu0
        %v8152 = vadd.f32 %v8079, %v8151
        %v8153 = vpop.f32.mrb[0].mxu0
        %v8154 = vadd.f32 %v8081, %v8153
        %v8155 = vpop.f32.mrb[0].mxu0
        %v8156 = vadd.f32 %v8083, %v8155
        %8157 = vmatprep.mubr.bf16.mxu0 %v981
        %8158 = vmatmul.mubr.bf16.gmra.mrb[0].mxu0 %v980
        %v8159 = vpop.f32.mrb[0].mxu0
        %v8160 = vadd.f32 %v8087, %v8159
        %v8161 = vpop.f32.mrb[0].mxu0
        %v8162 = vadd.f32 %v8089, %v8161
        %v8163 = vpop.f32.mrb[0].mxu0
        %v8164 = vadd.f32 %v8091, %v8163
        %v8165 = vpop.f32.mrb[0].mxu0
        %v8166 = vadd.f32 %v8093, %v8165
        %8167 = vdwg.mxu0
        %8168 = vmatprep.subr.bf16.mxu0 %v6487
        %8169 = vmatpush1.bf16.msra.mxu0 %v6486
        %8170 = vmatprep.subr.bf16.mxu0 %v6511
        %8171 = vmatpush1.bf16.msra.mxu0 %v6510
        %8172 = vmatprep.subr.bf16.mxu0 %v6535
        %8173 = vmatpush1.bf16.msra.mxu0 %v6534
        %8174 = vmatprep.subr.bf16.mxu0 %v6559
        %8175 = vmatpush1.bf16.msra.mxu0 %v6558
        %8176 = vmatprep.subr.bf16.mxu0 %v6583
        %8177 = vmatpush1.bf16.msra.mxu0 %v6582
        %8178 = vmatprep.subr.bf16.mxu0 %v6607
        %8179 = vmatpush1.bf16.msra.mxu0 %v6606
        %8180 = vmatprep.subr.bf16.mxu0 %v6631
        %8181 = vmatpush1.bf16.msra.mxu0 %v6630
        %8182 = vmatprep.subr.bf16.mxu0 %v6655
        %8183 = vmatpush1.bf16.msra.mxu0 %v6654
        %8184 = vmatprep.subr.bf16.mxu0 %v6679
        %8185 = vmatpush1.bf16.msra.mxu0 %v6678
        %8186 = vmatprep.subr.bf16.mxu0 %v6703
        %8187 = vmatpush1.bf16.msra.mxu0 %v6702
        %8188 = vmatprep.subr.bf16.mxu0 %v6727
        %8189 = vmatpush1.bf16.msra.mxu0 %v6726
        %8190 = vmatprep.subr.bf16.mxu0 %v6751
        %8191 = vmatpush1.bf16.msra.mxu0 %v6750
        %8192 = vmatprep.subr.bf16.mxu0 %v6775
        %8193 = vmatpush1.bf16.msra.mxu0 %v6774
        %8194 = vmatprep.subr.bf16.mxu0 %v6799
        %8195 = vmatpush1.bf16.msra.mxu0 %v6798
        %8196 = vmatprep.subr.bf16.mxu0 %v6823
        %8197 = vmatpush1.bf16.msra.mxu0 %v6822
        %8198 = vmatprep.subr.bf16.mxu0 %v6847
        %8199 = vmatpush1.bf16.msra.mxu0 %v6846
        %8200 = vmatprep.mubr.bf16.mxu0 %v965
        %8201 = vmatmul.mubr.bf16.gmra.mrb[0].mxu0 %v964
        %v8202 = vpop.f32.mrb[0].mxu0
        %v8203 = vadd.f32 %v8130, %v8202
        %v8204 = vpop.f32.mrb[0].mxu0
        %v8205 = vadd.f32 %v8132, %v8204
        %v8206 = vpop.f32.mrb[0].mxu0
        %v8207 = vadd.f32 %v8134, %v8206
        %v8208 = vpop.f32.mrb[0].mxu0
        %v8209 = vadd.f32 %v8136, %v8208
        %8210 = vmatprep.mubr.bf16.mxu0 %v971
        %8211 = vmatmul.mubr.bf16.gmra.mrb[0].mxu0 %v970
        %v8212 = vpop.f32.mrb[0].mxu0
        %v8213 = vadd.f32 %v8140, %v8212
        %v8214 = vpop.f32.mrb[0].mxu0
        %v8215 = vadd.f32 %v8142, %v8214
        %v8216 = vpop.f32.mrb[0].mxu0
        %v8217 = vadd.f32 %v8144, %v8216
        %v8218 = vpop.f32.mrb[0].mxu0
        %v8219 = vadd.f32 %v8146, %v8218
        %8220 = vmatprep.mubr.bf16.mxu0 %v977
        %8221 = vmatmul.mubr.bf16.gmra.mrb[0].mxu0 %v976
        %v8222 = vpop.f32.mrb[0].mxu0
        %v8223 = vadd.f32 %v8150, %v8222
        %v8224 = vpop.f32.mrb[0].mxu0
        %v8225 = vadd.f32 %v8152, %v8224
        %v8226 = vpop.f32.mrb[0].mxu0
        %v8227 = vadd.f32 %v8154, %v8226
        %v8228 = vpop.f32.mrb[0].mxu0
        %v8229 = vadd.f32 %v8156, %v8228
        %8230 = vmatprep.mubr.bf16.mxu0 %v983
        %8231 = vmatmul.mubr.bf16.gmra.mrb[0].mxu0 %v982
        %v8232 = vpop.f32.mrb[0].mxu0
        %v8233 = vadd.f32 %v8160, %v8232
        %v8234 = vpop.f32.mrb[0].mxu0
        %v8235 = vadd.f32 %v8162, %v8234
        %v8236 = vpop.f32.mrb[0].mxu0
        %v8237 = vadd.f32 %v8164, %v8236
        %v8238 = vpop.f32.mrb[0].mxu0
        %v8239 = vadd.f32 %v8166, %v8238
        %8240 = vdwg.mxu0
        %8241 = vmatprep.subr.bf16.mxu0 %v5721
        %8242 = vmatpush1.bf16.msra.mxu0 %v5720
        %8243 = vmatprep.subr.bf16.mxu0 %v5745
        %8244 = vmatpush1.bf16.msra.mxu0 %v5744
        %8245 = vmatprep.subr.bf16.mxu0 %v5769
        %8246 = vmatpush1.bf16.msra.mxu0 %v5768
        %8247 = vmatprep.subr.bf16.mxu0 %v5793
        %8248 = vmatpush1.bf16.msra.mxu0 %v5792
        %8249 = vmatprep.subr.bf16.mxu0 %v5817
        %8250 = vmatpush1.bf16.msra.mxu0 %v5816
        %8251 = vmatprep.subr.bf16.mxu0 %v5841
        %8252 = vmatpush1.bf16.msra.mxu0 %v5840
        %8253 = vmatprep.subr.bf16.mxu0 %v5865
        %8254 = vmatpush1.bf16.msra.mxu0 %v5864
        %8255 = vmatprep.subr.bf16.mxu0 %v5889
        %8256 = vmatpush1.bf16.msra.mxu0 %v5888
        %8257 = vmatprep.subr.bf16.mxu0 %v5913
        %8258 = vmatpush1.bf16.msra.mxu0 %v5912
        %8259 = vmatprep.subr.bf16.mxu0 %v5937
        %8260 = vmatpush1.bf16.msra.mxu0 %v5936
        %8261 = vmatprep.subr.bf16.mxu0 %v5961
        %8262 = vmatpush1.bf16.msra.mxu0 %v5960
        %8263 = vmatprep.subr.bf16.mxu0 %v5985
        %8264 = vmatpush1.bf16.msra.mxu0 %v5984
        %8265 = vmatprep.subr.bf16.mxu0 %v6009
        %8266 = vmatpush1.bf16.msra.mxu0 %v6008
        %8267 = vmatprep.subr.bf16.mxu0 %v6033
        %8268 = vmatpush1.bf16.msra.mxu0 %v6032
        %8269 = vmatprep.subr.bf16.mxu0 %v6057
        %8270 = vmatpush1.bf16.msra.mxu0 %v6056
        %8271 = vmatprep.subr.bf16.mxu0 %v6081
        %8272 = vmatpush1.bf16.msra.mxu0 %v6080
        %8273 = vmatprep.mubr.bf16.mxu0 %v961
        %8274 = vmatmul.mubr.bf16.gmra.mrb[0].mxu0 %v960
        %v8275 = vpop.f32.mrb[0].mxu0
        %v8276 = vadd.f32 %v2153, %v8275
        %v8277 = vpop.f32.mrb[0].mxu0
        %v8278 = vadd.f32 %v2157, %v8277
        %v8279 = vpop.f32.mrb[0].mxu0
        %v8280 = vadd.f32 %v2153, %v8279
        %v8281 = vpop.f32.mrb[0].mxu0
        %v8282 = vadd.f32 %v2157, %v8281
        %8283 = vmatprep.mubr.bf16.mxu0 %v967
        %8284 = vmatmul.mubr.bf16.gmra.mrb[0].mxu0 %v966
        %v8285 = vpop.f32.mrb[0].mxu0
        %v8286 = vadd.f32 %v2153, %v8285
        %v8287 = vpop.f32.mrb[0].mxu0
        %v8288 = vadd.f32 %v2157, %v8287
        %v8289 = vpop.f32.mrb[0].mxu0
        %v8290 = vadd.f32 %v2153, %v8289
        %v8291 = vpop.f32.mrb[0].mxu0
        %v8292 = vadd.f32 %v2157, %v8291
        %8293 = vmatprep.mubr.bf16.mxu0 %v973
        %8294 = vmatmul.mubr.bf16.gmra.mrb[0].mxu0 %v972
        %v8295 = vpop.f32.mrb[0].mxu0
        %v8296 = vadd.f32 %v2153, %v8295
        %v8297 = vpop.f32.mrb[0].mxu0
        %v8298 = vadd.f32 %v2157, %v8297
        %v8299 = vpop.f32.mrb[0].mxu0
        %v8300 = vadd.f32 %v2153, %v8299
        %v8301 = vpop.f32.mrb[0].mxu0
        %v8302 = vadd.f32 %v2157, %v8301
        %8303 = vmatprep.mubr.bf16.mxu0 %v979
        %8304 = vmatmul.mubr.bf16.gmra.mrb[0].mxu0 %v978
        %v8305 = vpop.f32.mrb[0].mxu0
        %v8306 = vadd.f32 %v2153, %v8305
        %v8307 = vpop.f32.mrb[0].mxu0
        %v8308 = vadd.f32 %v2157, %v8307
        %v8309 = vpop.f32.mrb[0].mxu0
        %v8310 = vadd.f32 %v2153, %v8309
        %v8311 = vpop.f32.mrb[0].mxu0
        %v8312 = vadd.f32 %v2157, %v8311
        %8313 = vdwg.mxu0
        %8314 = vmatprep.subr.bf16.mxu0 %v6105
        %8315 = vmatpush1.bf16.msra.mxu0 %v6104
        %8316 = vmatprep.subr.bf16.mxu0 %v6129
        %8317 = vmatpush1.bf16.msra.mxu0 %v6128
        %8318 = vmatprep.subr.bf16.mxu0 %v6153
        %8319 = vmatpush1.bf16.msra.mxu0 %v6152
        %8320 = vmatprep.subr.bf16.mxu0 %v6177
        %8321 = vmatpush1.bf16.msra.mxu0 %v6176
        %8322 = vmatprep.subr.bf16.mxu0 %v6201
        %8323 = vmatpush1.bf16.msra.mxu0 %v6200
        %8324 = vmatprep.subr.bf16.mxu0 %v6225
        %8325 = vmatpush1.bf16.msra.mxu0 %v6224
        %8326 = vmatprep.subr.bf16.mxu0 %v6249
        %8327 = vmatpush1.bf16.msra.mxu0 %v6248
        %8328 = vmatprep.subr.bf16.mxu0 %v6273
        %8329 = vmatpush1.bf16.msra.mxu0 %v6272
        %8330 = vmatprep.subr.bf16.mxu0 %v6297
        %8331 = vmatpush1.bf16.msra.mxu0 %v6296
        %8332 = vmatprep.subr.bf16.mxu0 %v6321
        %8333 = vmatpush1.bf16.msra.mxu0 %v6320
        %8334 = vmatprep.subr.bf16.mxu0 %v6345
        %8335 = vmatpush1.bf16.msra.mxu0 %v6344
        %8336 = vmatprep.subr.bf16.mxu0 %v6369
        %8337 = vmatpush1.bf16.msra.mxu0 %v6368
        %8338 = vmatprep.subr.bf16.mxu0 %v6393
        %8339 = vmatpush1.bf16.msra.mxu0 %v6392
        %8340 = vmatprep.subr.bf16.mxu0 %v6417
        %8341 = vmatpush1.bf16.msra.mxu0 %v6416
        %8342 = vmatprep.subr.bf16.mxu0 %v6441
        %8343 = vmatpush1.bf16.msra.mxu0 %v6440
        %8344 = vmatprep.subr.bf16.mxu0 %v6465
        %8345 = vmatpush1.bf16.msra.mxu0 %v6464
        %8346 = vmatprep.mubr.bf16.mxu0 %v963
        %8347 = vmatmul.mubr.bf16.gmra.mrb[0].mxu0 %v962
        %v8348 = vpop.f32.mrb[0].mxu0
        %v8349 = vadd.f32 %v8276, %v8348
        %v8350 = vpop.f32.mrb[0].mxu0
        %v8351 = vadd.f32 %v8278, %v8350
        %v8352 = vpop.f32.mrb[0].mxu0
        %v8353 = vadd.f32 %v8280, %v8352
        %v8354 = vpop.f32.mrb[0].mxu0
        %v8355 = vadd.f32 %v8282, %v8354
        %8356 = vmatprep.mubr.bf16.mxu0 %v969
        %8357 = vmatmul.mubr.bf16.gmra.mrb[0].mxu0 %v968
        %v8358 = vpop.f32.mrb[0].mxu0
        %v8359 = vadd.f32 %v8286, %v8358
        %v8360 = vpop.f32.mrb[0].mxu0
        %v8361 = vadd.f32 %v8288, %v8360
        %v8362 = vpop.f32.mrb[0].mxu0
        %v8363 = vadd.f32 %v8290, %v8362
        %v8364 = vpop.f32.mrb[0].mxu0
        %v8365 = vadd.f32 %v8292, %v8364
        %8366 = vmatprep.mubr.bf16.mxu0 %v975
        %8367 = vmatmul.mubr.bf16.gmra.mrb[0].mxu0 %v974
        %v8368 = vpop.f32.mrb[0].mxu0
        %v8369 = vadd.f32 %v8296, %v8368
        %v8370 = vpop.f32.mrb[0].mxu0
        %v8371 = vadd.f32 %v8298, %v8370
        %v8372 = vpop.f32.mrb[0].mxu0
        %v8373 = vadd.f32 %v8300, %v8372
        %v8374 = vpop.f32.mrb[0].mxu0
        %v8375 = vadd.f32 %v8302, %v8374
        %8376 = vmatprep.mubr.bf16.mxu0 %v981
        %8377 = vmatmul.mubr.bf16.gmra.mrb[0].mxu0 %v980
        %v8378 = vpop.f32.mrb[0].mxu0
        %v8379 = vadd.f32 %v8306, %v8378
        %v8380 = vpop.f32.mrb[0].mxu0
        %v8381 = vadd.f32 %v8308, %v8380
        %v8382 = vpop.f32.mrb[0].mxu0
        %v8383 = vadd.f32 %v8310, %v8382
        %v8384 = vpop.f32.mrb[0].mxu0
        %v8385 = vadd.f32 %v8312, %v8384
        %8386 = vdwg.mxu0
        %8387 = vmatprep.subr.bf16.mxu0 %v6489
        %8388 = vmatpush1.bf16.msra.mxu0 %v6488
        %8389 = vmatprep.subr.bf16.mxu0 %v6513
        %8390 = vmatpush1.bf16.msra.mxu0 %v6512
        %8391 = vmatprep.subr.bf16.mxu0 %v6537
        %8392 = vmatpush1.bf16.msra.mxu0 %v6536
        %8393 = vmatprep.subr.bf16.mxu0 %v6561
        %8394 = vmatpush1.bf16.msra.mxu0 %v6560
        %8395 = vmatprep.subr.bf16.mxu0 %v6585
        %8396 = vmatpush1.bf16.msra.mxu0 %v6584
        %8397 = vmatprep.subr.bf16.mxu0 %v6609
        %8398 = vmatpush1.bf16.msra.mxu0 %v6608
        %8399 = vmatprep.subr.bf16.mxu0 %v6633
        %8400 = vmatpush1.bf16.msra.mxu0 %v6632
        %8401 = vmatprep.subr.bf16.mxu0 %v6657
        %8402 = vmatpush1.bf16.msra.mxu0 %v6656
        %8403 = vmatprep.subr.bf16.mxu0 %v6681
        %8404 = vmatpush1.bf16.msra.mxu0 %v6680
        %8405 = vmatprep.subr.bf16.mxu0 %v6705
        %8406 = vmatpush1.bf16.msra.mxu0 %v6704
        %8407 = vmatprep.subr.bf16.mxu0 %v6729
        %8408 = vmatpush1.bf16.msra.mxu0 %v6728
        %8409 = vmatprep.subr.bf16.mxu0 %v6753
        %8410 = vmatpush1.bf16.msra.mxu0 %v6752
        %8411 = vmatprep.subr.bf16.mxu0 %v6777
        %8412 = vmatpush1.bf16.msra.mxu0 %v6776
        %8413 = vmatprep.subr.bf16.mxu0 %v6801
        %8414 = vmatpush1.bf16.msra.mxu0 %v6800
        %8415 = vmatprep.subr.bf16.mxu0 %v6825
        %8416 = vmatpush1.bf16.msra.mxu0 %v6824
        %8417 = vmatprep.subr.bf16.mxu0 %v6849
        %8418 = vmatpush1.bf16.msra.mxu0 %v6848
        %8419 = vmatprep.mubr.bf16.mxu0 %v965
        %8420 = vmatmul.mubr.bf16.gmra.mrb[0].mxu0 %v964
        %v8421 = vpop.f32.mrb[0].mxu0
        %v8422 = vadd.f32 %v8349, %v8421
        %v8423 = vpop.f32.mrb[0].mxu0
        %v8424 = vadd.f32 %v8351, %v8423
        %v8425 = vpop.f32.mrb[0].mxu0
        %v8426 = vadd.f32 %v8353, %v8425
        %v8427 = vpop.f32.mrb[0].mxu0
        %v8428 = vadd.f32 %v8355, %v8427
        %8429 = vmatprep.mubr.bf16.mxu0 %v971
        %8430 = vmatmul.mubr.bf16.gmra.mrb[0].mxu0 %v970
        %v8431 = vpop.f32.mrb[0].mxu0
        %v8432 = vadd.f32 %v8359, %v8431
        %v8433 = vpop.f32.mrb[0].mxu0
        %v8434 = vadd.f32 %v8361, %v8433
        %v8435 = vpop.f32.mrb[0].mxu0
        %v8436 = vadd.f32 %v8363, %v8435
        %v8437 = vpop.f32.mrb[0].mxu0
        %v8438 = vadd.f32 %v8365, %v8437
        %8439 = vmatprep.mubr.bf16.mxu0 %v977
        %8440 = vmatmul.mubr.bf16.gmra.mrb[0].mxu0 %v976
        %v8441 = vpop.f32.mrb[0].mxu0
        %v8442 = vadd.f32 %v8369, %v8441
        %v8443 = vpop.f32.mrb[0].mxu0
        %v8444 = vadd.f32 %v8371, %v8443
        %v8445 = vpop.f32.mrb[0].mxu0
        %v8446 = vadd.f32 %v8373, %v8445
        %v8447 = vpop.f32.mrb[0].mxu0
        %v8448 = vadd.f32 %v8375, %v8447
        %8449 = vmatprep.mubr.bf16.mxu0 %v983
        %8450 = vmatmul.mubr.bf16.gmra.mrb[0].mxu0 %v982
        %v8451 = vpop.f32.mrb[0].mxu0
        %v8452 = vadd.f32 %v8379, %v8451
        %v8453 = vpop.f32.mrb[0].mxu0
        %v8454 = vadd.f32 %v8381, %v8453
        %v8455 = vpop.f32.mrb[0].mxu0
        %v8456 = vadd.f32 %v8383, %v8455
        %v8457 = vpop.f32.mrb[0].mxu0
        %v8458 = vadd.f32 %v8385, %v8457
        %8459 = vdwg.mxu0
        %8460 = vmatprep.subr.bf16.mxu0 %v5723
        %8461 = vmatpush1.bf16.msra.mxu0 %v5722
        %8462 = vmatprep.subr.bf16.mxu0 %v5747
        %8463 = vmatpush1.bf16.msra.mxu0 %v5746
        %8464 = vmatprep.subr.bf16.mxu0 %v5771
        %8465 = vmatpush1.bf16.msra.mxu0 %v5770
        %8466 = vmatprep.subr.bf16.mxu0 %v5795
        %8467 = vmatpush1.bf16.msra.mxu0 %v5794
        %8468 = vmatprep.subr.bf16.mxu0 %v5819
        %8469 = vmatpush1.bf16.msra.mxu0 %v5818
        %8470 = vmatprep.subr.bf16.mxu0 %v5843
        %8471 = vmatpush1.bf16.msra.mxu0 %v5842
        %8472 = vmatprep.subr.bf16.mxu0 %v5867
        %8473 = vmatpush1.bf16.msra.mxu0 %v5866
        %8474 = vmatprep.subr.bf16.mxu0 %v5891
        %8475 = vmatpush1.bf16.msra.mxu0 %v5890
        %8476 = vmatprep.subr.bf16.mxu0 %v5915
        %8477 = vmatpush1.bf16.msra.mxu0 %v5914
        %8478 = vmatprep.subr.bf16.mxu0 %v5939
        %8479 = vmatpush1.bf16.msra.mxu0 %v5938
        %8480 = vmatprep.subr.bf16.mxu0 %v5963
        %8481 = vmatpush1.bf16.msra.mxu0 %v5962
        %8482 = vmatprep.subr.bf16.mxu0 %v5987
        %8483 = vmatpush1.bf16.msra.mxu0 %v5986
        %8484 = vmatprep.subr.bf16.mxu0 %v6011
        %8485 = vmatpush1.bf16.msra.mxu0 %v6010
        %8486 = vmatprep.subr.bf16.mxu0 %v6035
        %8487 = vmatpush1.bf16.msra.mxu0 %v6034
        %8488 = vmatprep.subr.bf16.mxu0 %v6059
        %8489 = vmatpush1.bf16.msra.mxu0 %v6058
        %8490 = vmatprep.subr.bf16.mxu0 %v6083
        %8491 = vmatpush1.bf16.msra.mxu0 %v6082
        %8492 = vmatprep.mubr.bf16.mxu0 %v961
        %8493 = vmatmul.mubr.bf16.gmra.mrb[0].mxu0 %v960
        %v8494 = vpop.f32.mrb[0].mxu0
        %v8495 = vadd.f32 %v2161, %v8494
        %v8496 = vpop.f32.mrb[0].mxu0
        %v8497 = vadd.f32 %v2165, %v8496
        %v8498 = vpop.f32.mrb[0].mxu0
        %v8499 = vadd.f32 %v2161, %v8498
        %v8500 = vpop.f32.mrb[0].mxu0
        %v8501 = vadd.f32 %v2165, %v8500
        %8502 = vmatprep.mubr.bf16.mxu0 %v967
        %8503 = vmatmul.mubr.bf16.gmra.mrb[0].mxu0 %v966
        %v8504 = vpop.f32.mrb[0].mxu0
        %v8505 = vadd.f32 %v2161, %v8504
        %v8506 = vpop.f32.mrb[0].mxu0
        %v8507 = vadd.f32 %v2165, %v8506
        %v8508 = vpop.f32.mrb[0].mxu0
        %v8509 = vadd.f32 %v2161, %v8508
        %v8510 = vpop.f32.mrb[0].mxu0
        %v8511 = vadd.f32 %v2165, %v8510
        %8512 = vmatprep.mubr.bf16.mxu0 %v973
        %8513 = vmatmul.mubr.bf16.gmra.mrb[0].mxu0 %v972
        %v8514 = vpop.f32.mrb[0].mxu0
        %v8515 = vadd.f32 %v2161, %v8514
        %v8516 = vpop.f32.mrb[0].mxu0
        %v8517 = vadd.f32 %v2165, %v8516
        %v8518 = vpop.f32.mrb[0].mxu0
        %v8519 = vadd.f32 %v2161, %v8518
        %v8520 = vpop.f32.mrb[0].mxu0
        %v8521 = vadd.f32 %v2165, %v8520
        %8522 = vmatprep.mubr.bf16.mxu0 %v979
        %8523 = vmatmul.mubr.bf16.gmra.mrb[0].mxu0 %v978
        %v8524 = vpop.f32.mrb[0].mxu0
        %v8525 = vadd.f32 %v2161, %v8524
        %v8526 = vpop.f32.mrb[0].mxu0
        %v8527 = vadd.f32 %v2165, %v8526
        %v8528 = vpop.f32.mrb[0].mxu0
        %v8529 = vadd.f32 %v2161, %v8528
        %v8530 = vpop.f32.mrb[0].mxu0
        %v8531 = vadd.f32 %v2165, %v8530
        %8532 = vdwg.mxu0
        %8533 = vmatprep.subr.bf16.mxu0 %v6107
        %8534 = vmatpush1.bf16.msra.mxu0 %v6106
        %8535 = vmatprep.subr.bf16.mxu0 %v6131
        %8536 = vmatpush1.bf16.msra.mxu0 %v6130
        %8537 = vmatprep.subr.bf16.mxu0 %v6155
        %8538 = vmatpush1.bf16.msra.mxu0 %v6154
        %8539 = vmatprep.subr.bf16.mxu0 %v6179
        %8540 = vmatpush1.bf16.msra.mxu0 %v6178
        %8541 = vmatprep.subr.bf16.mxu0 %v6203
        %8542 = vmatpush1.bf16.msra.mxu0 %v6202
        %8543 = vmatprep.subr.bf16.mxu0 %v6227
        %8544 = vmatpush1.bf16.msra.mxu0 %v6226
        %8545 = vmatprep.subr.bf16.mxu0 %v6251
        %8546 = vmatpush1.bf16.msra.mxu0 %v6250
        %8547 = vmatprep.subr.bf16.mxu0 %v6275
        %8548 = vmatpush1.bf16.msra.mxu0 %v6274
        %8549 = vmatprep.subr.bf16.mxu0 %v6299
        %8550 = vmatpush1.bf16.msra.mxu0 %v6298
        %8551 = vmatprep.subr.bf16.mxu0 %v6323
        %8552 = vmatpush1.bf16.msra.mxu0 %v6322
        %8553 = vmatprep.subr.bf16.mxu0 %v6347
        %8554 = vmatpush1.bf16.msra.mxu0 %v6346
        %8555 = vmatprep.subr.bf16.mxu0 %v6371
        %8556 = vmatpush1.bf16.msra.mxu0 %v6370
        %8557 = vmatprep.subr.bf16.mxu0 %v6395
        %8558 = vmatpush1.bf16.msra.mxu0 %v6394
        %8559 = vmatprep.subr.bf16.mxu0 %v6419
        %8560 = vmatpush1.bf16.msra.mxu0 %v6418
        %8561 = vmatprep.subr.bf16.mxu0 %v6443
        %8562 = vmatpush1.bf16.msra.mxu0 %v6442
        %8563 = vmatprep.subr.bf16.mxu0 %v6467
        %8564 = vmatpush1.bf16.msra.mxu0 %v6466
        %8565 = vmatprep.mubr.bf16.mxu0 %v963
        %8566 = vmatmul.mubr.bf16.gmra.mrb[0].mxu0 %v962
        %v8567 = vpop.f32.mrb[0].mxu0
        %v8568 = vadd.f32 %v8495, %v8567
        %v8569 = vpop.f32.mrb[0].mxu0
        %v8570 = vadd.f32 %v8497, %v8569
        %v8571 = vpop.f32.mrb[0].mxu0
        %v8572 = vadd.f32 %v8499, %v8571
        %v8573 = vpop.f32.mrb[0].mxu0
        %v8574 = vadd.f32 %v8501, %v8573
        %8575 = vmatprep.mubr.bf16.mxu0 %v969
        %8576 = vmatmul.mubr.bf16.gmra.mrb[0].mxu0 %v968
        %v8577 = vpop.f32.mrb[0].mxu0
        %v8578 = vadd.f32 %v8505, %v8577
        %v8579 = vpop.f32.mrb[0].mxu0
        %v8580 = vadd.f32 %v8507, %v8579
        %v8581 = vpop.f32.mrb[0].mxu0
        %v8582 = vadd.f32 %v8509, %v8581
        %v8583 = vpop.f32.mrb[0].mxu0
        %v8584 = vadd.f32 %v8511, %v8583
        %8585 = vmatprep.mubr.bf16.mxu0 %v975
        %8586 = vmatmul.mubr.bf16.gmra.mrb[0].mxu0 %v974
        %v8587 = vpop.f32.mrb[0].mxu0
        %v8588 = vadd.f32 %v8515, %v8587
        %v8589 = vpop.f32.mrb[0].mxu0
        %v8590 = vadd.f32 %v8517, %v8589
        %v8591 = vpop.f32.mrb[0].mxu0
        %v8592 = vadd.f32 %v8519, %v8591
        %v8593 = vpop.f32.mrb[0].mxu0
        %v8594 = vadd.f32 %v8521, %v8593
        %8595 = vmatprep.mubr.bf16.mxu0 %v981
        %8596 = vmatmul.mubr.bf16.gmra.mrb[0].mxu0 %v980
        %v8597 = vpop.f32.mrb[0].mxu0
        %v8598 = vadd.f32 %v8525, %v8597
        %v8599 = vpop.f32.mrb[0].mxu0
        %v8600 = vadd.f32 %v8527, %v8599
        %v8601 = vpop.f32.mrb[0].mxu0
        %v8602 = vadd.f32 %v8529, %v8601
        %v8603 = vpop.f32.mrb[0].mxu0
        %v8604 = vadd.f32 %v8531, %v8603
        %8605 = vdwg.mxu0
        %8606 = vmatprep.subr.bf16.mxu0 %v6491
        %8607 = vmatpush1.bf16.msra.mxu0 %v6490
        %8608 = vmatprep.subr.bf16.mxu0 %v6515
        %8609 = vmatpush1.bf16.msra.mxu0 %v6514
        %8610 = vmatprep.subr.bf16.mxu0 %v6539
        %8611 = vmatpush1.bf16.msra.mxu0 %v6538
        %8612 = vmatprep.subr.bf16.mxu0 %v6563
        %8613 = vmatpush1.bf16.msra.mxu0 %v6562
        %8614 = vmatprep.subr.bf16.mxu0 %v6587
        %8615 = vmatpush1.bf16.msra.mxu0 %v6586
        %8616 = vmatprep.subr.bf16.mxu0 %v6611
        %8617 = vmatpush1.bf16.msra.mxu0 %v6610
        %8618 = vmatprep.subr.bf16.mxu0 %v6635
        %8619 = vmatpush1.bf16.msra.mxu0 %v6634
        %8620 = vmatprep.subr.bf16.mxu0 %v6659
        %8621 = vmatpush1.bf16.msra.mxu0 %v6658
        %8622 = vmatprep.subr.bf16.mxu0 %v6683
        %8623 = vmatpush1.bf16.msra.mxu0 %v6682
        %8624 = vmatprep.subr.bf16.mxu0 %v6707
        %8625 = vmatpush1.bf16.msra.mxu0 %v6706
        %8626 = vmatprep.subr.bf16.mxu0 %v6731
        %8627 = vmatpush1.bf16.msra.mxu0 %v6730
        %8628 = vmatprep.subr.bf16.mxu0 %v6755
        %8629 = vmatpush1.bf16.msra.mxu0 %v6754
        %8630 = vmatprep.subr.bf16.mxu0 %v6779
        %8631 = vmatpush1.bf16.msra.mxu0 %v6778
        %8632 = vmatprep.subr.bf16.mxu0 %v6803
        %8633 = vmatpush1.bf16.msra.mxu0 %v6802
        %8634 = vmatprep.subr.bf16.mxu0 %v6827
        %8635 = vmatpush1.bf16.msra.mxu0 %v6826
        %8636 = vmatprep.subr.bf16.mxu0 %v6851
        %8637 = vmatpush1.bf16.msra.mxu0 %v6850
        %8638 = vmatprep.mubr.bf16.mxu0 %v965
        %8639 = vmatmul.mubr.bf16.gmra.mrb[0].mxu0 %v964
        %v8640 = vpop.f32.mrb[0].mxu0
        %v8641 = vadd.f32 %v8568, %v8640
        %v8642 = vpop.f32.mrb[0].mxu0
        %v8643 = vadd.f32 %v8570, %v8642
        %v8644 = vpop.f32.mrb[0].mxu0
        %v8645 = vadd.f32 %v8572, %v8644
        %v8646 = vpop.f32.mrb[0].mxu0
        %v8647 = vadd.f32 %v8574, %v8646
        %8648 = vmatprep.mubr.bf16.mxu0 %v971
        %8649 = vmatmul.mubr.bf16.gmra.mrb[0].mxu0 %v970
        %v8650 = vpop.f32.mrb[0].mxu0
        %v8651 = vadd.f32 %v8578, %v8650
        %v8652 = vpop.f32.mrb[0].mxu0
        %v8653 = vadd.f32 %v8580, %v8652
        %v8654 = vpop.f32.mrb[0].mxu0
        %v8655 = vadd.f32 %v8582, %v8654
        %v8656 = vpop.f32.mrb[0].mxu0
        %v8657 = vadd.f32 %v8584, %v8656
        %8658 = vmatprep.mubr.bf16.mxu0 %v977
        %8659 = vmatmul.mubr.bf16.gmra.mrb[0].mxu0 %v976
        %v8660 = vpop.f32.mrb[0].mxu0
        %v8661 = vadd.f32 %v8588, %v8660
        %v8662 = vpop.f32.mrb[0].mxu0
        %v8663 = vadd.f32 %v8590, %v8662
        %v8664 = vpop.f32.mrb[0].mxu0
        %v8665 = vadd.f32 %v8592, %v8664
        %v8666 = vpop.f32.mrb[0].mxu0
        %v8667 = vadd.f32 %v8594, %v8666
        %8668 = vmatprep.mubr.bf16.mxu0 %v983
        %8669 = vmatmul.mubr.bf16.gmra.mrb[0].mxu0 %v982
        %v8670 = vpop.f32.mrb[0].mxu0
        %v8671 = vadd.f32 %v8598, %v8670
        %v8672 = vpop.f32.mrb[0].mxu0
        %v8673 = vadd.f32 %v8600, %v8672
        %v8674 = vpop.f32.mrb[0].mxu0
        %v8675 = vadd.f32 %v8602, %v8674
        %v8676 = vpop.f32.mrb[0].mxu0
        %v8677 = vadd.f32 %v8604, %v8676
        %8678 = vdwg.mxu0
        %8679 = vmatprep.subr.bf16.mxu0 %v5725
        %8680 = vmatpush1.bf16.msra.mxu0 %v5724
        %8681 = vmatprep.subr.bf16.mxu0 %v5749
        %8682 = vmatpush1.bf16.msra.mxu0 %v5748
        %8683 = vmatprep.subr.bf16.mxu0 %v5773
        %8684 = vmatpush1.bf16.msra.mxu0 %v5772
        %8685 = vmatprep.subr.bf16.mxu0 %v5797
        %8686 = vmatpush1.bf16.msra.mxu0 %v5796
        %8687 = vmatprep.subr.bf16.mxu0 %v5821
        %8688 = vmatpush1.bf16.msra.mxu0 %v5820
        %8689 = vmatprep.subr.bf16.mxu0 %v5845
        %8690 = vmatpush1.bf16.msra.mxu0 %v5844
        %8691 = vmatprep.subr.bf16.mxu0 %v5869
        %8692 = vmatpush1.bf16.msra.mxu0 %v5868
        %8693 = vmatprep.subr.bf16.mxu0 %v5893
        %8694 = vmatpush1.bf16.msra.mxu0 %v5892
        %8695 = vmatprep.subr.bf16.mxu0 %v5917
        %8696 = vmatpush1.bf16.msra.mxu0 %v5916
        %8697 = vmatprep.subr.bf16.mxu0 %v5941
        %8698 = vmatpush1.bf16.msra.mxu0 %v5940
        %8699 = vmatprep.subr.bf16.mxu0 %v5965
        %8700 = vmatpush1.bf16.msra.mxu0 %v5964
        %8701 = vmatprep.subr.bf16.mxu0 %v5989
        %8702 = vmatpush1.bf16.msra.mxu0 %v5988
        %8703 = vmatprep.subr.bf16.mxu0 %v6013
        %8704 = vmatpush1.bf16.msra.mxu0 %v6012
        %8705 = vmatprep.subr.bf16.mxu0 %v6037
        %8706 = vmatpush1.bf16.msra.mxu0 %v6036
        %8707 = vmatprep.subr.bf16.mxu0 %v6061
        %8708 = vmatpush1.bf16.msra.mxu0 %v6060
        %8709 = vmatprep.subr.bf16.mxu0 %v6085
        %8710 = vmatpush1.bf16.msra.mxu0 %v6084
        %8711 = vmatprep.mubr.bf16.mxu0 %v961
        %8712 = vmatmul.mubr.bf16.gmra.mrb[0].mxu0 %v960
        %v8713 = vpop.f32.mrb[0].mxu0
        %v8714 = vadd.f32 %v2169, %v8713
        %v8715 = vpop.f32.mrb[0].mxu0
        %v8716 = vadd.f32 %v2173, %v8715
        %v8717 = vpop.f32.mrb[0].mxu0
        %v8718 = vadd.f32 %v2169, %v8717
        %v8719 = vpop.f32.mrb[0].mxu0
        %v8720 = vadd.f32 %v2173, %v8719
        %8721 = vmatprep.mubr.bf16.mxu0 %v967
        %8722 = vmatmul.mubr.bf16.gmra.mrb[0].mxu0 %v966
        %v8723 = vpop.f32.mrb[0].mxu0
        %v8724 = vadd.f32 %v2169, %v8723
        %v8725 = vpop.f32.mrb[0].mxu0
        %v8726 = vadd.f32 %v2173, %v8725
        %v8727 = vpop.f32.mrb[0].mxu0
        %v8728 = vadd.f32 %v2169, %v8727
        %v8729 = vpop.f32.mrb[0].mxu0
        %v8730 = vadd.f32 %v2173, %v8729
        %8731 = vmatprep.mubr.bf16.mxu0 %v973
        %8732 = vmatmul.mubr.bf16.gmra.mrb[0].mxu0 %v972
        %v8733 = vpop.f32.mrb[0].mxu0
        %v8734 = vadd.f32 %v2169, %v8733
        %v8735 = vpop.f32.mrb[0].mxu0
        %v8736 = vadd.f32 %v2173, %v8735
        %v8737 = vpop.f32.mrb[0].mxu0
        %v8738 = vadd.f32 %v2169, %v8737
        %v8739 = vpop.f32.mrb[0].mxu0
        %v8740 = vadd.f32 %v2173, %v8739
        %8741 = vmatprep.mubr.bf16.mxu0 %v979
        %8742 = vmatmul.mubr.bf16.gmra.mrb[0].mxu0 %v978
        %v8743 = vpop.f32.mrb[0].mxu0
        %v8744 = vadd.f32 %v2169, %v8743
        %v8745 = vpop.f32.mrb[0].mxu0
        %v8746 = vadd.f32 %v2173, %v8745
        %v8747 = vpop.f32.mrb[0].mxu0
        %v8748 = vadd.f32 %v2169, %v8747
        %v8749 = vpop.f32.mrb[0].mxu0
        %v8750 = vadd.f32 %v2173, %v8749
        %8751 = vdwg.mxu0
        %8752 = vmatprep.subr.bf16.mxu0 %v6109
        %8753 = vmatpush1.bf16.msra.mxu0 %v6108
        %8754 = vmatprep.subr.bf16.mxu0 %v6133
        %8755 = vmatpush1.bf16.msra.mxu0 %v6132
        %8756 = vmatprep.subr.bf16.mxu0 %v6157
        %8757 = vmatpush1.bf16.msra.mxu0 %v6156
        %8758 = vmatprep.subr.bf16.mxu0 %v6181
        %8759 = vmatpush1.bf16.msra.mxu0 %v6180
        %8760 = vmatprep.subr.bf16.mxu0 %v6205
        %8761 = vmatpush1.bf16.msra.mxu0 %v6204
        %8762 = vmatprep.subr.bf16.mxu0 %v6229
        %8763 = vmatpush1.bf16.msra.mxu0 %v6228
        %8764 = vmatprep.subr.bf16.mxu0 %v6253
        %8765 = vmatpush1.bf16.msra.mxu0 %v6252
        %8766 = vmatprep.subr.bf16.mxu0 %v6277
        %8767 = vmatpush1.bf16.msra.mxu0 %v6276
        %8768 = vmatprep.subr.bf16.mxu0 %v6301
        %8769 = vmatpush1.bf16.msra.mxu0 %v6300
        %8770 = vmatprep.subr.bf16.mxu0 %v6325
        %8771 = vmatpush1.bf16.msra.mxu0 %v6324
        %8772 = vmatprep.subr.bf16.mxu0 %v6349
        %8773 = vmatpush1.bf16.msra.mxu0 %v6348
        %8774 = vmatprep.subr.bf16.mxu0 %v6373
        %8775 = vmatpush1.bf16.msra.mxu0 %v6372
        %8776 = vmatprep.subr.bf16.mxu0 %v6397
        %8777 = vmatpush1.bf16.msra.mxu0 %v6396
        %8778 = vmatprep.subr.bf16.mxu0 %v6421
        %8779 = vmatpush1.bf16.msra.mxu0 %v6420
        %8780 = vmatprep.subr.bf16.mxu0 %v6445
        %8781 = vmatpush1.bf16.msra.mxu0 %v6444
        %8782 = vmatprep.subr.bf16.mxu0 %v6469
        %8783 = vmatpush1.bf16.msra.mxu0 %v6468
        %8784 = vmatprep.mubr.bf16.mxu0 %v963
        %8785 = vmatmul.mubr.bf16.gmra.mrb[0].mxu0 %v962
        %v8786 = vpop.f32.mrb[0].mxu0
        %v8787 = vadd.f32 %v8714, %v8786
        %v8788 = vpop.f32.mrb[0].mxu0
        %v8789 = vadd.f32 %v8716, %v8788
        %v8790 = vpop.f32.mrb[0].mxu0
        %v8791 = vadd.f32 %v8718, %v8790
        %v8792 = vpop.f32.mrb[0].mxu0
        %v8793 = vadd.f32 %v8720, %v8792
        %8794 = vmatprep.mubr.bf16.mxu0 %v969
        %8795 = vmatmul.mubr.bf16.gmra.mrb[0].mxu0 %v968
        %v8796 = vpop.f32.mrb[0].mxu0
        %v8797 = vadd.f32 %v8724, %v8796
        %v8798 = vpop.f32.mrb[0].mxu0
        %v8799 = vadd.f32 %v8726, %v8798
        %v8800 = vpop.f32.mrb[0].mxu0
        %v8801 = vadd.f32 %v8728, %v8800
        %v8802 = vpop.f32.mrb[0].mxu0
        %v8803 = vadd.f32 %v8730, %v8802
        %8804 = vmatprep.mubr.bf16.mxu0 %v975
        %8805 = vmatmul.mubr.bf16.gmra.mrb[0].mxu0 %v974
        %v8806 = vpop.f32.mrb[0].mxu0
        %v8807 = vadd.f32 %v8734, %v8806
        %v8808 = vpop.f32.mrb[0].mxu0
        %v8809 = vadd.f32 %v8736, %v8808
        %v8810 = vpop.f32.mrb[0].mxu0
        %v8811 = vadd.f32 %v8738, %v8810
        %v8812 = vpop.f32.mrb[0].mxu0
        %v8813 = vadd.f32 %v8740, %v8812
        %8814 = vmatprep.mubr.bf16.mxu0 %v981
        %8815 = vmatmul.mubr.bf16.gmra.mrb[0].mxu0 %v980
        %v8816 = vpop.f32.mrb[0].mxu0
        %v8817 = vadd.f32 %v8744, %v8816
        %v8818 = vpop.f32.mrb[0].mxu0
        %v8819 = vadd.f32 %v8746, %v8818
        %v8820 = vpop.f32.mrb[0].mxu0
        %v8821 = vadd.f32 %v8748, %v8820
        %v8822 = vpop.f32.mrb[0].mxu0
        %v8823 = vadd.f32 %v8750, %v8822
        %8824 = vdwg.mxu0
        %8825 = vmatprep.subr.bf16.mxu0 %v6493
        %8826 = vmatpush1.bf16.msra.mxu0 %v6492
        %8827 = vmatprep.subr.bf16.mxu0 %v6517
        %8828 = vmatpush1.bf16.msra.mxu0 %v6516
        %8829 = vmatprep.subr.bf16.mxu0 %v6541
        %8830 = vmatpush1.bf16.msra.mxu0 %v6540
        %8831 = vmatprep.subr.bf16.mxu0 %v6565
        %8832 = vmatpush1.bf16.msra.mxu0 %v6564
        %8833 = vmatprep.subr.bf16.mxu0 %v6589
        %8834 = vmatpush1.bf16.msra.mxu0 %v6588
        %8835 = vmatprep.subr.bf16.mxu0 %v6613
        %8836 = vmatpush1.bf16.msra.mxu0 %v6612
        %8837 = vmatprep.subr.bf16.mxu0 %v6637
        %8838 = vmatpush1.bf16.msra.mxu0 %v6636
        %8839 = vmatprep.subr.bf16.mxu0 %v6661
        %8840 = vmatpush1.bf16.msra.mxu0 %v6660
        %8841 = vmatprep.subr.bf16.mxu0 %v6685
        %8842 = vmatpush1.bf16.msra.mxu0 %v6684
        %8843 = vmatprep.subr.bf16.mxu0 %v6709
        %8844 = vmatpush1.bf16.msra.mxu0 %v6708
        %8845 = vmatprep.subr.bf16.mxu0 %v6733
        %8846 = vmatpush1.bf16.msra.mxu0 %v6732
        %8847 = vmatprep.subr.bf16.mxu0 %v6757
        %8848 = vmatpush1.bf16.msra.mxu0 %v6756
        %8849 = vmatprep.subr.bf16.mxu0 %v6781
        %8850 = vmatpush1.bf16.msra.mxu0 %v6780
        %8851 = vmatprep.subr.bf16.mxu0 %v6805
        %8852 = vmatpush1.bf16.msra.mxu0 %v6804
        %8853 = vmatprep.subr.bf16.mxu0 %v6829
        %8854 = vmatpush1.bf16.msra.mxu0 %v6828
        %8855 = vmatprep.subr.bf16.mxu0 %v6853
        %8856 = vmatpush1.bf16.msra.mxu0 %v6852
        %8857 = vmatprep.mubr.bf16.mxu0 %v965
        %8858 = vmatmul.mubr.bf16.gmra.mrb[0].mxu0 %v964
        %v8859 = vpop.f32.mrb[0].mxu0
        %v8860 = vadd.f32 %v8787, %v8859
        %v8861 = vpop.f32.mrb[0].mxu0
        %v8862 = vadd.f32 %v8789, %v8861
        %v8863 = vpop.f32.mrb[0].mxu0
        %v8864 = vadd.f32 %v8791, %v8863
        %v8865 = vpop.f32.mrb[0].mxu0
        %v8866 = vadd.f32 %v8793, %v8865
        %8867 = vmatprep.mubr.bf16.mxu0 %v971
        %8868 = vmatmul.mubr.bf16.gmra.mrb[0].mxu0 %v970
        %v8869 = vpop.f32.mrb[0].mxu0
        %v8870 = vadd.f32 %v8797, %v8869
        %v8871 = vpop.f32.mrb[0].mxu0
        %v8872 = vadd.f32 %v8799, %v8871
        %v8873 = vpop.f32.mrb[0].mxu0
        %v8874 = vadd.f32 %v8801, %v8873
        %v8875 = vpop.f32.mrb[0].mxu0
        %v8876 = vadd.f32 %v8803, %v8875
        %8877 = vmatprep.mubr.bf16.mxu0 %v977
        %8878 = vmatmul.mubr.bf16.gmra.mrb[0].mxu0 %v976
        %v8879 = vpop.f32.mrb[0].mxu0
        %v8880 = vadd.f32 %v8807, %v8879
        %v8881 = vpop.f32.mrb[0].mxu0
        %v8882 = vadd.f32 %v8809, %v8881
        %v8883 = vpop.f32.mrb[0].mxu0
        %v8884 = vadd.f32 %v8811, %v8883
        %v8885 = vpop.f32.mrb[0].mxu0
        %v8886 = vadd.f32 %v8813, %v8885
        %8887 = vmatprep.mubr.bf16.mxu0 %v983
        %8888 = vmatmul.mubr.bf16.gmra.mrb[0].mxu0 %v982
        %v8889 = vpop.f32.mrb[0].mxu0
        %v8890 = vadd.f32 %v8817, %v8889
        %v8891 = vpop.f32.mrb[0].mxu0
        %v8892 = vadd.f32 %v8819, %v8891
        %v8893 = vpop.f32.mrb[0].mxu0
        %v8894 = vadd.f32 %v8821, %v8893
        %v8895 = vpop.f32.mrb[0].mxu0
        %v8896 = vadd.f32 %v8823, %v8895
        %8897 = vdwg.mxu0
        %8898 = vmatprep.subr.bf16.mxu0 %v5727
        %8899 = vmatpush1.bf16.msra.mxu0 %v5726
        %8900 = vmatprep.subr.bf16.mxu0 %v5751
        %8901 = vmatpush1.bf16.msra.mxu0 %v5750
        %8902 = vmatprep.subr.bf16.mxu0 %v5775
        %8903 = vmatpush1.bf16.msra.mxu0 %v5774
        %8904 = vmatprep.subr.bf16.mxu0 %v5799
        %8905 = vmatpush1.bf16.msra.mxu0 %v5798
        %8906 = vmatprep.subr.bf16.mxu0 %v5823
        %8907 = vmatpush1.bf16.msra.mxu0 %v5822
        %8908 = vmatprep.subr.bf16.mxu0 %v5847
        %8909 = vmatpush1.bf16.msra.mxu0 %v5846
        %8910 = vmatprep.subr.bf16.mxu0 %v5871
        %8911 = vmatpush1.bf16.msra.mxu0 %v5870
        %8912 = vmatprep.subr.bf16.mxu0 %v5895
        %8913 = vmatpush1.bf16.msra.mxu0 %v5894
        %8914 = vmatprep.subr.bf16.mxu0 %v5919
        %8915 = vmatpush1.bf16.msra.mxu0 %v5918
        %8916 = vmatprep.subr.bf16.mxu0 %v5943
        %8917 = vmatpush1.bf16.msra.mxu0 %v5942
        %8918 = vmatprep.subr.bf16.mxu0 %v5967
        %8919 = vmatpush1.bf16.msra.mxu0 %v5966
        %8920 = vmatprep.subr.bf16.mxu0 %v5991
        %8921 = vmatpush1.bf16.msra.mxu0 %v5990
        %8922 = vmatprep.subr.bf16.mxu0 %v6015
        %8923 = vmatpush1.bf16.msra.mxu0 %v6014
        %8924 = vmatprep.subr.bf16.mxu0 %v6039
        %8925 = vmatpush1.bf16.msra.mxu0 %v6038
        %8926 = vmatprep.subr.bf16.mxu0 %v6063
        %8927 = vmatpush1.bf16.msra.mxu0 %v6062
        %8928 = vmatprep.subr.bf16.mxu0 %v6087
        %8929 = vmatpush1.bf16.msra.mxu0 %v6086
        %8930 = vmatprep.mubr.bf16.mxu0 %v961
        %8931 = vmatmul.mubr.bf16.gmra.mrb[0].mxu0 %v960
        %v8932 = vpop.f32.mrb[0].mxu0
        %v8933 = vadd.f32 %v2177, %v8932
        %v8934 = vpop.f32.mrb[0].mxu0
        %v8935 = vadd.f32 %v2181, %v8934
        %v8936 = vpop.f32.mrb[0].mxu0
        %v8937 = vadd.f32 %v2177, %v8936
        %v8938 = vpop.f32.mrb[0].mxu0
        %v8939 = vadd.f32 %v2181, %v8938
        %8940 = vmatprep.mubr.bf16.mxu0 %v967
        %8941 = vmatmul.mubr.bf16.gmra.mrb[0].mxu0 %v966
        %v8942 = vpop.f32.mrb[0].mxu0
        %v8943 = vadd.f32 %v2177, %v8942
        %v8944 = vpop.f32.mrb[0].mxu0
        %v8945 = vadd.f32 %v2181, %v8944
        %v8946 = vpop.f32.mrb[0].mxu0
        %v8947 = vadd.f32 %v2177, %v8946
        %v8948 = vpop.f32.mrb[0].mxu0
        %v8949 = vadd.f32 %v2181, %v8948
        %8950 = vmatprep.mubr.bf16.mxu0 %v973
        %8951 = vmatmul.mubr.bf16.gmra.mrb[0].mxu0 %v972
        %v8952 = vpop.f32.mrb[0].mxu0
        %v8953 = vadd.f32 %v2177, %v8952
        %v8954 = vpop.f32.mrb[0].mxu0
        %v8955 = vadd.f32 %v2181, %v8954
        %v8956 = vpop.f32.mrb[0].mxu0
        %v8957 = vadd.f32 %v2177, %v8956
        %v8958 = vpop.f32.mrb[0].mxu0
        %v8959 = vadd.f32 %v2181, %v8958
        %8960 = vmatprep.mubr.bf16.mxu0 %v979
        %8961 = vmatmul.mubr.bf16.gmra.mrb[0].mxu0 %v978
        %v8962 = vpop.f32.mrb[0].mxu0
        %v8963 = vadd.f32 %v2177, %v8962
        %v8964 = vpop.f32.mrb[0].mxu0
        %v8965 = vadd.f32 %v2181, %v8964
        %v8966 = vpop.f32.mrb[0].mxu0
        %v8967 = vadd.f32 %v2177, %v8966
        %v8968 = vpop.f32.mrb[0].mxu0
        %v8969 = vadd.f32 %v2181, %v8968
        %8970 = vdwg.mxu0
        %8971 = vmatprep.subr.bf16.mxu0 %v6111
        %8972 = vmatpush1.bf16.msra.mxu0 %v6110
        %8973 = vmatprep.subr.bf16.mxu0 %v6135
        %8974 = vmatpush1.bf16.msra.mxu0 %v6134
        %8975 = vmatprep.subr.bf16.mxu0 %v6159
        %8976 = vmatpush1.bf16.msra.mxu0 %v6158
        %8977 = vmatprep.subr.bf16.mxu0 %v6183
        %8978 = vmatpush1.bf16.msra.mxu0 %v6182
        %8979 = vmatprep.subr.bf16.mxu0 %v6207
        %8980 = vmatpush1.bf16.msra.mxu0 %v6206
        %8981 = vmatprep.subr.bf16.mxu0 %v6231
        %8982 = vmatpush1.bf16.msra.mxu0 %v6230
        %8983 = vmatprep.subr.bf16.mxu0 %v6255
        %8984 = vmatpush1.bf16.msra.mxu0 %v6254
        %8985 = vmatprep.subr.bf16.mxu0 %v6279
        %8986 = vmatpush1.bf16.msra.mxu0 %v6278
        %8987 = vmatprep.subr.bf16.mxu0 %v6303
        %8988 = vmatpush1.bf16.msra.mxu0 %v6302
        %8989 = vmatprep.subr.bf16.mxu0 %v6327
        %8990 = vmatpush1.bf16.msra.mxu0 %v6326
        %8991 = vmatprep.subr.bf16.mxu0 %v6351
        %8992 = vmatpush1.bf16.msra.mxu0 %v6350
        %8993 = vmatprep.subr.bf16.mxu0 %v6375
        %8994 = vmatpush1.bf16.msra.mxu0 %v6374
        %8995 = vmatprep.subr.bf16.mxu0 %v6399
        %8996 = vmatpush1.bf16.msra.mxu0 %v6398
        %8997 = vmatprep.subr.bf16.mxu0 %v6423
        %8998 = vmatpush1.bf16.msra.mxu0 %v6422
        %8999 = vmatprep.subr.bf16.mxu0 %v6447
        %9000 = vmatpush1.bf16.msra.mxu0 %v6446
        %9001 = vmatprep.subr.bf16.mxu0 %v6471
        %9002 = vmatpush1.bf16.msra.mxu0 %v6470
        %9003 = vmatprep.mubr.bf16.mxu0 %v963
        %9004 = vmatmul.mubr.bf16.gmra.mrb[0].mxu0 %v962
        %v9005 = vpop.f32.mrb[0].mxu0
        %v9006 = vadd.f32 %v8933, %v9005
        %v9007 = vpop.f32.mrb[0].mxu0
        %v9008 = vadd.f32 %v8935, %v9007
        %v9009 = vpop.f32.mrb[0].mxu0
        %v9010 = vadd.f32 %v8937, %v9009
        %v9011 = vpop.f32.mrb[0].mxu0
        %v9012 = vadd.f32 %v8939, %v9011
        %9013 = vmatprep.mubr.bf16.mxu0 %v969
        %9014 = vmatmul.mubr.bf16.gmra.mrb[0].mxu0 %v968
        %v9015 = vpop.f32.mrb[0].mxu0
        %v9016 = vadd.f32 %v8943, %v9015
        %v9017 = vpop.f32.mrb[0].mxu0
        %v9018 = vadd.f32 %v8945, %v9017
        %v9019 = vpop.f32.mrb[0].mxu0
        %v9020 = vadd.f32 %v8947, %v9019
        %v9021 = vpop.f32.mrb[0].mxu0
        %v9022 = vadd.f32 %v8949, %v9021
        %9023 = vmatprep.mubr.bf16.mxu0 %v975
        %9024 = vmatmul.mubr.bf16.gmra.mrb[0].mxu0 %v974
        %v9025 = vpop.f32.mrb[0].mxu0
        %v9026 = vadd.f32 %v8953, %v9025
        %v9027 = vpop.f32.mrb[0].mxu0
        %v9028 = vadd.f32 %v8955, %v9027
        %v9029 = vpop.f32.mrb[0].mxu0
        %v9030 = vadd.f32 %v8957, %v9029
        %v9031 = vpop.f32.mrb[0].mxu0
        %v9032 = vadd.f32 %v8959, %v9031
        %9033 = vmatprep.mubr.bf16.mxu0 %v981
        %9034 = vmatmul.mubr.bf16.gmra.mrb[0].mxu0 %v980
        %v9035 = vpop.f32.mrb[0].mxu0
        %v9036 = vadd.f32 %v8963, %v9035
        %v9037 = vpop.f32.mrb[0].mxu0
        %v9038 = vadd.f32 %v8965, %v9037
        %v9039 = vpop.f32.mrb[0].mxu0
        %v9040 = vadd.f32 %v8967, %v9039
        %v9041 = vpop.f32.mrb[0].mxu0
        %v9042 = vadd.f32 %v8969, %v9041
        %9043 = vdwg.mxu0
        %9044 = vmatprep.subr.bf16.mxu0 %v6495
        %9045 = vmatpush1.bf16.msra.mxu0 %v6494
        %9046 = vmatprep.subr.bf16.mxu0 %v6519
        %9047 = vmatpush1.bf16.msra.mxu0 %v6518
        %9048 = vmatprep.subr.bf16.mxu0 %v6543
        %9049 = vmatpush1.bf16.msra.mxu0 %v6542
        %9050 = vmatprep.subr.bf16.mxu0 %v6567
        %9051 = vmatpush1.bf16.msra.mxu0 %v6566
        %9052 = vmatprep.subr.bf16.mxu0 %v6591
        %9053 = vmatpush1.bf16.msra.mxu0 %v6590
        %9054 = vmatprep.subr.bf16.mxu0 %v6615
        %9055 = vmatpush1.bf16.msra.mxu0 %v6614
        %9056 = vmatprep.subr.bf16.mxu0 %v6639
        %9057 = vmatpush1.bf16.msra.mxu0 %v6638
        %9058 = vmatprep.subr.bf16.mxu0 %v6663
        %9059 = vmatpush1.bf16.msra.mxu0 %v6662
        %9060 = vmatprep.subr.bf16.mxu0 %v6687
        %9061 = vmatpush1.bf16.msra.mxu0 %v6686
        %9062 = vmatprep.subr.bf16.mxu0 %v6711
        %9063 = vmatpush1.bf16.msra.mxu0 %v6710
        %9064 = vmatprep.subr.bf16.mxu0 %v6735
        %9065 = vmatpush1.bf16.msra.mxu0 %v6734
        %9066 = vmatprep.subr.bf16.mxu0 %v6759
        %9067 = vmatpush1.bf16.msra.mxu0 %v6758
        %9068 = vmatprep.subr.bf16.mxu0 %v6783
        %9069 = vmatpush1.bf16.msra.mxu0 %v6782
        %9070 = vmatprep.subr.bf16.mxu0 %v6807
        %9071 = vmatpush1.bf16.msra.mxu0 %v6806
        %9072 = vmatprep.subr.bf16.mxu0 %v6831
        %9073 = vmatpush1.bf16.msra.mxu0 %v6830
        %9074 = vmatprep.subr.bf16.mxu0 %v6855
        %9075 = vmatpush1.bf16.msra.mxu0 %v6854
        %9076 = vmatprep.mubr.bf16.mxu0 %v965
        %9077 = vmatmul.mubr.bf16.gmra.mrb[0].mxu0 %v964
        %v9078 = vpop.f32.mrb[0].mxu0
        %v9079 = vadd.f32 %v9006, %v9078
        %v9080 = vpop.f32.mrb[0].mxu0
        %v9081 = vadd.f32 %v9008, %v9080
        %v9082 = vpop.f32.mrb[0].mxu0
        %v9083 = vadd.f32 %v9010, %v9082
        %v9084 = vpop.f32.mrb[0].mxu0
        %v9085 = vadd.f32 %v9012, %v9084
        %9086 = vmatprep.mubr.bf16.mxu0 %v971
        %9087 = vmatmul.mubr.bf16.gmra.mrb[0].mxu0 %v970
        %v9088 = vpop.f32.mrb[0].mxu0
        %v9089 = vadd.f32 %v9016, %v9088
        %v9090 = vpop.f32.mrb[0].mxu0
        %v9091 = vadd.f32 %v9018, %v9090
        %v9092 = vpop.f32.mrb[0].mxu0
        %v9093 = vadd.f32 %v9020, %v9092
        %v9094 = vpop.f32.mrb[0].mxu0
        %v9095 = vadd.f32 %v9022, %v9094
        %9096 = vmatprep.mubr.bf16.mxu0 %v977
        %9097 = vmatmul.mubr.bf16.gmra.mrb[0].mxu0 %v976
        %v9098 = vpop.f32.mrb[0].mxu0
        %v9099 = vadd.f32 %v9026, %v9098
        %v9100 = vpop.f32.mrb[0].mxu0
        %v9101 = vadd.f32 %v9028, %v9100
        %v9102 = vpop.f32.mrb[0].mxu0
        %v9103 = vadd.f32 %v9030, %v9102
        %v9104 = vpop.f32.mrb[0].mxu0
        %v9105 = vadd.f32 %v9032, %v9104
        %9106 = vmatprep.mubr.bf16.mxu0 %v983
        %9107 = vmatmul.mubr.bf16.gmra.mrb[0].mxu0 %v982
        %v9108 = vpop.f32.mrb[0].mxu0
        %v9109 = vadd.f32 %v9036, %v9108
        %v9110 = vpop.f32.mrb[0].mxu0
        %v9111 = vadd.f32 %v9038, %v9110
        %v9112 = vpop.f32.mrb[0].mxu0
        %v9113 = vadd.f32 %v9040, %v9112
        %v9114 = vpop.f32.mrb[0].mxu0
        %v9115 = vadd.f32 %v9042, %v9114
        %9116 = vdwg.mxu0
        %9117 = vmatprep.subr.bf16.mxu0 %v5729
        %9118 = vmatpush1.bf16.msra.mxu0 %v5728
        %9119 = vmatprep.subr.bf16.mxu0 %v5753
        %9120 = vmatpush1.bf16.msra.mxu0 %v5752
        %9121 = vmatprep.subr.bf16.mxu0 %v5777
        %9122 = vmatpush1.bf16.msra.mxu0 %v5776
        %9123 = vmatprep.subr.bf16.mxu0 %v5801
        %9124 = vmatpush1.bf16.msra.mxu0 %v5800
        %9125 = vmatprep.subr.bf16.mxu0 %v5825
        %9126 = vmatpush1.bf16.msra.mxu0 %v5824
        %9127 = vmatprep.subr.bf16.mxu0 %v5849
        %9128 = vmatpush1.bf16.msra.mxu0 %v5848
        %9129 = vmatprep.subr.bf16.mxu0 %v5873
        %9130 = vmatpush1.bf16.msra.mxu0 %v5872
        %9131 = vmatprep.subr.bf16.mxu0 %v5897
        %9132 = vmatpush1.bf16.msra.mxu0 %v5896
        %9133 = vmatprep.subr.bf16.mxu0 %v5921
        %9134 = vmatpush1.bf16.msra.mxu0 %v5920
        %9135 = vmatprep.subr.bf16.mxu0 %v5945
        %9136 = vmatpush1.bf16.msra.mxu0 %v5944
        %9137 = vmatprep.subr.bf16.mxu0 %v5969
        %9138 = vmatpush1.bf16.msra.mxu0 %v5968
        %9139 = vmatprep.subr.bf16.mxu0 %v5993
        %9140 = vmatpush1.bf16.msra.mxu0 %v5992
        %9141 = vmatprep.subr.bf16.mxu0 %v6017
        %9142 = vmatpush1.bf16.msra.mxu0 %v6016
        %9143 = vmatprep.subr.bf16.mxu0 %v6041
        %9144 = vmatpush1.bf16.msra.mxu0 %v6040
        %9145 = vmatprep.subr.bf16.mxu0 %v6065
        %9146 = vmatpush1.bf16.msra.mxu0 %v6064
        %9147 = vmatprep.subr.bf16.mxu0 %v6089
        %9148 = vmatpush1.bf16.msra.mxu0 %v6088
        %9149 = vmatprep.mubr.bf16.mxu0 %v961
        %9150 = vmatmul.mubr.bf16.gmra.mrb[0].mxu0 %v960
        %v9151 = vpop.f32.mrb[0].mxu0
        %v9152 = vadd.f32 %v2185, %v9151
        %v9153 = vpop.f32.mrb[0].mxu0
        %v9154 = vadd.f32 %v2189, %v9153
        %v9155 = vpop.f32.mrb[0].mxu0
        %v9156 = vadd.f32 %v2185, %v9155
        %v9157 = vpop.f32.mrb[0].mxu0
        %v9158 = vadd.f32 %v2189, %v9157
        %9159 = vmatprep.mubr.bf16.mxu0 %v967
        %9160 = vmatmul.mubr.bf16.gmra.mrb[0].mxu0 %v966
        %v9161 = vpop.f32.mrb[0].mxu0
        %v9162 = vadd.f32 %v2185, %v9161
        %v9163 = vpop.f32.mrb[0].mxu0
        %v9164 = vadd.f32 %v2189, %v9163
        %v9165 = vpop.f32.mrb[0].mxu0
        %v9166 = vadd.f32 %v2185, %v9165
        %v9167 = vpop.f32.mrb[0].mxu0
        %v9168 = vadd.f32 %v2189, %v9167
        %9169 = vmatprep.mubr.bf16.mxu0 %v973
        %9170 = vmatmul.mubr.bf16.gmra.mrb[0].mxu0 %v972
        %v9171 = vpop.f32.mrb[0].mxu0
        %v9172 = vadd.f32 %v2185, %v9171
        %v9173 = vpop.f32.mrb[0].mxu0
        %v9174 = vadd.f32 %v2189, %v9173
        %v9175 = vpop.f32.mrb[0].mxu0
        %v9176 = vadd.f32 %v2185, %v9175
        %v9177 = vpop.f32.mrb[0].mxu0
        %v9178 = vadd.f32 %v2189, %v9177
        %9179 = vmatprep.mubr.bf16.mxu0 %v979
        %9180 = vmatmul.mubr.bf16.gmra.mrb[0].mxu0 %v978
        %v9181 = vpop.f32.mrb[0].mxu0
        %v9182 = vadd.f32 %v2185, %v9181
        %v9183 = vpop.f32.mrb[0].mxu0
        %v9184 = vadd.f32 %v2189, %v9183
        %v9185 = vpop.f32.mrb[0].mxu0
        %v9186 = vadd.f32 %v2185, %v9185
        %v9187 = vpop.f32.mrb[0].mxu0
        %v9188 = vadd.f32 %v2189, %v9187
        %9189 = vdwg.mxu0
        %9190 = vmatprep.subr.bf16.mxu0 %v6113
        %9191 = vmatpush1.bf16.msra.mxu0 %v6112
        %9192 = vmatprep.subr.bf16.mxu0 %v6137
        %9193 = vmatpush1.bf16.msra.mxu0 %v6136
        %9194 = vmatprep.subr.bf16.mxu0 %v6161
        %9195 = vmatpush1.bf16.msra.mxu0 %v6160
        %9196 = vmatprep.subr.bf16.mxu0 %v6185
        %9197 = vmatpush1.bf16.msra.mxu0 %v6184
        %9198 = vmatprep.subr.bf16.mxu0 %v6209
        %9199 = vmatpush1.bf16.msra.mxu0 %v6208
        %9200 = vmatprep.subr.bf16.mxu0 %v6233
        %9201 = vmatpush1.bf16.msra.mxu0 %v6232
        %9202 = vmatprep.subr.bf16.mxu0 %v6257
        %9203 = vmatpush1.bf16.msra.mxu0 %v6256
        %9204 = vmatprep.subr.bf16.mxu0 %v6281
        %9205 = vmatpush1.bf16.msra.mxu0 %v6280
        %9206 = vmatprep.subr.bf16.mxu0 %v6305
        %9207 = vmatpush1.bf16.msra.mxu0 %v6304
        %9208 = vmatprep.subr.bf16.mxu0 %v6329
        %9209 = vmatpush1.bf16.msra.mxu0 %v6328
        %9210 = vmatprep.subr.bf16.mxu0 %v6353
        %9211 = vmatpush1.bf16.msra.mxu0 %v6352
        %9212 = vmatprep.subr.bf16.mxu0 %v6377
        %9213 = vmatpush1.bf16.msra.mxu0 %v6376
        %9214 = vmatprep.subr.bf16.mxu0 %v6401
        %9215 = vmatpush1.bf16.msra.mxu0 %v6400
        %9216 = vmatprep.subr.bf16.mxu0 %v6425
        %9217 = vmatpush1.bf16.msra.mxu0 %v6424
        %9218 = vmatprep.subr.bf16.mxu0 %v6449
        %9219 = vmatpush1.bf16.msra.mxu0 %v6448
        %9220 = vmatprep.subr.bf16.mxu0 %v6473
        %9221 = vmatpush1.bf16.msra.mxu0 %v6472
        %9222 = vmatprep.mubr.bf16.mxu0 %v963
        %9223 = vmatmul.mubr.bf16.gmra.mrb[0].mxu0 %v962
        %v9224 = vpop.f32.mrb[0].mxu0
        %v9225 = vadd.f32 %v9152, %v9224
        %v9226 = vpop.f32.mrb[0].mxu0
        %v9227 = vadd.f32 %v9154, %v9226
        %v9228 = vpop.f32.mrb[0].mxu0
        %v9229 = vadd.f32 %v9156, %v9228
        %v9230 = vpop.f32.mrb[0].mxu0
        %v9231 = vadd.f32 %v9158, %v9230
        %9232 = vmatprep.mubr.bf16.mxu0 %v969
        %9233 = vmatmul.mubr.bf16.gmra.mrb[0].mxu0 %v968
        %v9234 = vpop.f32.mrb[0].mxu0
        %v9235 = vadd.f32 %v9162, %v9234
        %v9236 = vpop.f32.mrb[0].mxu0
        %v9237 = vadd.f32 %v9164, %v9236
        %v9238 = vpop.f32.mrb[0].mxu0
        %v9239 = vadd.f32 %v9166, %v9238
        %v9240 = vpop.f32.mrb[0].mxu0
        %v9241 = vadd.f32 %v9168, %v9240
        %9242 = vmatprep.mubr.bf16.mxu0 %v975
        %9243 = vmatmul.mubr.bf16.gmra.mrb[0].mxu0 %v974
        %v9244 = vpop.f32.mrb[0].mxu0
        %v9245 = vadd.f32 %v9172, %v9244
        %v9246 = vpop.f32.mrb[0].mxu0
        %v9247 = vadd.f32 %v9174, %v9246
        %v9248 = vpop.f32.mrb[0].mxu0
        %v9249 = vadd.f32 %v9176, %v9248
        %v9250 = vpop.f32.mrb[0].mxu0
        %v9251 = vadd.f32 %v9178, %v9250
        %9252 = vmatprep.mubr.bf16.mxu0 %v981
        %9253 = vmatmul.mubr.bf16.gmra.mrb[0].mxu0 %v980
        %v9254 = vpop.f32.mrb[0].mxu0
        %v9255 = vadd.f32 %v9182, %v9254
        %v9256 = vpop.f32.mrb[0].mxu0
        %v9257 = vadd.f32 %v9184, %v9256
        %v9258 = vpop.f32.mrb[0].mxu0
        %v9259 = vadd.f32 %v9186, %v9258
        %v9260 = vpop.f32.mrb[0].mxu0
        %v9261 = vadd.f32 %v9188, %v9260
        %9262 = vdwg.mxu0
        %9263 = vmatprep.subr.bf16.mxu0 %v6497
        %9264 = vmatpush1.bf16.msra.mxu0 %v6496
        %9265 = vmatprep.subr.bf16.mxu0 %v6521
        %9266 = vmatpush1.bf16.msra.mxu0 %v6520
        %9267 = vmatprep.subr.bf16.mxu0 %v6545
        %9268 = vmatpush1.bf16.msra.mxu0 %v6544
        %9269 = vmatprep.subr.bf16.mxu0 %v6569
        %9270 = vmatpush1.bf16.msra.mxu0 %v6568
        %9271 = vmatprep.subr.bf16.mxu0 %v6593
        %9272 = vmatpush1.bf16.msra.mxu0 %v6592
        %9273 = vmatprep.subr.bf16.mxu0 %v6617
        %9274 = vmatpush1.bf16.msra.mxu0 %v6616
        %9275 = vmatprep.subr.bf16.mxu0 %v6641
        %9276 = vmatpush1.bf16.msra.mxu0 %v6640
        %9277 = vmatprep.subr.bf16.mxu0 %v6665
        %9278 = vmatpush1.bf16.msra.mxu0 %v6664
        %9279 = vmatprep.subr.bf16.mxu0 %v6689
        %9280 = vmatpush1.bf16.msra.mxu0 %v6688
        %9281 = vmatprep.subr.bf16.mxu0 %v6713
        %9282 = vmatpush1.bf16.msra.mxu0 %v6712
        %9283 = vmatprep.subr.bf16.mxu0 %v6737
        %9284 = vmatpush1.bf16.msra.mxu0 %v6736
        %9285 = vmatprep.subr.bf16.mxu0 %v6761
        %9286 = vmatpush1.bf16.msra.mxu0 %v6760
        %9287 = vmatprep.subr.bf16.mxu0 %v6785
        %9288 = vmatpush1.bf16.msra.mxu0 %v6784
        %9289 = vmatprep.subr.bf16.mxu0 %v6809
        %9290 = vmatpush1.bf16.msra.mxu0 %v6808
        %9291 = vmatprep.subr.bf16.mxu0 %v6833
        %9292 = vmatpush1.bf16.msra.mxu0 %v6832
        %9293 = vmatprep.subr.bf16.mxu0 %v6857
        %9294 = vmatpush1.bf16.msra.mxu0 %v6856
        %9295 = vmatprep.mubr.bf16.mxu0 %v965
        %9296 = vmatmul.mubr.bf16.gmra.mrb[0].mxu0 %v964
        %v9297 = vpop.f32.mrb[0].mxu0
        %v9298 = vadd.f32 %v9225, %v9297
        %v9299 = vpop.f32.mrb[0].mxu0
        %v9300 = vadd.f32 %v9227, %v9299
        %v9301 = vpop.f32.mrb[0].mxu0
        %v9302 = vadd.f32 %v9229, %v9301
        %v9303 = vpop.f32.mrb[0].mxu0
        %v9304 = vadd.f32 %v9231, %v9303
        %9305 = vmatprep.mubr.bf16.mxu0 %v971
        %9306 = vmatmul.mubr.bf16.gmra.mrb[0].mxu0 %v970
        %v9307 = vpop.f32.mrb[0].mxu0
        %v9308 = vadd.f32 %v9235, %v9307
        %v9309 = vpop.f32.mrb[0].mxu0
        %v9310 = vadd.f32 %v9237, %v9309
        %v9311 = vpop.f32.mrb[0].mxu0
        %v9312 = vadd.f32 %v9239, %v9311
        %v9313 = vpop.f32.mrb[0].mxu0
        %v9314 = vadd.f32 %v9241, %v9313
        %9315 = vmatprep.mubr.bf16.mxu0 %v977
        %9316 = vmatmul.mubr.bf16.gmra.mrb[0].mxu0 %v976
        %v9317 = vpop.f32.mrb[0].mxu0
        %v9318 = vadd.f32 %v9245, %v9317
        %v9319 = vpop.f32.mrb[0].mxu0
        %v9320 = vadd.f32 %v9247, %v9319
        %v9321 = vpop.f32.mrb[0].mxu0
        %v9322 = vadd.f32 %v9249, %v9321
        %v9323 = vpop.f32.mrb[0].mxu0
        %v9324 = vadd.f32 %v9251, %v9323
        %9325 = vmatprep.mubr.bf16.mxu0 %v983
        %9326 = vmatmul.mubr.bf16.gmra.mrb[0].mxu0 %v982
        %v9327 = vpop.f32.mrb[0].mxu0
        %v9328 = vadd.f32 %v9255, %v9327
        %v9329 = vpop.f32.mrb[0].mxu0
        %v9330 = vadd.f32 %v9257, %v9329
        %v9331 = vpop.f32.mrb[0].mxu0
        %v9332 = vadd.f32 %v9259, %v9331
        %v9333 = vpop.f32.mrb[0].mxu0
        %v9334 = vadd.f32 %v9261, %v9333
        %9335 = vdwg.mxu0
        %9336 = vmatprep.subr.bf16.mxu0 %v5731
        %9337 = vmatpush1.bf16.msra.mxu0 %v5730
        %9338 = vmatprep.subr.bf16.mxu0 %v5755
        %9339 = vmatpush1.bf16.msra.mxu0 %v5754
        %9340 = vmatprep.subr.bf16.mxu0 %v5779
        %9341 = vmatpush1.bf16.msra.mxu0 %v5778
        %9342 = vmatprep.subr.bf16.mxu0 %v5803
        %9343 = vmatpush1.bf16.msra.mxu0 %v5802
        %9344 = vmatprep.subr.bf16.mxu0 %v5827
        %9345 = vmatpush1.bf16.msra.mxu0 %v5826
        %9346 = vmatprep.subr.bf16.mxu0 %v5851
        %9347 = vmatpush1.bf16.msra.mxu0 %v5850
        %9348 = vmatprep.subr.bf16.mxu0 %v5875
        %9349 = vmatpush1.bf16.msra.mxu0 %v5874
        %9350 = vmatprep.subr.bf16.mxu0 %v5899
        %9351 = vmatpush1.bf16.msra.mxu0 %v5898
        %9352 = vmatprep.subr.bf16.mxu0 %v5923
        %9353 = vmatpush1.bf16.msra.mxu0 %v5922
        %9354 = vmatprep.subr.bf16.mxu0 %v5947
        %9355 = vmatpush1.bf16.msra.mxu0 %v5946
        %9356 = vmatprep.subr.bf16.mxu0 %v5971
        %9357 = vmatpush1.bf16.msra.mxu0 %v5970
        %9358 = vmatprep.subr.bf16.mxu0 %v5995
        %9359 = vmatpush1.bf16.msra.mxu0 %v5994
        %9360 = vmatprep.subr.bf16.mxu0 %v6019
        %9361 = vmatpush1.bf16.msra.mxu0 %v6018
        %9362 = vmatprep.subr.bf16.mxu0 %v6043
        %9363 = vmatpush1.bf16.msra.mxu0 %v6042
        %9364 = vmatprep.subr.bf16.mxu0 %v6067
        %9365 = vmatpush1.bf16.msra.mxu0 %v6066
        %9366 = vmatprep.subr.bf16.mxu0 %v6091
        %9367 = vmatpush1.bf16.msra.mxu0 %v6090
        %9368 = vmatprep.mubr.bf16.mxu0 %v961
        %9369 = vmatmul.mubr.bf16.gmra.mrb[0].mxu0 %v960
        %v9370 = vpop.f32.mrb[0].mxu0
        %v9371 = vadd.f32 %v2193, %v9370
        %v9372 = vpop.f32.mrb[0].mxu0
        %v9373 = vadd.f32 %v2197, %v9372
        %v9374 = vpop.f32.mrb[0].mxu0
        %v9375 = vadd.f32 %v2193, %v9374
        %v9376 = vpop.f32.mrb[0].mxu0
        %v9377 = vadd.f32 %v2197, %v9376
        %9378 = vmatprep.mubr.bf16.mxu0 %v967
        %9379 = vmatmul.mubr.bf16.gmra.mrb[0].mxu0 %v966
        %v9380 = vpop.f32.mrb[0].mxu0
        %v9381 = vadd.f32 %v2193, %v9380
        %v9382 = vpop.f32.mrb[0].mxu0
        %v9383 = vadd.f32 %v2197, %v9382
        %v9384 = vpop.f32.mrb[0].mxu0
        %v9385 = vadd.f32 %v2193, %v9384
        %v9386 = vpop.f32.mrb[0].mxu0
        %v9387 = vadd.f32 %v2197, %v9386
        %9388 = vmatprep.mubr.bf16.mxu0 %v973
        %9389 = vmatmul.mubr.bf16.gmra.mrb[0].mxu0 %v972
        %v9390 = vpop.f32.mrb[0].mxu0
        %v9391 = vadd.f32 %v2193, %v9390
        %v9392 = vpop.f32.mrb[0].mxu0
        %v9393 = vadd.f32 %v2197, %v9392
        %v9394 = vpop.f32.mrb[0].mxu0
        %v9395 = vadd.f32 %v2193, %v9394
        %v9396 = vpop.f32.mrb[0].mxu0
        %v9397 = vadd.f32 %v2197, %v9396
        %9398 = vmatprep.mubr.bf16.mxu0 %v979
        %9399 = vmatmul.mubr.bf16.gmra.mrb[0].mxu0 %v978
        %v9400 = vpop.f32.mrb[0].mxu0
        %v9401 = vadd.f32 %v2193, %v9400
        %v9402 = vpop.f32.mrb[0].mxu0
        %v9403 = vadd.f32 %v2197, %v9402
        %v9404 = vpop.f32.mrb[0].mxu0
        %v9405 = vadd.f32 %v2193, %v9404
        %v9406 = vpop.f32.mrb[0].mxu0
        %v9407 = vadd.f32 %v2197, %v9406
        %9408 = vdwg.mxu0
        %9409 = vmatprep.subr.bf16.mxu0 %v6115
        %9410 = vmatpush1.bf16.msra.mxu0 %v6114
        %9411 = vmatprep.subr.bf16.mxu0 %v6139
        %9412 = vmatpush1.bf16.msra.mxu0 %v6138
        %9413 = vmatprep.subr.bf16.mxu0 %v6163
        %9414 = vmatpush1.bf16.msra.mxu0 %v6162
        %9415 = vmatprep.subr.bf16.mxu0 %v6187
        %9416 = vmatpush1.bf16.msra.mxu0 %v6186
        %9417 = vmatprep.subr.bf16.mxu0 %v6211
        %9418 = vmatpush1.bf16.msra.mxu0 %v6210
        %9419 = vmatprep.subr.bf16.mxu0 %v6235
        %9420 = vmatpush1.bf16.msra.mxu0 %v6234
        %9421 = vmatprep.subr.bf16.mxu0 %v6259
        %9422 = vmatpush1.bf16.msra.mxu0 %v6258
        %9423 = vmatprep.subr.bf16.mxu0 %v6283
        %9424 = vmatpush1.bf16.msra.mxu0 %v6282
        %9425 = vmatprep.subr.bf16.mxu0 %v6307
        %9426 = vmatpush1.bf16.msra.mxu0 %v6306
        %9427 = vmatprep.subr.bf16.mxu0 %v6331
        %9428 = vmatpush1.bf16.msra.mxu0 %v6330
        %9429 = vmatprep.subr.bf16.mxu0 %v6355
        %9430 = vmatpush1.bf16.msra.mxu0 %v6354
        %9431 = vmatprep.subr.bf16.mxu0 %v6379
        %9432 = vmatpush1.bf16.msra.mxu0 %v6378
        %9433 = vmatprep.subr.bf16.mxu0 %v6403
        %9434 = vmatpush1.bf16.msra.mxu0 %v6402
        %9435 = vmatprep.subr.bf16.mxu0 %v6427
        %9436 = vmatpush1.bf16.msra.mxu0 %v6426
        %9437 = vmatprep.subr.bf16.mxu0 %v6451
        %9438 = vmatpush1.bf16.msra.mxu0 %v6450
        %9439 = vmatprep.subr.bf16.mxu0 %v6475
        %9440 = vmatpush1.bf16.msra.mxu0 %v6474
        %9441 = vmatprep.mubr.bf16.mxu0 %v963
        %9442 = vmatmul.mubr.bf16.gmra.mrb[0].mxu0 %v962
        %v9443 = vpop.f32.mrb[0].mxu0
        %v9444 = vadd.f32 %v9371, %v9443
        %v9445 = vpop.f32.mrb[0].mxu0
        %v9446 = vadd.f32 %v9373, %v9445
        %v9447 = vpop.f32.mrb[0].mxu0
        %v9448 = vadd.f32 %v9375, %v9447
        %v9449 = vpop.f32.mrb[0].mxu0
        %v9450 = vadd.f32 %v9377, %v9449
        %9451 = vmatprep.mubr.bf16.mxu0 %v969
        %9452 = vmatmul.mubr.bf16.gmra.mrb[0].mxu0 %v968
        %v9453 = vpop.f32.mrb[0].mxu0
        %v9454 = vadd.f32 %v9381, %v9453
        %v9455 = vpop.f32.mrb[0].mxu0
        %v9456 = vadd.f32 %v9383, %v9455
        %v9457 = vpop.f32.mrb[0].mxu0
        %v9458 = vadd.f32 %v9385, %v9457
        %v9459 = vpop.f32.mrb[0].mxu0
        %v9460 = vadd.f32 %v9387, %v9459
        %9461 = vmatprep.mubr.bf16.mxu0 %v975
        %9462 = vmatmul.mubr.bf16.gmra.mrb[0].mxu0 %v974
        %v9463 = vpop.f32.mrb[0].mxu0
        %v9464 = vadd.f32 %v9391, %v9463
        %v9465 = vpop.f32.mrb[0].mxu0
        %v9466 = vadd.f32 %v9393, %v9465
        %v9467 = vpop.f32.mrb[0].mxu0
        %v9468 = vadd.f32 %v9395, %v9467
        %v9469 = vpop.f32.mrb[0].mxu0
        %v9470 = vadd.f32 %v9397, %v9469
        %9471 = vmatprep.mubr.bf16.mxu0 %v981
        %9472 = vmatmul.mubr.bf16.gmra.mrb[0].mxu0 %v980
        %v9473 = vpop.f32.mrb[0].mxu0
        %v9474 = vadd.f32 %v9401, %v9473
        %v9475 = vpop.f32.mrb[0].mxu0
        %v9476 = vadd.f32 %v9403, %v9475
        %v9477 = vpop.f32.mrb[0].mxu0
        %v9478 = vadd.f32 %v9405, %v9477
        %v9479 = vpop.f32.mrb[0].mxu0
        %v9480 = vadd.f32 %v9407, %v9479
        %9481 = vdwg.mxu0
        %9482 = vmatprep.subr.bf16.mxu0 %v6499
        %9483 = vmatpush1.bf16.msra.mxu0 %v6498
        %9484 = vmatprep.subr.bf16.mxu0 %v6523
        %9485 = vmatpush1.bf16.msra.mxu0 %v6522
        %9486 = vmatprep.subr.bf16.mxu0 %v6547
        %9487 = vmatpush1.bf16.msra.mxu0 %v6546
        %9488 = vmatprep.subr.bf16.mxu0 %v6571
        %9489 = vmatpush1.bf16.msra.mxu0 %v6570
        %9490 = vmatprep.subr.bf16.mxu0 %v6595
        %9491 = vmatpush1.bf16.msra.mxu0 %v6594
        %9492 = vmatprep.subr.bf16.mxu0 %v6619
        %9493 = vmatpush1.bf16.msra.mxu0 %v6618
        %9494 = vmatprep.subr.bf16.mxu0 %v6643
        %9495 = vmatpush1.bf16.msra.mxu0 %v6642
        %9496 = vmatprep.subr.bf16.mxu0 %v6667
        %9497 = vmatpush1.bf16.msra.mxu0 %v6666
        %9498 = vmatprep.subr.bf16.mxu0 %v6691
        %9499 = vmatpush1.bf16.msra.mxu0 %v6690
        %9500 = vmatprep.subr.bf16.mxu0 %v6715
        %9501 = vmatpush1.bf16.msra.mxu0 %v6714
        %9502 = vmatprep.subr.bf16.mxu0 %v6739
        %9503 = vmatpush1.bf16.msra.mxu0 %v6738
        %9504 = vmatprep.subr.bf16.mxu0 %v6763
        %9505 = vmatpush1.bf16.msra.mxu0 %v6762
        %9506 = vmatprep.subr.bf16.mxu0 %v6787
        %9507 = vmatpush1.bf16.msra.mxu0 %v6786
        %9508 = vmatprep.subr.bf16.mxu0 %v6811
        %9509 = vmatpush1.bf16.msra.mxu0 %v6810
        %9510 = vmatprep.subr.bf16.mxu0 %v6835
        %9511 = vmatpush1.bf16.msra.mxu0 %v6834
        %9512 = vmatprep.subr.bf16.mxu0 %v6859
        %9513 = vmatpush1.bf16.msra.mxu0 %v6858
        %9514 = vmatprep.mubr.bf16.mxu0 %v965
        %9515 = vmatmul.mubr.bf16.gmra.mrb[0].mxu0 %v964
        %v9516 = vpop.f32.mrb[0].mxu0
        %v9517 = vadd.f32 %v9444, %v9516
        %v9518 = vpop.f32.mrb[0].mxu0
        %v9519 = vadd.f32 %v9446, %v9518
        %v9520 = vpop.f32.mrb[0].mxu0
        %v9521 = vadd.f32 %v9448, %v9520
        %v9522 = vpop.f32.mrb[0].mxu0
        %v9523 = vadd.f32 %v9450, %v9522
        %9524 = vmatprep.mubr.bf16.mxu0 %v971
        %9525 = vmatmul.mubr.bf16.gmra.mrb[0].mxu0 %v970
        %v9526 = vpop.f32.mrb[0].mxu0
        %v9527 = vadd.f32 %v9454, %v9526
        %v9528 = vpop.f32.mrb[0].mxu0
        %v9529 = vadd.f32 %v9456, %v9528
        %v9530 = vpop.f32.mrb[0].mxu0
        %v9531 = vadd.f32 %v9458, %v9530
        %v9532 = vpop.f32.mrb[0].mxu0
        %v9533 = vadd.f32 %v9460, %v9532
        %9534 = vmatprep.mubr.bf16.mxu0 %v977
        %9535 = vmatmul.mubr.bf16.gmra.mrb[0].mxu0 %v976
        %v9536 = vpop.f32.mrb[0].mxu0
        %v9537 = vadd.f32 %v9464, %v9536
        %v9538 = vpop.f32.mrb[0].mxu0
        %v9539 = vadd.f32 %v9466, %v9538
        %v9540 = vpop.f32.mrb[0].mxu0
        %v9541 = vadd.f32 %v9468, %v9540
        %v9542 = vpop.f32.mrb[0].mxu0
        %v9543 = vadd.f32 %v9470, %v9542
        %9544 = vmatprep.mubr.bf16.mxu0 %v983
        %9545 = vmatmul.mubr.bf16.gmra.mrb[0].mxu0 %v982
        %v9546 = vpop.f32.mrb[0].mxu0
        %v9547 = vadd.f32 %v9474, %v9546
        %v9548 = vpop.f32.mrb[0].mxu0
        %v9549 = vadd.f32 %v9476, %v9548
        %v9550 = vpop.f32.mrb[0].mxu0
        %v9551 = vadd.f32 %v9478, %v9550
        %v9552 = vpop.f32.mrb[0].mxu0
        %v9553 = vadd.f32 %v9480, %v9552
        %9554 = vdwg.mxu0
        %9555 = vmatprep.subr.bf16.mxu0 %v5733
        %9556 = vmatpush1.bf16.msra.mxu0 %v5732
        %9557 = vmatprep.subr.bf16.mxu0 %v5757
        %9558 = vmatpush1.bf16.msra.mxu0 %v5756
        %9559 = vmatprep.subr.bf16.mxu0 %v5781
        %9560 = vmatpush1.bf16.msra.mxu0 %v5780
        %9561 = vmatprep.subr.bf16.mxu0 %v5805
        %9562 = vmatpush1.bf16.msra.mxu0 %v5804
        %9563 = vmatprep.subr.bf16.mxu0 %v5829
        %9564 = vmatpush1.bf16.msra.mxu0 %v5828
        %9565 = vmatprep.subr.bf16.mxu0 %v5853
        %9566 = vmatpush1.bf16.msra.mxu0 %v5852
        %9567 = vmatprep.subr.bf16.mxu0 %v5877
        %9568 = vmatpush1.bf16.msra.mxu0 %v5876
        %9569 = vmatprep.subr.bf16.mxu0 %v5901
        %9570 = vmatpush1.bf16.msra.mxu0 %v5900
        %9571 = vmatprep.subr.bf16.mxu0 %v5925
        %9572 = vmatpush1.bf16.msra.mxu0 %v5924
        %9573 = vmatprep.subr.bf16.mxu0 %v5949
        %9574 = vmatpush1.bf16.msra.mxu0 %v5948
        %9575 = vmatprep.subr.bf16.mxu0 %v5973
        %9576 = vmatpush1.bf16.msra.mxu0 %v5972
        %9577 = vmatprep.subr.bf16.mxu0 %v5997
        %9578 = vmatpush1.bf16.msra.mxu0 %v5996
        %9579 = vmatprep.subr.bf16.mxu0 %v6021
        %9580 = vmatpush1.bf16.msra.mxu0 %v6020
        %9581 = vmatprep.subr.bf16.mxu0 %v6045
        %9582 = vmatpush1.bf16.msra.mxu0 %v6044
        %9583 = vmatprep.subr.bf16.mxu0 %v6069
        %9584 = vmatpush1.bf16.msra.mxu0 %v6068
        %9585 = vmatprep.subr.bf16.mxu0 %v6093
        %9586 = vmatpush1.bf16.msra.mxu0 %v6092
        %9587 = vmatprep.mubr.bf16.mxu0 %v961
        %9588 = vmatmul.mubr.bf16.gmra.mrb[0].mxu0 %v960
        %v9589 = vpop.f32.mrb[0].mxu0
        %v9590 = vadd.f32 %v2201, %v9589
        %v9591 = vpop.f32.mrb[0].mxu0
        %v9592 = vadd.f32 %v2205, %v9591
        %v9593 = vpop.f32.mrb[0].mxu0
        %v9594 = vadd.f32 %v2201, %v9593
        %v9595 = vpop.f32.mrb[0].mxu0
        %v9596 = vadd.f32 %v2205, %v9595
        %9597 = vmatprep.mubr.bf16.mxu0 %v967
        %9598 = vmatmul.mubr.bf16.gmra.mrb[0].mxu0 %v966
        %v9599 = vpop.f32.mrb[0].mxu0
        %v9600 = vadd.f32 %v2201, %v9599
        %v9601 = vpop.f32.mrb[0].mxu0
        %v9602 = vadd.f32 %v2205, %v9601
        %v9603 = vpop.f32.mrb[0].mxu0
        %v9604 = vadd.f32 %v2201, %v9603
        %v9605 = vpop.f32.mrb[0].mxu0
        %v9606 = vadd.f32 %v2205, %v9605
        %9607 = vmatprep.mubr.bf16.mxu0 %v973
        %9608 = vmatmul.mubr.bf16.gmra.mrb[0].mxu0 %v972
        %v9609 = vpop.f32.mrb[0].mxu0
        %v9610 = vadd.f32 %v2201, %v9609
        %v9611 = vpop.f32.mrb[0].mxu0
        %v9612 = vadd.f32 %v2205, %v9611
        %v9613 = vpop.f32.mrb[0].mxu0
        %v9614 = vadd.f32 %v2201, %v9613
        %v9615 = vpop.f32.mrb[0].mxu0
        %v9616 = vadd.f32 %v2205, %v9615
        %9617 = vmatprep.mubr.bf16.mxu0 %v979
        %9618 = vmatmul.mubr.bf16.gmra.mrb[0].mxu0 %v978
        %v9619 = vpop.f32.mrb[0].mxu0
        %v9620 = vadd.f32 %v2201, %v9619
        %v9621 = vpop.f32.mrb[0].mxu0
        %v9622 = vadd.f32 %v2205, %v9621
        %v9623 = vpop.f32.mrb[0].mxu0
        %v9624 = vadd.f32 %v2201, %v9623
        %v9625 = vpop.f32.mrb[0].mxu0
        %v9626 = vadd.f32 %v2205, %v9625
        %9627 = vdwg.mxu0
        %9628 = vmatprep.subr.bf16.mxu0 %v6117
        %9629 = vmatpush1.bf16.msra.mxu0 %v6116
        %9630 = vmatprep.subr.bf16.mxu0 %v6141
        %9631 = vmatpush1.bf16.msra.mxu0 %v6140
        %9632 = vmatprep.subr.bf16.mxu0 %v6165
        %9633 = vmatpush1.bf16.msra.mxu0 %v6164
        %9634 = vmatprep.subr.bf16.mxu0 %v6189
        %9635 = vmatpush1.bf16.msra.mxu0 %v6188
        %9636 = vmatprep.subr.bf16.mxu0 %v6213
        %9637 = vmatpush1.bf16.msra.mxu0 %v6212
        %9638 = vmatprep.subr.bf16.mxu0 %v6237
        %9639 = vmatpush1.bf16.msra.mxu0 %v6236
        %9640 = vmatprep.subr.bf16.mxu0 %v6261
        %9641 = vmatpush1.bf16.msra.mxu0 %v6260
        %9642 = vmatprep.subr.bf16.mxu0 %v6285
        %9643 = vmatpush1.bf16.msra.mxu0 %v6284
        %9644 = vmatprep.subr.bf16.mxu0 %v6309
        %9645 = vmatpush1.bf16.msra.mxu0 %v6308
        %9646 = vmatprep.subr.bf16.mxu0 %v6333
        %9647 = vmatpush1.bf16.msra.mxu0 %v6332
        %9648 = vmatprep.subr.bf16.mxu0 %v6357
        %9649 = vmatpush1.bf16.msra.mxu0 %v6356
        %9650 = vmatprep.subr.bf16.mxu0 %v6381
        %9651 = vmatpush1.bf16.msra.mxu0 %v6380
        %9652 = vmatprep.subr.bf16.mxu0 %v6405
        %9653 = vmatpush1.bf16.msra.mxu0 %v6404
        %9654 = vmatprep.subr.bf16.mxu0 %v6429
        %9655 = vmatpush1.bf16.msra.mxu0 %v6428
        %9656 = vmatprep.subr.bf16.mxu0 %v6453
        %9657 = vmatpush1.bf16.msra.mxu0 %v6452
        %9658 = vmatprep.subr.bf16.mxu0 %v6477
        %9659 = vmatpush1.bf16.msra.mxu0 %v6476
        %9660 = vmatprep.mubr.bf16.mxu0 %v963
        %9661 = vmatmul.mubr.bf16.gmra.mrb[0].mxu0 %v962
        %v9662 = vpop.f32.mrb[0].mxu0
        %v9663 = vadd.f32 %v9590, %v9662
        %v9664 = vpop.f32.mrb[0].mxu0
        %v9665 = vadd.f32 %v9592, %v9664
        %v9666 = vpop.f32.mrb[0].mxu0
        %v9667 = vadd.f32 %v9594, %v9666
        %v9668 = vpop.f32.mrb[0].mxu0
        %v9669 = vadd.f32 %v9596, %v9668
        %9670 = vmatprep.mubr.bf16.mxu0 %v969
        %9671 = vmatmul.mubr.bf16.gmra.mrb[0].mxu0 %v968
        %v9672 = vpop.f32.mrb[0].mxu0
        %v9673 = vadd.f32 %v9600, %v9672
        %v9674 = vpop.f32.mrb[0].mxu0
        %v9675 = vadd.f32 %v9602, %v9674
        %v9676 = vpop.f32.mrb[0].mxu0
        %v9677 = vadd.f32 %v9604, %v9676
        %v9678 = vpop.f32.mrb[0].mxu0
        %v9679 = vadd.f32 %v9606, %v9678
        %9680 = vmatprep.mubr.bf16.mxu0 %v975
        %9681 = vmatmul.mubr.bf16.gmra.mrb[0].mxu0 %v974
        %v9682 = vpop.f32.mrb[0].mxu0
        %v9683 = vadd.f32 %v9610, %v9682
        %v9684 = vpop.f32.mrb[0].mxu0
        %v9685 = vadd.f32 %v9612, %v9684
        %v9686 = vpop.f32.mrb[0].mxu0
        %v9687 = vadd.f32 %v9614, %v9686
        %v9688 = vpop.f32.mrb[0].mxu0
        %v9689 = vadd.f32 %v9616, %v9688
        %9690 = vmatprep.mubr.bf16.mxu0 %v981
        %9691 = vmatmul.mubr.bf16.gmra.mrb[0].mxu0 %v980
        %v9692 = vpop.f32.mrb[0].mxu0
        %v9693 = vadd.f32 %v9620, %v9692
        %v9694 = vpop.f32.mrb[0].mxu0
        %v9695 = vadd.f32 %v9622, %v9694
        %v9696 = vpop.f32.mrb[0].mxu0
        %v9697 = vadd.f32 %v9624, %v9696
        %v9698 = vpop.f32.mrb[0].mxu0
        %v9699 = vadd.f32 %v9626, %v9698
        %9700 = vdwg.mxu0
        %9701 = vmatprep.subr.bf16.mxu0 %v6501
        %9702 = vmatpush1.bf16.msra.mxu0 %v6500
        %9703 = vmatprep.subr.bf16.mxu0 %v6525
        %9704 = vmatpush1.bf16.msra.mxu0 %v6524
        %9705 = vmatprep.subr.bf16.mxu0 %v6549
        %9706 = vmatpush1.bf16.msra.mxu0 %v6548
        %9707 = vmatprep.subr.bf16.mxu0 %v6573
        %9708 = vmatpush1.bf16.msra.mxu0 %v6572
        %9709 = vmatprep.subr.bf16.mxu0 %v6597
        %9710 = vmatpush1.bf16.msra.mxu0 %v6596
        %9711 = vmatprep.subr.bf16.mxu0 %v6621
        %9712 = vmatpush1.bf16.msra.mxu0 %v6620
        %9713 = vmatprep.subr.bf16.mxu0 %v6645
        %9714 = vmatpush1.bf16.msra.mxu0 %v6644
        %9715 = vmatprep.subr.bf16.mxu0 %v6669
        %9716 = vmatpush1.bf16.msra.mxu0 %v6668
        %9717 = vmatprep.subr.bf16.mxu0 %v6693
        %9718 = vmatpush1.bf16.msra.mxu0 %v6692
        %9719 = vmatprep.subr.bf16.mxu0 %v6717
        %9720 = vmatpush1.bf16.msra.mxu0 %v6716
        %9721 = vmatprep.subr.bf16.mxu0 %v6741
        %9722 = vmatpush1.bf16.msra.mxu0 %v6740
        %9723 = vmatprep.subr.bf16.mxu0 %v6765
        %9724 = vmatpush1.bf16.msra.mxu0 %v6764
        %9725 = vmatprep.subr.bf16.mxu0 %v6789
        %9726 = vmatpush1.bf16.msra.mxu0 %v6788
        %9727 = vmatprep.subr.bf16.mxu0 %v6813
        %9728 = vmatpush1.bf16.msra.mxu0 %v6812
        %9729 = vmatprep.subr.bf16.mxu0 %v6837
        %9730 = vmatpush1.bf16.msra.mxu0 %v6836
        %9731 = vmatprep.subr.bf16.mxu0 %v6861
        %9732 = vmatpush1.bf16.msra.mxu0 %v6860
        %9733 = vmatprep.mubr.bf16.mxu0 %v965
        %9734 = vmatmul.mubr.bf16.gmra.mrb[0].mxu0 %v964
        %v9735 = vpop.f32.mrb[0].mxu0
        %v9736 = vadd.f32 %v9663, %v9735
        %v9737 = vpop.f32.mrb[0].mxu0
        %v9738 = vadd.f32 %v9665, %v9737
        %v9739 = vpop.f32.mrb[0].mxu0
        %v9740 = vadd.f32 %v9667, %v9739
        %v9741 = vpop.f32.mrb[0].mxu0
        %v9742 = vadd.f32 %v9669, %v9741
        %9743 = vmatprep.mubr.bf16.mxu0 %v971
        %9744 = vmatmul.mubr.bf16.gmra.mrb[0].mxu0 %v970
        %v9745 = vpop.f32.mrb[0].mxu0
        %v9746 = vadd.f32 %v9673, %v9745
        %v9747 = vpop.f32.mrb[0].mxu0
        %v9748 = vadd.f32 %v9675, %v9747
        %v9749 = vpop.f32.mrb[0].mxu0
        %v9750 = vadd.f32 %v9677, %v9749
        %v9751 = vpop.f32.mrb[0].mxu0
        %v9752 = vadd.f32 %v9679, %v9751
        %9753 = vmatprep.mubr.bf16.mxu0 %v977
        %9754 = vmatmul.mubr.bf16.gmra.mrb[0].mxu0 %v976
        %v9755 = vpop.f32.mrb[0].mxu0
        %v9756 = vadd.f32 %v9683, %v9755
        %v9757 = vpop.f32.mrb[0].mxu0
        %v9758 = vadd.f32 %v9685, %v9757
        %v9759 = vpop.f32.mrb[0].mxu0
        %v9760 = vadd.f32 %v9687, %v9759
        %v9761 = vpop.f32.mrb[0].mxu0
        %v9762 = vadd.f32 %v9689, %v9761
        %9763 = vmatprep.mubr.bf16.mxu0 %v983
        %9764 = vmatmul.mubr.bf16.gmra.mrb[0].mxu0 %v982
        %v9765 = vpop.f32.mrb[0].mxu0
        %v9766 = vadd.f32 %v9693, %v9765
        %v9767 = vpop.f32.mrb[0].mxu0
        %v9768 = vadd.f32 %v9695, %v9767
        %v9769 = vpop.f32.mrb[0].mxu0
        %v9770 = vadd.f32 %v9697, %v9769
        %v9771 = vpop.f32.mrb[0].mxu0
        %v9772 = vadd.f32 %v9699, %v9771
        %9773 = vdwg.mxu0
        %9774 = vmatprep.subr.bf16.mxu0 %v5735
        %9775 = vmatpush1.bf16.msra.mxu0 %v5734
        %9776 = vmatprep.subr.bf16.mxu0 %v5759
        %9777 = vmatpush1.bf16.msra.mxu0 %v5758
        %9778 = vmatprep.subr.bf16.mxu0 %v5783
        %9779 = vmatpush1.bf16.msra.mxu0 %v5782
        %9780 = vmatprep.subr.bf16.mxu0 %v5807
        %9781 = vmatpush1.bf16.msra.mxu0 %v5806
        %9782 = vmatprep.subr.bf16.mxu0 %v5831
        %9783 = vmatpush1.bf16.msra.mxu0 %v5830
        %9784 = vmatprep.subr.bf16.mxu0 %v5855
        %9785 = vmatpush1.bf16.msra.mxu0 %v5854
        %9786 = vmatprep.subr.bf16.mxu0 %v5879
        %9787 = vmatpush1.bf16.msra.mxu0 %v5878
        %9788 = vmatprep.subr.bf16.mxu0 %v5903
        %9789 = vmatpush1.bf16.msra.mxu0 %v5902
        %9790 = vmatprep.subr.bf16.mxu0 %v5927
        %9791 = vmatpush1.bf16.msra.mxu0 %v5926
        %9792 = vmatprep.subr.bf16.mxu0 %v5951
        %9793 = vmatpush1.bf16.msra.mxu0 %v5950
        %9794 = vmatprep.subr.bf16.mxu0 %v5975
        %9795 = vmatpush1.bf16.msra.mxu0 %v5974
        %9796 = vmatprep.subr.bf16.mxu0 %v5999
        %9797 = vmatpush1.bf16.msra.mxu0 %v5998
        %9798 = vmatprep.subr.bf16.mxu0 %v6023
        %9799 = vmatpush1.bf16.msra.mxu0 %v6022
        %9800 = vmatprep.subr.bf16.mxu0 %v6047
        %9801 = vmatpush1.bf16.msra.mxu0 %v6046
        %9802 = vmatprep.subr.bf16.mxu0 %v6071
        %9803 = vmatpush1.bf16.msra.mxu0 %v6070
        %9804 = vmatprep.subr.bf16.mxu0 %v6095
        %9805 = vmatpush1.bf16.msra.mxu0 %v6094
        %9806 = vmatprep.mubr.bf16.mxu0 %v961
        %9807 = vmatmul.mubr.bf16.gmra.mrb[0].mxu0 %v960
        %v9808 = vpop.f32.mrb[0].mxu0
        %v9809 = vadd.f32 %v2209, %v9808
        %v9810 = vpop.f32.mrb[0].mxu0
        %v9811 = vadd.f32 %v2213, %v9810
        %v9812 = vpop.f32.mrb[0].mxu0
        %v9813 = vadd.f32 %v2209, %v9812
        %v9814 = vpop.f32.mrb[0].mxu0
        %v9815 = vadd.f32 %v2213, %v9814
        %9816 = vmatprep.mubr.bf16.mxu0 %v967
        %9817 = vmatmul.mubr.bf16.gmra.mrb[0].mxu0 %v966
        %v9818 = vpop.f32.mrb[0].mxu0
        %v9819 = vadd.f32 %v2209, %v9818
        %v9820 = vpop.f32.mrb[0].mxu0
        %v9821 = vadd.f32 %v2213, %v9820
        %v9822 = vpop.f32.mrb[0].mxu0
        %v9823 = vadd.f32 %v2209, %v9822
        %v9824 = vpop.f32.mrb[0].mxu0
        %v9825 = vadd.f32 %v2213, %v9824
        %9826 = vmatprep.mubr.bf16.mxu0 %v973
        %9827 = vmatmul.mubr.bf16.gmra.mrb[0].mxu0 %v972
        %v9828 = vpop.f32.mrb[0].mxu0
        %v9829 = vadd.f32 %v2209, %v9828
        %v9830 = vpop.f32.mrb[0].mxu0
        %v9831 = vadd.f32 %v2213, %v9830
        %v9832 = vpop.f32.mrb[0].mxu0
        %v9833 = vadd.f32 %v2209, %v9832
        %v9834 = vpop.f32.mrb[0].mxu0
        %v9835 = vadd.f32 %v2213, %v9834
        %9836 = vmatprep.mubr.bf16.mxu0 %v979
        %9837 = vmatmul.mubr.bf16.gmra.mrb[0].mxu0 %v978
        %v9838 = vpop.f32.mrb[0].mxu0
        %v9839 = vadd.f32 %v2209, %v9838
        %v9840 = vpop.f32.mrb[0].mxu0
        %v9841 = vadd.f32 %v2213, %v9840
        %v9842 = vpop.f32.mrb[0].mxu0
        %v9843 = vadd.f32 %v2209, %v9842
        %v9844 = vpop.f32.mrb[0].mxu0
        %v9845 = vadd.f32 %v2213, %v9844
        %9846 = vdwg.mxu0
        %9847 = vmatprep.subr.bf16.mxu0 %v6119
        %9848 = vmatpush1.bf16.msra.mxu0 %v6118
        %9849 = vmatprep.subr.bf16.mxu0 %v6143
        %9850 = vmatpush1.bf16.msra.mxu0 %v6142
        %9851 = vmatprep.subr.bf16.mxu0 %v6167
        %9852 = vmatpush1.bf16.msra.mxu0 %v6166
        %9853 = vmatprep.subr.bf16.mxu0 %v6191
        %9854 = vmatpush1.bf16.msra.mxu0 %v6190
        %9855 = vmatprep.subr.bf16.mxu0 %v6215
        %9856 = vmatpush1.bf16.msra.mxu0 %v6214
        %9857 = vmatprep.subr.bf16.mxu0 %v6239
        %9858 = vmatpush1.bf16.msra.mxu0 %v6238
        %9859 = vmatprep.subr.bf16.mxu0 %v6263
        %9860 = vmatpush1.bf16.msra.mxu0 %v6262
        %9861 = vmatprep.subr.bf16.mxu0 %v6287
        %9862 = vmatpush1.bf16.msra.mxu0 %v6286
        %9863 = vmatprep.subr.bf16.mxu0 %v6311
        %9864 = vmatpush1.bf16.msra.mxu0 %v6310
        %9865 = vmatprep.subr.bf16.mxu0 %v6335
        %9866 = vmatpush1.bf16.msra.mxu0 %v6334
        %9867 = vmatprep.subr.bf16.mxu0 %v6359
        %9868 = vmatpush1.bf16.msra.mxu0 %v6358
        %9869 = vmatprep.subr.bf16.mxu0 %v6383
        %9870 = vmatpush1.bf16.msra.mxu0 %v6382
        %9871 = vmatprep.subr.bf16.mxu0 %v6407
        %9872 = vmatpush1.bf16.msra.mxu0 %v6406
        %9873 = vmatprep.subr.bf16.mxu0 %v6431
        %9874 = vmatpush1.bf16.msra.mxu0 %v6430
        %9875 = vmatprep.subr.bf16.mxu0 %v6455
        %9876 = vmatpush1.bf16.msra.mxu0 %v6454
        %9877 = vmatprep.subr.bf16.mxu0 %v6479
        %9878 = vmatpush1.bf16.msra.mxu0 %v6478
        %9879 = vmatprep.mubr.bf16.mxu0 %v963
        %9880 = vmatmul.mubr.bf16.gmra.mrb[0].mxu0 %v962
        %v9881 = vpop.f32.mrb[0].mxu0
        %v9882 = vadd.f32 %v9809, %v9881
        %v9883 = vpop.f32.mrb[0].mxu0
        %v9884 = vadd.f32 %v9811, %v9883
        %v9885 = vpop.f32.mrb[0].mxu0
        %v9886 = vadd.f32 %v9813, %v9885
        %v9887 = vpop.f32.mrb[0].mxu0
        %v9888 = vadd.f32 %v9815, %v9887
        %9889 = vmatprep.mubr.bf16.mxu0 %v969
        %9890 = vmatmul.mubr.bf16.gmra.mrb[0].mxu0 %v968
        %v9891 = vpop.f32.mrb[0].mxu0
        %v9892 = vadd.f32 %v9819, %v9891
        %v9893 = vpop.f32.mrb[0].mxu0
        %v9894 = vadd.f32 %v9821, %v9893
        %v9895 = vpop.f32.mrb[0].mxu0
        %v9896 = vadd.f32 %v9823, %v9895
        %v9897 = vpop.f32.mrb[0].mxu0
        %v9898 = vadd.f32 %v9825, %v9897
        %9899 = vmatprep.mubr.bf16.mxu0 %v975
        %9900 = vmatmul.mubr.bf16.gmra.mrb[0].mxu0 %v974
        %v9901 = vpop.f32.mrb[0].mxu0
        %v9902 = vadd.f32 %v9829, %v9901
        %v9903 = vpop.f32.mrb[0].mxu0
        %v9904 = vadd.f32 %v9831, %v9903
        %v9905 = vpop.f32.mrb[0].mxu0
        %v9906 = vadd.f32 %v9833, %v9905
        %v9907 = vpop.f32.mrb[0].mxu0
        %v9908 = vadd.f32 %v9835, %v9907
        %9909 = vmatprep.mubr.bf16.mxu0 %v981
        %9910 = vmatmul.mubr.bf16.gmra.mrb[0].mxu0 %v980
        %v9911 = vpop.f32.mrb[0].mxu0
        %v9912 = vadd.f32 %v9839, %v9911
        %v9913 = vpop.f32.mrb[0].mxu0
        %v9914 = vadd.f32 %v9841, %v9913
        %v9915 = vpop.f32.mrb[0].mxu0
        %v9916 = vadd.f32 %v9843, %v9915
        %v9917 = vpop.f32.mrb[0].mxu0
        %v9918 = vadd.f32 %v9845, %v9917
        %9919 = vdwg.mxu0
        %9920 = vmatprep.subr.bf16.mxu0 %v6503
        %9921 = vmatpush1.bf16.msra.mxu0 %v6502
        %9922 = vmatprep.subr.bf16.mxu0 %v6527
        %9923 = vmatpush1.bf16.msra.mxu0 %v6526
        %9924 = vmatprep.subr.bf16.mxu0 %v6551
        %9925 = vmatpush1.bf16.msra.mxu0 %v6550
        %9926 = vmatprep.subr.bf16.mxu0 %v6575
        %9927 = vmatpush1.bf16.msra.mxu0 %v6574
        %9928 = vmatprep.subr.bf16.mxu0 %v6599
        %9929 = vmatpush1.bf16.msra.mxu0 %v6598
        %9930 = vmatprep.subr.bf16.mxu0 %v6623
        %9931 = vmatpush1.bf16.msra.mxu0 %v6622
        %9932 = vmatprep.subr.bf16.mxu0 %v6647
        %9933 = vmatpush1.bf16.msra.mxu0 %v6646
        %9934 = vmatprep.subr.bf16.mxu0 %v6671
        %9935 = vmatpush1.bf16.msra.mxu0 %v6670
        %9936 = vmatprep.subr.bf16.mxu0 %v6695
        %9937 = vmatpush1.bf16.msra.mxu0 %v6694
        %9938 = vmatprep.subr.bf16.mxu0 %v6719
        %9939 = vmatpush1.bf16.msra.mxu0 %v6718
        %9940 = vmatprep.subr.bf16.mxu0 %v6743
        %9941 = vmatpush1.bf16.msra.mxu0 %v6742
        %9942 = vmatprep.subr.bf16.mxu0 %v6767
        %9943 = vmatpush1.bf16.msra.mxu0 %v6766
        %9944 = vmatprep.subr.bf16.mxu0 %v6791
        %9945 = vmatpush1.bf16.msra.mxu0 %v6790
        %9946 = vmatprep.subr.bf16.mxu0 %v6815
        %9947 = vmatpush1.bf16.msra.mxu0 %v6814
        %9948 = vmatprep.subr.bf16.mxu0 %v6839
        %9949 = vmatpush1.bf16.msra.mxu0 %v6838
        %9950 = vmatprep.subr.bf16.mxu0 %v6863
        %9951 = vmatpush1.bf16.msra.mxu0 %v6862
        %9952 = vmatprep.mubr.bf16.mxu0 %v965
        %9953 = vmatmul.mubr.bf16.gmra.mrb[0].mxu0 %v964
        %v9954 = vpop.f32.mrb[0].mxu0
        %v9955 = vadd.f32 %v9882, %v9954
        %v9956 = vpop.f32.mrb[0].mxu0
        %v9957 = vadd.f32 %v9884, %v9956
        %v9958 = vpop.f32.mrb[0].mxu0
        %v9959 = vadd.f32 %v9886, %v9958
        %v9960 = vpop.f32.mrb[0].mxu0
        %v9961 = vadd.f32 %v9888, %v9960
        %9962 = vmatprep.mubr.bf16.mxu0 %v971
        %9963 = vmatmul.mubr.bf16.gmra.mrb[0].mxu0 %v970
        %v9964 = vpop.f32.mrb[0].mxu0
        %v9965 = vadd.f32 %v9892, %v9964
        %v9966 = vpop.f32.mrb[0].mxu0
        %v9967 = vadd.f32 %v9894, %v9966
        %v9968 = vpop.f32.mrb[0].mxu0
        %v9969 = vadd.f32 %v9896, %v9968
        %v9970 = vpop.f32.mrb[0].mxu0
        %v9971 = vadd.f32 %v9898, %v9970
        %9972 = vmatprep.mubr.bf16.mxu0 %v977
        %9973 = vmatmul.mubr.bf16.gmra.mrb[0].mxu0 %v976
        %v9974 = vpop.f32.mrb[0].mxu0
        %v9975 = vadd.f32 %v9902, %v9974
        %v9976 = vpop.f32.mrb[0].mxu0
        %v9977 = vadd.f32 %v9904, %v9976
        %v9978 = vpop.f32.mrb[0].mxu0
        %v9979 = vadd.f32 %v9906, %v9978
        %v9980 = vpop.f32.mrb[0].mxu0
        %v9981 = vadd.f32 %v9908, %v9980
        %9982 = vmatprep.mubr.bf16.mxu0 %v983
        %9983 = vmatmul.mubr.bf16.gmra.mrb[0].mxu0 %v982
        %v9984 = vpop.f32.mrb[0].mxu0
        %v9985 = vadd.f32 %v9912, %v9984
        %v9986 = vpop.f32.mrb[0].mxu0
        %v9987 = vadd.f32 %v9914, %v9986
        %v9988 = vpop.f32.mrb[0].mxu0
        %v9989 = vadd.f32 %v9916, %v9988
        %v9990 = vpop.f32.mrb[0].mxu0
        %v9991 = vadd.f32 %v9918, %v9990
        %9992 = vdwg.mxu0
        %9993 = vmatprep.subr.bf16.mxu0 %v5737
        %9994 = vmatpush1.bf16.msra.mxu0 %v5736
        %9995 = vmatprep.subr.bf16.mxu0 %v5761
        %9996 = vmatpush1.bf16.msra.mxu0 %v5760
        %9997 = vmatprep.subr.bf16.mxu0 %v5785
        %9998 = vmatpush1.bf16.msra.mxu0 %v5784
        %9999 = vmatprep.subr.bf16.mxu0 %v5809
        %10000 = vmatpush1.bf16.msra.mxu0 %v5808
        %10001 = vmatprep.subr.bf16.mxu0 %v5833
        %10002 = vmatpush1.bf16.msra.mxu0 %v5832
        %10003 = vmatprep.subr.bf16.mxu0 %v5857
        %10004 = vmatpush1.bf16.msra.mxu0 %v5856
        %10005 = vmatprep.subr.bf16.mxu0 %v5881
        %10006 = vmatpush1.bf16.msra.mxu0 %v5880
        %10007 = vmatprep.subr.bf16.mxu0 %v5905
        %10008 = vmatpush1.bf16.msra.mxu0 %v5904
        %10009 = vmatprep.subr.bf16.mxu0 %v5929
        %10010 = vmatpush1.bf16.msra.mxu0 %v5928
        %10011 = vmatprep.subr.bf16.mxu0 %v5953
        %10012 = vmatpush1.bf16.msra.mxu0 %v5952
        %10013 = vmatprep.subr.bf16.mxu0 %v5977
        %10014 = vmatpush1.bf16.msra.mxu0 %v5976
        %10015 = vmatprep.subr.bf16.mxu0 %v6001
        %10016 = vmatpush1.bf16.msra.mxu0 %v6000
        %10017 = vmatprep.subr.bf16.mxu0 %v6025
        %10018 = vmatpush1.bf16.msra.mxu0 %v6024
        %10019 = vmatprep.subr.bf16.mxu0 %v6049
        %10020 = vmatpush1.bf16.msra.mxu0 %v6048
        %10021 = vmatprep.subr.bf16.mxu0 %v6073
        %10022 = vmatpush1.bf16.msra.mxu0 %v6072
        %10023 = vmatprep.subr.bf16.mxu0 %v6097
        %10024 = vmatpush1.bf16.msra.mxu0 %v6096
        %10025 = vmatprep.mubr.bf16.mxu0 %v961
        %10026 = vmatmul.mubr.bf16.gmra.mrb[0].mxu0 %v960
        %v10027 = vpop.f32.mrb[0].mxu0
        %v10028 = vadd.f32 %v2217, %v10027
        %v10029 = vpop.f32.mrb[0].mxu0
        %v10030 = vadd.f32 %v2221, %v10029
        %v10031 = vpop.f32.mrb[0].mxu0
        %v10032 = vadd.f32 %v2217, %v10031
        %v10033 = vpop.f32.mrb[0].mxu0
        %v10034 = vadd.f32 %v2221, %v10033
        %10035 = vmatprep.mubr.bf16.mxu0 %v967
        %10036 = vmatmul.mubr.bf16.gmra.mrb[0].mxu0 %v966
        %v10037 = vpop.f32.mrb[0].mxu0
        %v10038 = vadd.f32 %v2217, %v10037
        %v10039 = vpop.f32.mrb[0].mxu0
        %v10040 = vadd.f32 %v2221, %v10039
        %v10041 = vpop.f32.mrb[0].mxu0
        %v10042 = vadd.f32 %v2217, %v10041
        %v10043 = vpop.f32.mrb[0].mxu0
        %v10044 = vadd.f32 %v2221, %v10043
        %10045 = vmatprep.mubr.bf16.mxu0 %v973
        %10046 = vmatmul.mubr.bf16.gmra.mrb[0].mxu0 %v972
        %v10047 = vpop.f32.mrb[0].mxu0
        %v10048 = vadd.f32 %v2217, %v10047
        %v10049 = vpop.f32.mrb[0].mxu0
        %v10050 = vadd.f32 %v2221, %v10049
        %v10051 = vpop.f32.mrb[0].mxu0
        %v10052 = vadd.f32 %v2217, %v10051
        %v10053 = vpop.f32.mrb[0].mxu0
        %v10054 = vadd.f32 %v2221, %v10053
        %10055 = vmatprep.mubr.bf16.mxu0 %v979
        %10056 = vmatmul.mubr.bf16.gmra.mrb[0].mxu0 %v978
        %v10057 = vpop.f32.mrb[0].mxu0
        %v10058 = vadd.f32 %v2217, %v10057
        %v10059 = vpop.f32.mrb[0].mxu0
        %v10060 = vadd.f32 %v2221, %v10059
        %v10061 = vpop.f32.mrb[0].mxu0
        %v10062 = vadd.f32 %v2217, %v10061
        %v10063 = vpop.f32.mrb[0].mxu0
        %v10064 = vadd.f32 %v2221, %v10063
        %10065 = vdwg.mxu0
        %10066 = vmatprep.subr.bf16.mxu0 %v6121
        %10067 = vmatpush1.bf16.msra.mxu0 %v6120
        %10068 = vmatprep.subr.bf16.mxu0 %v6145
        %10069 = vmatpush1.bf16.msra.mxu0 %v6144
        %10070 = vmatprep.subr.bf16.mxu0 %v6169
        %10071 = vmatpush1.bf16.msra.mxu0 %v6168
        %10072 = vmatprep.subr.bf16.mxu0 %v6193
        %10073 = vmatpush1.bf16.msra.mxu0 %v6192
        %10074 = vmatprep.subr.bf16.mxu0 %v6217
        %10075 = vmatpush1.bf16.msra.mxu0 %v6216
        %10076 = vmatprep.subr.bf16.mxu0 %v6241
        %10077 = vmatpush1.bf16.msra.mxu0 %v6240
        %10078 = vmatprep.subr.bf16.mxu0 %v6265
        %10079 = vmatpush1.bf16.msra.mxu0 %v6264
        %10080 = vmatprep.subr.bf16.mxu0 %v6289
        %10081 = vmatpush1.bf16.msra.mxu0 %v6288
        %10082 = vmatprep.subr.bf16.mxu0 %v6313
        %10083 = vmatpush1.bf16.msra.mxu0 %v6312
        %10084 = vmatprep.subr.bf16.mxu0 %v6337
        %10085 = vmatpush1.bf16.msra.mxu0 %v6336
        %10086 = vmatprep.subr.bf16.mxu0 %v6361
        %10087 = vmatpush1.bf16.msra.mxu0 %v6360
        %10088 = vmatprep.subr.bf16.mxu0 %v6385
        %10089 = vmatpush1.bf16.msra.mxu0 %v6384
        %10090 = vmatprep.subr.bf16.mxu0 %v6409
        %10091 = vmatpush1.bf16.msra.mxu0 %v6408
        %10092 = vmatprep.subr.bf16.mxu0 %v6433
        %10093 = vmatpush1.bf16.msra.mxu0 %v6432
        %10094 = vmatprep.subr.bf16.mxu0 %v6457
        %10095 = vmatpush1.bf16.msra.mxu0 %v6456
        %10096 = vmatprep.subr.bf16.mxu0 %v6481
        %10097 = vmatpush1.bf16.msra.mxu0 %v6480
        %10098 = vmatprep.mubr.bf16.mxu0 %v963
        %10099 = vmatmul.mubr.bf16.gmra.mrb[0].mxu0 %v962
        %v10100 = vpop.f32.mrb[0].mxu0
        %v10101 = vadd.f32 %v10028, %v10100
        %v10102 = vpop.f32.mrb[0].mxu0
        %v10103 = vadd.f32 %v10030, %v10102
        %v10104 = vpop.f32.mrb[0].mxu0
        %v10105 = vadd.f32 %v10032, %v10104
        %v10106 = vpop.f32.mrb[0].mxu0
        %v10107 = vadd.f32 %v10034, %v10106
        %10108 = vmatprep.mubr.bf16.mxu0 %v969
        %10109 = vmatmul.mubr.bf16.gmra.mrb[0].mxu0 %v968
        %v10110 = vpop.f32.mrb[0].mxu0
        %v10111 = vadd.f32 %v10038, %v10110
        %v10112 = vpop.f32.mrb[0].mxu0
        %v10113 = vadd.f32 %v10040, %v10112
        %v10114 = vpop.f32.mrb[0].mxu0
        %v10115 = vadd.f32 %v10042, %v10114
        %v10116 = vpop.f32.mrb[0].mxu0
        %v10117 = vadd.f32 %v10044, %v10116
        %10118 = vmatprep.mubr.bf16.mxu0 %v975
        %10119 = vmatmul.mubr.bf16.gmra.mrb[0].mxu0 %v974
        %v10120 = vpop.f32.mrb[0].mxu0
        %v10121 = vadd.f32 %v10048, %v10120
        %v10122 = vpop.f32.mrb[0].mxu0
        %v10123 = vadd.f32 %v10050, %v10122
        %v10124 = vpop.f32.mrb[0].mxu0
        %v10125 = vadd.f32 %v10052, %v10124
        %v10126 = vpop.f32.mrb[0].mxu0
        %v10127 = vadd.f32 %v10054, %v10126
        %10128 = vmatprep.mubr.bf16.mxu0 %v981
        %10129 = vmatmul.mubr.bf16.gmra.mrb[0].mxu0 %v980
        %v10130 = vpop.f32.mrb[0].mxu0
        %v10131 = vadd.f32 %v10058, %v10130
        %v10132 = vpop.f32.mrb[0].mxu0
        %v10133 = vadd.f32 %v10060, %v10132
        %v10134 = vpop.f32.mrb[0].mxu0
        %v10135 = vadd.f32 %v10062, %v10134
        %v10136 = vpop.f32.mrb[0].mxu0
        %v10137 = vadd.f32 %v10064, %v10136
        %10138 = vdwg.mxu0
        %10139 = vmatprep.subr.bf16.mxu0 %v6505
        %10140 = vmatpush1.bf16.msra.mxu0 %v6504
        %10141 = vmatprep.subr.bf16.mxu0 %v6529
        %10142 = vmatpush1.bf16.msra.mxu0 %v6528
        %10143 = vmatprep.subr.bf16.mxu0 %v6553
        %10144 = vmatpush1.bf16.msra.mxu0 %v6552
        %10145 = vmatprep.subr.bf16.mxu0 %v6577
        %10146 = vmatpush1.bf16.msra.mxu0 %v6576
        %10147 = vmatprep.subr.bf16.mxu0 %v6601
        %10148 = vmatpush1.bf16.msra.mxu0 %v6600
        %10149 = vmatprep.subr.bf16.mxu0 %v6625
        %10150 = vmatpush1.bf16.msra.mxu0 %v6624
        %10151 = vmatprep.subr.bf16.mxu0 %v6649
        %10152 = vmatpush1.bf16.msra.mxu0 %v6648
        %10153 = vmatprep.subr.bf16.mxu0 %v6673
        %10154 = vmatpush1.bf16.msra.mxu0 %v6672
        %10155 = vmatprep.subr.bf16.mxu0 %v6697
        %10156 = vmatpush1.bf16.msra.mxu0 %v6696
        %10157 = vmatprep.subr.bf16.mxu0 %v6721
        %10158 = vmatpush1.bf16.msra.mxu0 %v6720
        %10159 = vmatprep.subr.bf16.mxu0 %v6745
        %10160 = vmatpush1.bf16.msra.mxu0 %v6744
        %10161 = vmatprep.subr.bf16.mxu0 %v6769
        %10162 = vmatpush1.bf16.msra.mxu0 %v6768
        %10163 = vmatprep.subr.bf16.mxu0 %v6793
        %10164 = vmatpush1.bf16.msra.mxu0 %v6792
        %10165 = vmatprep.subr.bf16.mxu0 %v6817
        %10166 = vmatpush1.bf16.msra.mxu0 %v6816
        %10167 = vmatprep.subr.bf16.mxu0 %v6841
        %10168 = vmatpush1.bf16.msra.mxu0 %v6840
        %10169 = vmatprep.subr.bf16.mxu0 %v6865
        %10170 = vmatpush1.bf16.msra.mxu0 %v6864
        %10171 = vmatprep.mubr.bf16.mxu0 %v965
        %10172 = vmatmul.mubr.bf16.gmra.mrb[0].mxu0 %v964
        %v10173 = vpop.f32.mrb[0].mxu0
        %v10174 = vadd.f32 %v10101, %v10173
        %v10175 = vpop.f32.mrb[0].mxu0
        %v10176 = vadd.f32 %v10103, %v10175
        %v10177 = vpop.f32.mrb[0].mxu0
        %v10178 = vadd.f32 %v10105, %v10177
        %v10179 = vpop.f32.mrb[0].mxu0
        %v10180 = vadd.f32 %v10107, %v10179
        %10181 = vmatprep.mubr.bf16.mxu0 %v971
        %10182 = vmatmul.mubr.bf16.gmra.mrb[0].mxu0 %v970
        %v10183 = vpop.f32.mrb[0].mxu0
        %v10184 = vadd.f32 %v10111, %v10183
        %v10185 = vpop.f32.mrb[0].mxu0
        %v10186 = vadd.f32 %v10113, %v10185
        %v10187 = vpop.f32.mrb[0].mxu0
        %v10188 = vadd.f32 %v10115, %v10187
        %v10189 = vpop.f32.mrb[0].mxu0
        %v10190 = vadd.f32 %v10117, %v10189
        %10191 = vmatprep.mubr.bf16.mxu0 %v977
        %10192 = vmatmul.mubr.bf16.gmra.mrb[0].mxu0 %v976
        %v10193 = vpop.f32.mrb[0].mxu0
        %v10194 = vadd.f32 %v10121, %v10193
        %v10195 = vpop.f32.mrb[0].mxu0
        %v10196 = vadd.f32 %v10123, %v10195
        %v10197 = vpop.f32.mrb[0].mxu0
        %v10198 = vadd.f32 %v10125, %v10197
        %v10199 = vpop.f32.mrb[0].mxu0
        %v10200 = vadd.f32 %v10127, %v10199
        %10201 = vmatprep.mubr.bf16.mxu0 %v983
        %10202 = vmatmul.mubr.bf16.gmra.mrb[0].mxu0 %v982
        %v10203 = vpop.f32.mrb[0].mxu0
        %v10204 = vadd.f32 %v10131, %v10203
        %v10205 = vpop.f32.mrb[0].mxu0
        %v10206 = vadd.f32 %v10133, %v10205
        %v10207 = vpop.f32.mrb[0].mxu0
        %v10208 = vadd.f32 %v10135, %v10207
        %v10209 = vpop.f32.mrb[0].mxu0
        %v10210 = vadd.f32 %v10137, %v10209
        %10211 = vdwg.mxu0
        %10212 = vmatprep.subr.bf16.mxu0 %v5739
        %10213 = vmatpush1.bf16.msra.mxu0 %v5738
        %10214 = vmatprep.subr.bf16.mxu0 %v5763
        %10215 = vmatpush1.bf16.msra.mxu0 %v5762
        %10216 = vmatprep.subr.bf16.mxu0 %v5787
        %10217 = vmatpush1.bf16.msra.mxu0 %v5786
        %10218 = vmatprep.subr.bf16.mxu0 %v5811
        %10219 = vmatpush1.bf16.msra.mxu0 %v5810
        %10220 = vmatprep.subr.bf16.mxu0 %v5835
        %10221 = vmatpush1.bf16.msra.mxu0 %v5834
        %10222 = vmatprep.subr.bf16.mxu0 %v5859
        %10223 = vmatpush1.bf16.msra.mxu0 %v5858
        %10224 = vmatprep.subr.bf16.mxu0 %v5883
        %10225 = vmatpush1.bf16.msra.mxu0 %v5882
        %10226 = vmatprep.subr.bf16.mxu0 %v5907
        %10227 = vmatpush1.bf16.msra.mxu0 %v5906
        %10228 = vmatprep.subr.bf16.mxu0 %v5931
        %10229 = vmatpush1.bf16.msra.mxu0 %v5930
        %10230 = vmatprep.subr.bf16.mxu0 %v5955
        %10231 = vmatpush1.bf16.msra.mxu0 %v5954
        %10232 = vmatprep.subr.bf16.mxu0 %v5979
        %10233 = vmatpush1.bf16.msra.mxu0 %v5978
        %10234 = vmatprep.subr.bf16.mxu0 %v6003
        %10235 = vmatpush1.bf16.msra.mxu0 %v6002
        %10236 = vmatprep.subr.bf16.mxu0 %v6027
        %10237 = vmatpush1.bf16.msra.mxu0 %v6026
        %10238 = vmatprep.subr.bf16.mxu0 %v6051
        %10239 = vmatpush1.bf16.msra.mxu0 %v6050
        %10240 = vmatprep.subr.bf16.mxu0 %v6075
        %10241 = vmatpush1.bf16.msra.mxu0 %v6074
        %10242 = vmatprep.subr.bf16.mxu0 %v6099
        %10243 = vmatpush1.bf16.msra.mxu0 %v6098
        %10244 = vmatprep.mubr.bf16.mxu0 %v961
        %10245 = vmatmul.mubr.bf16.gmra.mrb[0].mxu0 %v960
        %v10246 = vpop.f32.mrb[0].mxu0
        %v10247 = vadd.f32 %v2225, %v10246
        %v10248 = vpop.f32.mrb[0].mxu0
        %v10249 = vadd.f32 %v2229, %v10248
        %v10250 = vpop.f32.mrb[0].mxu0
        %v10251 = vadd.f32 %v2225, %v10250
        %v10252 = vpop.f32.mrb[0].mxu0
        %v10253 = vadd.f32 %v2229, %v10252
        %10254 = vmatprep.mubr.bf16.mxu0 %v967
        %10255 = vmatmul.mubr.bf16.gmra.mrb[0].mxu0 %v966
        %v10256 = vpop.f32.mrb[0].mxu0
        %v10257 = vadd.f32 %v2225, %v10256
        %v10258 = vpop.f32.mrb[0].mxu0
        %v10259 = vadd.f32 %v2229, %v10258
        %v10260 = vpop.f32.mrb[0].mxu0
        %v10261 = vadd.f32 %v2225, %v10260
        %v10262 = vpop.f32.mrb[0].mxu0
        %v10263 = vadd.f32 %v2229, %v10262
        %10264 = vmatprep.mubr.bf16.mxu0 %v973
        %10265 = vmatmul.mubr.bf16.gmra.mrb[0].mxu0 %v972
        %v10266 = vpop.f32.mrb[0].mxu0
        %v10267 = vadd.f32 %v2225, %v10266
        %v10268 = vpop.f32.mrb[0].mxu0
        %v10269 = vadd.f32 %v2229, %v10268
        %v10270 = vpop.f32.mrb[0].mxu0
        %v10271 = vadd.f32 %v2225, %v10270
        %v10272 = vpop.f32.mrb[0].mxu0
        %v10273 = vadd.f32 %v2229, %v10272
        %10274 = vmatprep.mubr.bf16.mxu0 %v979
        %10275 = vmatmul.mubr.bf16.gmra.mrb[0].mxu0 %v978
        %v10276 = vpop.f32.mrb[0].mxu0
        %v10277 = vadd.f32 %v2225, %v10276
        %v10278 = vpop.f32.mrb[0].mxu0
        %v10279 = vadd.f32 %v2229, %v10278
        %v10280 = vpop.f32.mrb[0].mxu0
        %v10281 = vadd.f32 %v2225, %v10280
        %v10282 = vpop.f32.mrb[0].mxu0
        %v10283 = vadd.f32 %v2229, %v10282
        %10284 = vdwg.mxu0
        %10285 = vmatprep.subr.bf16.mxu0 %v6123
        %10286 = vmatpush1.bf16.msra.mxu0 %v6122
        %10287 = vmatprep.subr.bf16.mxu0 %v6147
        %10288 = vmatpush1.bf16.msra.mxu0 %v6146
        %10289 = vmatprep.subr.bf16.mxu0 %v6171
        %10290 = vmatpush1.bf16.msra.mxu0 %v6170
        %10291 = vmatprep.subr.bf16.mxu0 %v6195
        %10292 = vmatpush1.bf16.msra.mxu0 %v6194
        %10293 = vmatprep.subr.bf16.mxu0 %v6219
        %10294 = vmatpush1.bf16.msra.mxu0 %v6218
        %10295 = vmatprep.subr.bf16.mxu0 %v6243
        %10296 = vmatpush1.bf16.msra.mxu0 %v6242
        %10297 = vmatprep.subr.bf16.mxu0 %v6267
        %10298 = vmatpush1.bf16.msra.mxu0 %v6266
        %10299 = vmatprep.subr.bf16.mxu0 %v6291
        %10300 = vmatpush1.bf16.msra.mxu0 %v6290
        %10301 = vmatprep.subr.bf16.mxu0 %v6315
        %10302 = vmatpush1.bf16.msra.mxu0 %v6314
        %10303 = vmatprep.subr.bf16.mxu0 %v6339
        %10304 = vmatpush1.bf16.msra.mxu0 %v6338
        %10305 = vmatprep.subr.bf16.mxu0 %v6363
        %10306 = vmatpush1.bf16.msra.mxu0 %v6362
        %10307 = vmatprep.subr.bf16.mxu0 %v6387
        %10308 = vmatpush1.bf16.msra.mxu0 %v6386
        %10309 = vmatprep.subr.bf16.mxu0 %v6411
        %10310 = vmatpush1.bf16.msra.mxu0 %v6410
        %10311 = vmatprep.subr.bf16.mxu0 %v6435
        %10312 = vmatpush1.bf16.msra.mxu0 %v6434
        %10313 = vmatprep.subr.bf16.mxu0 %v6459
        %10314 = vmatpush1.bf16.msra.mxu0 %v6458
        %10315 = vmatprep.subr.bf16.mxu0 %v6483
        %10316 = vmatpush1.bf16.msra.mxu0 %v6482
        %10317 = vmatprep.mubr.bf16.mxu0 %v963
        %10318 = vmatmul.mubr.bf16.gmra.mrb[0].mxu0 %v962
        %v10319 = vpop.f32.mrb[0].mxu0
        %v10320 = vadd.f32 %v10247, %v10319
        %v10321 = vpop.f32.mrb[0].mxu0
        %v10322 = vadd.f32 %v10249, %v10321
        %v10323 = vpop.f32.mrb[0].mxu0
        %v10324 = vadd.f32 %v10251, %v10323
        %v10325 = vpop.f32.mrb[0].mxu0
        %v10326 = vadd.f32 %v10253, %v10325
        %10327 = vmatprep.mubr.bf16.mxu0 %v969
        %10328 = vmatmul.mubr.bf16.gmra.mrb[0].mxu0 %v968
        %v10329 = vpop.f32.mrb[0].mxu0
        %v10330 = vadd.f32 %v10257, %v10329
        %v10331 = vpop.f32.mrb[0].mxu0
        %v10332 = vadd.f32 %v10259, %v10331
        %v10333 = vpop.f32.mrb[0].mxu0
        %v10334 = vadd.f32 %v10261, %v10333
        %v10335 = vpop.f32.mrb[0].mxu0
        %v10336 = vadd.f32 %v10263, %v10335
        %10337 = vmatprep.mubr.bf16.mxu0 %v975
        %10338 = vmatmul.mubr.bf16.gmra.mrb[0].mxu0 %v974
        %v10339 = vpop.f32.mrb[0].mxu0
        %v10340 = vadd.f32 %v10267, %v10339
        %v10341 = vpop.f32.mrb[0].mxu0
        %v10342 = vadd.f32 %v10269, %v10341
        %v10343 = vpop.f32.mrb[0].mxu0
        %v10344 = vadd.f32 %v10271, %v10343
        %v10345 = vpop.f32.mrb[0].mxu0
        %v10346 = vadd.f32 %v10273, %v10345
        %10347 = vmatprep.mubr.bf16.mxu0 %v981
        %10348 = vmatmul.mubr.bf16.gmra.mrb[0].mxu0 %v980
        %v10349 = vpop.f32.mrb[0].mxu0
        %v10350 = vadd.f32 %v10277, %v10349
        %v10351 = vpop.f32.mrb[0].mxu0
        %v10352 = vadd.f32 %v10279, %v10351
        %v10353 = vpop.f32.mrb[0].mxu0
        %v10354 = vadd.f32 %v10281, %v10353
        %v10355 = vpop.f32.mrb[0].mxu0
        %v10356 = vadd.f32 %v10283, %v10355
        %10357 = vdwg.mxu0
        %10358 = vmatprep.subr.bf16.mxu0 %v6507
        %10359 = vmatpush1.bf16.msra.mxu0 %v6506
        %10360 = vmatprep.subr.bf16.mxu0 %v6531
        %10361 = vmatpush1.bf16.msra.mxu0 %v6530
        %10362 = vmatprep.subr.bf16.mxu0 %v6555
        %10363 = vmatpush1.bf16.msra.mxu0 %v6554
        %10364 = vmatprep.subr.bf16.mxu0 %v6579
        %10365 = vmatpush1.bf16.msra.mxu0 %v6578
        %10366 = vmatprep.subr.bf16.mxu0 %v6603
        %10367 = vmatpush1.bf16.msra.mxu0 %v6602
        %10368 = vmatprep.subr.bf16.mxu0 %v6627
        %10369 = vmatpush1.bf16.msra.mxu0 %v6626
        %10370 = vmatprep.subr.bf16.mxu0 %v6651
        %10371 = vmatpush1.bf16.msra.mxu0 %v6650
        %10372 = vmatprep.subr.bf16.mxu0 %v6675
        %10373 = vmatpush1.bf16.msra.mxu0 %v6674
        %10374 = vmatprep.subr.bf16.mxu0 %v6699
        %10375 = vmatpush1.bf16.msra.mxu0 %v6698
        %10376 = vmatprep.subr.bf16.mxu0 %v6723
        %10377 = vmatpush1.bf16.msra.mxu0 %v6722
        %10378 = vmatprep.subr.bf16.mxu0 %v6747
        %10379 = vmatpush1.bf16.msra.mxu0 %v6746
        %10380 = vmatprep.subr.bf16.mxu0 %v6771
        %10381 = vmatpush1.bf16.msra.mxu0 %v6770
        %10382 = vmatprep.subr.bf16.mxu0 %v6795
        %10383 = vmatpush1.bf16.msra.mxu0 %v6794
        %10384 = vmatprep.subr.bf16.mxu0 %v6819
        %10385 = vmatpush1.bf16.msra.mxu0 %v6818
        %10386 = vmatprep.subr.bf16.mxu0 %v6843
        %10387 = vmatpush1.bf16.msra.mxu0 %v6842
        %10388 = vmatprep.subr.bf16.mxu0 %v6867
        %10389 = vmatpush1.bf16.msra.mxu0 %v6866
        %10390 = vmatprep.mubr.bf16.mxu0 %v965
        %10391 = vmatmul.mubr.bf16.gmra.mrb[0].mxu0 %v964
        %v10392 = vpop.f32.mrb[0].mxu0
        %v10393 = vadd.f32 %v10320, %v10392
        %v10394 = vpop.f32.mrb[0].mxu0
        %v10395 = vadd.f32 %v10322, %v10394
        %v10396 = vpop.f32.mrb[0].mxu0
        %v10397 = vadd.f32 %v10324, %v10396
        %v10398 = vpop.f32.mrb[0].mxu0
        %v10399 = vadd.f32 %v10326, %v10398
        %10400 = vmatprep.mubr.bf16.mxu0 %v971
        %10401 = vmatmul.mubr.bf16.gmra.mrb[0].mxu0 %v970
        %v10402 = vpop.f32.mrb[0].mxu0
        %v10403 = vadd.f32 %v10330, %v10402
        %v10404 = vpop.f32.mrb[0].mxu0
        %v10405 = vadd.f32 %v10332, %v10404
        %v10406 = vpop.f32.mrb[0].mxu0
        %v10407 = vadd.f32 %v10334, %v10406
        %v10408 = vpop.f32.mrb[0].mxu0
        %v10409 = vadd.f32 %v10336, %v10408
        %10410 = vmatprep.mubr.bf16.mxu0 %v977
        %10411 = vmatmul.mubr.bf16.gmra.mrb[0].mxu0 %v976
        %v10412 = vpop.f32.mrb[0].mxu0
        %v10413 = vadd.f32 %v10340, %v10412
        %v10414 = vpop.f32.mrb[0].mxu0
        %v10415 = vadd.f32 %v10342, %v10414
        %v10416 = vpop.f32.mrb[0].mxu0
        %v10417 = vadd.f32 %v10344, %v10416
        %v10418 = vpop.f32.mrb[0].mxu0
        %v10419 = vadd.f32 %v10346, %v10418
        %10420 = vmatprep.mubr.bf16.mxu0 %v983
        %10421 = vmatmul.mubr.bf16.gmra.mrb[0].mxu0 %v982
        %v10422 = vpop.f32.mrb[0].mxu0
        %v10423 = vadd.f32 %v10350, %v10422
        %v10424 = vpop.f32.mrb[0].mxu0
        %v10425 = vadd.f32 %v10352, %v10424
        %v10426 = vpop.f32.mrb[0].mxu0
        %v10427 = vadd.f32 %v10354, %v10426
        %v10428 = vpop.f32.mrb[0].mxu0
        %v10429 = vadd.f32 %v10356, %v10428
        %10430 = vdwg.mxu0
        %10431 = vmatprep.subr.bf16.mxu0 %v5741
        %10432 = vmatpush1.bf16.msra.mxu0 %v5740
        %10433 = vmatprep.subr.bf16.mxu0 %v5765
        %10434 = vmatpush1.bf16.msra.mxu0 %v5764
        %10435 = vmatprep.subr.bf16.mxu0 %v5789
        %10436 = vmatpush1.bf16.msra.mxu0 %v5788
        %10437 = vmatprep.subr.bf16.mxu0 %v5813
        %10438 = vmatpush1.bf16.msra.mxu0 %v5812
        %10439 = vmatprep.subr.bf16.mxu0 %v5837
        %10440 = vmatpush1.bf16.msra.mxu0 %v5836
        %10441 = vmatprep.subr.bf16.mxu0 %v5861
        %10442 = vmatpush1.bf16.msra.mxu0 %v5860
        %10443 = vmatprep.subr.bf16.mxu0 %v5885
        %10444 = vmatpush1.bf16.msra.mxu0 %v5884
        %10445 = vmatprep.subr.bf16.mxu0 %v5909
        %10446 = vmatpush1.bf16.msra.mxu0 %v5908
        %10447 = vmatprep.subr.bf16.mxu0 %v5933
        %10448 = vmatpush1.bf16.msra.mxu0 %v5932
        %10449 = vmatprep.subr.bf16.mxu0 %v5957
        %10450 = vmatpush1.bf16.msra.mxu0 %v5956
        %10451 = vmatprep.subr.bf16.mxu0 %v5981
        %10452 = vmatpush1.bf16.msra.mxu0 %v5980
        %10453 = vmatprep.subr.bf16.mxu0 %v6005
        %10454 = vmatpush1.bf16.msra.mxu0 %v6004
        %10455 = vmatprep.subr.bf16.mxu0 %v6029
        %10456 = vmatpush1.bf16.msra.mxu0 %v6028
        %10457 = vmatprep.subr.bf16.mxu0 %v6053
        %10458 = vmatpush1.bf16.msra.mxu0 %v6052
        %10459 = vmatprep.subr.bf16.mxu0 %v6077
        %10460 = vmatpush1.bf16.msra.mxu0 %v6076
        %10461 = vmatprep.subr.bf16.mxu0 %v6101
        %10462 = vmatpush1.bf16.msra.mxu0 %v6100
        %10463 = vmatprep.mubr.bf16.mxu0 %v961
        %10464 = vmatmul.mubr.bf16.gmra.mrb[0].mxu0 %v960
        %v10465 = vpop.f32.mrb[0].mxu0
        %v10466 = vadd.f32 %v2233, %v10465
        %v10467 = vpop.f32.mrb[0].mxu0
        %v10468 = vadd.f32 %v2237, %v10467
        %v10469 = vpop.f32.mrb[0].mxu0
        %v10470 = vadd.f32 %v2233, %v10469
        %v10471 = vpop.f32.mrb[0].mxu0
        %v10472 = vadd.f32 %v2237, %v10471
        %10473 = vmatprep.mubr.bf16.mxu0 %v967
        %10474 = vmatmul.mubr.bf16.gmra.mrb[0].mxu0 %v966
        %v10475 = vpop.f32.mrb[0].mxu0
        %v10476 = vadd.f32 %v2233, %v10475
        %v10477 = vpop.f32.mrb[0].mxu0
        %v10478 = vadd.f32 %v2237, %v10477
        %v10479 = vpop.f32.mrb[0].mxu0
        %v10480 = vadd.f32 %v2233, %v10479
        %v10481 = vpop.f32.mrb[0].mxu0
        %v10482 = vadd.f32 %v2237, %v10481
        %10483 = vmatprep.mubr.bf16.mxu0 %v973
        %10484 = vmatmul.mubr.bf16.gmra.mrb[0].mxu0 %v972
        %v10485 = vpop.f32.mrb[0].mxu0
        %v10486 = vadd.f32 %v2233, %v10485
        %v10487 = vpop.f32.mrb[0].mxu0
        %v10488 = vadd.f32 %v2237, %v10487
        %v10489 = vpop.f32.mrb[0].mxu0
        %v10490 = vadd.f32 %v2233, %v10489
        %v10491 = vpop.f32.mrb[0].mxu0
        %v10492 = vadd.f32 %v2237, %v10491
        %10493 = vmatprep.mubr.bf16.mxu0 %v979
        %10494 = vmatmul.mubr.bf16.gmra.mrb[0].mxu0 %v978
        %v10495 = vpop.f32.mrb[0].mxu0
        %v10496 = vadd.f32 %v2233, %v10495
        %v10497 = vpop.f32.mrb[0].mxu0
        %v10498 = vadd.f32 %v2237, %v10497
        %v10499 = vpop.f32.mrb[0].mxu0
        %v10500 = vadd.f32 %v2233, %v10499
        %v10501 = vpop.f32.mrb[0].mxu0
        %v10502 = vadd.f32 %v2237, %v10501
        %10503 = vdwg.mxu0
        %10504 = vmatprep.subr.bf16.mxu0 %v6125
        %10505 = vmatpush1.bf16.msra.mxu0 %v6124
        %10506 = vmatprep.subr.bf16.mxu0 %v6149
        %10507 = vmatpush1.bf16.msra.mxu0 %v6148
        %10508 = vmatprep.subr.bf16.mxu0 %v6173
        %10509 = vmatpush1.bf16.msra.mxu0 %v6172
        %10510 = vmatprep.subr.bf16.mxu0 %v6197
        %10511 = vmatpush1.bf16.msra.mxu0 %v6196
        %10512 = vmatprep.subr.bf16.mxu0 %v6221
        %10513 = vmatpush1.bf16.msra.mxu0 %v6220
        %10514 = vmatprep.subr.bf16.mxu0 %v6245
        %10515 = vmatpush1.bf16.msra.mxu0 %v6244
        %10516 = vmatprep.subr.bf16.mxu0 %v6269
        %10517 = vmatpush1.bf16.msra.mxu0 %v6268
        %10518 = vmatprep.subr.bf16.mxu0 %v6293
        %10519 = vmatpush1.bf16.msra.mxu0 %v6292
        %10520 = vmatprep.subr.bf16.mxu0 %v6317
        %10521 = vmatpush1.bf16.msra.mxu0 %v6316
        %10522 = vmatprep.subr.bf16.mxu0 %v6341
        %10523 = vmatpush1.bf16.msra.mxu0 %v6340
        %10524 = vmatprep.subr.bf16.mxu0 %v6365
        %10525 = vmatpush1.bf16.msra.mxu0 %v6364
        %10526 = vmatprep.subr.bf16.mxu0 %v6389
        %10527 = vmatpush1.bf16.msra.mxu0 %v6388
        %10528 = vmatprep.subr.bf16.mxu0 %v6413
        %10529 = vmatpush1.bf16.msra.mxu0 %v6412
        %10530 = vmatprep.subr.bf16.mxu0 %v6437
        %10531 = vmatpush1.bf16.msra.mxu0 %v6436
        %10532 = vmatprep.subr.bf16.mxu0 %v6461
        %10533 = vmatpush1.bf16.msra.mxu0 %v6460
        %10534 = vmatprep.subr.bf16.mxu0 %v6485
        %10535 = vmatpush1.bf16.msra.mxu0 %v6484
        %10536 = vmatprep.mubr.bf16.mxu0 %v963
        %10537 = vmatmul.mubr.bf16.gmra.mrb[0].mxu0 %v962
        %v10538 = vpop.f32.mrb[0].mxu0
        %v10539 = vadd.f32 %v10466, %v10538
        %v10540 = vpop.f32.mrb[0].mxu0
        %v10541 = vadd.f32 %v10468, %v10540
        %v10542 = vpop.f32.mrb[0].mxu0
        %v10543 = vadd.f32 %v10470, %v10542
        %v10544 = vpop.f32.mrb[0].mxu0
        %v10545 = vadd.f32 %v10472, %v10544
        %10546 = vmatprep.mubr.bf16.mxu0 %v969
        %10547 = vmatmul.mubr.bf16.gmra.mrb[0].mxu0 %v968
        %v10548 = vpop.f32.mrb[0].mxu0
        %v10549 = vadd.f32 %v10476, %v10548
        %v10550 = vpop.f32.mrb[0].mxu0
        %v10551 = vadd.f32 %v10478, %v10550
        %v10552 = vpop.f32.mrb[0].mxu0
        %v10553 = vadd.f32 %v10480, %v10552
        %v10554 = vpop.f32.mrb[0].mxu0
        %v10555 = vadd.f32 %v10482, %v10554
        %10556 = vmatprep.mubr.bf16.mxu0 %v975
        %10557 = vmatmul.mubr.bf16.gmra.mrb[0].mxu0 %v974
        %v10558 = vpop.f32.mrb[0].mxu0
        %v10559 = vadd.f32 %v10486, %v10558
        %v10560 = vpop.f32.mrb[0].mxu0
        %v10561 = vadd.f32 %v10488, %v10560
        %v10562 = vpop.f32.mrb[0].mxu0
        %v10563 = vadd.f32 %v10490, %v10562
        %v10564 = vpop.f32.mrb[0].mxu0
        %v10565 = vadd.f32 %v10492, %v10564
        %10566 = vmatprep.mubr.bf16.mxu0 %v981
        %10567 = vmatmul.mubr.bf16.gmra.mrb[0].mxu0 %v980
        %v10568 = vpop.f32.mrb[0].mxu0
        %v10569 = vadd.f32 %v10496, %v10568
        %v10570 = vpop.f32.mrb[0].mxu0
        %v10571 = vadd.f32 %v10498, %v10570
        %v10572 = vpop.f32.mrb[0].mxu0
        %v10573 = vadd.f32 %v10500, %v10572
        %v10574 = vpop.f32.mrb[0].mxu0
        %v10575 = vadd.f32 %v10502, %v10574
        %10576 = vdwg.mxu0
        %10577 = vmatprep.subr.bf16.mxu0 %v6509
        %10578 = vmatpush1.bf16.msra.mxu0 %v6508
        %10579 = vmatprep.subr.bf16.mxu0 %v6533
        %10580 = vmatpush1.bf16.msra.mxu0 %v6532
        %10581 = vmatprep.subr.bf16.mxu0 %v6557
        %10582 = vmatpush1.bf16.msra.mxu0 %v6556
        %10583 = vmatprep.subr.bf16.mxu0 %v6581
        %10584 = vmatpush1.bf16.msra.mxu0 %v6580
        %10585 = vmatprep.subr.bf16.mxu0 %v6605
        %10586 = vmatpush1.bf16.msra.mxu0 %v6604
        %10587 = vmatprep.subr.bf16.mxu0 %v6629
        %10588 = vmatpush1.bf16.msra.mxu0 %v6628
        %10589 = vmatprep.subr.bf16.mxu0 %v6653
        %10590 = vmatpush1.bf16.msra.mxu0 %v6652
        %10591 = vmatprep.subr.bf16.mxu0 %v6677
        %10592 = vmatpush1.bf16.msra.mxu0 %v6676
        %10593 = vmatprep.subr.bf16.mxu0 %v6701
        %10594 = vmatpush1.bf16.msra.mxu0 %v6700
        %10595 = vmatprep.subr.bf16.mxu0 %v6725
        %10596 = vmatpush1.bf16.msra.mxu0 %v6724
        %10597 = vmatprep.subr.bf16.mxu0 %v6749
        %10598 = vmatpush1.bf16.msra.mxu0 %v6748
        %10599 = vmatprep.subr.bf16.mxu0 %v6773
        %10600 = vmatpush1.bf16.msra.mxu0 %v6772
        %10601 = vmatprep.subr.bf16.mxu0 %v6797
        %10602 = vmatpush1.bf16.msra.mxu0 %v6796
        %10603 = vmatprep.subr.bf16.mxu0 %v6821
        %10604 = vmatpush1.bf16.msra.mxu0 %v6820
        %10605 = vmatprep.subr.bf16.mxu0 %v6845
        %10606 = vmatpush1.bf16.msra.mxu0 %v6844
        %10607 = vmatprep.subr.bf16.mxu0 %v6869
        %10608 = vmatpush1.bf16.msra.mxu0 %v6868
        %10609 = vmatprep.mubr.bf16.mxu0 %v965
        %10610 = vmatmul.mubr.bf16.gmra.mrb[0].mxu0 %v964
        %v10611 = vpop.f32.mrb[0].mxu0
        %v10612 = vadd.f32 %v10539, %v10611
        %v10613 = vpop.f32.mrb[0].mxu0
        %v10614 = vadd.f32 %v10541, %v10613
        %v10615 = vpop.f32.mrb[0].mxu0
        %v10616 = vadd.f32 %v10543, %v10615
        %v10617 = vpop.f32.mrb[0].mxu0
        %v10618 = vadd.f32 %v10545, %v10617
        %10619 = vmatprep.mubr.bf16.mxu0 %v971
        %10620 = vmatmul.mubr.bf16.gmra.mrb[0].mxu0 %v970
        %v10621 = vpop.f32.mrb[0].mxu0
        %v10622 = vadd.f32 %v10549, %v10621
        %v10623 = vpop.f32.mrb[0].mxu0
        %v10624 = vadd.f32 %v10551, %v10623
        %v10625 = vpop.f32.mrb[0].mxu0
        %v10626 = vadd.f32 %v10553, %v10625
        %v10627 = vpop.f32.mrb[0].mxu0
        %v10628 = vadd.f32 %v10555, %v10627
        %10629 = vmatprep.mubr.bf16.mxu0 %v977
        %10630 = vmatmul.mubr.bf16.gmra.mrb[0].mxu0 %v976
        %v10631 = vpop.f32.mrb[0].mxu0
        %v10632 = vadd.f32 %v10559, %v10631
        %v10633 = vpop.f32.mrb[0].mxu0
        %v10634 = vadd.f32 %v10561, %v10633
        %v10635 = vpop.f32.mrb[0].mxu0
        %v10636 = vadd.f32 %v10563, %v10635
        %v10637 = vpop.f32.mrb[0].mxu0
        %v10638 = vadd.f32 %v10565, %v10637
        %10639 = vmatprep.mubr.bf16.mxu0 %v983
        %10640 = vmatmul.mubr.bf16.gmra.mrb[0].mxu0 %v982
        %v10641 = vpop.f32.mrb[0].mxu0
        %v10642 = vadd.f32 %v10569, %v10641
        %v10643 = vpop.f32.mrb[0].mxu0
        %v10644 = vadd.f32 %v10571, %v10643
        %v10645 = vpop.f32.mrb[0].mxu0
        %v10646 = vadd.f32 %v10573, %v10645
        %v10647 = vpop.f32.mrb[0].mxu0
        %v10648 = vadd.f32 %v10575, %v10647
        %10649 = vdwg.mxu0
        %v10650 = vmul.f32 %v8203, 0.5
        %v10651 = vmul.f32 %v8205, 0.5
        %v10652 = vmul.f32 %v8422, 0.5
        %v10653 = vmul.f32 %v8424, 0.5
        %v10654 = vmul.f32 %v8641, 0.5
        %v10655 = vmul.f32 %v8643, 0.5
        %v10656 = vmul.f32 %v8860, 0.5
        %v10657 = vmul.f32 %v8862, 0.5
        %v10658 = vmul.f32 %v9079, 0.5
        %v10659 = vmul.f32 %v9081, 0.5
        %v10660 = vmul.f32 %v9298, 0.5
        %v10661 = vmul.f32 %v9300, 0.5
        %v10662 = vmul.f32 %v9517, 0.5
        %v10663 = vmul.f32 %v9519, 0.5
        %v10664 = vmul.f32 %v9736, 0.5
        %v10665 = vmul.f32 %v9738, 0.5
        %v10666 = vmul.f32 %v9955, 0.5
        %v10667 = vmul.f32 %v9957, 0.5
        %v10668 = vmul.f32 %v10174, 0.5
        %v10669 = vmul.f32 %v10176, 0.5
        %v10670 = vmul.f32 %v10393, 0.5
        %v10671 = vmul.f32 %v10395, 0.5
        %v10672 = vmul.f32 %v10612, 0.5
        %v10673 = vmul.f32 %v10614, 0.5
        %v10674 = vmul.f32 %v8207, 0.5
        %v10675 = vmul.f32 %v8209, 0.5
        %v10676 = vmul.f32 %v8426, 0.5
        %v10677 = vmul.f32 %v8428, 0.5
        %v10678 = vmul.f32 %v8645, 0.5
        %v10679 = vmul.f32 %v8647, 0.5
        %v10680 = vmul.f32 %v8864, 0.5
        %v10681 = vmul.f32 %v8866, 0.5
        %v10682 = vmul.f32 %v9083, 0.5
        %v10683 = vmul.f32 %v9085, 0.5
        %v10684 = vmul.f32 %v9302, 0.5
        %v10685 = vmul.f32 %v9304, 0.5
        %v10686 = vmul.f32 %v9521, 0.5
        %v10687 = vmul.f32 %v9523, 0.5
        %v10688 = vmul.f32 %v9740, 0.5
        %v10689 = vmul.f32 %v9742, 0.5
        %v10690 = vmul.f32 %v9959, 0.5
        %v10691 = vmul.f32 %v9961, 0.5
        %v10692 = vmul.f32 %v10178, 0.5
        %v10693 = vmul.f32 %v10180, 0.5
        %v10694 = vmul.f32 %v10397, 0.5
        %v10695 = vmul.f32 %v10399, 0.5
        %v10696 = vmul.f32 %v10616, 0.5
        %v10697 = vmul.f32 %v10618, 0.5
        %v10698 = vmul.f32 %v8213, 0.5
        %v10699 = vmul.f32 %v8215, 0.5
        %v10700 = vmul.f32 %v8432, 0.5
        %v10701 = vmul.f32 %v8434, 0.5
        %v10702 = vmul.f32 %v8651, 0.5
        %v10703 = vmul.f32 %v8653, 0.5
        %v10704 = vmul.f32 %v8870, 0.5
        %v10705 = vmul.f32 %v8872, 0.5
        %v10706 = vmul.f32 %v9089, 0.5
        %v10707 = vmul.f32 %v9091, 0.5
        %v10708 = vmul.f32 %v9308, 0.5
        %v10709 = vmul.f32 %v9310, 0.5
        %v10710 = vmul.f32 %v9527, 0.5
        %v10711 = vmul.f32 %v9529, 0.5
        %v10712 = vmul.f32 %v9746, 0.5
        %v10713 = vmul.f32 %v9748, 0.5
        %v10714 = vmul.f32 %v9965, 0.5
        %v10715 = vmul.f32 %v9967, 0.5
        %v10716 = vmul.f32 %v10184, 0.5
        %v10717 = vmul.f32 %v10186, 0.5
        %v10718 = vmul.f32 %v10403, 0.5
        %v10719 = vmul.f32 %v10405, 0.5
        %v10720 = vmul.f32 %v10622, 0.5
        %v10721 = vmul.f32 %v10624, 0.5
        %v10722 = vmul.f32 %v8217, 0.5
        %v10723 = vmul.f32 %v8219, 0.5
        %v10724 = vmul.f32 %v8436, 0.5
        %v10725 = vmul.f32 %v8438, 0.5
        %v10726 = vmul.f32 %v8655, 0.5
        %v10727 = vmul.f32 %v8657, 0.5
        %v10728 = vmul.f32 %v8874, 0.5
        %v10729 = vmul.f32 %v8876, 0.5
        %v10730 = vmul.f32 %v9093, 0.5
        %v10731 = vmul.f32 %v9095, 0.5
        %v10732 = vmul.f32 %v9312, 0.5
        %v10733 = vmul.f32 %v9314, 0.5
        %v10734 = vmul.f32 %v9531, 0.5
        %v10735 = vmul.f32 %v9533, 0.5
        %v10736 = vmul.f32 %v9750, 0.5
        %v10737 = vmul.f32 %v9752, 0.5
        %v10738 = vmul.f32 %v9969, 0.5
        %v10739 = vmul.f32 %v9971, 0.5
        %v10740 = vmul.f32 %v10188, 0.5
        %v10741 = vmul.f32 %v10190, 0.5
        %v10742 = vmul.f32 %v10407, 0.5
        %v10743 = vmul.f32 %v10409, 0.5
        %v10744 = vmul.f32 %v10626, 0.5
        %v10745 = vmul.f32 %v10628, 0.5
        %v10746 = vmul.f32 %v8223, 0.5
        %v10747 = vmul.f32 %v8225, 0.5
        %v10748 = vmul.f32 %v8442, 0.5
        %v10749 = vmul.f32 %v8444, 0.5
        %v10750 = vmul.f32 %v8661, 0.5
        %v10751 = vmul.f32 %v8663, 0.5
        %v10752 = vmul.f32 %v8880, 0.5
        %v10753 = vmul.f32 %v8882, 0.5
        %v10754 = vmul.f32 %v9099, 0.5
        %v10755 = vmul.f32 %v9101, 0.5
        %v10756 = vmul.f32 %v9318, 0.5
        %v10757 = vmul.f32 %v9320, 0.5
        %v10758 = vmul.f32 %v9537, 0.5
        %v10759 = vmul.f32 %v9539, 0.5
        %v10760 = vmul.f32 %v9756, 0.5
        %v10761 = vmul.f32 %v9758, 0.5
        %v10762 = vmul.f32 %v9975, 0.5
        %v10763 = vmul.f32 %v9977, 0.5
        %v10764 = vmul.f32 %v10194, 0.5
        %v10765 = vmul.f32 %v10196, 0.5
        %v10766 = vmul.f32 %v10413, 0.5
        %v10767 = vmul.f32 %v10415, 0.5
        %v10768 = vmul.f32 %v10632, 0.5
        %v10769 = vmul.f32 %v10634, 0.5
        %v10770 = vmul.f32 %v8227, 0.5
        %v10771 = vmul.f32 %v8229, 0.5
        %v10772 = vmul.f32 %v8446, 0.5
        %v10773 = vmul.f32 %v8448, 0.5
        %v10774 = vmul.f32 %v8665, 0.5
        %v10775 = vmul.f32 %v8667, 0.5
        %v10776 = vmul.f32 %v8884, 0.5
        %v10777 = vmul.f32 %v8886, 0.5
        %v10778 = vmul.f32 %v9103, 0.5
        %v10779 = vmul.f32 %v9105, 0.5
        %v10780 = vmul.f32 %v9322, 0.5
        %v10781 = vmul.f32 %v9324, 0.5
        %v10782 = vmul.f32 %v9541, 0.5
        %v10783 = vmul.f32 %v9543, 0.5
        %v10784 = vmul.f32 %v9760, 0.5
        %v10785 = vmul.f32 %v9762, 0.5
        %v10786 = vmul.f32 %v9979, 0.5
        %v10787 = vmul.f32 %v9981, 0.5
        %v10788 = vmul.f32 %v10198, 0.5
        %v10789 = vmul.f32 %v10200, 0.5
        %v10790 = vmul.f32 %v10417, 0.5
        %v10791 = vmul.f32 %v10419, 0.5
        %v10792 = vmul.f32 %v10636, 0.5
        %v10793 = vmul.f32 %v10638, 0.5
        %v10794 = vmul.f32 %v8233, 0.5
        %v10795 = vmul.f32 %v8235, 0.5
        %v10796 = vmul.f32 %v8452, 0.5
        %v10797 = vmul.f32 %v8454, 0.5
        %v10798 = vmul.f32 %v8671, 0.5
        %v10799 = vmul.f32 %v8673, 0.5
        %v10800 = vmul.f32 %v8890, 0.5
        %v10801 = vmul.f32 %v8892, 0.5
        %v10802 = vmul.f32 %v9109, 0.5
        %v10803 = vmul.f32 %v9111, 0.5
        %v10804 = vmul.f32 %v9328, 0.5
        %v10805 = vmul.f32 %v9330, 0.5
        %v10806 = vmul.f32 %v9547, 0.5
        %v10807 = vmul.f32 %v9549, 0.5
        %v10808 = vmul.f32 %v9766, 0.5
        %v10809 = vmul.f32 %v9768, 0.5
        %v10810 = vmul.f32 %v9985, 0.5
        %v10811 = vmul.f32 %v9987, 0.5
        %v10812 = vmul.f32 %v10204, 0.5
        %v10813 = vmul.f32 %v10206, 0.5
        %v10814 = vmul.f32 %v10423, 0.5
        %v10815 = vmul.f32 %v10425, 0.5
        %v10816 = vmul.f32 %v10642, 0.5
        %v10817 = vmul.f32 %v10644, 0.5
        %v10818 = vmul.f32 %v8237, 0.5
        %v10819 = vmul.f32 %v8239, 0.5
        %v10820 = vmul.f32 %v8456, 0.5
        %v10821 = vmul.f32 %v8458, 0.5
        %v10822 = vmul.f32 %v8675, 0.5
        %v10823 = vmul.f32 %v8677, 0.5
        %v10824 = vmul.f32 %v8894, 0.5
        %v10825 = vmul.f32 %v8896, 0.5
        %v10826 = vmul.f32 %v9113, 0.5
        %v10827 = vmul.f32 %v9115, 0.5
        %v10828 = vmul.f32 %v9332, 0.5
        %v10829 = vmul.f32 %v9334, 0.5
        %v10830 = vmul.f32 %v9551, 0.5
        %v10831 = vmul.f32 %v9553, 0.5
        %v10832 = vmul.f32 %v9770, 0.5
        %v10833 = vmul.f32 %v9772, 0.5
        %v10834 = vmul.f32 %v9989, 0.5
        %v10835 = vmul.f32 %v9991, 0.5
        %v10836 = vmul.f32 %v10208, 0.5
        %v10837 = vmul.f32 %v10210, 0.5
        %v10838 = vmul.f32 %v10427, 0.5
        %v10839 = vmul.f32 %v10429, 0.5
        %v10840 = vmul.f32 %v10646, 0.5
        %v10841 = vmul.f32 %v10648, 0.5
        %v10842 = vmul.f32 %v8203, 0.70710677
        %v10843 = vmul.f32 %v8205, 0.70710677
        %v10844 = vmul.f32 %v8422, 0.70710677
        %v10845 = vmul.f32 %v8424, 0.70710677
        %v10846 = vmul.f32 %v8641, 0.70710677
        %v10847 = vmul.f32 %v8643, 0.70710677
        %v10848 = vmul.f32 %v8860, 0.70710677
        %v10849 = vmul.f32 %v8862, 0.70710677
        %v10850 = vmul.f32 %v9079, 0.70710677
        %v10851 = vmul.f32 %v9081, 0.70710677
        %v10852 = vmul.f32 %v9298, 0.70710677
        %v10853 = vmul.f32 %v9300, 0.70710677
        %v10854 = vmul.f32 %v9517, 0.70710677
        %v10855 = vmul.f32 %v9519, 0.70710677
        %v10856 = vmul.f32 %v9736, 0.70710677
        %v10857 = vmul.f32 %v9738, 0.70710677
        %v10858 = vmul.f32 %v9955, 0.70710677
        %v10859 = vmul.f32 %v9957, 0.70710677
        %v10860 = vmul.f32 %v10174, 0.70710677
        %v10861 = vmul.f32 %v10176, 0.70710677
        %v10862 = vmul.f32 %v10393, 0.70710677
        %v10863 = vmul.f32 %v10395, 0.70710677
        %v10864 = vmul.f32 %v10612, 0.70710677
        %v10865 = vmul.f32 %v10614, 0.70710677
        %v10866 = vmul.f32 %v8207, 0.70710677
        %v10867 = vmul.f32 %v8209, 0.70710677
        %v10868 = vmul.f32 %v8426, 0.70710677
        %v10869 = vmul.f32 %v8428, 0.70710677
        %v10870 = vmul.f32 %v8645, 0.70710677
        %v10871 = vmul.f32 %v8647, 0.70710677
        %v10872 = vmul.f32 %v8864, 0.70710677
        %v10873 = vmul.f32 %v8866, 0.70710677
        %v10874 = vmul.f32 %v9083, 0.70710677
        %v10875 = vmul.f32 %v9085, 0.70710677
        %v10876 = vmul.f32 %v9302, 0.70710677
        %v10877 = vmul.f32 %v9304, 0.70710677
        %v10878 = vmul.f32 %v9521, 0.70710677
        %v10879 = vmul.f32 %v9523, 0.70710677
        %v10880 = vmul.f32 %v9740, 0.70710677
        %v10881 = vmul.f32 %v9742, 0.70710677
        %v10882 = vmul.f32 %v9959, 0.70710677
        %v10883 = vmul.f32 %v9961, 0.70710677
        %v10884 = vmul.f32 %v10178, 0.70710677
        %v10885 = vmul.f32 %v10180, 0.70710677
        %v10886 = vmul.f32 %v10397, 0.70710677
        %v10887 = vmul.f32 %v10399, 0.70710677
        %v10888 = vmul.f32 %v10616, 0.70710677
        %v10889 = vmul.f32 %v10618, 0.70710677
        %v10890 = vmul.f32 %v8213, 0.70710677
        %v10891 = vmul.f32 %v8215, 0.70710677
        %v10892 = vmul.f32 %v8432, 0.70710677
        %v10893 = vmul.f32 %v8434, 0.70710677
        %v10894 = vmul.f32 %v8651, 0.70710677
        %v10895 = vmul.f32 %v8653, 0.70710677
        %v10896 = vmul.f32 %v8870, 0.70710677
        %v10897 = vmul.f32 %v8872, 0.70710677
        %v10898 = vmul.f32 %v9089, 0.70710677
        %v10899 = vmul.f32 %v9091, 0.70710677
        %v10900 = vmul.f32 %v9308, 0.70710677
        %v10901 = vmul.f32 %v9310, 0.70710677
        %v10902 = vmul.f32 %v9527, 0.70710677
        %v10903 = vmul.f32 %v9529, 0.70710677
        %v10904 = vmul.f32 %v9746, 0.70710677
        %v10905 = vmul.f32 %v9748, 0.70710677
        %v10906 = vmul.f32 %v9965, 0.70710677
        %v10907 = vmul.f32 %v9967, 0.70710677
        %v10908 = vmul.f32 %v10184, 0.70710677
        %v10909 = vmul.f32 %v10186, 0.70710677
        %v10910 = vmul.f32 %v10403, 0.70710677
        %v10911 = vmul.f32 %v10405, 0.70710677
        %v10912 = vmul.f32 %v10622, 0.70710677
        %v10913 = vmul.f32 %v10624, 0.70710677
        %v10914 = vmul.f32 %v8217, 0.70710677
        %v10915 = vmul.f32 %v8219, 0.70710677
        %v10916 = vmul.f32 %v8436, 0.70710677
        %v10917 = vmul.f32 %v8438, 0.70710677
        %v10918 = vmul.f32 %v8655, 0.70710677
        %v10919 = vmul.f32 %v8657, 0.70710677
        %v10920 = vmul.f32 %v8874, 0.70710677
        %v10921 = vmul.f32 %v8876, 0.70710677
        %v10922 = vmul.f32 %v9093, 0.70710677
        %v10923 = vmul.f32 %v9095, 0.70710677
        %v10924 = vmul.f32 %v9312, 0.70710677
        %v10925 = vmul.f32 %v9314, 0.70710677
        %v10926 = vmul.f32 %v9531, 0.70710677
        %v10927 = vmul.f32 %v9533, 0.70710677
        %v10928 = vmul.f32 %v9750, 0.70710677
        %v10929 = vmul.f32 %v9752, 0.70710677
        %v10930 = vmul.f32 %v9969, 0.70710677
        %v10931 = vmul.f32 %v9971, 0.70710677
        %v10932 = vmul.f32 %v10188, 0.70710677
        %v10933 = vmul.f32 %v10190, 0.70710677
        %v10934 = vmul.f32 %v10407, 0.70710677
        %v10935 = vmul.f32 %v10409, 0.70710677
        %v10936 = vmul.f32 %v10626, 0.70710677
        %v10937 = vmul.f32 %v10628, 0.70710677
        %v10938 = vmul.f32 %v8223, 0.70710677
        %v10939 = vmul.f32 %v8225, 0.70710677
        %v10940 = vmul.f32 %v8442, 0.70710677
        %v10941 = vmul.f32 %v8444, 0.70710677
        %v10942 = vmul.f32 %v8661, 0.70710677
        %v10943 = vmul.f32 %v8663, 0.70710677
        %v10944 = vmul.f32 %v8880, 0.70710677
        %v10945 = vmul.f32 %v8882, 0.70710677
        %v10946 = vmul.f32 %v9099, 0.70710677
        %v10947 = vmul.f32 %v9101, 0.70710677
        %v10948 = vmul.f32 %v9318, 0.70710677
        %v10949 = vmul.f32 %v9320, 0.70710677
        %v10950 = vmul.f32 %v9537, 0.70710677
        %v10951 = vmul.f32 %v9539, 0.70710677
        %v10952 = vmul.f32 %v9756, 0.70710677
        %v10953 = vmul.f32 %v9758, 0.70710677
        %v10954 = vmul.f32 %v9975, 0.70710677
        %v10955 = vmul.f32 %v9977, 0.70710677
        %v10956 = vmul.f32 %v10194, 0.70710677
        %v10957 = vmul.f32 %v10196, 0.70710677
        %v10958 = vmul.f32 %v10413, 0.70710677
        %v10959 = vmul.f32 %v10415, 0.70710677
        %v10960 = vmul.f32 %v10632, 0.70710677
        %v10961 = vmul.f32 %v10634, 0.70710677
        %v10962 = vmul.f32 %v8227, 0.70710677
        %v10963 = vmul.f32 %v8229, 0.70710677
        %v10964 = vmul.f32 %v8446, 0.70710677
        %v10965 = vmul.f32 %v8448, 0.70710677
        %v10966 = vmul.f32 %v8665, 0.70710677
        %v10967 = vmul.f32 %v8667, 0.70710677
        %v10968 = vmul.f32 %v8884, 0.70710677
        %v10969 = vmul.f32 %v8886, 0.70710677
        %v10970 = vmul.f32 %v9103, 0.70710677
        %v10971 = vmul.f32 %v9105, 0.70710677
        %v10972 = vmul.f32 %v9322, 0.70710677
        %v10973 = vmul.f32 %v9324, 0.70710677
        %v10974 = vmul.f32 %v9541, 0.70710677
        %v10975 = vmul.f32 %v9543, 0.70710677
        %v10976 = vmul.f32 %v9760, 0.70710677
        %v10977 = vmul.f32 %v9762, 0.70710677
        %v10978 = vmul.f32 %v9979, 0.70710677
        %v10979 = vmul.f32 %v9981, 0.70710677
        %v10980 = vmul.f32 %v10198, 0.70710677
        %v10981 = vmul.f32 %v10200, 0.70710677
        %v10982 = vmul.f32 %v10417, 0.70710677
        %v10983 = vmul.f32 %v10419, 0.70710677
        %v10984 = vmul.f32 %v10636, 0.70710677
        %v10985 = vmul.f32 %v10638, 0.70710677
        %v10986 = vmul.f32 %v8233, 0.70710677
        %v10987 = vmul.f32 %v8235, 0.70710677
        %v10988 = vmul.f32 %v8452, 0.70710677
        %v10989 = vmul.f32 %v8454, 0.70710677
        %v10990 = vmul.f32 %v8671, 0.70710677
        %v10991 = vmul.f32 %v8673, 0.70710677
        %v10992 = vmul.f32 %v8890, 0.70710677
        %v10993 = vmul.f32 %v8892, 0.70710677
        %v10994 = vmul.f32 %v9109, 0.70710677
        %v10995 = vmul.f32 %v9111, 0.70710677
        %v10996 = vmul.f32 %v9328, 0.70710677
        %v10997 = vmul.f32 %v9330, 0.70710677
        %v10998 = vmul.f32 %v9547, 0.70710677
        %v10999 = vmul.f32 %v9549, 0.70710677
        %v11000 = vmul.f32 %v9766, 0.70710677
        %v11001 = vmul.f32 %v9768, 0.70710677
        %v11002 = vmul.f32 %v9985, 0.70710677
        %v11003 = vmul.f32 %v9987, 0.70710677
        %v11004 = vmul.f32 %v10204, 0.70710677
        %v11005 = vmul.f32 %v10206, 0.70710677
        %v11006 = vmul.f32 %v10423, 0.70710677
        %v11007 = vmul.f32 %v10425, 0.70710677
        %v11008 = vmul.f32 %v10642, 0.70710677
        %v11009 = vmul.f32 %v10644, 0.70710677
        %v11010 = vmul.f32 %v8237, 0.70710677
        %v11011 = vmul.f32 %v8239, 0.70710677
        %v11012 = vmul.f32 %v8456, 0.70710677
        %v11013 = vmul.f32 %v8458, 0.70710677
        %v11014 = vmul.f32 %v8675, 0.70710677
        %v11015 = vmul.f32 %v8677, 0.70710677
        %v11016 = vmul.f32 %v8894, 0.70710677
        %v11017 = vmul.f32 %v8896, 0.70710677
        %v11018 = vmul.f32 %v9113, 0.70710677
        %v11019 = vmul.f32 %v9115, 0.70710677
        %v11020 = vmul.f32 %v9332, 0.70710677
        %v11021 = vmul.f32 %v9334, 0.70710677
        %v11022 = vmul.f32 %v9551, 0.70710677
        %v11023 = vmul.f32 %v9553, 0.70710677
        %v11024 = vmul.f32 %v9770, 0.70710677
        %v11025 = vmul.f32 %v9772, 0.70710677
        %v11026 = vmul.f32 %v9989, 0.70710677
        %v11027 = vmul.f32 %v9991, 0.70710677
        %v11028 = vmul.f32 %v10208, 0.70710677
        %v11029 = vmul.f32 %v10210, 0.70710677
        %v11030 = vmul.f32 %v10427, 0.70710677
        %v11031 = vmul.f32 %v10429, 0.70710677
        %v11032 = vmul.f32 %v10646, 0.70710677
        %v11033 = vmul.f32 %v10648, 0.70710677
        %v11034 = verf.f32.pop %v10842
        %v11035 = verf.f32.pop %v10843
        %v11036 = verf.f32.pop %v10844
        %v11037 = verf.f32.pop %v10845
        %v11038 = verf.f32.pop %v10846
        %v11039 = verf.f32.pop %v10847
        %v11040 = verf.f32.pop %v10848
        %v11041 = verf.f32.pop %v10849
        %v11042 = verf.f32.pop %v10850
        %v11043 = verf.f32.pop %v10851
        %v11044 = verf.f32.pop %v10852
        %v11045 = verf.f32.pop %v10853
        %v11046 = verf.f32.pop %v10854
        %v11047 = verf.f32.pop %v10855
        %v11048 = verf.f32.pop %v10856
        %v11049 = verf.f32.pop %v10857
        %v11050 = verf.f32.pop %v10858
        %v11051 = verf.f32.pop %v10859
        %v11052 = verf.f32.pop %v10860
        %v11053 = verf.f32.pop %v10861
        %v11054 = verf.f32.pop %v10862
        %v11055 = verf.f32.pop %v10863
        %v11056 = verf.f32.pop %v10864
        %v11057 = verf.f32.pop %v10865
        %v11058 = verf.f32.pop %v10866
        %v11059 = verf.f32.pop %v10867
        %v11060 = verf.f32.pop %v10868
        %v11061 = verf.f32.pop %v10869
        %v11062 = verf.f32.pop %v10870
        %v11063 = verf.f32.pop %v10871
        %v11064 = verf.f32.pop %v10872
        %v11065 = verf.f32.pop %v10873
        %v11066 = verf.f32.pop %v10874
        %v11067 = verf.f32.pop %v10875
        %v11068 = verf.f32.pop %v10876
        %v11069 = verf.f32.pop %v10877
        %v11070 = verf.f32.pop %v10878
        %v11071 = verf.f32.pop %v10879
        %v11072 = verf.f32.pop %v10880
        %v11073 = verf.f32.pop %v10881
        %v11074 = verf.f32.pop %v10882
        %v11075 = verf.f32.pop %v10883
        %v11076 = verf.f32.pop %v10884
        %v11077 = verf.f32.pop %v10885
        %v11078 = verf.f32.pop %v10886
        %v11079 = verf.f32.pop %v10887
        %v11080 = verf.f32.pop %v10888
        %v11081 = verf.f32.pop %v10889
        %v11082 = verf.f32.pop %v10890
        %v11083 = verf.f32.pop %v10891
        %v11084 = verf.f32.pop %v10892
        %v11085 = verf.f32.pop %v10893
        %v11086 = verf.f32.pop %v10894
        %v11087 = verf.f32.pop %v10895
        %v11088 = verf.f32.pop %v10896
        %v11089 = verf.f32.pop %v10897
        %v11090 = verf.f32.pop %v10898
        %v11091 = verf.f32.pop %v10899
        %v11092 = verf.f32.pop %v10900
        %v11093 = verf.f32.pop %v10901
        %v11094 = verf.f32.pop %v10902
        %v11095 = verf.f32.pop %v10903
        %v11096 = verf.f32.pop %v10904
        %v11097 = verf.f32.pop %v10905
        %v11098 = verf.f32.pop %v10906
        %v11099 = verf.f32.pop %v10907
        %v11100 = verf.f32.pop %v10908
        %v11101 = verf.f32.pop %v10909
        %v11102 = verf.f32.pop %v10910
        %v11103 = verf.f32.pop %v10911
        %v11104 = verf.f32.pop %v10912
        %v11105 = verf.f32.pop %v10913
        %v11106 = verf.f32.pop %v10914
        %v11107 = verf.f32.pop %v10915
        %v11108 = verf.f32.pop %v10916
        %v11109 = verf.f32.pop %v10917
        %v11110 = verf.f32.pop %v10918
        %v11111 = verf.f32.pop %v10919
        %v11112 = verf.f32.pop %v10920
        %v11113 = verf.f32.pop %v10921
        %v11114 = verf.f32.pop %v10922
        %v11115 = verf.f32.pop %v10923
        %v11116 = verf.f32.pop %v10924
        %v11117 = verf.f32.pop %v10925
        %v11118 = verf.f32.pop %v10926
        %v11119 = verf.f32.pop %v10927
        %v11120 = verf.f32.pop %v10928
        %v11121 = verf.f32.pop %v10929
        %v11122 = verf.f32.pop %v10930
        %v11123 = verf.f32.pop %v10931
        %v11124 = verf.f32.pop %v10932
        %v11125 = verf.f32.pop %v10933
        %v11126 = verf.f32.pop %v10934
        %v11127 = verf.f32.pop %v10935
        %v11128 = verf.f32.pop %v10936
        %v11129 = verf.f32.pop %v10937
        %v11130 = verf.f32.pop %v10938
        %v11131 = verf.f32.pop %v10939
        %v11132 = verf.f32.pop %v10940
        %v11133 = verf.f32.pop %v10941
        %v11134 = verf.f32.pop %v10942
        %v11135 = verf.f32.pop %v10943
        %v11136 = verf.f32.pop %v10944
        %v11137 = verf.f32.pop %v10945
        %v11138 = verf.f32.pop %v10946
        %v11139 = verf.f32.pop %v10947
        %v11140 = verf.f32.pop %v10948
        %v11141 = verf.f32.pop %v10949
        %v11142 = verf.f32.pop %v10950
        %v11143 = verf.f32.pop %v10951
        %v11144 = verf.f32.pop %v10952
        %v11145 = verf.f32.pop %v10953
        %v11146 = verf.f32.pop %v10954
        %v11147 = verf.f32.pop %v10955
        %v11148 = verf.f32.pop %v10956
        %v11149 = verf.f32.pop %v10957
        %v11150 = verf.f32.pop %v10958
        %v11151 = verf.f32.pop %v10959
        %v11152 = verf.f32.pop %v10960
        %v11153 = verf.f32.pop %v10961
        %v11154 = verf.f32.pop %v10962
        %v11155 = verf.f32.pop %v10963
        %v11156 = verf.f32.pop %v10964
        %v11157 = verf.f32.pop %v10965
        %v11158 = verf.f32.pop %v10966
        %v11159 = verf.f32.pop %v10967
        %v11160 = verf.f32.pop %v10968
        %v11161 = verf.f32.pop %v10969
        %v11162 = verf.f32.pop %v10970
        %v11163 = verf.f32.pop %v10971
        %v11164 = verf.f32.pop %v10972
        %v11165 = verf.f32.pop %v10973
        %v11166 = verf.f32.pop %v10974
        %v11167 = verf.f32.pop %v10975
        %v11168 = verf.f32.pop %v10976
        %v11169 = verf.f32.pop %v10977
        %v11170 = verf.f32.pop %v10978
        %v11171 = verf.f32.pop %v10979
        %v11172 = verf.f32.pop %v10980
        %v11173 = verf.f32.pop %v10981
        %v11174 = verf.f32.pop %v10982
        %v11175 = verf.f32.pop %v10983
        %v11176 = verf.f32.pop %v10984
        %v11177 = verf.f32.pop %v10985
        %v11178 = verf.f32.pop %v10986
        %v11179 = verf.f32.pop %v10987
        %v11180 = verf.f32.pop %v10988
        %v11181 = verf.f32.pop %v10989
        %v11182 = verf.f32.pop %v10990
        %v11183 = verf.f32.pop %v10991
        %v11184 = verf.f32.pop %v10992
        %v11185 = verf.f32.pop %v10993
        %v11186 = verf.f32.pop %v10994
        %v11187 = verf.f32.pop %v10995
        %v11188 = verf.f32.pop %v10996
        %v11189 = verf.f32.pop %v10997
        %v11190 = verf.f32.pop %v10998
        %v11191 = verf.f32.pop %v10999
        %v11192 = verf.f32.pop %v11000
        %v11193 = verf.f32.pop %v11001
        %v11194 = verf.f32.pop %v11002
        %v11195 = verf.f32.pop %v11003
        %v11196 = verf.f32.pop %v11004
        %v11197 = verf.f32.pop %v11005
        %v11198 = verf.f32.pop %v11006
        %v11199 = verf.f32.pop %v11007
        %v11200 = verf.f32.pop %v11008
        %v11201 = verf.f32.pop %v11009
        %v11202 = verf.f32.pop %v11010
        %v11203 = verf.f32.pop %v11011
        %v11204 = verf.f32.pop %v11012
        %v11205 = verf.f32.pop %v11013
        %v11206 = verf.f32.pop %v11014
        %v11207 = verf.f32.pop %v11015
        %v11208 = verf.f32.pop %v11016
        %v11209 = verf.f32.pop %v11017
        %v11210 = verf.f32.pop %v11018
        %v11211 = verf.f32.pop %v11019
        %v11212 = verf.f32.pop %v11020
        %v11213 = verf.f32.pop %v11021
        %v11214 = verf.f32.pop %v11022
        %v11215 = verf.f32.pop %v11023
        %v11216 = verf.f32.pop %v11024
        %v11217 = verf.f32.pop %v11025
        %v11218 = verf.f32.pop %v11026
        %v11219 = verf.f32.pop %v11027
        %v11220 = verf.f32.pop %v11028
        %v11221 = verf.f32.pop %v11029
        %v11222 = verf.f32.pop %v11030
        %v11223 = verf.f32.pop %v11031
        %v11224 = verf.f32.pop %v11032
        %v11225 = verf.f32.pop %v11033
        %v11226 = vadd.f32 %v11034, 1.0
        %v11227 = vadd.f32 %v11035, 1.0
        %v11228 = vadd.f32 %v11036, 1.0
        %v11229 = vadd.f32 %v11037, 1.0
        %v11230 = vadd.f32 %v11038, 1.0
        %v11231 = vadd.f32 %v11039, 1.0
        %v11232 = vadd.f32 %v11040, 1.0
        %v11233 = vadd.f32 %v11041, 1.0
        %v11234 = vadd.f32 %v11042, 1.0
        %v11235 = vadd.f32 %v11043, 1.0
        %v11236 = vadd.f32 %v11044, 1.0
        %v11237 = vadd.f32 %v11045, 1.0
        %v11238 = vadd.f32 %v11046, 1.0
        %v11239 = vadd.f32 %v11047, 1.0
        %v11240 = vadd.f32 %v11048, 1.0
        %v11241 = vadd.f32 %v11049, 1.0
        %v11242 = vadd.f32 %v11050, 1.0
        %v11243 = vadd.f32 %v11051, 1.0
        %v11244 = vadd.f32 %v11052, 1.0
        %v11245 = vadd.f32 %v11053, 1.0
        %v11246 = vadd.f32 %v11054, 1.0
        %v11247 = vadd.f32 %v11055, 1.0
        %v11248 = vadd.f32 %v11056, 1.0
        %v11249 = vadd.f32 %v11057, 1.0
        %v11250 = vadd.f32 %v11058, 1.0
        %v11251 = vadd.f32 %v11059, 1.0
        %v11252 = vadd.f32 %v11060, 1.0
        %v11253 = vadd.f32 %v11061, 1.0
        %v11254 = vadd.f32 %v11062, 1.0
        %v11255 = vadd.f32 %v11063, 1.0
        %v11256 = vadd.f32 %v11064, 1.0
        %v11257 = vadd.f32 %v11065, 1.0
        %v11258 = vadd.f32 %v11066, 1.0
        %v11259 = vadd.f32 %v11067, 1.0
        %v11260 = vadd.f32 %v11068, 1.0
        %v11261 = vadd.f32 %v11069, 1.0
        %v11262 = vadd.f32 %v11070, 1.0
        %v11263 = vadd.f32 %v11071, 1.0
        %v11264 = vadd.f32 %v11072, 1.0
        %v11265 = vadd.f32 %v11073, 1.0
        %v11266 = vadd.f32 %v11074, 1.0
        %v11267 = vadd.f32 %v11075, 1.0
        %v11268 = vadd.f32 %v11076, 1.0
        %v11269 = vadd.f32 %v11077, 1.0
        %v11270 = vadd.f32 %v11078, 1.0
        %v11271 = vadd.f32 %v11079, 1.0
        %v11272 = vadd.f32 %v11080, 1.0
        %v11273 = vadd.f32 %v11081, 1.0
        %v11274 = vadd.f32 %v11082, 1.0
        %v11275 = vadd.f32 %v11083, 1.0
        %v11276 = vadd.f32 %v11084, 1.0
        %v11277 = vadd.f32 %v11085, 1.0
        %v11278 = vadd.f32 %v11086, 1.0
        %v11279 = vadd.f32 %v11087, 1.0
        %v11280 = vadd.f32 %v11088, 1.0
        %v11281 = vadd.f32 %v11089, 1.0
        %v11282 = vadd.f32 %v11090, 1.0
        %v11283 = vadd.f32 %v11091, 1.0
        %v11284 = vadd.f32 %v11092, 1.0
        %v11285 = vadd.f32 %v11093, 1.0
        %v11286 = vadd.f32 %v11094, 1.0
        %v11287 = vadd.f32 %v11095, 1.0
        %v11288 = vadd.f32 %v11096, 1.0
        %v11289 = vadd.f32 %v11097, 1.0
        %v11290 = vadd.f32 %v11098, 1.0
        %v11291 = vadd.f32 %v11099, 1.0
        %v11292 = vadd.f32 %v11100, 1.0
        %v11293 = vadd.f32 %v11101, 1.0
        %v11294 = vadd.f32 %v11102, 1.0
        %v11295 = vadd.f32 %v11103, 1.0
        %v11296 = vadd.f32 %v11104, 1.0
        %v11297 = vadd.f32 %v11105, 1.0
        %v11298 = vadd.f32 %v11106, 1.0
        %v11299 = vadd.f32 %v11107, 1.0
        %v11300 = vadd.f32 %v11108, 1.0
        %v11301 = vadd.f32 %v11109, 1.0
        %v11302 = vadd.f32 %v11110, 1.0
        %v11303 = vadd.f32 %v11111, 1.0
        %v11304 = vadd.f32 %v11112, 1.0
        %v11305 = vadd.f32 %v11113, 1.0
        %v11306 = vadd.f32 %v11114, 1.0
        %v11307 = vadd.f32 %v11115, 1.0
        %v11308 = vadd.f32 %v11116, 1.0
        %v11309 = vadd.f32 %v11117, 1.0
        %v11310 = vadd.f32 %v11118, 1.0
        %v11311 = vadd.f32 %v11119, 1.0
        %v11312 = vadd.f32 %v11120, 1.0
        %v11313 = vadd.f32 %v11121, 1.0
        %v11314 = vadd.f32 %v11122, 1.0
        %v11315 = vadd.f32 %v11123, 1.0
        %v11316 = vadd.f32 %v11124, 1.0
        %v11317 = vadd.f32 %v11125, 1.0
        %v11318 = vadd.f32 %v11126, 1.0
        %v11319 = vadd.f32 %v11127, 1.0
        %v11320 = vadd.f32 %v11128, 1.0
        %v11321 = vadd.f32 %v11129, 1.0
        %v11322 = vadd.f32 %v11130, 1.0
        %v11323 = vadd.f32 %v11131, 1.0
        %v11324 = vadd.f32 %v11132, 1.0
        %v11325 = vadd.f32 %v11133, 1.0
        %v11326 = vadd.f32 %v11134, 1.0
        %v11327 = vadd.f32 %v11135, 1.0
        %v11328 = vadd.f32 %v11136, 1.0
        %v11329 = vadd.f32 %v11137, 1.0
        %v11330 = vadd.f32 %v11138, 1.0
        %v11331 = vadd.f32 %v11139, 1.0
        %v11332 = vadd.f32 %v11140, 1.0
        %v11333 = vadd.f32 %v11141, 1.0
        %v11334 = vadd.f32 %v11142, 1.0
        %v11335 = vadd.f32 %v11143, 1.0
        %v11336 = vadd.f32 %v11144, 1.0
        %v11337 = vadd.f32 %v11145, 1.0
        %v11338 = vadd.f32 %v11146, 1.0
        %v11339 = vadd.f32 %v11147, 1.0
        %v11340 = vadd.f32 %v11148, 1.0
        %v11341 = vadd.f32 %v11149, 1.0
        %v11342 = vadd.f32 %v11150, 1.0
        %v11343 = vadd.f32 %v11151, 1.0
        %v11344 = vadd.f32 %v11152, 1.0
        %v11345 = vadd.f32 %v11153, 1.0
        %v11346 = vadd.f32 %v11154, 1.0
        %v11347 = vadd.f32 %v11155, 1.0
        %v11348 = vadd.f32 %v11156, 1.0
        %v11349 = vadd.f32 %v11157, 1.0
        %v11350 = vadd.f32 %v11158, 1.0
        %v11351 = vadd.f32 %v11159, 1.0
        %v11352 = vadd.f32 %v11160, 1.0
        %v11353 = vadd.f32 %v11161, 1.0
        %v11354 = vadd.f32 %v11162, 1.0
        %v11355 = vadd.f32 %v11163, 1.0
        %v11356 = vadd.f32 %v11164, 1.0
        %v11357 = vadd.f32 %v11165, 1.0
        %v11358 = vadd.f32 %v11166, 1.0
        %v11359 = vadd.f32 %v11167, 1.0
        %v11360 = vadd.f32 %v11168, 1.0
        %v11361 = vadd.f32 %v11169, 1.0
        %v11362 = vadd.f32 %v11170, 1.0
        %v11363 = vadd.f32 %v11171, 1.0
        %v11364 = vadd.f32 %v11172, 1.0
        %v11365 = vadd.f32 %v11173, 1.0
        %v11366 = vadd.f32 %v11174, 1.0
        %v11367 = vadd.f32 %v11175, 1.0
        %v11368 = vadd.f32 %v11176, 1.0
        %v11369 = vadd.f32 %v11177, 1.0
        %v11370 = vadd.f32 %v11178, 1.0
        %v11371 = vadd.f32 %v11179, 1.0
        %v11372 = vadd.f32 %v11180, 1.0
        %v11373 = vadd.f32 %v11181, 1.0
        %v11374 = vadd.f32 %v11182, 1.0
        %v11375 = vadd.f32 %v11183, 1.0
        %v11376 = vadd.f32 %v11184, 1.0
        %v11377 = vadd.f32 %v11185, 1.0
        %v11378 = vadd.f32 %v11186, 1.0
        %v11379 = vadd.f32 %v11187, 1.0
        %v11380 = vadd.f32 %v11188, 1.0
        %v11381 = vadd.f32 %v11189, 1.0
        %v11382 = vadd.f32 %v11190, 1.0
        %v11383 = vadd.f32 %v11191, 1.0
        %v11384 = vadd.f32 %v11192, 1.0
        %v11385 = vadd.f32 %v11193, 1.0
        %v11386 = vadd.f32 %v11194, 1.0
        %v11387 = vadd.f32 %v11195, 1.0
        %v11388 = vadd.f32 %v11196, 1.0
        %v11389 = vadd.f32 %v11197, 1.0
        %v11390 = vadd.f32 %v11198, 1.0
        %v11391 = vadd.f32 %v11199, 1.0
        %v11392 = vadd.f32 %v11200, 1.0
        %v11393 = vadd.f32 %v11201, 1.0
        %v11394 = vadd.f32 %v11202, 1.0
        %v11395 = vadd.f32 %v11203, 1.0
        %v11396 = vadd.f32 %v11204, 1.0
        %v11397 = vadd.f32 %v11205, 1.0
        %v11398 = vadd.f32 %v11206, 1.0
        %v11399 = vadd.f32 %v11207, 1.0
        %v11400 = vadd.f32 %v11208, 1.0
        %v11401 = vadd.f32 %v11209, 1.0
        %v11402 = vadd.f32 %v11210, 1.0
        %v11403 = vadd.f32 %v11211, 1.0
        %v11404 = vadd.f32 %v11212, 1.0
        %v11405 = vadd.f32 %v11213, 1.0
        %v11406 = vadd.f32 %v11214, 1.0
        %v11407 = vadd.f32 %v11215, 1.0
        %v11408 = vadd.f32 %v11216, 1.0
        %v11409 = vadd.f32 %v11217, 1.0
        %v11410 = vadd.f32 %v11218, 1.0
        %v11411 = vadd.f32 %v11219, 1.0
        %v11412 = vadd.f32 %v11220, 1.0
        %v11413 = vadd.f32 %v11221, 1.0
        %v11414 = vadd.f32 %v11222, 1.0
        %v11415 = vadd.f32 %v11223, 1.0
        %v11416 = vadd.f32 %v11224, 1.0
        %v11417 = vadd.f32 %v11225, 1.0
        %v11418 = vmul.f32 %v10650, %v11226
        %v11419 = vmul.f32 %v10651, %v11227
        %v11420 = vmul.f32 %v10652, %v11228
        %v11421 = vmul.f32 %v10653, %v11229
        %v11422 = vmul.f32 %v10654, %v11230
        %v11423 = vmul.f32 %v10655, %v11231
        %v11424 = vmul.f32 %v10656, %v11232
        %v11425 = vmul.f32 %v10657, %v11233
        %v11426 = vmul.f32 %v10658, %v11234
        %v11427 = vmul.f32 %v10659, %v11235
        %v11428 = vmul.f32 %v10660, %v11236
        %v11429 = vmul.f32 %v10661, %v11237
        %v11430 = vmul.f32 %v10662, %v11238
        %v11431 = vmul.f32 %v10663, %v11239
        %v11432 = vmul.f32 %v10664, %v11240
        %v11433 = vmul.f32 %v10665, %v11241
        %v11434 = vmul.f32 %v10666, %v11242
        %v11435 = vmul.f32 %v10667, %v11243
        %v11436 = vmul.f32 %v10668, %v11244
        %v11437 = vmul.f32 %v10669, %v11245
        %v11438 = vmul.f32 %v10670, %v11246
        %v11439 = vmul.f32 %v10671, %v11247
        %v11440 = vmul.f32 %v10672, %v11248
        %v11441 = vmul.f32 %v10673, %v11249
        %v11442 = vmul.f32 %v10674, %v11250
        %v11443 = vmul.f32 %v10675, %v11251
        %v11444 = vmul.f32 %v10676, %v11252
        %v11445 = vmul.f32 %v10677, %v11253
        %v11446 = vmul.f32 %v10678, %v11254
        %v11447 = vmul.f32 %v10679, %v11255
        %v11448 = vmul.f32 %v10680, %v11256
        %v11449 = vmul.f32 %v10681, %v11257
        %v11450 = vmul.f32 %v10682, %v11258
        %v11451 = vmul.f32 %v10683, %v11259
        %v11452 = vmul.f32 %v10684, %v11260
        %v11453 = vmul.f32 %v10685, %v11261
        %v11454 = vmul.f32 %v10686, %v11262
        %v11455 = vmul.f32 %v10687, %v11263
        %v11456 = vmul.f32 %v10688, %v11264
        %v11457 = vmul.f32 %v10689, %v11265
        %v11458 = vmul.f32 %v10690, %v11266
        %v11459 = vmul.f32 %v10691, %v11267
        %v11460 = vmul.f32 %v10692, %v11268
        %v11461 = vmul.f32 %v10693, %v11269
        %v11462 = vmul.f32 %v10694, %v11270
        %v11463 = vmul.f32 %v10695, %v11271
        %v11464 = vmul.f32 %v10696, %v11272
        %v11465 = vmul.f32 %v10697, %v11273
        %v11466 = vmul.f32 %v10698, %v11274
        %v11467 = vmul.f32 %v10699, %v11275
        %v11468 = vmul.f32 %v10700, %v11276
        %v11469 = vmul.f32 %v10701, %v11277
        %v11470 = vmul.f32 %v10702, %v11278
        %v11471 = vmul.f32 %v10703, %v11279
        %v11472 = vmul.f32 %v10704, %v11280
        %v11473 = vmul.f32 %v10705, %v11281
        %v11474 = vmul.f32 %v10706, %v11282
        %v11475 = vmul.f32 %v10707, %v11283
        %v11476 = vmul.f32 %v10708, %v11284
        %v11477 = vmul.f32 %v10709, %v11285
        %v11478 = vmul.f32 %v10710, %v11286
        %v11479 = vmul.f32 %v10711, %v11287
        %v11480 = vmul.f32 %v10712, %v11288
        %v11481 = vmul.f32 %v10713, %v11289
        %v11482 = vmul.f32 %v10714, %v11290
        %v11483 = vmul.f32 %v10715, %v11291
        %v11484 = vmul.f32 %v10716, %v11292
        %v11485 = vmul.f32 %v10717, %v11293
        %v11486 = vmul.f32 %v10718, %v11294
        %v11487 = vmul.f32 %v10719, %v11295
        %v11488 = vmul.f32 %v10720, %v11296
        %v11489 = vmul.f32 %v10721, %v11297
        %v11490 = vmul.f32 %v10722, %v11298
        %v11491 = vmul.f32 %v10723, %v11299
        %v11492 = vmul.f32 %v10724, %v11300
        %v11493 = vmul.f32 %v10725, %v11301
        %v11494 = vmul.f32 %v10726, %v11302
        %v11495 = vmul.f32 %v10727, %v11303
        %v11496 = vmul.f32 %v10728, %v11304
        %v11497 = vmul.f32 %v10729, %v11305
        %v11498 = vmul.f32 %v10730, %v11306
        %v11499 = vmul.f32 %v10731, %v11307
        %v11500 = vmul.f32 %v10732, %v11308
        %v11501 = vmul.f32 %v10733, %v11309
        %v11502 = vmul.f32 %v10734, %v11310
        %v11503 = vmul.f32 %v10735, %v11311
        %v11504 = vmul.f32 %v10736, %v11312
        %v11505 = vmul.f32 %v10737, %v11313
        %v11506 = vmul.f32 %v10738, %v11314
        %v11507 = vmul.f32 %v10739, %v11315
        %v11508 = vmul.f32 %v10740, %v11316
        %v11509 = vmul.f32 %v10741, %v11317
        %v11510 = vmul.f32 %v10742, %v11318
        %v11511 = vmul.f32 %v10743, %v11319
        %v11512 = vmul.f32 %v10744, %v11320
        %v11513 = vmul.f32 %v10745, %v11321
        %v11514 = vmul.f32 %v10746, %v11322
        %v11515 = vmul.f32 %v10747, %v11323
        %v11516 = vmul.f32 %v10748, %v11324
        %v11517 = vmul.f32 %v10749, %v11325
        %v11518 = vmul.f32 %v10750, %v11326
        %v11519 = vmul.f32 %v10751, %v11327
        %v11520 = vmul.f32 %v10752, %v11328
        %v11521 = vmul.f32 %v10753, %v11329
        %v11522 = vmul.f32 %v10754, %v11330
        %v11523 = vmul.f32 %v10755, %v11331
        %v11524 = vmul.f32 %v10756, %v11332
        %v11525 = vmul.f32 %v10757, %v11333
        %v11526 = vmul.f32 %v10758, %v11334
        %v11527 = vmul.f32 %v10759, %v11335
        %v11528 = vmul.f32 %v10760, %v11336
        %v11529 = vmul.f32 %v10761, %v11337
        %v11530 = vmul.f32 %v10762, %v11338
        %v11531 = vmul.f32 %v10763, %v11339
        %v11532 = vmul.f32 %v10764, %v11340
        %v11533 = vmul.f32 %v10765, %v11341
        %v11534 = vmul.f32 %v10766, %v11342
        %v11535 = vmul.f32 %v10767, %v11343
        %v11536 = vmul.f32 %v10768, %v11344
        %v11537 = vmul.f32 %v10769, %v11345
        %v11538 = vmul.f32 %v10770, %v11346
        %v11539 = vmul.f32 %v10771, %v11347
        %v11540 = vmul.f32 %v10772, %v11348
        %v11541 = vmul.f32 %v10773, %v11349
        %v11542 = vmul.f32 %v10774, %v11350
        %v11543 = vmul.f32 %v10775, %v11351
        %v11544 = vmul.f32 %v10776, %v11352
        %v11545 = vmul.f32 %v10777, %v11353
        %v11546 = vmul.f32 %v10778, %v11354
        %v11547 = vmul.f32 %v10779, %v11355
        %v11548 = vmul.f32 %v10780, %v11356
        %v11549 = vmul.f32 %v10781, %v11357
        %v11550 = vmul.f32 %v10782, %v11358
        %v11551 = vmul.f32 %v10783, %v11359
        %v11552 = vmul.f32 %v10784, %v11360
        %v11553 = vmul.f32 %v10785, %v11361
        %v11554 = vmul.f32 %v10786, %v11362
        %v11555 = vmul.f32 %v10787, %v11363
        %v11556 = vmul.f32 %v10788, %v11364
        %v11557 = vmul.f32 %v10789, %v11365
        %v11558 = vmul.f32 %v10790, %v11366
        %v11559 = vmul.f32 %v10791, %v11367
        %v11560 = vmul.f32 %v10792, %v11368
        %v11561 = vmul.f32 %v10793, %v11369
        %v11562 = vmul.f32 %v10794, %v11370
        %v11563 = vmul.f32 %v10795, %v11371
        %v11564 = vmul.f32 %v10796, %v11372
        %v11565 = vmul.f32 %v10797, %v11373
        %v11566 = vmul.f32 %v10798, %v11374
        %v11567 = vmul.f32 %v10799, %v11375
        %v11568 = vmul.f32 %v10800, %v11376
        %v11569 = vmul.f32 %v10801, %v11377
        %v11570 = vmul.f32 %v10802, %v11378
        %v11571 = vmul.f32 %v10803, %v11379
        %v11572 = vmul.f32 %v10804, %v11380
        %v11573 = vmul.f32 %v10805, %v11381
        %v11574 = vmul.f32 %v10806, %v11382
        %v11575 = vmul.f32 %v10807, %v11383
        %v11576 = vmul.f32 %v10808, %v11384
        %v11577 = vmul.f32 %v10809, %v11385
        %v11578 = vmul.f32 %v10810, %v11386
        %v11579 = vmul.f32 %v10811, %v11387
        %v11580 = vmul.f32 %v10812, %v11388
        %v11581 = vmul.f32 %v10813, %v11389
        %v11582 = vmul.f32 %v10814, %v11390
        %v11583 = vmul.f32 %v10815, %v11391
        %v11584 = vmul.f32 %v10816, %v11392
        %v11585 = vmul.f32 %v10817, %v11393
        %v11586 = vmul.f32 %v10818, %v11394
        %v11587 = vmul.f32 %v10819, %v11395
        %v11588 = vmul.f32 %v10820, %v11396
        %v11589 = vmul.f32 %v10821, %v11397
        %v11590 = vmul.f32 %v10822, %v11398
        %v11591 = vmul.f32 %v10823, %v11399
        %v11592 = vmul.f32 %v10824, %v11400
        %v11593 = vmul.f32 %v10825, %v11401
        %v11594 = vmul.f32 %v10826, %v11402
        %v11595 = vmul.f32 %v10827, %v11403
        %v11596 = vmul.f32 %v10828, %v11404
        %v11597 = vmul.f32 %v10829, %v11405
        %v11598 = vmul.f32 %v10830, %v11406
        %v11599 = vmul.f32 %v10831, %v11407
        %v11600 = vmul.f32 %v10832, %v11408
        %v11601 = vmul.f32 %v10833, %v11409
        %v11602 = vmul.f32 %v10834, %v11410
        %v11603 = vmul.f32 %v10835, %v11411
        %v11604 = vmul.f32 %v10836, %v11412
        %v11605 = vmul.f32 %v10837, %v11413
        %v11606 = vmul.f32 %v10838, %v11414
        %v11607 = vmul.f32 %v10839, %v11415
        %v11608 = vmul.f32 %v10840, %v11416
        %v11609 = vmul.f32 %v10841, %v11417
        %11610 = vst [vmem:[%s363] sm:$0xff] %v11418
        %11611 = vst [vmem:[%s363 + $0x8] sm:$0xff] %v11419
        %11612 = vst [vmem:[%s363 + $0x10] sm:$0xff] %v11420
        %11613 = vst [vmem:[%s363 + $0x18] sm:$0xff] %v11421
        %11614 = vst [vmem:[%s363 + $0x20] sm:$0xff] %v11422
        %11615 = vst [vmem:[%s363 + $0x28] sm:$0xff] %v11423
        %11616 = vst [vmem:[%s363 + $0x30] sm:$0xff] %v11424
        %11617 = vst [vmem:[%s363 + $0x38] sm:$0xff] %v11425
        %11618 = vst [vmem:[%s363 + $0x40] sm:$0xff] %v11426
        %11619 = vst [vmem:[%s363 + $0x48] sm:$0xff] %v11427
        %11620 = vst [vmem:[%s363 + $0x50] sm:$0xff] %v11428
        %11621 = vst [vmem:[%s363 + $0x58] sm:$0xff] %v11429
        %11622 = vst [vmem:[%s363 + $0x60] sm:$0xff] %v11430
        %11623 = vst [vmem:[%s363 + $0x68] sm:$0xff] %v11431
        %11624 = vst [vmem:[%s363 + $0x70] sm:$0xff] %v11432
        %11625 = vst [vmem:[%s363 + $0x78] sm:$0xff] %v11433
        %11626 = vst [vmem:[%s363 + $0x80] sm:$0xff] %v11434
        %11627 = vst [vmem:[%s363 + $0x88] sm:$0xff] %v11435
        %11628 = vst [vmem:[%s363 + $0x90] sm:$0xff] %v11436
        %11629 = vst [vmem:[%s363 + $0x98] sm:$0xff] %v11437
        %11630 = vst [vmem:[%s363 + $0xa0] sm:$0xff] %v11438
        %11631 = vst [vmem:[%s363 + $0xa8] sm:$0xff] %v11439
        %11632 = vst [vmem:[%s363 + $0xb0] sm:$0xff] %v11440
        %11633 = vst [vmem:[%s363 + $0xb8] sm:$0xff] %v11441
        %11634 = vst [vmem:[%s363 + $0xc0] sm:$0xff] %v11442
        %11635 = vst [vmem:[%s363 + $0xc8] sm:$0xff] %v11443
        %11636 = vst [vmem:[%s363 + $0xd0] sm:$0xff] %v11444
        %11637 = vst [vmem:[%s363 + $0xd8] sm:$0xff] %v11445
        %11638 = vst [vmem:[%s363 + $0xe0] sm:$0xff] %v11446
        %11639 = vst [vmem:[%s363 + $0xe8] sm:$0xff] %v11447
        %11640 = vst [vmem:[%s363 + $0xf0] sm:$0xff] %v11448
        %11641 = vst [vmem:[%s363 + $0xf8] sm:$0xff] %v11449
        %11642 = vst [vmem:[%s363 + $0x100] sm:$0xff] %v11450
        %11643 = vst [vmem:[%s363 + $0x108] sm:$0xff] %v11451
        %11644 = vst [vmem:[%s363 + $0x110] sm:$0xff] %v11452
        %11645 = vst [vmem:[%s363 + $0x118] sm:$0xff] %v11453
        %11646 = vst [vmem:[%s363 + $0x120] sm:$0xff] %v11454
        %11647 = vst [vmem:[%s363 + $0x128] sm:$0xff] %v11455
        %11648 = vst [vmem:[%s363 + $0x130] sm:$0xff] %v11456
        %11649 = vst [vmem:[%s363 + $0x138] sm:$0xff] %v11457
        %11650 = vst [vmem:[%s363 + $0x140] sm:$0xff] %v11458
        %11651 = vst [vmem:[%s363 + $0x148] sm:$0xff] %v11459
        %11652 = vst [vmem:[%s363 + $0x150] sm:$0xff] %v11460
        %11653 = vst [vmem:[%s363 + $0x158] sm:$0xff] %v11461
        %11654 = vst [vmem:[%s363 + $0x160] sm:$0xff] %v11462
        %11655 = vst [vmem:[%s363 + $0x168] sm:$0xff] %v11463
        %11656 = vst [vmem:[%s363 + $0x170] sm:$0xff] %v11464
        %11657 = vst [vmem:[%s363 + $0x178] sm:$0xff] %v11465
        %11658 = vst [vmem:[%s363 + $0x180] sm:$0xff] %v11466
        %11659 = vst [vmem:[%s363 + $0x188] sm:$0xff] %v11467
        %11660 = vst [vmem:[%s363 + $0x190] sm:$0xff] %v11468
        %11661 = vst [vmem:[%s363 + $0x198] sm:$0xff] %v11469
        %11662 = vst [vmem:[%s363 + $0x1a0] sm:$0xff] %v11470
        %11663 = vst [vmem:[%s363 + $0x1a8] sm:$0xff] %v11471
        %11664 = vst [vmem:[%s363 + $0x1b0] sm:$0xff] %v11472
        %11665 = vst [vmem:[%s363 + $0x1b8] sm:$0xff] %v11473
        %11666 = vst [vmem:[%s363 + $0x1c0] sm:$0xff] %v11474
        %11667 = vst [vmem:[%s363 + $0x1c8] sm:$0xff] %v11475
        %11668 = vst [vmem:[%s363 + $0x1d0] sm:$0xff] %v11476
        %11669 = vst [vmem:[%s363 + $0x1d8] sm:$0xff] %v11477
        %11670 = vst [vmem:[%s363 + $0x1e0] sm:$0xff] %v11478
        %11671 = vst [vmem:[%s363 + $0x1e8] sm:$0xff] %v11479
        %11672 = vst [vmem:[%s363 + $0x1f0] sm:$0xff] %v11480
        %11673 = vst [vmem:[%s363 + $0x1f8] sm:$0xff] %v11481
        %11674 = vst [vmem:[%s363 + $0x200] sm:$0xff] %v11482
        %11675 = vst [vmem:[%s363 + $0x208] sm:$0xff] %v11483
        %11676 = vst [vmem:[%s363 + $0x210] sm:$0xff] %v11484
        %11677 = vst [vmem:[%s363 + $0x218] sm:$0xff] %v11485
        %11678 = vst [vmem:[%s363 + $0x220] sm:$0xff] %v11486
        %11679 = vst [vmem:[%s363 + $0x228] sm:$0xff] %v11487
        %11680 = vst [vmem:[%s363 + $0x230] sm:$0xff] %v11488
        %11681 = vst [vmem:[%s363 + $0x238] sm:$0xff] %v11489
        %11682 = vst [vmem:[%s363 + $0x240] sm:$0xff] %v11490
        %11683 = vst [vmem:[%s363 + $0x248] sm:$0xff] %v11491
        %11684 = vst [vmem:[%s363 + $0x250] sm:$0xff] %v11492
        %11685 = vst [vmem:[%s363 + $0x258] sm:$0xff] %v11493
        %11686 = vst [vmem:[%s363 + $0x260] sm:$0xff] %v11494
        %11687 = vst [vmem:[%s363 + $0x268] sm:$0xff] %v11495
        %11688 = vst [vmem:[%s363 + $0x270] sm:$0xff] %v11496
        %11689 = vst [vmem:[%s363 + $0x278] sm:$0xff] %v11497
        %11690 = vst [vmem:[%s363 + $0x280] sm:$0xff] %v11498
        %11691 = vst [vmem:[%s363 + $0x288] sm:$0xff] %v11499
        %11692 = vst [vmem:[%s363 + $0x290] sm:$0xff] %v11500
        %11693 = vst [vmem:[%s363 + $0x298] sm:$0xff] %v11501
        %11694 = vst [vmem:[%s363 + $0x2a0] sm:$0xff] %v11502
        %11695 = vst [vmem:[%s363 + $0x2a8] sm:$0xff] %v11503
        %11696 = vst [vmem:[%s363 + $0x2b0] sm:$0xff] %v11504
        %11697 = vst [vmem:[%s363 + $0x2b8] sm:$0xff] %v11505
        %11698 = vst [vmem:[%s363 + $0x2c0] sm:$0xff] %v11506
        %11699 = vst [vmem:[%s363 + $0x2c8] sm:$0xff] %v11507
        %11700 = vst [vmem:[%s363 + $0x2d0] sm:$0xff] %v11508
        %11701 = vst [vmem:[%s363 + $0x2d8] sm:$0xff] %v11509
        %11702 = vst [vmem:[%s363 + $0x2e0] sm:$0xff] %v11510
        %11703 = vst [vmem:[%s363 + $0x2e8] sm:$0xff] %v11511
        %11704 = vst [vmem:[%s363 + $0x2f0] sm:$0xff] %v11512
        %11705 = vst [vmem:[%s363 + $0x2f8] sm:$0xff] %v11513
        %11706 = vst [vmem:[%s363 + $0x300] sm:$0xff] %v11514
        %11707 = vst [vmem:[%s363 + $0x308] sm:$0xff] %v11515
        %11708 = vst [vmem:[%s363 + $0x310] sm:$0xff] %v11516
        %11709 = vst [vmem:[%s363 + $0x318] sm:$0xff] %v11517
        %11710 = vst [vmem:[%s363 + $0x320] sm:$0xff] %v11518
        %11711 = vst [vmem:[%s363 + $0x328] sm:$0xff] %v11519
        %11712 = vst [vmem:[%s363 + $0x330] sm:$0xff] %v11520
        %11713 = vst [vmem:[%s363 + $0x338] sm:$0xff] %v11521
        %11714 = vst [vmem:[%s363 + $0x340] sm:$0xff] %v11522
        %11715 = vst [vmem:[%s363 + $0x348] sm:$0xff] %v11523
        %11716 = vst [vmem:[%s363 + $0x350] sm:$0xff] %v11524
        %11717 = vst [vmem:[%s363 + $0x358] sm:$0xff] %v11525
        %11718 = vst [vmem:[%s363 + $0x360] sm:$0xff] %v11526
        %11719 = vst [vmem:[%s363 + $0x368] sm:$0xff] %v11527
        %11720 = vst [vmem:[%s363 + $0x370] sm:$0xff] %v11528
        %11721 = vst [vmem:[%s363 + $0x378] sm:$0xff] %v11529
        %11722 = vst [vmem:[%s363 + $0x380] sm:$0xff] %v11530
        %11723 = vst [vmem:[%s363 + $0x388] sm:$0xff] %v11531
        %11724 = vst [vmem:[%s363 + $0x390] sm:$0xff] %v11532
        %11725 = vst [vmem:[%s363 + $0x398] sm:$0xff] %v11533
        %11726 = vst [vmem:[%s363 + $0x3a0] sm:$0xff] %v11534
        %11727 = vst [vmem:[%s363 + $0x3a8] sm:$0xff] %v11535
        %11728 = vst [vmem:[%s363 + $0x3b0] sm:$0xff] %v11536
        %11729 = vst [vmem:[%s363 + $0x3b8] sm:$0xff] %v11537
        %11730 = vst [vmem:[%s363 + $0x3c0] sm:$0xff] %v11538
        %11731 = vst [vmem:[%s363 + $0x3c8] sm:$0xff] %v11539
        %11732 = vst [vmem:[%s363 + $0x3d0] sm:$0xff] %v11540
        %11733 = vst [vmem:[%s363 + $0x3d8] sm:$0xff] %v11541
        %11734 = vst [vmem:[%s363 + $0x3e0] sm:$0xff] %v11542
        %11735 = vst [vmem:[%s363 + $0x3e8] sm:$0xff] %v11543
        %11736 = vst [vmem:[%s363 + $0x3f0] sm:$0xff] %v11544
        %11737 = vst [vmem:[%s363 + $0x3f8] sm:$0xff] %v11545
        %11738 = vst [vmem:[%s363 + $0x400] sm:$0xff] %v11546
        %11739 = vst [vmem:[%s363 + $0x408] sm:$0xff] %v11547
        %11740 = vst [vmem:[%s363 + $0x410] sm:$0xff] %v11548
        %11741 = vst [vmem:[%s363 + $0x418] sm:$0xff] %v11549
        %11742 = vst [vmem:[%s363 + $0x420] sm:$0xff] %v11550
        %11743 = vst [vmem:[%s363 + $0x428] sm:$0xff] %v11551
        %11744 = vst [vmem:[%s363 + $0x430] sm:$0xff] %v11552
        %11745 = vst [vmem:[%s363 + $0x438] sm:$0xff] %v11553
        %11746 = vst [vmem:[%s363 + $0x440] sm:$0xff] %v11554
        %11747 = vst [vmem:[%s363 + $0x448] sm:$0xff] %v11555
        %11748 = vst [vmem:[%s363 + $0x450] sm:$0xff] %v11556
        %11749 = vst [vmem:[%s363 + $0x458] sm:$0xff] %v11557
        %11750 = vst [vmem:[%s363 + $0x460] sm:$0xff] %v11558
        %11751 = vst [vmem:[%s363 + $0x468] sm:$0xff] %v11559
        %11752 = vst [vmem:[%s363 + $0x470] sm:$0xff] %v11560
        %11753 = vst [vmem:[%s363 + $0x478] sm:$0xff] %v11561
        %11754 = vst [vmem:[%s363 + $0x480] sm:$0xff] %v11562
        %11755 = vst [vmem:[%s363 + $0x488] sm:$0xff] %v11563
        %11756 = vst [vmem:[%s363 + $0x490] sm:$0xff] %v11564
        %11757 = vst [vmem:[%s363 + $0x498] sm:$0xff] %v11565
        %11758 = vst [vmem:[%s363 + $0x4a0] sm:$0xff] %v11566
        %11759 = vst [vmem:[%s363 + $0x4a8] sm:$0xff] %v11567
        %11760 = vst [vmem:[%s363 + $0x4b0] sm:$0xff] %v11568
        %11761 = vst [vmem:[%s363 + $0x4b8] sm:$0xff] %v11569
        %11762 = vst [vmem:[%s363 + $0x4c0] sm:$0xff] %v11570
        %11763 = vst [vmem:[%s363 + $0x4c8] sm:$0xff] %v11571
        %11764 = vst [vmem:[%s363 + $0x4d0] sm:$0xff] %v11572
        %11765 = vst [vmem:[%s363 + $0x4d8] sm:$0xff] %v11573
        %11766 = vst [vmem:[%s363 + $0x4e0] sm:$0xff] %v11574
        %11767 = vst [vmem:[%s363 + $0x4e8] sm:$0xff] %v11575
        %11768 = vst [vmem:[%s363 + $0x4f0] sm:$0xff] %v11576
        %11769 = vst [vmem:[%s363 + $0x4f8] sm:$0xff] %v11577
        %11770 = vst [vmem:[%s363 + $0x500] sm:$0xff] %v11578
        %11771 = vst [vmem:[%s363 + $0x508] sm:$0xff] %v11579
        %11772 = vst [vmem:[%s363 + $0x510] sm:$0xff] %v11580
        %11773 = vst [vmem:[%s363 + $0x518] sm:$0xff] %v11581
        %11774 = vst [vmem:[%s363 + $0x520] sm:$0xff] %v11582
        %11775 = vst [vmem:[%s363 + $0x528] sm:$0xff] %v11583
        %11776 = vst [vmem:[%s363 + $0x530] sm:$0xff] %v11584
        %11777 = vst [vmem:[%s363 + $0x538] sm:$0xff] %v11585
        %11778 = vst [vmem:[%s363 + $0x540] sm:$0xff] %v11586
        %11779 = vst [vmem:[%s363 + $0x548] sm:$0xff] %v11587
        %11780 = vst [vmem:[%s363 + $0x550] sm:$0xff] %v11588
        %11781 = vst [vmem:[%s363 + $0x558] sm:$0xff] %v11589
        %11782 = vst [vmem:[%s363 + $0x560] sm:$0xff] %v11590
        %11783 = vst [vmem:[%s363 + $0x568] sm:$0xff] %v11591
        %11784 = vst [vmem:[%s363 + $0x570] sm:$0xff] %v11592
        %11785 = vst [vmem:[%s363 + $0x578] sm:$0xff] %v11593
        %11786 = vst [vmem:[%s363 + $0x580] sm:$0xff] %v11594
        %11787 = vst [vmem:[%s363 + $0x588] sm:$0xff] %v11595
        %11788 = vst [vmem:[%s363 + $0x590] sm:$0xff] %v11596
        %11789 = vst [vmem:[%s363 + $0x598] sm:$0xff] %v11597
        %11790 = vst [vmem:[%s363 + $0x5a0] sm:$0xff] %v11598
        %11791 = vst [vmem:[%s363 + $0x5a8] sm:$0xff] %v11599
        %11792 = vst [vmem:[%s363 + $0x5b0] sm:$0xff] %v11600
        %11793 = vst [vmem:[%s363 + $0x5b8] sm:$0xff] %v11601
        %11794 = vst [vmem:[%s363 + $0x5c0] sm:$0xff] %v11602
        %11795 = vst [vmem:[%s363 + $0x5c8] sm:$0xff] %v11603
        %11796 = vst [vmem:[%s363 + $0x5d0] sm:$0xff] %v11604
        %11797 = vst [vmem:[%s363 + $0x5d8] sm:$0xff] %v11605
        %11798 = vst [vmem:[%s363 + $0x5e0] sm:$0xff] %v11606
        %11799 = vst [vmem:[%s363 + $0x5e8] sm:$0xff] %v11607
        %11800 = vst [vmem:[%s363 + $0x5f0] sm:$0xff] %v11608
        %11801 = vst [vmem:[%s363 + $0x5f8] sm:$0xff] %v11609
        %s11802 = sand.u32 %s172, 1
        %s11803 = scalar_lea.sflag [#allocation4], %s11802
        %s11804 = sand.u32 %s172, 1
        %s11805 = smul.addr %s11804, 1536
        %s11806 = scalar_lea.vmem [#allocation13], %s11805
        // Predicated region
        $region69: #{tpu_custom_call.1} parent=43 // pred_check
          %p11807 = pneg %p182
        $region70: #{tpu_custom_call.1} parent=43 // pred_check_branch
          %11809 = sbr.rel (%p11807) target = $region72
        $region71: #{tpu_custom_call.1} parent=43 // pred_region
          %s11810 = smul.u32 8, %s28
          %s11812 = ssub.s32 24576, 24576
          %11813 = vsyncadd %s11803, %s11812
          %s11814 = smul.addr %s11810, 24
          %s11815 = smul.addr %s11814, 128
          %s11816 = scalar_lea.hbm %s6, %s11815
          %s11817 = sshll.u32 %s11806, 4
          %s11818 = int_to_ptr.vmem [resolvable:$true] %s11817
          %11823 = dma.vmem_to_hbm [thread:$0]  %s11818, 24576, %s11816, %s11803, 3072, 3072, 192
        $region72: #{tpu_custom_call.1} parent=43 // pred_fallthru
          _
      $region44: #{tpu_custom_call.1} parent=5 // pred_fallthru
        _
      %p11824 = scmp.le.s32.totalorder 2, %s23
      // Predicated region
      $region73: #{tpu_custom_call.1} parent=5 // pred_check
        %p11825 = pneg %p11824
      $region74: #{tpu_custom_call.1} parent=5 // pred_check_branch
        %11827 = sbr.rel (%p11825) target = $region76
      $region75: #{tpu_custom_call.1} parent=5 // pred_region
        %s11828 = ssub.s32 %s23, 2
        // Predicated region
        $region77: #{tpu_custom_call.1} parent=75 // pred_check
          %p11829 = pneg %p188
        $region78: #{tpu_custom_call.1} parent=75 // pred_check_branch
          %11831 = sbr.rel (%p11829) target = $region80
        $region79: #{tpu_custom_call.1} parent=75 // pred_region
          %s11832 = sand.u32 %s173, 1
          %s11833 = scalar_lea.sflag [#allocation4], %s11832
          %s11834 = sand.u32 %s173, 1
          %s11835 = smul.addr %s11834, 1536
          %s11836 = scalar_lea.vmem [#allocation13], %s11835
          %11837 = dma.done %s11833, 24576
        $region80: #{tpu_custom_call.1} parent=75 // pred_fallthru
          _
      $region76: #{tpu_custom_call.1} parent=5 // pred_fallthru
        _
    $region6: #{tpu_custom_call.1} parent=1 // loop_footer
      %s27 = sadd.s32 1, %s23
    $region7: #{tpu_custom_call.1} parent=1 // loop_footer_branch
      %22 = sbr.rel target = $region3
    $region8: #{tpu_custom_call.1} parent=1 // loop_exit
      _
    %11838 = vsyncpa [#allocation3], 1
    %s11839 = scalar_lea.sflag [#allocation3], 1
    %11840 = vsyncpa %s11839, 1
    %11841 = vsyncpa [#allocation6], 1
    %s11842 = scalar_lea.sflag [#allocation6], 1
    %11843 = vsyncpa %s11842, 1
    %11844 = vsyncpa [#allocation9], 1
    %11845 = vsyncpa [#allocation12], 1
    %11846 = vsyncpa [#allocation4], 1
    %s11847 = scalar_lea.sflag [#allocation4], 1
    %11848 = vsyncpa %s11847, 1

</llo_original>
